<compile_context>
chip_gen: v7x
topology: tpu7x:2x2x1
jax: 0.10.0
libtpu: 0.0.40
codegen_flags: <defaults>
</compile_context>

<pallas_src>
import functools
import math

import jax
import jax.numpy as jnp
import numpy as np
from jax import lax
from jax.experimental import pallas as pl
from jax.experimental.pallas import tpu as pltpu

_BN_EPS = 1e-5
_INV_SQRT2 = 1.0 / math.sqrt(2.0)
_TM_MAX = 1024                     # row-tile upper bound (bigger tiles item)
_MIN_STEPS = 8                     # v7x: 2 TCs + pipelining want >= ~8 steps
_VMEM_LIMIT = 32 * 1024 * 1024     # above v5e's 16 MiB scoped default


def _choose_tm(m, tm_max=_TM_MAX, min_steps=_MIN_STEPS):
    """Largest multiple-of-8 divisor of m that is <= tm_max, preferring tiles
    that still give >= min_steps grid steps while never dropping below 256
    rows.  Falls back to m itself (single full-extent block) when no such
    divisor exists, so no row padding is ever materialized."""
    best = None
    t = min(tm_max, m)
    t -= t % 8
    while t >= 8:
        if m % t == 0:
            if best is None:
                best = t
            if m // t >= min_steps or t <= 256:
                return t
        t -= 8
    return best if best is not None else m


def _gelu_exact(y):
    # torch.nn.functional.gelu default (erf form), kept exact for parity.
    # TODO(synk): tanh-form GELU would move the transcendental to the EUP slot
    # if the erf VALU polynomial ever becomes the binding unit.
    return 0.5 * y * (1.0 + lax.erf(y * jnp.float32(_INV_SQRT2)))


# ---------------- Kernel: 1x1-conv matmul + channel stats ------------------ #

def _mm_stats_kernel(x_ref, w_ref, o_ref, s_ref, ss_ref):
    lhs = x_ref[...].astype(jnp.bfloat16)                     # bf16 MXU operand
    acc = jnp.dot(lhs, w_ref[...], preferred_element_type=jnp.float32)
    o_ref[...] = acc
    s_ref[...] = jnp.sum(acc, axis=0)[None, None, :]
    ss_ref[...] = jnp.sum(acc * acc, axis=0)[None, None, :]


def _mm_stats_fused_bn_gelu_kernel(x_ref, sc_ref, bi_ref, w_ref,
                                   o_ref, s_ref, ss_ref):
    # Previous layer's BN + GELU applied in-registers before the dot.
    lhs = _gelu_exact(x_ref[...] * sc_ref[...] + bi_ref[...]).astype(jnp.bfloat16)
    acc = jnp.dot(lhs, w_ref[...], preferred_element_type=jnp.float32)
    o_ref[...] = acc
    s_ref[...] = jnp.sum(acc, axis=0)[None, None, :]
    ss_ref[...] = jnp.sum(acc * acc, axis=0)[None, None, :]


def _mm_pallas_call(kernel, args, in_specs, m, k, c, tm, flops, transcend, nbytes):
    nt = m // tm
    cost = pl.CostEstimate(flops=flops, transcendentals=transcend,
                           bytes_accessed=nbytes)
    return pl.pallas_call(
        kernel,
        out_shape=(jax.ShapeDtypeStruct((m, c), jnp.float32),
                   jax.ShapeDtypeStruct((nt, 1, c), jnp.float32),
                   jax.ShapeDtypeStruct((nt, 1, c), jnp.float32)),
        grid=(nt,),
        in_specs=in_specs,
        out_specs=(pl.BlockSpec((tm, c), lambda i: (i, 0)),
                   pl.BlockSpec((1, 1, c), lambda i: (i, 0, 0)),
                   pl.BlockSpec((1, 1, c), lambda i: (i, 0, 0))),
        compiler_params=pltpu.CompilerParams(
            dimension_semantics=("parallel",),
            vmem_limit_bytes=_VMEM_LIMIT),
        cost_estimate=cost,
    )(*args)


def matmul_stats(lhs, w_bf16, tm):
    m, k = lhs.shape
    c = w_bf16.shape[1]
    in_specs = [pl.BlockSpec((tm, k), lambda i: (i, 0)),
                pl.BlockSpec((k, c), lambda i: (0, 0))]        # resident weight
    nbytes = 4 * m * k + 2 * k * c + 4 * m * c + 8 * (m // tm) * c
    return _mm_pallas_call(_mm_stats_kernel, (lhs, w_bf16), in_specs,
                           m, k, c, tm, 2 * m * k * c, 0, nbytes)


def matmul_stats_fused_bn_gelu(lhs_raw, scale, bias, w_bf16, tm):
    m, k = lhs_raw.shape
    c = w_bf16.shape[1]
    in_specs = [pl.BlockSpec((tm, k), lambda i: (i, 0)),
                pl.BlockSpec((1, k), lambda i: (0, 0)),
                pl.BlockSpec((1, k), lambda i: (0, 0)),
                pl.BlockSpec((k, c), lambda i: (0, 0))]
    nbytes = 4 * m * k + 8 * k + 2 * k * c + 4 * m * c + 8 * (m // tm) * c
    return _mm_pallas_call(_mm_stats_fused_bn_gelu_kernel,
                           (lhs_raw, scale, bias, w_bf16), in_specs,
                           m, k, c, tm, 2 * m * k * c + 4 * m * k, m * k, nbytes)


# -------------- Kernel: 3x3 conv via 9 shifted in-kernel matmuls ----------- #

def _conv3x3_stats_kernel(*refs, n_src, taps, ho, wo):
    srcs = refs[:n_src]
    w_ref = refs[n_src]
    o_ref, s_ref, ss_ref = refs[n_src + 1:]
    src_vals = [r[0] for r in srcs]                 # each (hs, ws, cin), f32
    acc = None
    for t, (si, dh, dw) in enumerate(taps):         # unrolled at trace time
        win = src_vals[si][dh:dh + ho, dw:dw + wo, :]
        lhs = win.reshape(ho * wo, win.shape[-1]).astype(jnp.bfloat16)
        d = jnp.dot(lhs, w_ref[t], preferred_element_type=jnp.float32)
        acc = d if acc is None else acc + d
    o_ref[...] = acc
    s_ref[...] = jnp.sum(acc, axis=0)[None, None, :]
    ss_ref[...] = jnp.sum(acc * acc, axis=0)[None, None, :]


def conv3x3_stats(srcs, taps, w_taps_bf16, ho, wo):
    n = srcs[0].shape[0]
    cin = srcs[0].shape[-1]
    cout = w_taps_bf16.shape[-1]
    m = n * ho * wo
    kern = functools.partial(_conv3x3_stats_kernel, n_src=len(srcs),
                             taps=tuple(taps), ho=ho, wo=wo)
    in_specs = [pl.BlockSpec((1,) + s.shape[1:], lambda b: (b, 0, 0, 0))
                for s in srcs]
    in_specs.append(pl.BlockSpec(w_taps_bf16.shape, lambda b: (0, 0, 0)))
    nbytes = (4 * sum(int(np.prod(s.shape)) for s in srcs)
              + 2 * int(w_taps_bf16.size) + 4 * m * cout + 8 * n * cout)
    cost = pl.CostEstimate(flops=2 * m * 9 * cin * cout, transcendentals=0,
                           bytes_accessed=nbytes)
    return pl.pallas_call(
        kern,
        out_shape=(jax.ShapeDtypeStruct((m, cout), jnp.float32),
                   jax.ShapeDtypeStruct((n, 1, cout), jnp.float32),
                   jax.ShapeDtypeStruct((n, 1, cout), jnp.float32)),
        grid=(n,),
        in_specs=in_specs,
        out_specs=(pl.BlockSpec((ho * wo, cout), lambda b: (b, 0)),
                   pl.BlockSpec((1, 1, cout), lambda b: (b, 0, 0)),
                   pl.BlockSpec((1, 1, cout), lambda b: (b, 0, 0))),
        compiler_params=pltpu.CompilerParams(
            dimension_semantics=("parallel",),
            vmem_limit_bytes=_VMEM_LIMIT),
        cost_estimate=cost,
    )(*srcs, w_taps_bf16)


# ----------------------- Kernels: BN apply (+res) (+GELU) ------------------ #

def _bn_gelu_kernel(x_ref, sc_ref, bi_ref, o_ref):
    o_ref[...] = _gelu_exact(x_ref[...] * sc_ref[...] + bi_ref[...])


def _final_proj_kernel(x_ref, sc_ref, bi_ref, r_ref, rsc_ref, rbi_ref, o_ref):
    y = x_ref[...] * sc_ref[...] + bi_ref[...]
    y = y + (r_ref[...] * rsc_ref[...] + rbi_ref[...])
    o_ref[...] = _gelu_exact(y)


def _final_identity_kernel(x_ref, sc_ref, bi_ref, r_ref, o_ref):
    o_ref[...] = _gelu_exact(x_ref[...] * sc_ref[...] + bi_ref[...] + r_ref[...])


def _apply_call(kernel, args, in_specs, m, c, tm, nbytes):
    cost = pl.CostEstimate(flops=6 * m * c, transcendentals=m * c,
                           bytes_accessed=nbytes)
    return pl.pallas_call(
        kernel,
        out_shape=jax.ShapeDtypeStruct((m, c), jnp.float32),
        grid=(m // tm,),
        in_specs=in_specs,
        out_specs=pl.BlockSpec((tm, c), lambda i: (i, 0)),
        compiler_params=pltpu.CompilerParams(
            dimension_semantics=("parallel",),
            vmem_limit_bytes=_VMEM_LIMIT),
        cost_estimate=cost,
    )(*args)


def bn_gelu_apply(conv, scale, bias, tm):
    m, c = conv.shape
    row = pl.BlockSpec((tm, c), lambda i: (i, 0))
    vec = pl.BlockSpec((1, c), lambda i: (0, 0))
    return _apply_call(_bn_gelu_kernel, (conv, scale, bias), [row, vec, vec],
                       m, c, tm, 8 * m * c + 8 * c)


def final_apply(conv, scale, bias, residual, tm, r_scale=None, r_bias=None):
    m, c = conv.shape
    row = pl.BlockSpec((tm, c), lambda i: (i, 0))
    vec = pl.BlockSpec((1, c), lambda i: (0, 0))
    if r_scale is None:   # identity residual: no per-channel scale/bias ops
        return _apply_call(_final_identity_kernel, (conv, scale, bias, residual),
                           [row, vec, vec, row], m, c, tm, 12 * m * c + 8 * c)
    return _apply_call(_final_proj_kernel,
                       (conv, scale, bias, residual, r_scale, r_bias),
                       [row, vec, vec, row, vec, vec], m, c, tm,
                       12 * m * c + 16 * c)


# ------------------------------- JAX glue ----------------------------------- #

def _fold_bn(gamma, beta, s, ss, count):
    """Fold training-mode BN (biased variance) into per-channel scale/bias.
    # TODO(synk): Welford/centered accumulation if E[x^2]-E[x]^2 cancellation
    # ever matters at real network scales."""
    total = jnp.sum(s, axis=0)        # (1, C)
    total_sq = jnp.sum(ss, axis=0)    # (1, C)
    mean = total / count
    var = jnp.maximum(total_sq / count - mean * mean, 0.0)
    scale = gamma.reshape(1, -1).astype(jnp.float32) * lax.rsqrt(var + _BN_EPS)
    bias = beta.reshape(1, -1).astype(jnp.float32) - mean * scale
    return scale, bias


def _w1x1(w):
    """(Cout, Cin, 1, 1) -> (Cin, Cout) bf16 MXU operand."""
    cout, cin = w.shape[:2]
    return jnp.transpose(w.reshape(cout, cin), (1, 0)).astype(jnp.bfloat16)


def _w3x3(w):
    """(Cout, Cin, 3, 3) -> (9, Cin, Cout) bf16, tap index t = kh*3 + kw."""
    cout, cin = w.shape[:2]
    return jnp.transpose(w, (2, 3, 1, 0)).reshape(9, cin, cout).astype(jnp.bfloat16)


def bottleneck_gelu(x_nchw, params, stride):
    """Forward pass of Bottleneck_GELU (training-mode BN). NCHW in / NCHW out."""
    expansion = 4
    n, in_planes, h, w = x_nchw.shape
    planes = params["w1"].shape[0]
    out_planes = expansion * planes
    assert stride in (1, 2)
    if stride == 2:
        assert h % 2 == 0 and w % 2 == 0

    x = jnp.transpose(x_nchw, (0, 2, 3, 1)).astype(jnp.float32)   # NHWC
    m1 = n * h * w
    tm1 = _choose_tm(m1)

    # conv1 (1x1) -> raw conv + exact batch stats (one fused kernel).
    c1, s1, ss1 = matmul_stats(x.reshape(m1, in_planes), _w1x1(params["w1"]), tm1)
    sc1, bi1 = _fold_bn(params["g1"], params["b1"], s1, ss1, float(m1))

    # bn1 + GELU apply.  Kept as its own pass: conv2 needs spatial zero padding
    # and GELU(bn(0)) != 0, so it cannot be folded into conv2's LHS epilogue.
    out1 = bn_gelu_apply(c1, sc1, bi1, tm1).reshape(n, h, w, planes)

    # conv2 (3x3, stride s, pad 1): 9 shifted in-kernel matmuls, no im2col.
    ho = (h + 2 - 3) // stride + 1
    wo = (w + 2 - 3) // stride + 1
    m2 = n * ho * wo
    xp = jnp.pad(out1, ((0, 0), (1, 1), (1, 1), (0, 0)))
    if stride == 1:
        srcs = [xp]
        taps = [(0, kh, kw) for kh in range(3) for kw in range(3)]
    else:
        # Space-to-depth parity split: every tap becomes a unit-stride window.
        srcs = [xp[:, a::2, b::2, :] for a in range(2) for b in range(2)]
        taps = [(2 * (kh % 2) + (kw % 2), kh // 2, kw // 2)
                for kh in range(3) for kw in range(3)]
    c2, s2, ss2 = conv3x3_stats(srcs, taps, _w3x3(params["w2"]), ho, wo)
    sc2, bi2 = _fold_bn(params["g2"], params["b2"], s2, ss2, float(m2))

    # conv3 (1x1) with BN2 + GELU fused into its LHS epilogue.
    tm3 = _choose_tm(m2)
    c3, s3, ss3 = matmul_stats_fused_bn_gelu(c2, sc2, bi2,
                                             _w1x1(params["w3"]), tm3)
    sc3, bi3 = _fold_bn(params["g3"], params["b3"], s3, ss3, float(m2))

    if stride != 1 or in_planes != out_planes:
        # Projection shortcut: 1x1 strided conv; its BN apply is fused into the
        # final kernel (shortcut conv output fed pre-BN with its own scale/bias).
        xs = x[:, ::stride, ::stride, :].reshape(m2, in_planes)
        cs, ssh, sssh = matmul_stats(xs, _w1x1(params["ws"]), tm3)
        scs, bis = _fold_bn(params["gs"], params["bs"], ssh, sssh, float(m2))
        out = final_apply(c3, sc3, bi3, cs, tm3, r_scale=scs, r_bias=bis)
    else:
        out = final_apply(c3, sc3, bi3, x.reshape(m2, out_planes), tm3)

    return jnp.transpose(out.reshape(n, ho, wo, out_planes), (0, 3, 1, 2))


# --------------------------- pure-JAX reference ----------------------------- #

def _ref_conv(x, w, stride, pad):
    return lax.conv_general_dilated(
        x, w, window_strides=(stride, stride),
        padding=((pad, pad), (pad, pad)),
        dimension_numbers=("NCHW", "OIHW", "NCHW"))


def _ref_bn(x, g, b):
    mean = jnp.mean(x, axis=(0, 2, 3), keepdims=True)
    var = jnp.mean(jnp.square(x - mean), axis=(0, 2, 3), keepdims=True)
    return (x - mean) * lax.rsqrt(var + _BN_EPS) * g.reshape(1, -1, 1, 1) \
        + b.reshape(1, -1, 1, 1)


def _ref_block(x, params, stride):
    expansion = 4
    in_planes = x.shape[1]
    planes = params["w1"].shape[0]
    out = jax.nn.gelu(_ref_bn(_ref_conv(x, params["w1"], 1, 0),
                              params["g1"], params["b1"]), approximate=False)
    out = jax.nn.gelu(_ref_bn(_ref_conv(out, params["w2"], stride, 1),
                              params["g2"], params["b2"]), approximate=False)
    out = _ref_bn(_ref_conv(out, params["w3"], 1, 0),
                  params["g3"], params["b3"])
    if stride != 1 or in_planes != expansion * planes:
        sc = _ref_bn(_ref_conv(x, params["ws"], stride, 0),
                     params["gs"], params["bs"])
    else:
        sc = x
    return jax.nn.gelu(out + sc, approximate=False)


# ---------------------------------- main ------------------------------------ #

if __name__ == "__main__":
    key = jax.random.PRNGKey(0)

    def make_params(k, in_planes, planes, with_shortcut):
        expansion = 4
        ks = jax.random.split(k, 12)
        p = {
            "w1": jax.random.normal(ks[0], (planes, in_planes, 1, 1), jnp.float32) * 0.2,
            "g1": 1.0 + 0.1 * jax.random.normal(ks[1], (planes,), jnp.float32),
            "b1": 0.1 * jax.random.normal(ks[2], (planes,), jnp.float32),
            "w2": jax.random.normal(ks[3], (planes, planes, 3, 3), jnp.float32) * 0.1,
            "g2": 1.0 + 0.1 * jax.random.normal(ks[4], (planes,), jnp.float32),
            "b2": 0.1 * jax.random.normal(ks[5], (planes,), jnp.float32),
            "w3": jax.random.normal(ks[6], (expansion * planes, planes, 1, 1), jnp.float32) * 0.1,
            "g3": 1.0 + 0.1 * jax.random.normal(ks[7], (expansion * planes,), jnp.float32),
            "b3": 0.1 * jax.random.normal(ks[8], (expansion * planes,), jnp.float32),
        }
        if with_shortcut:
            p["ws"] = jax.random.normal(ks[9], (expansion * planes, in_planes, 1, 1), jnp.float32) * 0.2
            p["gs"] = 1.0 + 0.1 * jax.random.normal(ks[10], (expansion * planes,), jnp.float32)
            p["bs"] = 0.1 * jax.random.normal(ks[11], (expansion * planes,), jnp.float32)
        return p

    fwd = jax.jit(bottleneck_gelu, static_argnums=2)
    kA, kB, kxA, kxB = jax.random.split(key, 4)

    # Kernels use bf16 MXU operands (f32 accumulation/stats) while the
    # reference is full f32 -> tolerance relaxed per the performance review.
    TOL = dict(rtol=5e-2, atol=5e-2)

    # Config A: projection shortcut (stride 2, in_planes != expansion*planes),
    # CIFAR-sized spatial dims -> conv1 grid has 8 parallel steps.
    paramsA = make_params(kA, 4, 8, True)
    xA = jax.random.normal(kxA, (2, 4, 32, 32), jnp.float32)
    outA = jax.block_until_ready(fwd(xA, paramsA, 2))
    refA = jax.block_until_ready(_ref_block(xA, paramsA, 2))
    np.testing.assert_allclose(np.asarray(outA), np.asarray(refA), **TOL)

    # Config B: identity shortcut (stride 1, in_planes == expansion*planes).
    paramsB = make_params(kB, 32, 8, False)
    xB = jax.random.normal(kxB, (2, 32, 16, 16), jnp.float32)
    outB = jax.block_until_ready(fwd(xB, paramsB, 1))
    refB = jax.block_until_ready(_ref_block(xB, paramsB, 1))
    np.testing.assert_allclose(np.asarray(outB), np.asarray(refB), **TOL)

    print("KERNEL_OK")
</pallas_src>

<mosaic_0001>
module attributes {stable_mosaic.version = 11 : i64} {
  func.func @_mm_stats_kernel(%arg0: i32, %arg1: memref<256x4xf32, #tpu.memory_space<vmem>>, %arg2: memref<4x8xbf16, #tpu.memory_space<vmem>>, %arg3: memref<256x8xf32, #tpu.memory_space<vmem>>, %arg4: memref<1x1x8xf32, #tpu.memory_space<vmem>>, %arg5: memref<1x1x8xf32, #tpu.memory_space<vmem>>) attributes {dimension_semantics = [#tpu.dimension_semantics<parallel>], iteration_bounds = array<i64: 8>, scalar_prefetch = 0 : i64, scratch_operands = 0 : i64, tpu.core_type = #tpu.core_type<tc>, window_params = [{transform_indices = @transform_0, window_bounds = array<i64: 256, 4>}, {pipeline_mode = #tpu.pipeline_mode<synchronous>, transform_indices = @transform_1, window_bounds = array<i64: 4, 8>}, {transform_indices = @transform_2, window_bounds = array<i64: 256, 8>}, {transform_indices = @transform_3, window_bounds = array<i64: 1, 1, 8>}, {transform_indices = @transform_4, window_bounds = array<i64: 1, 1, 8>}]} {
    %c0 = arith.constant 0 : index
    %c0_0 = arith.constant 0 : index
    %0 = vector.load %arg1[%c0, %c0_0] : memref<256x4xf32, #tpu.memory_space<vmem>>, vector<256x4xf32>
    %1 = arith.truncf %0 : vector<256x4xf32> to vector<256x4xbf16>
    %c0_1 = arith.constant 0 : index
    %c0_2 = arith.constant 0 : index
    %2 = vector.load %arg2[%c0_1, %c0_2] : memref<4x8xbf16, #tpu.memory_space<vmem>>, vector<4x8xbf16>
    %cst = arith.constant dense<0.000000e+00> : vector<256x8xf32>
    %3 = tpu.matmul %1, %2, %cst {dimension_numbers = #tpu.dot_dimension_numbers<[1], [0], [0], [1], [0, 0, 1, 1], [], []>} : vector<256x4xbf16>, vector<4x8xbf16>, vector<256x8xf32> -> vector<256x8xf32>
    %c0_3 = arith.constant 0 : index
    %c0_4 = arith.constant 0 : index
    %4 = vector.load %arg3[%c0_3, %c0_4] : memref<256x8xf32, #tpu.memory_space<vmem>>, vector<256x8xf32>
    tpu.vector_store %arg3[%c0_3, %c0_4], %3 {strides = array<i32>} : memref<256x8xf32, #tpu.memory_space<vmem>>, vector<256x8xf32>,
    %cst_5 = arith.constant dense<0.000000e+00> : vector<8xf32>
    %5 = vector.multi_reduction <add>, %3, %cst_5 [0] : vector<256x8xf32> to vector<8xf32>
    %6 = vector.shape_cast %5 : vector<8xf32> to vector<1x1x8xf32>
    %c0_6 = arith.constant 0 : index
    %c0_7 = arith.constant 0 : index
    %c0_8 = arith.constant 0 : index
    %7 = vector.load %arg4[%c0_6, %c0_7, %c0_8] : memref<1x1x8xf32, #tpu.memory_space<vmem>>, vector<1x1x8xf32>
    tpu.vector_store %arg4[%c0_6, %c0_7, %c0_8], %6 {strides = array<i32>} : memref<1x1x8xf32, #tpu.memory_space<vmem>>, vector<1x1x8xf32>,
    %8 = arith.mulf %3, %3 : vector<256x8xf32>
    %cst_9 = arith.constant dense<0.000000e+00> : vector<8xf32>
    %9 = vector.multi_reduction <add>, %8, %cst_9 [0] : vector<256x8xf32> to vector<8xf32>
    %10 = vector.shape_cast %9 : vector<8xf32> to vector<1x1x8xf32>
    %c0_10 = arith.constant 0 : index
    %c0_11 = arith.constant 0 : index
    %c0_12 = arith.constant 0 : index
    %11 = vector.load %arg5[%c0_10, %c0_11, %c0_12] : memref<1x1x8xf32, #tpu.memory_space<vmem>>, vector<1x1x8xf32>
    tpu.vector_store %arg5[%c0_10, %c0_11, %c0_12], %10 {strides = array<i32>} : memref<1x1x8xf32, #tpu.memory_space<vmem>>, vector<1x1x8xf32>,
    return
  }
  func.func @transform_0(%arg0: i32) -> (i32, i32) {
    %c0_i32 = arith.constant 0 : i32
    %c0_i32_0 = arith.constant 0 : i32
    return %arg0, %c0_i32 : i32, i32
  }
  func.func @transform_1(%arg0: i32) -> (i32, i32) {
    %c0_i32 = arith.constant 0 : i32
    %c0_i32_0 = arith.constant 0 : i32
    %c0_i32_1 = arith.constant 0 : i32
    return %c0_i32, %c0_i32_0 : i32, i32
  }
  func.func @transform_2(%arg0: i32) -> (i32, i32) {
    %c0_i32 = arith.constant 0 : i32
    %c0_i32_0 = arith.constant 0 : i32
    return %arg0, %c0_i32 : i32, i32
  }
  func.func @transform_3(%arg0: i32) -> (i32, i32, i32) {
    %c0_i32 = arith.constant 0 : i32
    %c0_i32_0 = arith.constant 0 : i32
    %c0_i32_1 = arith.constant 0 : i32
    return %arg0, %c0_i32, %c0_i32_0 : i32, i32, i32
  }
  func.func @transform_4(%arg0: i32) -> (i32, i32, i32) {
    %c0_i32 = arith.constant 0 : i32
    %c0_i32_0 = arith.constant 0 : i32
    %c0_i32_1 = arith.constant 0 : i32
    return %arg0, %c0_i32, %c0_i32_0 : i32, i32, i32
  }
}

module attributes {stable_mosaic.version = 11 : i64} {
  func.func @_bn_gelu_kernel(%arg0: i32, %arg1: memref<256x8xf32, #tpu.memory_space<vmem>>, %arg2: memref<1x8xf32, #tpu.memory_space<vmem>>, %arg3: memref<1x8xf32, #tpu.memory_space<vmem>>, %arg4: memref<256x8xf32, #tpu.memory_space<vmem>>) attributes {dimension_semantics = [#tpu.dimension_semantics<parallel>], iteration_bounds = array<i64: 8>, scalar_prefetch = 0 : i64, scratch_operands = 0 : i64, tpu.core_type = #tpu.core_type<tc>, window_params = [{transform_indices = @transform_0, window_bounds = array<i64: 256, 8>}, {pipeline_mode = #tpu.pipeline_mode<synchronous>, transform_indices = @transform_1, window_bounds = array<i64: 1, 8>}, {pipeline_mode = #tpu.pipeline_mode<synchronous>, transform_indices = @transform_2, window_bounds = array<i64: 1, 8>}, {transform_indices = @transform_3, window_bounds = array<i64: 256, 8>}]} {
    %c0 = arith.constant 0 : index
    %c0_0 = arith.constant 0 : index
    %0 = vector.load %arg1[%c0, %c0_0] : memref<256x8xf32, #tpu.memory_space<vmem>>, vector<256x8xf32>
    %c0_1 = arith.constant 0 : index
    %c0_2 = arith.constant 0 : index
    %1 = vector.load %arg2[%c0_1, %c0_2] : memref<1x8xf32, #tpu.memory_space<vmem>>, vector<1x8xf32>
    %2 = vector.broadcast %1 : vector<1x8xf32> to vector<256x8xf32>
    %3 = arith.mulf %0, %2 : vector<256x8xf32>
    %c0_3 = arith.constant 0 : index
    %c0_4 = arith.constant 0 : index
    %4 = vector.load %arg3[%c0_3, %c0_4] : memref<1x8xf32, #tpu.memory_space<vmem>>, vector<1x8xf32>
    %5 = vector.broadcast %4 : vector<1x8xf32> to vector<256x8xf32>
    %6 = arith.addf %3, %5 : vector<256x8xf32>
    %cst = arith.constant 5.000000e-01 : f32
    %7 = vector.broadcast %cst : f32 to vector<256x8xf32>
    %8 = arith.mulf %7, %6 : vector<256x8xf32>
    %cst_5 = arith.constant 0.707106769 : f32
    %9 = vector.broadcast %cst_5 : f32 to vector<256x8xf32>
    %10 = arith.mulf %6, %9 : vector<256x8xf32>
    %11 = math.erf %10 : vector<256x8xf32>
    %cst_6 = arith.constant 1.000000e+00 : f32
    %12 = vector.broadcast %cst_6 : f32 to vector<256x8xf32>
    %13 = arith.addf %12, %11 : vector<256x8xf32>
    %14 = arith.mulf %8, %13 : vector<256x8xf32>
    %c0_7 = arith.constant 0 : index
    %c0_8 = arith.constant 0 : index
    %15 = vector.load %arg4[%c0_7, %c0_8] : memref<256x8xf32, #tpu.memory_space<vmem>>, vector<256x8xf32>
    tpu.vector_store %arg4[%c0_7, %c0_8], %14 {strides = array<i32>} : memref<256x8xf32, #tpu.memory_space<vmem>>, vector<256x8xf32>,
    return
  }
  func.func @transform_0(%arg0: i32) -> (i32, i32) {
    %c0_i32 = arith.constant 0 : i32
    %c0_i32_0 = arith.constant 0 : i32
    return %arg0, %c0_i32 : i32, i32
  }
  func.func @transform_1(%arg0: i32) -> (i32, i32) {
    %c0_i32 = arith.constant 0 : i32
    %c0_i32_0 = arith.constant 0 : i32
    %c0_i32_1 = arith.constant 0 : i32
    return %c0_i32, %c0_i32_0 : i32, i32
  }
  func.func @transform_2(%arg0: i32) -> (i32, i32) {
    %c0_i32 = arith.constant 0 : i32
    %c0_i32_0 = arith.constant 0 : i32
    %c0_i32_1 = arith.constant 0 : i32
    return %c0_i32, %c0_i32_0 : i32, i32
  }
  func.func @transform_3(%arg0: i32) -> (i32, i32) {
    %c0_i32 = arith.constant 0 : i32
    %c0_i32_0 = arith.constant 0 : i32
    return %arg0, %c0_i32 : i32, i32
  }
}

module attributes {stable_mosaic.version = 11 : i64} {
  func.func @_conv3x3_stats_kernel(%arg0: i32, %arg1: memref<1x17x17x8xf32, #tpu.memory_space<vmem>>, %arg2: memref<1x17x17x8xf32, #tpu.memory_space<vmem>>, %arg3: memref<1x17x17x8xf32, #tpu.memory_space<vmem>>, %arg4: memref<1x17x17x8xf32, #tpu.memory_space<vmem>>, %arg5: memref<9x8x8xbf16, #tpu.memory_space<vmem>>, %arg6: memref<256x8xf32, #tpu.memory_space<vmem>>, %arg7: memref<1x1x8xf32, #tpu.memory_space<vmem>>, %arg8: memref<1x1x8xf32, #tpu.memory_space<vmem>>) attributes {dimension_semantics = [#tpu.dimension_semantics<parallel>], iteration_bounds = array<i64: 2>, scalar_prefetch = 0 : i64, scratch_operands = 0 : i64, tpu.core_type = #tpu.core_type<tc>, window_params = [{transform_indices = @transform_0, window_bounds = array<i64: 1, 17, 17, 8>}, {transform_indices = @transform_1, window_bounds = array<i64: 1, 17, 17, 8>}, {transform_indices = @transform_2, window_bounds = array<i64: 1, 17, 17, 8>}, {transform_indices = @transform_3, window_bounds = array<i64: 1, 17, 17, 8>}, {pipeline_mode = #tpu.pipeline_mode<synchronous>, transform_indices = @transform_4, window_bounds = array<i64: 9, 8, 8>}, {transform_indices = @transform_5, window_bounds = array<i64: 256, 8>}, {transform_indices = @transform_6, window_bounds = array<i64: 1, 1, 8>}, {transform_indices = @transform_7, window_bounds = array<i64: 1, 1, 8>}]} {
    %c0 = arith.constant 0 : index
    %c0_0 = arith.constant 0 : index
    %c0_1 = arith.constant 0 : index
    %c0_2 = arith.constant 0 : index
    %0 = vector.load %arg1[%c0, %c0_0, %c0_1, %c0_2] : memref<1x17x17x8xf32, #tpu.memory_space<vmem>>, vector<1x17x17x8xf32>
    %1 = vector.shape_cast %0 : vector<1x17x17x8xf32> to vector<17x17x8xf32>
    %c0_3 = arith.constant 0 : index
    %c0_4 = arith.constant 0 : index
    %c0_5 = arith.constant 0 : index
    %c0_6 = arith.constant 0 : index
    %2 = vector.load %arg2[%c0_3, %c0_4, %c0_5, %c0_6] : memref<1x17x17x8xf32, #tpu.memory_space<vmem>>, vector<1x17x17x8xf32>
    %3 = vector.shape_cast %2 : vector<1x17x17x8xf32> to vector<17x17x8xf32>
    %c0_7 = arith.constant 0 : index
    %c0_8 = arith.constant 0 : index
    %c0_9 = arith.constant 0 : index
    %c0_10 = arith.constant 0 : index
    %4 = vector.load %arg3[%c0_7, %c0_8, %c0_9, %c0_10] : memref<1x17x17x8xf32, #tpu.memory_space<vmem>>, vector<1x17x17x8xf32>
    %5 = vector.shape_cast %4 : vector<1x17x17x8xf32> to vector<17x17x8xf32>
    %c0_11 = arith.constant 0 : index
    %c0_12 = arith.constant 0 : index
    %c0_13 = arith.constant 0 : index
    %c0_14 = arith.constant 0 : index
    %6 = vector.load %arg4[%c0_11, %c0_12, %c0_13, %c0_14] : memref<1x17x17x8xf32, #tpu.memory_space<vmem>>, vector<1x17x17x8xf32>
    %7 = vector.shape_cast %6 : vector<1x17x17x8xf32> to vector<17x17x8xf32>
    %8 = vector.extract_strided_slice %1 {offsets = [0, 0, 0], sizes = [16, 16, 8], strides = [1, 1, 1]} : vector<17x17x8xf32> to vector<16x16x8xf32>
    %9 = vector.shape_cast %8 : vector<16x16x8xf32> to vector<256x8xf32>
    %10 = arith.truncf %9 : vector<256x8xf32> to vector<256x8xbf16>
    %c0_15 = arith.constant 0 : index
    %c0_16 = arith.constant 0 : index
    %c0_17 = arith.constant 0 : index
    %11 = vector.load %arg5[%c0_15, %c0_16, %c0_17] : memref<9x8x8xbf16, #tpu.memory_space<vmem>>, vector<1x8x8xbf16>
    %12 = vector.shape_cast %11 : vector<1x8x8xbf16> to vector<8x8xbf16>
    %cst = arith.constant dense<0.000000e+00> : vector<256x8xf32>
    %13 = tpu.matmul %10, %12, %cst {dimension_numbers = #tpu.dot_dimension_numbers<[1], [0], [0], [1], [0, 0, 1, 1], [], []>} : vector<256x8xbf16>, vector<8x8xbf16>, vector<256x8xf32> -> vector<256x8xf32>
    %14 = vector.extract_strided_slice %3 {offsets = [0, 0, 0], sizes = [16, 16, 8], strides = [1, 1, 1]} : vector<17x17x8xf32> to vector<16x16x8xf32>
    %15 = vector.shape_cast %14 : vector<16x16x8xf32> to vector<256x8xf32>
    %16 = arith.truncf %15 : vector<256x8xf32> to vector<256x8xbf16>
    %c1 = arith.constant 1 : index
    %c0_18 = arith.constant 0 : index
    %c0_19 = arith.constant 0 : index
    %17 = vector.load %arg5[%c1, %c0_18, %c0_19] : memref<9x8x8xbf16, #tpu.memory_space<vmem>>, vector<1x8x8xbf16>
    %18 = vector.shape_cast %17 : vector<1x8x8xbf16> to vector<8x8xbf16>
    %cst_20 = arith.constant dense<0.000000e+00> : vector<256x8xf32>
    %19 = tpu.matmul %16, %18, %cst_20 {dimension_numbers = #tpu.dot_dimension_numbers<[1], [0], [0], [1], [0, 0, 1, 1], [], []>} : vector<256x8xbf16>, vector<8x8xbf16>, vector<256x8xf32> -> vector<256x8xf32>
    %20 = arith.addf %13, %19 : vector<256x8xf32>
    %21 = vector.extract_strided_slice %1 {offsets = [0, 1, 0], sizes = [16, 16, 8], strides = [1, 1, 1]} : vector<17x17x8xf32> to vector<16x16x8xf32>
    %22 = vector.shape_cast %21 : vector<16x16x8xf32> to vector<256x8xf32>
    %23 = arith.truncf %22 : vector<256x8xf32> to vector<256x8xbf16>
    %c2 = arith.constant 2 : index
    %c0_21 = arith.constant 0 : index
    %c0_22 = arith.constant 0 : index
    %24 = vector.load %arg5[%c2, %c0_21, %c0_22] : memref<9x8x8xbf16, #tpu.memory_space<vmem>>, vector<1x8x8xbf16>
    %25 = vector.shape_cast %24 : vector<1x8x8xbf16> to vector<8x8xbf16>
    %cst_23 = arith.constant dense<0.000000e+00> : vector<256x8xf32>
    %26 = tpu.matmul %23, %25, %cst_23 {dimension_numbers = #tpu.dot_dimension_numbers<[1], [0], [0], [1], [0, 0, 1, 1], [], []>} : vector<256x8xbf16>, vector<8x8xbf16>, vector<256x8xf32> -> vector<256x8xf32>
    %27 = arith.addf %20, %26 : vector<256x8xf32>
    %28 = vector.extract_strided_slice %5 {offsets = [0, 0, 0], sizes = [16, 16, 8], strides = [1, 1, 1]} : vector<17x17x8xf32> to vector<16x16x8xf32>
    %29 = vector.shape_cast %28 : vector<16x16x8xf32> to vector<256x8xf32>
    %30 = arith.truncf %29 : vector<256x8xf32> to vector<256x8xbf16>
    %c3 = arith.constant 3 : index
    %c0_24 = arith.constant 0 : index
    %c0_25 = arith.constant 0 : index
    %31 = vector.load %arg5[%c3, %c0_24, %c0_25] : memref<9x8x8xbf16, #tpu.memory_space<vmem>>, vector<1x8x8xbf16>
    %32 = vector.shape_cast %31 : vector<1x8x8xbf16> to vector<8x8xbf16>
    %cst_26 = arith.constant dense<0.000000e+00> : vector<256x8xf32>
    %33 = tpu.matmul %30, %32, %cst_26 {dimension_numbers = #tpu.dot_dimension_numbers<[1], [0], [0], [1], [0, 0, 1, 1], [], []>} : vector<256x8xbf16>, vector<8x8xbf16>, vector<256x8xf32> -> vector<256x8xf32>
    %34 = arith.addf %27, %33 : vector<256x8xf32>
    %35 = vector.extract_strided_slice %7 {offsets = [0, 0, 0], sizes = [16, 16, 8], strides = [1, 1, 1]} : vector<17x17x8xf32> to vector<16x16x8xf32>
    %36 = vector.shape_cast %35 : vector<16x16x8xf32> to vector<256x8xf32>
    %37 = arith.truncf %36 : vector<256x8xf32> to vector<256x8xbf16>
    %c4 = arith.constant 4 : index
    %c0_27 = arith.constant 0 : index
    %c0_28 = arith.constant 0 : index
    %38 = vector.load %arg5[%c4, %c0_27, %c0_28] : memref<9x8x8xbf16, #tpu.memory_space<vmem>>, vector<1x8x8xbf16>
    %39 = vector.shape_cast %38 : vector<1x8x8xbf16> to vector<8x8xbf16>
    %cst_29 = arith.constant dense<0.000000e+00> : vector<256x8xf32>
    %40 = tpu.matmul %37, %39, %cst_29 {dimension_numbers = #tpu.dot_dimension_numbers<[1], [0], [0], [1], [0, 0, 1, 1], [], []>} : vector<256x8xbf16>, vector<8x8xbf16>, vector<256x8xf32> -> vector<256x8xf32>
    %41 = arith.addf %34, %40 : vector<256x8xf32>
    %42 = vector.extract_strided_slice %5 {offsets = [0, 1, 0], sizes = [16, 16, 8], strides = [1, 1, 1]} : vector<17x17x8xf32> to vector<16x16x8xf32>
    %43 = vector.shape_cast %42 : vector<16x16x8xf32> to vector<256x8xf32>
    %44 = arith.truncf %43 : vector<256x8xf32> to vector<256x8xbf16>
    %c5 = arith.constant 5 : index
    %c0_30 = arith.constant 0 : index
    %c0_31 = arith.constant 0 : index
    %45 = vector.load %arg5[%c5, %c0_30, %c0_31] : memref<9x8x8xbf16, #tpu.memory_space<vmem>>, vector<1x8x8xbf16>
    %46 = vector.shape_cast %45 : vector<1x8x8xbf16> to vector<8x8xbf16>
    %cst_32 = arith.constant dense<0.000000e+00> : vector<256x8xf32>
    %47 = tpu.matmul %44, %46, %cst_32 {dimension_numbers = #tpu.dot_dimension_numbers<[1], [0], [0], [1], [0, 0, 1, 1], [], []>} : vector<256x8xbf16>, vector<8x8xbf16>, vector<256x8xf32> -> vector<256x8xf32>
    %48 = arith.addf %41, %47 : vector<256x8xf32>
    %49 = vector.extract_strided_slice %1 {offsets = [1, 0, 0], sizes = [16, 16, 8], strides = [1, 1, 1]} : vector<17x17x8xf32> to vector<16x16x8xf32>
    %50 = vector.shape_cast %49 : vector<16x16x8xf32> to vector<256x8xf32>
    %51 = arith.truncf %50 : vector<256x8xf32> to vector<256x8xbf16>
    %c6 = arith.constant 6 : index
    %c0_33 = arith.constant 0 : index
    %c0_34 = arith.constant 0 : index
    %52 = vector.load %arg5[%c6, %c0_33, %c0_34] : memref<9x8x8xbf16, #tpu.memory_space<vmem>>, vector<1x8x8xbf16>
    %53 = vector.shape_cast %52 : vector<1x8x8xbf16> to vector<8x8xbf16>
    %cst_35 = arith.constant dense<0.000000e+00> : vector<256x8xf32>
    %54 = tpu.matmul %51, %53, %cst_35 {dimension_numbers = #tpu.dot_dimension_numbers<[1], [0], [0], [1], [0, 0, 1, 1], [], []>} : vector<256x8xbf16>, vector<8x8xbf16>, vector<256x8xf32> -> vector<256x8xf32>
    %55 = arith.addf %48, %54 : vector<256x8xf32>
    %56 = vector.extract_strided_slice %3 {offsets = [1, 0, 0], sizes = [16, 16, 8], strides = [1, 1, 1]} : vector<17x17x8xf32> to vector<16x16x8xf32>
    %57 = vector.shape_cast %56 : vector<16x16x8xf32> to vector<256x8xf32>
    %58 = arith.truncf %57 : vector<256x8xf32> to vector<256x8xbf16>
    %c7 = arith.constant 7 : index
    %c0_36 = arith.constant 0 : index
    %c0_37 = arith.constant 0 : index
    %59 = vector.load %arg5[%c7, %c0_36, %c0_37] : memref<9x8x8xbf16, #tpu.memory_space<vmem>>, vector<1x8x8xbf16>
    %60 = vector.shape_cast %59 : vector<1x8x8xbf16> to vector<8x8xbf16>
    %cst_38 = arith.constant dense<0.000000e+00> : vector<256x8xf32>
    %61 = tpu.matmul %58, %60, %cst_38 {dimension_numbers = #tpu.dot_dimension_numbers<[1], [0], [0], [1], [0, 0, 1, 1], [], []>} : vector<256x8xbf16>, vector<8x8xbf16>, vector<256x8xf32> -> vector<256x8xf32>
    %62 = arith.addf %55, %61 : vector<256x8xf32>
    %63 = vector.extract_strided_slice %1 {offsets = [1, 1, 0], sizes = [16, 16, 8], strides = [1, 1, 1]} : vector<17x17x8xf32> to vector<16x16x8xf32>
    %64 = vector.shape_cast %63 : vector<16x16x8xf32> to vector<256x8xf32>
    %65 = arith.truncf %64 : vector<256x8xf32> to vector<256x8xbf16>
    %c8 = arith.constant 8 : index
    %c0_39 = arith.constant 0 : index
    %c0_40 = arith.constant 0 : index
    %66 = vector.load %arg5[%c8, %c0_39, %c0_40] : memref<9x8x8xbf16, #tpu.memory_space<vmem>>, vector<1x8x8xbf16>
    %67 = vector.shape_cast %66 : vector<1x8x8xbf16> to vector<8x8xbf16>
    %cst_41 = arith.constant dense<0.000000e+00> : vector<256x8xf32>
    %68 = tpu.matmul %65, %67, %cst_41 {dimension_numbers = #tpu.dot_dimension_numbers<[1], [0], [0], [1], [0, 0, 1, 1], [], []>} : vector<256x8xbf16>, vector<8x8xbf16>, vector<256x8xf32> -> vector<256x8xf32>
    %69 = arith.addf %62, %68 : vector<256x8xf32>
    %c0_42 = arith.constant 0 : index
    %c0_43 = arith.constant 0 : index
    %70 = vector.load %arg6[%c0_42, %c0_43] : memref<256x8xf32, #tpu.memory_space<vmem>>, vector<256x8xf32>
    tpu.vector_store %arg6[%c0_42, %c0_43], %69 {strides = array<i32>} : memref<256x8xf32, #tpu.memory_space<vmem>>, vector<256x8xf32>,
    %cst_44 = arith.constant dense<0.000000e+00> : vector<8xf32>
    %71 = vector.multi_reduction <add>, %69, %cst_44 [0] : vector<256x8xf32> to vector<8xf32>
    %72 = vector.shape_cast %71 : vector<8xf32> to vector<1x1x8xf32>
    %c0_45 = arith.constant 0 : index
    %c0_46 = arith.constant 0 : index
    %c0_47 = arith.constant 0 : index
    %73 = vector.load %arg7[%c0_45, %c0_46, %c0_47] : memref<1x1x8xf32, #tpu.memory_space<vmem>>, vector<1x1x8xf32>
    tpu.vector_store %arg7[%c0_45, %c0_46, %c0_47], %72 {strides = array<i32>} : memref<1x1x8xf32, #tpu.memory_space<vmem>>, vector<1x1x8xf32>,
    %74 = arith.mulf %69, %69 : vector<256x8xf32>
    %cst_48 = arith.constant dense<0.000000e+00> : vector<8xf32>
    %75 = vector.multi_reduction <add>, %74, %cst_48 [0] : vector<256x8xf32> to vector<8xf32>
    %76 = vector.shape_cast %75 : vector<8xf32> to vector<1x1x8xf32>
    %c0_49 = arith.constant 0 : index
    %c0_50 = arith.constant 0 : index
    %c0_51 = arith.constant 0 : index
    %77 = vector.load %arg8[%c0_49, %c0_50, %c0_51] : memref<1x1x8xf32, #tpu.memory_space<vmem>>, vector<1x1x8xf32>
    tpu.vector_store %arg8[%c0_49, %c0_50, %c0_51], %76 {strides = array<i32>} : memref<1x1x8xf32, #tpu.memory_space<vmem>>, vector<1x1x8xf32>,
    return
  }
  func.func @transform_0(%arg0: i32) -> (i32, i32, i32, i32) {
    %c0_i32 = arith.constant 0 : i32
    %c0_i32_0 = arith.constant 0 : i32
    %c0_i32_1 = arith.constant 0 : i32
    %c0_i32_2 = arith.constant 0 : i32
    return %arg0, %c0_i32, %c0_i32_0, %c0_i32_1 : i32, i32, i32, i32
  }
  func.func @transform_1(%arg0: i32) -> (i32, i32, i32, i32) {
    %c0_i32 = arith.constant 0 : i32
    %c0_i32_0 = arith.constant 0 : i32
    %c0_i32_1 = arith.constant 0 : i32
    %c0_i32_2 = arith.constant 0 : i32
    return %arg0, %c0_i32, %c0_i32_0, %c0_i32_1 : i32, i32, i32, i32
  }
  func.func @transform_2(%arg0: i32) -> (i32, i32, i32, i32) {
    %c0_i32 = arith.constant 0 : i32
    %c0_i32_0 = arith.constant 0 : i32
    %c0_i32_1 = arith.constant 0 : i32
    %c0_i32_2 = arith.constant 0 : i32
    return %arg0, %c0_i32, %c0_i32_0, %c0_i32_1 : i32, i32, i32, i32
  }
  func.func @transform_3(%arg0: i32) -> (i32, i32, i32, i32) {
    %c0_i32 = arith.constant 0 : i32
    %c0_i32_0 = arith.constant 0 : i32
    %c0_i32_1 = arith.constant 0 : i32
    %c0_i32_2 = arith.constant 0 : i32
    return %arg0, %c0_i32, %c0_i32_0, %c0_i32_1 : i32, i32, i32, i32
  }
  func.func @transform_4(%arg0: i32) -> (i32, i32, i32) {
    %c0_i32 = arith.constant 0 : i32
    %c0_i32_0 = arith.constant 0 : i32
    %c0_i32_1 = arith.constant 0 : i32
    %c0_i32_2 = arith.constant 0 : i32
    return %c0_i32, %c0_i32_0, %c0_i32_1 : i32, i32, i32
  }
  func.func @transform_5(%arg0: i32) -> (i32, i32) {
    %c0_i32 = arith.constant 0 : i32
    %c0_i32_0 = arith.constant 0 : i32
    return %arg0, %c0_i32 : i32, i32
  }
  func.func @transform_6(%arg0: i32) -> (i32, i32, i32) {
    %c0_i32 = arith.constant 0 : i32
    %c0_i32_0 = arith.constant 0 : i32
    %c0_i32_1 = arith.constant 0 : i32
    return %arg0, %c0_i32, %c0_i32_0 : i32, i32, i32
  }
  func.func @transform_7(%arg0: i32) -> (i32, i32, i32) {
    %c0_i32 = arith.constant 0 : i32
    %c0_i32_0 = arith.constant 0 : i32
    %c0_i32_1 = arith.constant 0 : i32
    return %arg0, %c0_i32, %c0_i32_0 : i32, i32, i32
  }
}

module attributes {stable_mosaic.version = 11 : i64} {
  func.func @_mm_stats_fused_bn_gelu_kernel(%arg0: i32, %arg1: memref<256x8xf32, #tpu.memory_space<vmem>>, %arg2: memref<1x8xf32, #tpu.memory_space<vmem>>, %arg3: memref<1x8xf32, #tpu.memory_space<vmem>>, %arg4: memref<8x32xbf16, #tpu.memory_space<vmem>>, %arg5: memref<256x32xf32, #tpu.memory_space<vmem>>, %arg6: memref<1x1x32xf32, #tpu.memory_space<vmem>>, %arg7: memref<1x1x32xf32, #tpu.memory_space<vmem>>) attributes {dimension_semantics = [#tpu.dimension_semantics<parallel>], iteration_bounds = array<i64: 2>, scalar_prefetch = 0 : i64, scratch_operands = 0 : i64, tpu.core_type = #tpu.core_type<tc>, window_params = [{transform_indices = @transform_0, window_bounds = array<i64: 256, 8>}, {pipeline_mode = #tpu.pipeline_mode<synchronous>, transform_indices = @transform_1, window_bounds = array<i64: 1, 8>}, {pipeline_mode = #tpu.pipeline_mode<synchronous>, transform_indices = @transform_2, window_bounds = array<i64: 1, 8>}, {pipeline_mode = #tpu.pipeline_mode<synchronous>, transform_indices = @transform_3, window_bounds = array<i64: 8, 32>}, {transform_indices = @transform_4, window_bounds = array<i64: 256, 32>}, {transform_indices = @transform_5, window_bounds = array<i64: 1, 1, 32>}, {transform_indices = @transform_6, window_bounds = array<i64: 1, 1, 32>}]} {
    %c0 = arith.constant 0 : index
    %c0_0 = arith.constant 0 : index
    %0 = vector.load %arg1[%c0, %c0_0] : memref<256x8xf32, #tpu.memory_space<vmem>>, vector<256x8xf32>
    %c0_1 = arith.constant 0 : index
    %c0_2 = arith.constant 0 : index
    %1 = vector.load %arg2[%c0_1, %c0_2] : memref<1x8xf32, #tpu.memory_space<vmem>>, vector<1x8xf32>
    %2 = vector.broadcast %1 : vector<1x8xf32> to vector<256x8xf32>
    %3 = arith.mulf %0, %2 : vector<256x8xf32>
    %c0_3 = arith.constant 0 : index
    %c0_4 = arith.constant 0 : index
    %4 = vector.load %arg3[%c0_3, %c0_4] : memref<1x8xf32, #tpu.memory_space<vmem>>, vector<1x8xf32>
    %5 = vector.broadcast %4 : vector<1x8xf32> to vector<256x8xf32>
    %6 = arith.addf %3, %5 : vector<256x8xf32>
    %cst = arith.constant 5.000000e-01 : f32
    %7 = vector.broadcast %cst : f32 to vector<256x8xf32>
    %8 = arith.mulf %7, %6 : vector<256x8xf32>
    %cst_5 = arith.constant 0.707106769 : f32
    %9 = vector.broadcast %cst_5 : f32 to vector<256x8xf32>
    %10 = arith.mulf %6, %9 : vector<256x8xf32>
    %11 = math.erf %10 : vector<256x8xf32>
    %cst_6 = arith.constant 1.000000e+00 : f32
    %12 = vector.broadcast %cst_6 : f32 to vector<256x8xf32>
    %13 = arith.addf %12, %11 : vector<256x8xf32>
    %14 = arith.mulf %8, %13 : vector<256x8xf32>
    %15 = arith.truncf %14 : vector<256x8xf32> to vector<256x8xbf16>
    %c0_7 = arith.constant 0 : index
    %c0_8 = arith.constant 0 : index
    %16 = vector.load %arg4[%c0_7, %c0_8] : memref<8x32xbf16, #tpu.memory_space<vmem>>, vector<8x32xbf16>
    %cst_9 = arith.constant dense<0.000000e+00> : vector<256x32xf32>
    %17 = tpu.matmul %15, %16, %cst_9 {dimension_numbers = #tpu.dot_dimension_numbers<[1], [0], [0], [1], [0, 0, 1, 1], [], []>} : vector<256x8xbf16>, vector<8x32xbf16>, vector<256x32xf32> -> vector<256x32xf32>
    %c0_10 = arith.constant 0 : index
    %c0_11 = arith.constant 0 : index
    %18 = vector.load %arg5[%c0_10, %c0_11] : memref<256x32xf32, #tpu.memory_space<vmem>>, vector<256x32xf32>
    tpu.vector_store %arg5[%c0_10, %c0_11], %17 {strides = array<i32>} : memref<256x32xf32, #tpu.memory_space<vmem>>, vector<256x32xf32>,
    %cst_12 = arith.constant dense<0.000000e+00> : vector<32xf32>
    %19 = vector.multi_reduction <add>, %17, %cst_12 [0] : vector<256x32xf32> to vector<32xf32>
    %20 = vector.shape_cast %19 : vector<32xf32> to vector<1x1x32xf32>
    %c0_13 = arith.constant 0 : index
    %c0_14 = arith.constant 0 : index
    %c0_15 = arith.constant 0 : index
    %21 = vector.load %arg6[%c0_13, %c0_14, %c0_15] : memref<1x1x32xf32, #tpu.memory_space<vmem>>, vector<1x1x32xf32>
    tpu.vector_store %arg6[%c0_13, %c0_14, %c0_15], %20 {strides = array<i32>} : memref<1x1x32xf32, #tpu.memory_space<vmem>>, vector<1x1x32xf32>,
    %22 = arith.mulf %17, %17 : vector<256x32xf32>
    %cst_16 = arith.constant dense<0.000000e+00> : vector<32xf32>
    %23 = vector.multi_reduction <add>, %22, %cst_16 [0] : vector<256x32xf32> to vector<32xf32>
    %24 = vector.shape_cast %23 : vector<32xf32> to vector<1x1x32xf32>
    %c0_17 = arith.constant 0 : index
    %c0_18 = arith.constant 0 : index
    %c0_19 = arith.constant 0 : index
    %25 = vector.load %arg7[%c0_17, %c0_18, %c0_19] : memref<1x1x32xf32, #tpu.memory_space<vmem>>, vector<1x1x32xf32>
    tpu.vector_store %arg7[%c0_17, %c0_18, %c0_19], %24 {strides = array<i32>} : memref<1x1x32xf32, #tpu.memory_space<vmem>>, vector<1x1x32xf32>,
    return
  }
  func.func @transform_0(%arg0: i32) -> (i32, i32) {
    %c0_i32 = arith.constant 0 : i32
    %c0_i32_0 = arith.constant 0 : i32
    return %arg0, %c0_i32 : i32, i32
  }
  func.func @transform_1(%arg0: i32) -> (i32, i32) {
    %c0_i32 = arith.constant 0 : i32
    %c0_i32_0 = arith.constant 0 : i32
    %c0_i32_1 = arith.constant 0 : i32
    return %c0_i32, %c0_i32_0 : i32, i32
  }
  func.func @transform_2(%arg0: i32) -> (i32, i32) {
    %c0_i32 = arith.constant 0 : i32
    %c0_i32_0 = arith.constant 0 : i32
    %c0_i32_1 = arith.constant 0 : i32
    return %c0_i32, %c0_i32_0 : i32, i32
  }
  func.func @transform_3(%arg0: i32) -> (i32, i32) {
    %c0_i32 = arith.constant 0 : i32
    %c0_i32_0 = arith.constant 0 : i32
    %c0_i32_1 = arith.constant 0 : i32
    return %c0_i32, %c0_i32_0 : i32, i32
  }
  func.func @transform_4(%arg0: i32) -> (i32, i32) {
    %c0_i32 = arith.constant 0 : i32
    %c0_i32_0 = arith.constant 0 : i32
    return %arg0, %c0_i32 : i32, i32
  }
  func.func @transform_5(%arg0: i32) -> (i32, i32, i32) {
    %c0_i32 = arith.constant 0 : i32
    %c0_i32_0 = arith.constant 0 : i32
    %c0_i32_1 = arith.constant 0 : i32
    return %arg0, %c0_i32, %c0_i32_0 : i32, i32, i32
  }
  func.func @transform_6(%arg0: i32) -> (i32, i32, i32) {
    %c0_i32 = arith.constant 0 : i32
    %c0_i32_0 = arith.constant 0 : i32
    %c0_i32_1 = arith.constant 0 : i32
    return %arg0, %c0_i32, %c0_i32_0 : i32, i32, i32
  }
}

module attributes {stable_mosaic.version = 11 : i64} {
  func.func @_mm_stats_kernel(%arg0: i32, %arg1: memref<256x4xf32, #tpu.memory_space<vmem>>, %arg2: memref<4x32xbf16, #tpu.memory_space<vmem>>, %arg3: memref<256x32xf32, #tpu.memory_space<vmem>>, %arg4: memref<1x1x32xf32, #tpu.memory_space<vmem>>, %arg5: memref<1x1x32xf32, #tpu.memory_space<vmem>>) attributes {dimension_semantics = [#tpu.dimension_semantics<parallel>], iteration_bounds = array<i64: 2>, scalar_prefetch = 0 : i64, scratch_operands = 0 : i64, tpu.core_type = #tpu.core_type<tc>, window_params = [{transform_indices = @transform_0, window_bounds = array<i64: 256, 4>}, {pipeline_mode = #tpu.pipeline_mode<synchronous>, transform_indices = @transform_1, window_bounds = array<i64: 4, 32>}, {transform_indices = @transform_2, window_bounds = array<i64: 256, 32>}, {transform_indices = @transform_3, window_bounds = array<i64: 1, 1, 32>}, {transform_indices = @transform_4, window_bounds = array<i64: 1, 1, 32>}]} {
    %c0 = arith.constant 0 : index
    %c0_0 = arith.constant 0 : index
    %0 = vector.load %arg1[%c0, %c0_0] : memref<256x4xf32, #tpu.memory_space<vmem>>, vector<256x4xf32>
    %1 = arith.truncf %0 : vector<256x4xf32> to vector<256x4xbf16>
    %c0_1 = arith.constant 0 : index
    %c0_2 = arith.constant 0 : index
    %2 = vector.load %arg2[%c0_1, %c0_2] : memref<4x32xbf16, #tpu.memory_space<vmem>>, vector<4x32xbf16>
    %cst = arith.constant dense<0.000000e+00> : vector<256x32xf32>
    %3 = tpu.matmul %1, %2, %cst {dimension_numbers = #tpu.dot_dimension_numbers<[1], [0], [0], [1], [0, 0, 1, 1], [], []>} : vector<256x4xbf16>, vector<4x32xbf16>, vector<256x32xf32> -> vector<256x32xf32>
    %c0_3 = arith.constant 0 : index
    %c0_4 = arith.constant 0 : index
    %4 = vector.load %arg3[%c0_3, %c0_4] : memref<256x32xf32, #tpu.memory_space<vmem>>, vector<256x32xf32>
    tpu.vector_store %arg3[%c0_3, %c0_4], %3 {strides = array<i32>} : memref<256x32xf32, #tpu.memory_space<vmem>>, vector<256x32xf32>,
    %cst_5 = arith.constant dense<0.000000e+00> : vector<32xf32>
    %5 = vector.multi_reduction <add>, %3, %cst_5 [0] : vector<256x32xf32> to vector<32xf32>
    %6 = vector.shape_cast %5 : vector<32xf32> to vector<1x1x32xf32>
    %c0_6 = arith.constant 0 : index
    %c0_7 = arith.constant 0 : index
    %c0_8 = arith.constant 0 : index
    %7 = vector.load %arg4[%c0_6, %c0_7, %c0_8] : memref<1x1x32xf32, #tpu.memory_space<vmem>>, vector<1x1x32xf32>
    tpu.vector_store %arg4[%c0_6, %c0_7, %c0_8], %6 {strides = array<i32>} : memref<1x1x32xf32, #tpu.memory_space<vmem>>, vector<1x1x32xf32>,
    %8 = arith.mulf %3, %3 : vector<256x32xf32>
    %cst_9 = arith.constant dense<0.000000e+00> : vector<32xf32>
    %9 = vector.multi_reduction <add>, %8, %cst_9 [0] : vector<256x32xf32> to vector<32xf32>
    %10 = vector.shape_cast %9 : vector<32xf32> to vector<1x1x32xf32>
    %c0_10 = arith.constant 0 : index
    %c0_11 = arith.constant 0 : index
    %c0_12 = arith.constant 0 : index
    %11 = vector.load %arg5[%c0_10, %c0_11, %c0_12] : memref<1x1x32xf32, #tpu.memory_space<vmem>>, vector<1x1x32xf32>
    tpu.vector_store %arg5[%c0_10, %c0_11, %c0_12], %10 {strides = array<i32>} : memref<1x1x32xf32, #tpu.memory_space<vmem>>, vector<1x1x32xf32>,
    return
  }
  func.func @transform_0(%arg0: i32) -> (i32, i32) {
    %c0_i32 = arith.constant 0 : i32
    %c0_i32_0 = arith.constant 0 : i32
    return %arg0, %c0_i32 : i32, i32
  }
  func.func @transform_1(%arg0: i32) -> (i32, i32) {
    %c0_i32 = arith.constant 0 : i32
    %c0_i32_0 = arith.constant 0 : i32
    %c0_i32_1 = arith.constant 0 : i32
    return %c0_i32, %c0_i32_0 : i32, i32
  }
  func.func @transform_2(%arg0: i32) -> (i32, i32) {
    %c0_i32 = arith.constant 0 : i32
    %c0_i32_0 = arith.constant 0 : i32
    return %arg0, %c0_i32 : i32, i32
  }
  func.func @transform_3(%arg0: i32) -> (i32, i32, i32) {
    %c0_i32 = arith.constant 0 : i32
    %c0_i32_0 = arith.constant 0 : i32
    %c0_i32_1 = arith.constant 0 : i32
    return %arg0, %c0_i32, %c0_i32_0 : i32, i32, i32
  }
  func.func @transform_4(%arg0: i32) -> (i32, i32, i32) {
    %c0_i32 = arith.constant 0 : i32
    %c0_i32_0 = arith.constant 0 : i32
    %c0_i32_1 = arith.constant 0 : i32
    return %arg0, %c0_i32, %c0_i32_0 : i32, i32, i32
  }
}

module attributes {stable_mosaic.version = 11 : i64} {
  func.func @_final_proj_kernel(%arg0: i32, %arg1: memref<256x32xf32, #tpu.memory_space<vmem>>, %arg2: memref<1x32xf32, #tpu.memory_space<vmem>>, %arg3: memref<1x32xf32, #tpu.memory_space<vmem>>, %arg4: memref<256x32xf32, #tpu.memory_space<vmem>>, %arg5: memref<1x32xf32, #tpu.memory_space<vmem>>, %arg6: memref<1x32xf32, #tpu.memory_space<vmem>>, %arg7: memref<256x32xf32, #tpu.memory_space<vmem>>) attributes {dimension_semantics = [#tpu.dimension_semantics<parallel>], iteration_bounds = array<i64: 2>, scalar_prefetch = 0 : i64, scratch_operands = 0 : i64, tpu.core_type = #tpu.core_type<tc>, window_params = [{transform_indices = @transform_0, window_bounds = array<i64: 256, 32>}, {pipeline_mode = #tpu.pipeline_mode<synchronous>, transform_indices = @transform_1, window_bounds = array<i64: 1, 32>}, {pipeline_mode = #tpu.pipeline_mode<synchronous>, transform_indices = @transform_2, window_bounds = array<i64: 1, 32>}, {transform_indices = @transform_3, window_bounds = array<i64: 256, 32>}, {pipeline_mode = #tpu.pipeline_mode<synchronous>, transform_indices = @transform_4, window_bounds = array<i64: 1, 32>}, {pipeline_mode = #tpu.pipeline_mode<synchronous>, transform_indices = @transform_5, window_bounds = array<i64: 1, 32>}, {transform_indices = @transform_6, window_bounds = array<i64: 256, 32>}]} {
    %c0 = arith.constant 0 : index
    %c0_0 = arith.constant 0 : index
    %0 = vector.load %arg1[%c0, %c0_0] : memref<256x32xf32, #tpu.memory_space<vmem>>, vector<256x32xf32>
    %c0_1 = arith.constant 0 : index
    %c0_2 = arith.constant 0 : index
    %1 = vector.load %arg2[%c0_1, %c0_2] : memref<1x32xf32, #tpu.memory_space<vmem>>, vector<1x32xf32>
    %2 = vector.broadcast %1 : vector<1x32xf32> to vector<256x32xf32>
    %3 = arith.mulf %0, %2 : vector<256x32xf32>
    %c0_3 = arith.constant 0 : index
    %c0_4 = arith.constant 0 : index
    %4 = vector.load %arg3[%c0_3, %c0_4] : memref<1x32xf32, #tpu.memory_space<vmem>>, vector<1x32xf32>
    %5 = vector.broadcast %4 : vector<1x32xf32> to vector<256x32xf32>
    %6 = arith.addf %3, %5 : vector<256x32xf32>
    %c0_5 = arith.constant 0 : index
    %c0_6 = arith.constant 0 : index
    %7 = vector.load %arg4[%c0_5, %c0_6] : memref<256x32xf32, #tpu.memory_space<vmem>>, vector<256x32xf32>
    %c0_7 = arith.constant 0 : index
    %c0_8 = arith.constant 0 : index
    %8 = vector.load %arg5[%c0_7, %c0_8] : memref<1x32xf32, #tpu.memory_space<vmem>>, vector<1x32xf32>
    %9 = vector.broadcast %8 : vector<1x32xf32> to vector<256x32xf32>
    %10 = arith.mulf %7, %9 : vector<256x32xf32>
    %c0_9 = arith.constant 0 : index
    %c0_10 = arith.constant 0 : index
    %11 = vector.load %arg6[%c0_9, %c0_10] : memref<1x32xf32, #tpu.memory_space<vmem>>, vector<1x32xf32>
    %12 = vector.broadcast %11 : vector<1x32xf32> to vector<256x32xf32>
    %13 = arith.addf %10, %12 : vector<256x32xf32>
    %14 = arith.addf %6, %13 : vector<256x32xf32>
    %cst = arith.constant 5.000000e-01 : f32
    %15 = vector.broadcast %cst : f32 to vector<256x32xf32>
    %16 = arith.mulf %15, %14 : vector<256x32xf32>
    %cst_11 = arith.constant 0.707106769 : f32
    %17 = vector.broadcast %cst_11 : f32 to vector<256x32xf32>
    %18 = arith.mulf %14, %17 : vector<256x32xf32>
    %19 = math.erf %18 : vector<256x32xf32>
    %cst_12 = arith.constant 1.000000e+00 : f32
    %20 = vector.broadcast %cst_12 : f32 to vector<256x32xf32>
    %21 = arith.addf %20, %19 : vector<256x32xf32>
    %22 = arith.mulf %16, %21 : vector<256x32xf32>
    %c0_13 = arith.constant 0 : index
    %c0_14 = arith.constant 0 : index
    %23 = vector.load %arg7[%c0_13, %c0_14] : memref<256x32xf32, #tpu.memory_space<vmem>>, vector<256x32xf32>
    tpu.vector_store %arg7[%c0_13, %c0_14], %22 {strides = array<i32>} : memref<256x32xf32, #tpu.memory_space<vmem>>, vector<256x32xf32>,
    return
  }
  func.func @transform_0(%arg0: i32) -> (i32, i32) {
    %c0_i32 = arith.constant 0 : i32
    %c0_i32_0 = arith.constant 0 : i32
    return %arg0, %c0_i32 : i32, i32
  }
  func.func @transform_1(%arg0: i32) -> (i32, i32) {
    %c0_i32 = arith.constant 0 : i32
    %c0_i32_0 = arith.constant 0 : i32
    %c0_i32_1 = arith.constant 0 : i32
    return %c0_i32, %c0_i32_0 : i32, i32
  }
  func.func @transform_2(%arg0: i32) -> (i32, i32) {
    %c0_i32 = arith.constant 0 : i32
    %c0_i32_0 = arith.constant 0 : i32
    %c0_i32_1 = arith.constant 0 : i32
    return %c0_i32, %c0_i32_0 : i32, i32
  }
  func.func @transform_3(%arg0: i32) -> (i32, i32) {
    %c0_i32 = arith.constant 0 : i32
    %c0_i32_0 = arith.constant 0 : i32
    return %arg0, %c0_i32 : i32, i32
  }
  func.func @transform_4(%arg0: i32) -> (i32, i32) {
    %c0_i32 = arith.constant 0 : i32
    %c0_i32_0 = arith.constant 0 : i32
    %c0_i32_1 = arith.constant 0 : i32
    return %c0_i32, %c0_i32_0 : i32, i32
  }
  func.func @transform_5(%arg0: i32) -> (i32, i32) {
    %c0_i32 = arith.constant 0 : i32
    %c0_i32_0 = arith.constant 0 : i32
    %c0_i32_1 = arith.constant 0 : i32
    return %c0_i32, %c0_i32_0 : i32, i32
  }
  func.func @transform_6(%arg0: i32) -> (i32, i32) {
    %c0_i32 = arith.constant 0 : i32
    %c0_i32_0 = arith.constant 0 : i32
    return %arg0, %c0_i32 : i32, i32
  }
}

</mosaic_0001>

<llo_original>
// kernel: bottleneck_gelu.6
$region0: #{bottleneck_gelu.6}
  #allocation0 [shape = 'u32[]', space=smem, size = 0x4, offset = 0x4, fixed_abs, tag = 'smem constant byte address 0x4 - core index']
  #allocation1 [shape = 'u32[144,128]{1,0:T(1,128)}', space=vmem, size = 0x12000, scoped, tag = 'internal scratch']
  %s0 = inlined_call_operand.vmem [shape: f32[2048,4], index: 0, kind: input, shape index: {}]
  %s1 = inlined_call_operand.vmem [shape: bf16[4,8], index: 1, kind: input, shape index: {}]
  %s2 = inlined_call_operand.vmem [shape: f32[2048,8], index: 2, kind: output, shape index: {0}]
  %s3 = inlined_call_operand.vmem [shape: f32[8,1,8], index: 3, kind: output, shape index: {1}]
  %s4 = inlined_call_operand.vmem [shape: f32[8,1,8], index: 4, kind: output, shape index: {2}]
  %5 = xla_tuple %s2, %s3, %s4
  %s6 = sld [smem:[#allocation0]]
  $region57: #{bottleneck_gelu.6} parent=0
    _
  %s8 = ssub.s32 1, %s6
  %s9 = scalar_select 0, %s8, %s6
  loop: start=0, step=1, limit=10
  $region2: #{bottleneck_gelu.6} parent=0 // loop_pre_header
    _
  $region3: #{bottleneck_gelu.6} parent=0 // loop_header
    %s11 = sphi 0, %s15
    %p12 = scmp.ge.s32.totalorder %s11, 10
    %s21 = sphi 0, %s23
    %s24 = sphi 0, %s21
    %s25 = sphi 0, %s24
    %s41 = sphi 0, %s25
    %s45 = sphi 0, %s45
    %s47 = sphi 0, %s45
    %s48 = sphi 0, %s47
    %s62 = sphi 0, %s48
    %s68 = sphi 0, %s70
    %s71 = sphi 0, %s68
    %s72 = sphi 0, %s71
    %s88 = sphi 0, %s72
    %s94 = sphi 0, %s96
    %s97 = sphi 0, %s94
    %s98 = sphi 0, %s97
    %s114 = sphi 0, %s98
    %s120 = sphi 0, %s122
    %s123 = sphi 0, %s120
    %s124 = sphi 0, %s123
    %s140 = sphi 0, %s124
  $region4: #{bottleneck_gelu.6} parent=0 // loop_header_branch
    %14 = sbr.rel (%p12) target = $region8
  $region5: #{bottleneck_gelu.6} parent=0 // loop_body
    %s16 = ssub.s32 %s11, 1
    %s17 = ssub.s32 %s11, 2
    %s18 = sadd.s32 %s11, 1
    %s19 = ssub.s32 %s11, %s18
    %p20 = scmp.eq.s32.totalorder %s19, 0
    %s22 = sadd.s32 %s21, 1
    %s23 = scalar_select %p20, %s21, %s22
    %p26 = pneg %p20
    %p27 = scmp.eq.s32.totalorder %s11, 7
    %p28 = por %p26, %p27
    %p29 = scmp.ne.s32.totalorder %s21, %s24
    %p30 = scmp.eq.s32.totalorder %s11, 0
    %p31 = por %p29, %p30
    %p32 = scmp.ne.s32.totalorder %s21, %s24
    %p33 = scmp.eq.s32.totalorder %s16, 7
    %p34 = por %p32, %p33
    %p35 = scmp.ne.s32.totalorder %s24, %s25
    %p36 = scmp.eq.s32.totalorder %s16, 0
    %p37 = por %p35, %p36
    %p38 = scmp.ne.s32.totalorder %s24, %s25
    %p39 = scmp.eq.s32.totalorder %s17, 7
    %p40 = por %p38, %p39
    %p42 = scmp.ne.s32.totalorder %s25, %s41
    %p43 = scmp.eq.s32.totalorder %s17, 0
    %p44 = por %p42, %p43
    %s46 = sadd.s32 %s45, 1
    %p49 = scmp.eq.s32.totalorder %s11, 7
    %p50 = scmp.ne.s32.totalorder %s45, %s47
    %p51 = scmp.eq.s32.totalorder %s11, 0
    %p52 = por %p50, %p51
    %p53 = scmp.ne.s32.totalorder %s45, %s47
    %p54 = scmp.eq.s32.totalorder %s16, 7
    %p55 = por %p53, %p54
    %p56 = scmp.ne.s32.totalorder %s47, %s48
    %p57 = scmp.eq.s32.totalorder %s16, 0
    %p58 = por %p56, %p57
    %p59 = scmp.ne.s32.totalorder %s47, %s48
    %p60 = scmp.eq.s32.totalorder %s17, 7
    %p61 = por %p59, %p60
    %p63 = scmp.ne.s32.totalorder %s48, %s62
    %p64 = scmp.eq.s32.totalorder %s17, 0
    %p65 = por %p63, %p64
    %s66 = ssub.s32 %s11, %s18
    %p67 = scmp.eq.s32.totalorder %s66, 0
    %s69 = sadd.s32 %s68, 1
    %s70 = scalar_select %p67, %s68, %s69
    %p73 = pneg %p67
    %p74 = scmp.eq.s32.totalorder %s11, 7
    %p75 = por %p73, %p74
    %p76 = scmp.ne.s32.totalorder %s68, %s71
    %p77 = scmp.eq.s32.totalorder %s11, 0
    %p78 = por %p76, %p77
    %p79 = scmp.ne.s32.totalorder %s68, %s71
    %p80 = scmp.eq.s32.totalorder %s16, 7
    %p81 = por %p79, %p80
    %p82 = scmp.ne.s32.totalorder %s71, %s72
    %p83 = scmp.eq.s32.totalorder %s16, 0
    %p84 = por %p82, %p83
    %p85 = scmp.ne.s32.totalorder %s71, %s72
    %p86 = scmp.eq.s32.totalorder %s17, 7
    %p87 = por %p85, %p86
    %p89 = scmp.ne.s32.totalorder %s72, %s88
    %p90 = scmp.eq.s32.totalorder %s17, 0
    %p91 = por %p89, %p90
    %s92 = ssub.s32 %s11, %s18
    %p93 = scmp.eq.s32.totalorder %s92, 0
    %s95 = sadd.s32 %s94, 1
    %s96 = scalar_select %p93, %s94, %s95
    %p99 = pneg %p93
    %p100 = scmp.eq.s32.totalorder %s11, 7
    %p101 = por %p99, %p100
    %p102 = scmp.ne.s32.totalorder %s94, %s97
    %p103 = scmp.eq.s32.totalorder %s11, 0
    %p104 = por %p102, %p103
    %p105 = scmp.ne.s32.totalorder %s94, %s97
    %p106 = scmp.eq.s32.totalorder %s16, 7
    %p107 = por %p105, %p106
    %p108 = scmp.ne.s32.totalorder %s97, %s98
    %p109 = scmp.eq.s32.totalorder %s16, 0
    %p110 = por %p108, %p109
    %p111 = scmp.ne.s32.totalorder %s97, %s98
    %p112 = scmp.eq.s32.totalorder %s17, 7
    %p113 = por %p111, %p112
    %p115 = scmp.ne.s32.totalorder %s98, %s114
    %p116 = scmp.eq.s32.totalorder %s17, 0
    %p117 = por %p115, %p116
    %s118 = ssub.s32 %s11, %s18
    %p119 = scmp.eq.s32.totalorder %s118, 0
    %s121 = sadd.s32 %s120, 1
    %s122 = scalar_select %p119, %s120, %s121
    %p125 = pneg %p119
    %p126 = scmp.eq.s32.totalorder %s11, 7
    %p127 = por %p125, %p126
    %p128 = scmp.ne.s32.totalorder %s120, %s123
    %p129 = scmp.eq.s32.totalorder %s11, 0
    %p130 = por %p128, %p129
    %p131 = scmp.ne.s32.totalorder %s120, %s123
    %p132 = scmp.eq.s32.totalorder %s16, 7
    %p133 = por %p131, %p132
    %p134 = scmp.ne.s32.totalorder %s123, %s124
    %p135 = scmp.eq.s32.totalorder %s16, 0
    %p136 = por %p134, %p135
    %p137 = scmp.ne.s32.totalorder %s123, %s124
    %p138 = scmp.eq.s32.totalorder %s17, 7
    %p139 = por %p137, %p138
    %p141 = scmp.ne.s32.totalorder %s124, %s140
    %p142 = scmp.eq.s32.totalorder %s17, 0
    %p143 = por %p141, %p142
    %p144 = scmp.le.s32.totalorder 1, %s11
    %p145 = scmp.lt.s32.totalorder %s11, 9
    %p146 = pnand %p144, %p145
    %p147 = pneg %p146
    // Predicated region
    $region9: #{bottleneck_gelu.6} parent=5 // pred_check
      _
    $region10: #{bottleneck_gelu.6} parent=5 // pred_check_branch
      %149 = sbr.rel (%p146) target = $region12
    $region11: #{bottleneck_gelu.6} parent=5 // pred_region
      %s150 = ssub.s32 %s11, 1
      // Predicated region
      $region13: #{bottleneck_gelu.6} parent=11 // pred_check
        %p151 = pneg %p58
      $region14: #{bottleneck_gelu.6} parent=11 // pred_check_branch
        %153 = sbr.rel (%p151) target = $region16
      $region15: #{bottleneck_gelu.6} parent=11 // pred_region
        _
      $region16: #{bottleneck_gelu.6} parent=11 // pred_fallthru
        _
    $region12: #{bottleneck_gelu.6} parent=5 // pred_fallthru
      _
    %p154 = scmp.lt.s32.totalorder %s11, 8
    // Predicated region
    $region17: #{bottleneck_gelu.6} parent=5 // pred_check
      %p155 = pneg %p154
    $region18: #{bottleneck_gelu.6} parent=5 // pred_check_branch
      %157 = sbr.rel (%p155) target = $region20
    $region19: #{bottleneck_gelu.6} parent=5 // pred_region
      // Predicated region
      $region21: #{bottleneck_gelu.6} parent=19 // pred_check
        %p158 = pneg %p31
      $region22: #{bottleneck_gelu.6} parent=19 // pred_check_branch
        %160 = sbr.rel (%p158) target = $region24
      $region23: #{bottleneck_gelu.6} parent=19 // pred_region
        %s161 = smul.u32 32, %s11
        %p162 = scmp.lt.s32.totalorder %s161, 255
        %s163 = scalar_select %p162, %s161, 255
        %s164 = smul.addr %s163, 8
        %s165 = scalar_lea.vmem %s0, %s164
        %s166 = smul.u32 32, %s11
      $region24: #{bottleneck_gelu.6} parent=19 // pred_fallthru
        _
    $region20: #{bottleneck_gelu.6} parent=5 // pred_fallthru
      _
    %p167 = scmp.le.s32.totalorder 1, %s11
    %p168 = scmp.lt.s32.totalorder %s11, 9
    %p169 = pnand %p167, %p168
    %p170 = pneg %p169
    // Predicated region
    $region25: #{bottleneck_gelu.6} parent=5 // pred_check
      _
    $region26: #{bottleneck_gelu.6} parent=5 // pred_check_branch
      %172 = sbr.rel (%p169) target = $region28
    $region27: #{bottleneck_gelu.6} parent=5 // pred_region
      %s173 = ssub.s32 %s11, 1
      %s174 = smul.u32 32, %s16
      %p175 = scmp.lt.s32.totalorder %s174, 255
      %s176 = scalar_select %p175, %s174, 255
      %s177 = smul.addr %s176, 8
      %s178 = scalar_lea.vmem %s0, %s177
      %p179 = pneg %p37
      %p180 = pneg %p34
      %p181 = pneg %p58
      %p182 = pneg %p55
      %p183 = pneg %p84
      %p184 = pneg %p81
      %s185 = smul.u32 32, %s16
      %p186 = scmp.lt.s32.totalorder %s185, 255
      %s187 = scalar_select %p186, %s185, 255
      %s188 = smul.addr %s187, 8
      %s189 = scalar_lea.vmem %s2, %s188
      %p190 = pneg %p110
      %p191 = pneg %p107
      %p192 = scmp.lt.s32.totalorder %s16, 7
      %s193 = scalar_select %p192, %s16, 7
      %s194 = scalar_lea.vmem %s3, %s193
      %p195 = pneg %p136
      %p196 = pneg %p133
      %p197 = scmp.lt.s32.totalorder %s16, 7
      %s198 = scalar_select %p197, %s16, 7
      %s199 = scalar_lea.vmem %s4, %s198
      %s200 = smul.u32 32, %s16
      %p201 = scmp.lt.s32.totalorder %s200, 255
      %s202 = scalar_select %p201, %s200, 255
      %s203 = smul.addr %s202, 8
      %s204 = scalar_lea.vmem %s0, %s203
      %s205 = smul.u32 32, %s16
      %s206 = smul.u32 32, %s16
      %p207 = scmp.lt.s32.totalorder %s206, 255
      %s208 = scalar_select %p207, %s206, 255
      %s209 = smul.addr %s208, 8
      %s210 = scalar_lea.vmem %s2, %s209
      %s211 = smul.u32 32, %s16
      %p212 = scmp.lt.s32.totalorder %s16, 7
      %s213 = scalar_select %p212, %s16, 7
      %s214 = scalar_lea.vmem %s3, %s213
      %p215 = scmp.lt.s32.totalorder %s16, 7
      %s216 = scalar_select %p215, %s16, 7
      %s217 = scalar_lea.vmem %s4, %s216
      %v219 = vld [vmem:[%s204] sm:$0xff]
      %v220 = vld [vmem:[%s204 + $0x8] sm:$0xff]
      %v221 = vld [vmem:[%s204 + $0x10] sm:$0xff]
      %v222 = vld [vmem:[%s204 + $0x18] sm:$0xff]
      %v223 = vld [vmem:[%s204 + $0x20] sm:$0xff]
      %v224 = vld [vmem:[%s204 + $0x28] sm:$0xff]
      %v225 = vld [vmem:[%s204 + $0x30] sm:$0xff]
      %v226 = vld [vmem:[%s204 + $0x38] sm:$0xff]
      %v227 = vld [vmem:[%s204 + $0x40] sm:$0xff]
      %v228 = vld [vmem:[%s204 + $0x48] sm:$0xff]
      %v229 = vld [vmem:[%s204 + $0x50] sm:$0xff]
      %v230 = vld [vmem:[%s204 + $0x58] sm:$0xff]
      %v231 = vld [vmem:[%s204 + $0x60] sm:$0xff]
      %v232 = vld [vmem:[%s204 + $0x68] sm:$0xff]
      %v233 = vld [vmem:[%s204 + $0x70] sm:$0xff]
      %v234 = vld [vmem:[%s204 + $0x78] sm:$0xff]
      %v235 = vld [vmem:[%s204 + $0x80] sm:$0xff]
      %v236 = vld [vmem:[%s204 + $0x88] sm:$0xff]
      %v237 = vld [vmem:[%s204 + $0x90] sm:$0xff]
      %v238 = vld [vmem:[%s204 + $0x98] sm:$0xff]
      %v239 = vld [vmem:[%s204 + $0xa0] sm:$0xff]
      %v240 = vld [vmem:[%s204 + $0xa8] sm:$0xff]
      %v241 = vld [vmem:[%s204 + $0xb0] sm:$0xff]
      %v242 = vld [vmem:[%s204 + $0xb8] sm:$0xff]
      %v243 = vld [vmem:[%s204 + $0xc0] sm:$0xff]
      %v244 = vld [vmem:[%s204 + $0xc8] sm:$0xff]
      %v245 = vld [vmem:[%s204 + $0xd0] sm:$0xff]
      %v246 = vld [vmem:[%s204 + $0xd8] sm:$0xff]
      %v247 = vld [vmem:[%s204 + $0xe0] sm:$0xff]
      %v248 = vld [vmem:[%s204 + $0xe8] sm:$0xff]
      %v249 = vld [vmem:[%s204 + $0xf0] sm:$0xff]
      %v250 = vld [vmem:[%s204 + $0xf8] sm:$0xff]
      %v251 = vpack.c.bf16 %v220, %v219
      %v252 = vpack.c.bf16 %v222, %v221
      %v253 = vpack.c.bf16 %v224, %v223
      %v254 = vpack.c.bf16 %v226, %v225
      %v255 = vpack.c.bf16 %v228, %v227
      %v256 = vpack.c.bf16 %v230, %v229
      %v257 = vpack.c.bf16 %v232, %v231
      %v258 = vpack.c.bf16 %v234, %v233
      %v259 = vpack.c.bf16 %v236, %v235
      %v260 = vpack.c.bf16 %v238, %v237
      %v261 = vpack.c.bf16 %v240, %v239
      %v262 = vpack.c.bf16 %v242, %v241
      %v263 = vpack.c.bf16 %v244, %v243
      %v264 = vpack.c.bf16 %v246, %v245
      %v265 = vpack.c.bf16 %v248, %v247
      %v266 = vpack.c.bf16 %v250, %v249
      %v267 = vld [vmem:[%s1] sm:$0x3]
      %vm268 = vcmask 31744
      %v270 = vsel %vm268, %v251, 0
      %v273 = vsel %vm268, %v252, 0
      %v276 = vsel %vm268, %v253, 0
      %v279 = vsel %vm268, %v254, 0
      %v282 = vsel %vm268, %v255, 0
      %v285 = vsel %vm268, %v256, 0
      %v288 = vsel %vm268, %v257, 0
      %v291 = vsel %vm268, %v258, 0
      %v294 = vsel %vm268, %v259, 0
      %v297 = vsel %vm268, %v260, 0
      %v300 = vsel %vm268, %v261, 0
      %v303 = vsel %vm268, %v262, 0
      %v306 = vsel %vm268, %v263, 0
      %v309 = vsel %vm268, %v264, 0
      %v312 = vsel %vm268, %v265, 0
      %v315 = vsel %vm268, %v266, 0
      %vm317 = vcmask 1041408
      %v319 = vsel %vm317, %v267, 0
      %321 = vmatprep.subr.bf16.mxu0 0
      %322 = vmatpush1.bf16.msra.mxu0 %v319
      %323 = vmatprep.subr.bf16.mxu0 0
      %324 = vmatpush1.bf16.msra.mxu0 0
      %325 = vmatprep.subr.bf16.mxu0 0
      %326 = vmatpush1.bf16.msra.mxu0 0
      %327 = vmatprep.subr.bf16.mxu0 0
      %328 = vmatpush1.bf16.msra.mxu0 0
      %329 = vmatprep.subr.bf16.mxu0 0
      %330 = vmatpush1.bf16.msra.mxu0 0
      %331 = vmatprep.subr.bf16.mxu0 0
      %332 = vmatpush1.bf16.msra.mxu0 0
      %333 = vmatprep.subr.bf16.mxu0 0
      %334 = vmatpush1.bf16.msra.mxu0 0
      %335 = vmatprep.subr.bf16.mxu0 0
      %336 = vmatpush1.bf16.msra.mxu0 0
      %337 = vmatprep.subr.bf16.mxu0 0
      %338 = vmatpush1.bf16.msra.mxu0 0
      %339 = vmatprep.subr.bf16.mxu0 0
      %340 = vmatpush1.bf16.msra.mxu0 0
      %341 = vmatprep.subr.bf16.mxu0 0
      %342 = vmatpush1.bf16.msra.mxu0 0
      %343 = vmatprep.subr.bf16.mxu0 0
      %344 = vmatpush1.bf16.msra.mxu0 0
      %345 = vmatprep.subr.bf16.mxu0 0
      %346 = vmatpush1.bf16.msra.mxu0 0
      %347 = vmatprep.subr.bf16.mxu0 0
      %348 = vmatpush1.bf16.msra.mxu0 0
      %349 = vmatprep.subr.bf16.mxu0 0
      %350 = vmatpush1.bf16.msra.mxu0 0
      %351 = vmatprep.subr.bf16.mxu0 0
      %352 = vmatpush1.bf16.msra.mxu0 0
      %353 = vmatprep.mubr.bf16.mxu0 0
      %354 = vmatmul.mubr.bf16.gmra.mrb[0].mxu0 %v270
      %v355 = vpop.f32.mrb[0].mxu0
      %v356 = vadd.f32 0.0, %v355
      %v357 = vpop.f32.mrb[0].mxu0
      %v358 = vpop.f32.mrb[0].mxu0
      %v359 = vadd.f32 0.0, %v358
      %v360 = vpop.f32.mrb[0].mxu0
      %361 = vmatprep.mubr.bf16.mxu0 0
      %362 = vmatmul.mubr.bf16.gmra.mrb[0].mxu0 %v273
      %v363 = vpop.f32.mrb[0].mxu0
      %v364 = vadd.f32 0.0, %v363
      %v365 = vpop.f32.mrb[0].mxu0
      %v366 = vpop.f32.mrb[0].mxu0
      %v367 = vadd.f32 0.0, %v366
      %v368 = vpop.f32.mrb[0].mxu0
      %369 = vmatprep.mubr.bf16.mxu0 0
      %370 = vmatmul.mubr.bf16.gmra.mrb[0].mxu0 %v276
      %v371 = vpop.f32.mrb[0].mxu0
      %v372 = vadd.f32 0.0, %v371
      %v373 = vpop.f32.mrb[0].mxu0
      %v374 = vpop.f32.mrb[0].mxu0
      %v375 = vadd.f32 0.0, %v374
      %v376 = vpop.f32.mrb[0].mxu0
      %377 = vmatprep.mubr.bf16.mxu0 0
      %378 = vmatmul.mubr.bf16.gmra.mrb[0].mxu0 %v279
      %v379 = vpop.f32.mrb[0].mxu0
      %v380 = vadd.f32 0.0, %v379
      %v381 = vpop.f32.mrb[0].mxu0
      %v382 = vpop.f32.mrb[0].mxu0
      %v383 = vadd.f32 0.0, %v382
      %v384 = vpop.f32.mrb[0].mxu0
      %385 = vmatprep.mubr.bf16.mxu0 0
      %386 = vmatmul.mubr.bf16.gmra.mrb[0].mxu0 %v282
      %v387 = vpop.f32.mrb[0].mxu0
      %v388 = vadd.f32 0.0, %v387
      %v389 = vpop.f32.mrb[0].mxu0
      %v390 = vpop.f32.mrb[0].mxu0
      %v391 = vadd.f32 0.0, %v390
      %v392 = vpop.f32.mrb[0].mxu0
      %393 = vmatprep.mubr.bf16.mxu0 0
      %394 = vmatmul.mubr.bf16.gmra.mrb[0].mxu0 %v285
      %v395 = vpop.f32.mrb[0].mxu0
      %v396 = vadd.f32 0.0, %v395
      %v397 = vpop.f32.mrb[0].mxu0
      %v398 = vpop.f32.mrb[0].mxu0
      %v399 = vadd.f32 0.0, %v398
      %v400 = vpop.f32.mrb[0].mxu0
      %401 = vmatprep.mubr.bf16.mxu0 0
      %402 = vmatmul.mubr.bf16.gmra.mrb[0].mxu0 %v288
      %v403 = vpop.f32.mrb[0].mxu0
      %v404 = vadd.f32 0.0, %v403
      %v405 = vpop.f32.mrb[0].mxu0
      %v406 = vpop.f32.mrb[0].mxu0
      %v407 = vadd.f32 0.0, %v406
      %v408 = vpop.f32.mrb[0].mxu0
      %409 = vmatprep.mubr.bf16.mxu0 0
      %410 = vmatmul.mubr.bf16.gmra.mrb[0].mxu0 %v291
      %v411 = vpop.f32.mrb[0].mxu0
      %v412 = vadd.f32 0.0, %v411
      %v413 = vpop.f32.mrb[0].mxu0
      %v414 = vpop.f32.mrb[0].mxu0
      %v415 = vadd.f32 0.0, %v414
      %v416 = vpop.f32.mrb[0].mxu0
      %417 = vmatprep.mubr.bf16.mxu0 0
      %418 = vmatmul.mubr.bf16.gmra.mrb[0].mxu0 %v294
      %v419 = vpop.f32.mrb[0].mxu0
      %v420 = vadd.f32 0.0, %v419
      %v421 = vpop.f32.mrb[0].mxu0
      %v422 = vpop.f32.mrb[0].mxu0
      %v423 = vadd.f32 0.0, %v422
      %v424 = vpop.f32.mrb[0].mxu0
      %425 = vmatprep.mubr.bf16.mxu0 0
      %426 = vmatmul.mubr.bf16.gmra.mrb[0].mxu0 %v297
      %v427 = vpop.f32.mrb[0].mxu0
      %v428 = vadd.f32 0.0, %v427
      %v429 = vpop.f32.mrb[0].mxu0
      %v430 = vpop.f32.mrb[0].mxu0
      %v431 = vadd.f32 0.0, %v430
      %v432 = vpop.f32.mrb[0].mxu0
      %433 = vmatprep.mubr.bf16.mxu0 0
      %434 = vmatmul.mubr.bf16.gmra.mrb[0].mxu0 %v300
      %v435 = vpop.f32.mrb[0].mxu0
      %v436 = vadd.f32 0.0, %v435
      %v437 = vpop.f32.mrb[0].mxu0
      %v438 = vpop.f32.mrb[0].mxu0
      %v439 = vadd.f32 0.0, %v438
      %v440 = vpop.f32.mrb[0].mxu0
      %441 = vmatprep.mubr.bf16.mxu0 0
      %442 = vmatmul.mubr.bf16.gmra.mrb[0].mxu0 %v303
      %v443 = vpop.f32.mrb[0].mxu0
      %v444 = vadd.f32 0.0, %v443
      %v445 = vpop.f32.mrb[0].mxu0
      %v446 = vpop.f32.mrb[0].mxu0
      %v447 = vadd.f32 0.0, %v446
      %v448 = vpop.f32.mrb[0].mxu0
      %449 = vmatprep.mubr.bf16.mxu0 0
      %450 = vmatmul.mubr.bf16.gmra.mrb[0].mxu0 %v306
      %v451 = vpop.f32.mrb[0].mxu0
      %v452 = vadd.f32 0.0, %v451
      %v453 = vpop.f32.mrb[0].mxu0
      %v454 = vpop.f32.mrb[0].mxu0
      %v455 = vadd.f32 0.0, %v454
      %v456 = vpop.f32.mrb[0].mxu0
      %457 = vmatprep.mubr.bf16.mxu0 0
      %458 = vmatmul.mubr.bf16.gmra.mrb[0].mxu0 %v309
      %v459 = vpop.f32.mrb[0].mxu0
      %v460 = vadd.f32 0.0, %v459
      %v461 = vpop.f32.mrb[0].mxu0
      %v462 = vpop.f32.mrb[0].mxu0
      %v463 = vadd.f32 0.0, %v462
      %v464 = vpop.f32.mrb[0].mxu0
      %465 = vmatprep.mubr.bf16.mxu0 0
      %466 = vmatmul.mubr.bf16.gmra.mrb[0].mxu0 %v312
      %v467 = vpop.f32.mrb[0].mxu0
      %v468 = vadd.f32 0.0, %v467
      %v469 = vpop.f32.mrb[0].mxu0
      %v470 = vpop.f32.mrb[0].mxu0
      %v471 = vadd.f32 0.0, %v470
      %v472 = vpop.f32.mrb[0].mxu0
      %473 = vmatprep.mubr.bf16.mxu0 0
      %474 = vmatmul.mubr.bf16.gmra.mrb[0].mxu0 %v315
      %v475 = vpop.f32.mrb[0].mxu0
      %v476 = vadd.f32 0.0, %v475
      %v477 = vpop.f32.mrb[0].mxu0
      %v478 = vpop.f32.mrb[0].mxu0
      %v479 = vadd.f32 0.0, %v478
      %v480 = vpop.f32.mrb[0].mxu0
      %481 = vdwg.mxu0
      %vm482 = vcmask 64512
      %483 = vst.msk [vmem:[%s210] sm:$0xff] %vm482, %v356
      %484 = vst.msk [vmem:[%s210 + $0x8] sm:$0xff] %vm482, %v359
      %485 = vst.msk [vmem:[%s210 + $0x10] sm:$0xff] %vm482, %v364
      %486 = vst.msk [vmem:[%s210 + $0x18] sm:$0xff] %vm482, %v367
      %487 = vst.msk [vmem:[%s210 + $0x20] sm:$0xff] %vm482, %v372
      %488 = vst.msk [vmem:[%s210 + $0x28] sm:$0xff] %vm482, %v375
      %489 = vst.msk [vmem:[%s210 + $0x30] sm:$0xff] %vm482, %v380
      %490 = vst.msk [vmem:[%s210 + $0x38] sm:$0xff] %vm482, %v383
      %491 = vst.msk [vmem:[%s210 + $0x40] sm:$0xff] %vm482, %v388
      %492 = vst.msk [vmem:[%s210 + $0x48] sm:$0xff] %vm482, %v391
      %493 = vst.msk [vmem:[%s210 + $0x50] sm:$0xff] %vm482, %v396
      %494 = vst.msk [vmem:[%s210 + $0x58] sm:$0xff] %vm482, %v399
      %495 = vst.msk [vmem:[%s210 + $0x60] sm:$0xff] %vm482, %v404
      %496 = vst.msk [vmem:[%s210 + $0x68] sm:$0xff] %vm482, %v407
      %497 = vst.msk [vmem:[%s210 + $0x70] sm:$0xff] %vm482, %v412
      %498 = vst.msk [vmem:[%s210 + $0x78] sm:$0xff] %vm482, %v415
      %499 = vst.msk [vmem:[%s210 + $0x80] sm:$0xff] %vm482, %v420
      %500 = vst.msk [vmem:[%s210 + $0x88] sm:$0xff] %vm482, %v423
      %501 = vst.msk [vmem:[%s210 + $0x90] sm:$0xff] %vm482, %v428
      %502 = vst.msk [vmem:[%s210 + $0x98] sm:$0xff] %vm482, %v431
      %503 = vst.msk [vmem:[%s210 + $0xa0] sm:$0xff] %vm482, %v436
      %504 = vst.msk [vmem:[%s210 + $0xa8] sm:$0xff] %vm482, %v439
      %505 = vst.msk [vmem:[%s210 + $0xb0] sm:$0xff] %vm482, %v444
      %506 = vst.msk [vmem:[%s210 + $0xb8] sm:$0xff] %vm482, %v447
      %507 = vst.msk [vmem:[%s210 + $0xc0] sm:$0xff] %vm482, %v452
      %508 = vst.msk [vmem:[%s210 + $0xc8] sm:$0xff] %vm482, %v455
      %509 = vst.msk [vmem:[%s210 + $0xd0] sm:$0xff] %vm482, %v460
      %510 = vst.msk [vmem:[%s210 + $0xd8] sm:$0xff] %vm482, %v463
      %511 = vst.msk [vmem:[%s210 + $0xe0] sm:$0xff] %vm482, %v468
      %512 = vst.msk [vmem:[%s210 + $0xe8] sm:$0xff] %vm482, %v471
      %513 = vst.msk [vmem:[%s210 + $0xf0] sm:$0xff] %vm482, %v476
      %514 = vst.msk [vmem:[%s210 + $0xf8] sm:$0xff] %vm482, %v479
      %v515 = vsel %vm482, %v356, 0.0
      %v516 = vsel %vm482, %v359, 0.0
      %v517 = vadd.f32 %v515, %v516
      %v518 = vsel %vm482, %v364, 0.0
      %v519 = vadd.f32 %v517, %v518
      %v520 = vsel %vm482, %v367, 0.0
      %v521 = vadd.f32 %v519, %v520
      %v522 = vsel %vm482, %v372, 0.0
      %v523 = vadd.f32 %v521, %v522
      %v524 = vsel %vm482, %v375, 0.0
      %v525 = vadd.f32 %v523, %v524
      %v526 = vsel %vm482, %v380, 0.0
      %v527 = vadd.f32 %v525, %v526
      %v528 = vsel %vm482, %v383, 0.0
      %v529 = vadd.f32 %v527, %v528
      %v530 = vsel %vm482, %v388, 0.0
      %v531 = vadd.f32 %v529, %v530
      %v532 = vsel %vm482, %v391, 0.0
      %v533 = vadd.f32 %v531, %v532
      %v534 = vsel %vm482, %v396, 0.0
      %v535 = vadd.f32 %v533, %v534
      %v536 = vsel %vm482, %v399, 0.0
      %v537 = vadd.f32 %v535, %v536
      %v538 = vsel %vm482, %v404, 0.0
      %v539 = vadd.f32 %v537, %v538
      %v540 = vsel %vm482, %v407, 0.0
      %v541 = vadd.f32 %v539, %v540
      %v542 = vsel %vm482, %v412, 0.0
      %v543 = vadd.f32 %v541, %v542
      %v544 = vsel %vm482, %v415, 0.0
      %v545 = vadd.f32 %v543, %v544
      %v546 = vsel %vm482, %v420, 0.0
      %v547 = vadd.f32 %v545, %v546
      %v548 = vsel %vm482, %v423, 0.0
      %v549 = vadd.f32 %v547, %v548
      %v550 = vsel %vm482, %v428, 0.0
      %v551 = vadd.f32 %v549, %v550
      %v552 = vsel %vm482, %v431, 0.0
      %v553 = vadd.f32 %v551, %v552
      %v554 = vsel %vm482, %v436, 0.0
      %v555 = vadd.f32 %v553, %v554
      %v556 = vsel %vm482, %v439, 0.0
      %v557 = vadd.f32 %v555, %v556
      %v558 = vsel %vm482, %v444, 0.0
      %v559 = vadd.f32 %v557, %v558
      %v560 = vsel %vm482, %v447, 0.0
      %v561 = vadd.f32 %v559, %v560
      %v562 = vsel %vm482, %v452, 0.0
      %v563 = vadd.f32 %v561, %v562
      %v564 = vsel %vm482, %v455, 0.0
      %v565 = vadd.f32 %v563, %v564
      %v566 = vsel %vm482, %v460, 0.0
      %v567 = vadd.f32 %v565, %v566
      %v568 = vsel %vm482, %v463, 0.0
      %v569 = vadd.f32 %v567, %v568
      %v570 = vsel %vm482, %v468, 0.0
      %v571 = vadd.f32 %v569, %v570
      %v572 = vsel %vm482, %v471, 0.0
      %v573 = vadd.f32 %v571, %v572
      %v574 = vsel %vm482, %v476, 0.0
      %v575 = vadd.f32 %v573, %v574
      %v576 = vsel %vm482, %v479, 0.0
      %v577 = vadd.f32 %v575, %v576
      %v578 = vrot.slane %v577, 4
      %v579 = vadd.f32 %v577, %v578
      %v580 = vrot.slane %v579, 2
      %v581 = vadd.f32 %v579, %v580
      %v582 = vrot.slane %v581, 1
      %v583 = vadd.f32 %v581, %v582
      %vm584 = vcmask 57344
      %585 = vst.msk [vmem:[%s214] sm:$0x1] %vm584, %v583
      %v586 = vmul.f32 %v356, %v356
      %v587 = vmul.f32 %v359, %v359
      %v588 = vmul.f32 %v364, %v364
      %v589 = vmul.f32 %v367, %v367
      %v590 = vmul.f32 %v372, %v372
      %v591 = vmul.f32 %v375, %v375
      %v592 = vmul.f32 %v380, %v380
      %v593 = vmul.f32 %v383, %v383
      %v594 = vmul.f32 %v388, %v388
      %v595 = vmul.f32 %v391, %v391
      %v596 = vmul.f32 %v396, %v396
      %v597 = vmul.f32 %v399, %v399
      %v598 = vmul.f32 %v404, %v404
      %v599 = vmul.f32 %v407, %v407
      %v600 = vmul.f32 %v412, %v412
      %v601 = vmul.f32 %v415, %v415
      %v602 = vmul.f32 %v420, %v420
      %v603 = vmul.f32 %v423, %v423
      %v604 = vmul.f32 %v428, %v428
      %v605 = vmul.f32 %v431, %v431
      %v606 = vmul.f32 %v436, %v436
      %v607 = vmul.f32 %v439, %v439
      %v608 = vmul.f32 %v444, %v444
      %v609 = vmul.f32 %v447, %v447
      %v610 = vmul.f32 %v452, %v452
      %v611 = vmul.f32 %v455, %v455
      %v612 = vmul.f32 %v460, %v460
      %v613 = vmul.f32 %v463, %v463
      %v614 = vmul.f32 %v468, %v468
      %v615 = vmul.f32 %v471, %v471
      %v616 = vmul.f32 %v476, %v476
      %v617 = vmul.f32 %v479, %v479
      %v618 = vsel %vm482, %v586, 0.0
      %v619 = vsel %vm482, %v587, 0.0
      %v620 = vadd.f32 %v618, %v619
      %v621 = vsel %vm482, %v588, 0.0
      %v622 = vadd.f32 %v620, %v621
      %v623 = vsel %vm482, %v589, 0.0
      %v624 = vadd.f32 %v622, %v623
      %v625 = vsel %vm482, %v590, 0.0
      %v626 = vadd.f32 %v624, %v625
      %v627 = vsel %vm482, %v591, 0.0
      %v628 = vadd.f32 %v626, %v627
      %v629 = vsel %vm482, %v592, 0.0
      %v630 = vadd.f32 %v628, %v629
      %v631 = vsel %vm482, %v593, 0.0
      %v632 = vadd.f32 %v630, %v631
      %v633 = vsel %vm482, %v594, 0.0
      %v634 = vadd.f32 %v632, %v633
      %v635 = vsel %vm482, %v595, 0.0
      %v636 = vadd.f32 %v634, %v635
      %v637 = vsel %vm482, %v596, 0.0
      %v638 = vadd.f32 %v636, %v637
      %v639 = vsel %vm482, %v597, 0.0
      %v640 = vadd.f32 %v638, %v639
      %v641 = vsel %vm482, %v598, 0.0
      %v642 = vadd.f32 %v640, %v641
      %v643 = vsel %vm482, %v599, 0.0
      %v644 = vadd.f32 %v642, %v643
      %v645 = vsel %vm482, %v600, 0.0
      %v646 = vadd.f32 %v644, %v645
      %v647 = vsel %vm482, %v601, 0.0
      %v648 = vadd.f32 %v646, %v647
      %v649 = vsel %vm482, %v602, 0.0
      %v650 = vadd.f32 %v648, %v649
      %v651 = vsel %vm482, %v603, 0.0
      %v652 = vadd.f32 %v650, %v651
      %v653 = vsel %vm482, %v604, 0.0
      %v654 = vadd.f32 %v652, %v653
      %v655 = vsel %vm482, %v605, 0.0
      %v656 = vadd.f32 %v654, %v655
      %v657 = vsel %vm482, %v606, 0.0
      %v658 = vadd.f32 %v656, %v657
      %v659 = vsel %vm482, %v607, 0.0
      %v660 = vadd.f32 %v658, %v659
      %v661 = vsel %vm482, %v608, 0.0
      %v662 = vadd.f32 %v660, %v661
      %v663 = vsel %vm482, %v609, 0.0
      %v664 = vadd.f32 %v662, %v663
      %v665 = vsel %vm482, %v610, 0.0
      %v666 = vadd.f32 %v664, %v665
      %v667 = vsel %vm482, %v611, 0.0
      %v668 = vadd.f32 %v666, %v667
      %v669 = vsel %vm482, %v612, 0.0
      %v670 = vadd.f32 %v668, %v669
      %v671 = vsel %vm482, %v613, 0.0
      %v672 = vadd.f32 %v670, %v671
      %v673 = vsel %vm482, %v614, 0.0
      %v674 = vadd.f32 %v672, %v673
      %v675 = vsel %vm482, %v615, 0.0
      %v676 = vadd.f32 %v674, %v675
      %v677 = vsel %vm482, %v616, 0.0
      %v678 = vadd.f32 %v676, %v677
      %v679 = vsel %vm482, %v617, 0.0
      %v680 = vadd.f32 %v678, %v679
      %v681 = vrot.slane %v680, 4
      %v682 = vadd.f32 %v680, %v681
      %v683 = vrot.slane %v682, 2
      %v684 = vadd.f32 %v682, %v683
      %v685 = vrot.slane %v684, 1
      %v686 = vadd.f32 %v684, %v685
      %687 = vst.msk [vmem:[%s217] sm:$0x1] %vm584, %v686
      %s688 = smul.u32 32, %s16
      %p689 = scmp.lt.s32.totalorder %s688, 255
      %s690 = scalar_select %p689, %s688, 255
      %s691 = smul.addr %s690, 8
      %s692 = scalar_lea.vmem %s2, %s691
      %p693 = scmp.lt.s32.totalorder %s16, 7
      %s694 = scalar_select %p693, %s16, 7
      %s695 = scalar_lea.vmem %s3, %s694
      %p696 = scmp.lt.s32.totalorder %s16, 7
      %s697 = scalar_select %p696, %s16, 7
      %s698 = scalar_lea.vmem %s4, %s697
      // Predicated region
      $region29: #{bottleneck_gelu.6} parent=27 // pred_check
        %p699 = pneg %p81
      $region30: #{bottleneck_gelu.6} parent=27 // pred_check_branch
        %701 = sbr.rel (%p699) target = $region32
      $region31: #{bottleneck_gelu.6} parent=27 // pred_region
        %s702 = smul.u32 32, %s16
      $region32: #{bottleneck_gelu.6} parent=27 // pred_fallthru
        _
      // Predicated region
      $region33: #{bottleneck_gelu.6} parent=27 // pred_check
        %p703 = pneg %p107
      $region34: #{bottleneck_gelu.6} parent=27 // pred_check_branch
        %705 = sbr.rel (%p703) target = $region36
      $region35: #{bottleneck_gelu.6} parent=27 // pred_region
        _
      $region36: #{bottleneck_gelu.6} parent=27 // pred_fallthru
        _
      // Predicated region
      $region37: #{bottleneck_gelu.6} parent=27 // pred_check
        %p706 = pneg %p133
      $region38: #{bottleneck_gelu.6} parent=27 // pred_check_branch
        %708 = sbr.rel (%p706) target = $region40
      $region39: #{bottleneck_gelu.6} parent=27 // pred_region
        _
      $region40: #{bottleneck_gelu.6} parent=27 // pred_fallthru
        _
    $region28: #{bottleneck_gelu.6} parent=5 // pred_fallthru
      _
    %p709 = scmp.le.s32.totalorder 2, %s11
    // Predicated region
    $region41: #{bottleneck_gelu.6} parent=5 // pred_check
      %p710 = pneg %p709
    $region42: #{bottleneck_gelu.6} parent=5 // pred_check_branch
      %712 = sbr.rel (%p710) target = $region44
    $region43: #{bottleneck_gelu.6} parent=5 // pred_region
      %s713 = ssub.s32 %s11, 2
      // Predicated region
      $region45: #{bottleneck_gelu.6} parent=43 // pred_check
        %p714 = pneg %p87
      $region46: #{bottleneck_gelu.6} parent=43 // pred_check_branch
        %716 = sbr.rel (%p714) target = $region48
      $region47: #{bottleneck_gelu.6} parent=43 // pred_region
        %s717 = smul.u32 32, %s17
        %p718 = scmp.lt.s32.totalorder %s717, 255
        %s719 = scalar_select %p718, %s717, 255
        %s720 = smul.addr %s719, 8
        %s721 = scalar_lea.vmem %s2, %s720
      $region48: #{bottleneck_gelu.6} parent=43 // pred_fallthru
        _
      // Predicated region
      $region49: #{bottleneck_gelu.6} parent=43 // pred_check
        %p722 = pneg %p113
      $region50: #{bottleneck_gelu.6} parent=43 // pred_check_branch
        %724 = sbr.rel (%p722) target = $region52
      $region51: #{bottleneck_gelu.6} parent=43 // pred_region
        %p725 = scmp.lt.s32.totalorder %s17, 7
        %s726 = scalar_select %p725, %s17, 7
        %s727 = scalar_lea.vmem %s3, %s726
      $region52: #{bottleneck_gelu.6} parent=43 // pred_fallthru
        _
      // Predicated region
      $region53: #{bottleneck_gelu.6} parent=43 // pred_check
        %p728 = pneg %p139
      $region54: #{bottleneck_gelu.6} parent=43 // pred_check_branch
        %730 = sbr.rel (%p728) target = $region56
      $region55: #{bottleneck_gelu.6} parent=43 // pred_region
        %p731 = scmp.lt.s32.totalorder %s17, 7
        %s732 = scalar_select %p731, %s17, 7
        %s733 = scalar_lea.vmem %s4, %s732
      $region56: #{bottleneck_gelu.6} parent=43 // pred_fallthru
        _
    $region44: #{bottleneck_gelu.6} parent=5 // pred_fallthru
      _
  $region6: #{bottleneck_gelu.6} parent=0 // loop_footer
    %s15 = sadd.s32 1, %s11
  $region7: #{bottleneck_gelu.6} parent=0 // loop_footer_branch
    %10 = sbr.rel target = $region3
  $region8: #{bottleneck_gelu.6} parent=0 // loop_exit
    _

// kernel: bottleneck_gelu.7
$region0: #{bottleneck_gelu.7}
  #allocation0 [shape = 'u32[]', space=smem, size = 0x4, offset = 0x4, fixed_abs, tag = 'smem constant byte address 0x4 - core index']
  #allocation1 [shape = 'u32[144,128]{1,0:T(1,128)}', space=vmem, size = 0x12000, scoped, tag = 'internal scratch']
  %s0 = inlined_call_operand.vmem [shape: f32[2048,8], index: 0, kind: input, shape index: {}]
  %s1 = inlined_call_operand.vmem [shape: f32[1,8], index: 1, kind: input, shape index: {}]
  %s2 = inlined_call_operand.vmem [shape: f32[1,8], index: 2, kind: input, shape index: {}]
  %s3 = inlined_call_operand.vmem [shape: f32[2048,8], index: 3, kind: output, shape index: {}]
  %s4 = sld [smem:[#allocation0]]
  $region45: #{bottleneck_gelu.7} parent=0
    _
  %s6 = ssub.s32 1, %s4
  %s7 = scalar_select 0, %s6, %s4
  loop: start=0, step=1, limit=10
  $region2: #{bottleneck_gelu.7} parent=0 // loop_pre_header
    _
  $region3: #{bottleneck_gelu.7} parent=0 // loop_header
    %s9 = sphi 0, %s13
    %p10 = scmp.ge.s32.totalorder %s9, 10
    %s19 = sphi 0, %s21
    %s22 = sphi 0, %s19
    %s23 = sphi 0, %s22
    %s39 = sphi 0, %s23
    %s43 = sphi 0, %s43
    %s45 = sphi 0, %s43
    %s46 = sphi 0, %s45
    %s60 = sphi 0, %s46
    %s64 = sphi 0, %s64
    %s66 = sphi 0, %s64
    %s67 = sphi 0, %s66
    %s81 = sphi 0, %s67
    %s87 = sphi 0, %s89
    %s90 = sphi 0, %s87
    %s91 = sphi 0, %s90
    %s107 = sphi 0, %s91
  $region4: #{bottleneck_gelu.7} parent=0 // loop_header_branch
    %12 = sbr.rel (%p10) target = $region8
  $region5: #{bottleneck_gelu.7} parent=0 // loop_body
    %s14 = ssub.s32 %s9, 1
    %s15 = ssub.s32 %s9, 2
    %s16 = sadd.s32 %s9, 1
    %s17 = ssub.s32 %s9, %s16
    %p18 = scmp.eq.s32.totalorder %s17, 0
    %s20 = sadd.s32 %s19, 1
    %s21 = scalar_select %p18, %s19, %s20
    %p24 = pneg %p18
    %p25 = scmp.eq.s32.totalorder %s9, 7
    %p26 = por %p24, %p25
    %p27 = scmp.ne.s32.totalorder %s19, %s22
    %p28 = scmp.eq.s32.totalorder %s9, 0
    %p29 = por %p27, %p28
    %p30 = scmp.ne.s32.totalorder %s19, %s22
    %p31 = scmp.eq.s32.totalorder %s14, 7
    %p32 = por %p30, %p31
    %p33 = scmp.ne.s32.totalorder %s22, %s23
    %p34 = scmp.eq.s32.totalorder %s14, 0
    %p35 = por %p33, %p34
    %p36 = scmp.ne.s32.totalorder %s22, %s23
    %p37 = scmp.eq.s32.totalorder %s15, 7
    %p38 = por %p36, %p37
    %p40 = scmp.ne.s32.totalorder %s23, %s39
    %p41 = scmp.eq.s32.totalorder %s15, 0
    %p42 = por %p40, %p41
    %s44 = sadd.s32 %s43, 1
    %p47 = scmp.eq.s32.totalorder %s9, 7
    %p48 = scmp.ne.s32.totalorder %s43, %s45
    %p49 = scmp.eq.s32.totalorder %s9, 0
    %p50 = por %p48, %p49
    %p51 = scmp.ne.s32.totalorder %s43, %s45
    %p52 = scmp.eq.s32.totalorder %s14, 7
    %p53 = por %p51, %p52
    %p54 = scmp.ne.s32.totalorder %s45, %s46
    %p55 = scmp.eq.s32.totalorder %s14, 0
    %p56 = por %p54, %p55
    %p57 = scmp.ne.s32.totalorder %s45, %s46
    %p58 = scmp.eq.s32.totalorder %s15, 7
    %p59 = por %p57, %p58
    %p61 = scmp.ne.s32.totalorder %s46, %s60
    %p62 = scmp.eq.s32.totalorder %s15, 0
    %p63 = por %p61, %p62
    %s65 = sadd.s32 %s64, 1
    %p68 = scmp.eq.s32.totalorder %s9, 7
    %p69 = scmp.ne.s32.totalorder %s64, %s66
    %p70 = scmp.eq.s32.totalorder %s9, 0
    %p71 = por %p69, %p70
    %p72 = scmp.ne.s32.totalorder %s64, %s66
    %p73 = scmp.eq.s32.totalorder %s14, 7
    %p74 = por %p72, %p73
    %p75 = scmp.ne.s32.totalorder %s66, %s67
    %p76 = scmp.eq.s32.totalorder %s14, 0
    %p77 = por %p75, %p76
    %p78 = scmp.ne.s32.totalorder %s66, %s67
    %p79 = scmp.eq.s32.totalorder %s15, 7
    %p80 = por %p78, %p79
    %p82 = scmp.ne.s32.totalorder %s67, %s81
    %p83 = scmp.eq.s32.totalorder %s15, 0
    %p84 = por %p82, %p83
    %s85 = ssub.s32 %s9, %s16
    %p86 = scmp.eq.s32.totalorder %s85, 0
    %s88 = sadd.s32 %s87, 1
    %s89 = scalar_select %p86, %s87, %s88
    %p92 = pneg %p86
    %p93 = scmp.eq.s32.totalorder %s9, 7
    %p94 = por %p92, %p93
    %p95 = scmp.ne.s32.totalorder %s87, %s90
    %p96 = scmp.eq.s32.totalorder %s9, 0
    %p97 = por %p95, %p96
    %p98 = scmp.ne.s32.totalorder %s87, %s90
    %p99 = scmp.eq.s32.totalorder %s14, 7
    %p100 = por %p98, %p99
    %p101 = scmp.ne.s32.totalorder %s90, %s91
    %p102 = scmp.eq.s32.totalorder %s14, 0
    %p103 = por %p101, %p102
    %p104 = scmp.ne.s32.totalorder %s90, %s91
    %p105 = scmp.eq.s32.totalorder %s15, 7
    %p106 = por %p104, %p105
    %p108 = scmp.ne.s32.totalorder %s91, %s107
    %p109 = scmp.eq.s32.totalorder %s15, 0
    %p110 = por %p108, %p109
    %p111 = scmp.le.s32.totalorder 1, %s9
    %p112 = scmp.lt.s32.totalorder %s9, 9
    %p113 = pnand %p111, %p112
    %p114 = pneg %p113
    // Predicated region
    $region9: #{bottleneck_gelu.7} parent=5 // pred_check
      _
    $region10: #{bottleneck_gelu.7} parent=5 // pred_check_branch
      %116 = sbr.rel (%p113) target = $region12
    $region11: #{bottleneck_gelu.7} parent=5 // pred_region
      %s117 = ssub.s32 %s9, 1
      // Predicated region
      $region13: #{bottleneck_gelu.7} parent=11 // pred_check
        %p118 = pneg %p56
      $region14: #{bottleneck_gelu.7} parent=11 // pred_check_branch
        %120 = sbr.rel (%p118) target = $region16
      $region15: #{bottleneck_gelu.7} parent=11 // pred_region
        _
      $region16: #{bottleneck_gelu.7} parent=11 // pred_fallthru
        _
      // Predicated region
      $region17: #{bottleneck_gelu.7} parent=11 // pred_check
        %p121 = pneg %p77
      $region18: #{bottleneck_gelu.7} parent=11 // pred_check_branch
        %123 = sbr.rel (%p121) target = $region20
      $region19: #{bottleneck_gelu.7} parent=11 // pred_region
        _
      $region20: #{bottleneck_gelu.7} parent=11 // pred_fallthru
        _
    $region12: #{bottleneck_gelu.7} parent=5 // pred_fallthru
      _
    %p124 = scmp.lt.s32.totalorder %s9, 8
    // Predicated region
    $region21: #{bottleneck_gelu.7} parent=5 // pred_check
      %p125 = pneg %p124
    $region22: #{bottleneck_gelu.7} parent=5 // pred_check_branch
      %127 = sbr.rel (%p125) target = $region24
    $region23: #{bottleneck_gelu.7} parent=5 // pred_region
      // Predicated region
      $region25: #{bottleneck_gelu.7} parent=23 // pred_check
        %p128 = pneg %p29
      $region26: #{bottleneck_gelu.7} parent=23 // pred_check_branch
        %130 = sbr.rel (%p128) target = $region28
      $region27: #{bottleneck_gelu.7} parent=23 // pred_region
        %s131 = smul.u32 32, %s9
        %p132 = scmp.lt.s32.totalorder %s131, 255
        %s133 = scalar_select %p132, %s131, 255
        %s134 = smul.addr %s133, 8
        %s135 = scalar_lea.vmem %s0, %s134
        %s136 = smul.u32 32, %s9
      $region28: #{bottleneck_gelu.7} parent=23 // pred_fallthru
        _
    $region24: #{bottleneck_gelu.7} parent=5 // pred_fallthru
      _
    %p137 = scmp.le.s32.totalorder 1, %s9
    %p138 = scmp.lt.s32.totalorder %s9, 9
    %p139 = pnand %p137, %p138
    %p140 = pneg %p139
    // Predicated region
    $region29: #{bottleneck_gelu.7} parent=5 // pred_check
      _
    $region30: #{bottleneck_gelu.7} parent=5 // pred_check_branch
      %142 = sbr.rel (%p139) target = $region32
    $region31: #{bottleneck_gelu.7} parent=5 // pred_region
      %s143 = ssub.s32 %s9, 1
      %s144 = smul.u32 32, %s14
      %p145 = scmp.lt.s32.totalorder %s144, 255
      %s146 = scalar_select %p145, %s144, 255
      %s147 = smul.addr %s146, 8
      %s148 = scalar_lea.vmem %s0, %s147
      %p149 = pneg %p35
      %p150 = pneg %p32
      %p151 = pneg %p56
      %p152 = pneg %p53
      %p153 = pneg %p77
      %p154 = pneg %p74
      %p155 = pneg %p103
      %p156 = pneg %p100
      %s157 = smul.u32 32, %s14
      %p158 = scmp.lt.s32.totalorder %s157, 255
      %s159 = scalar_select %p158, %s157, 255
      %s160 = smul.addr %s159, 8
      %s161 = scalar_lea.vmem %s3, %s160
      %s162 = smul.u32 32, %s14
      %p163 = scmp.lt.s32.totalorder %s162, 255
      %s164 = scalar_select %p163, %s162, 255
      %s165 = smul.addr %s164, 8
      %s166 = scalar_lea.vmem %s0, %s165
      %s167 = smul.u32 32, %s14
      %s168 = smul.u32 32, %s14
      %p169 = scmp.lt.s32.totalorder %s168, 255
      %s170 = scalar_select %p169, %s168, 255
      %s171 = smul.addr %s170, 8
      %s172 = scalar_lea.vmem %s3, %s171
      %s173 = smul.u32 32, %s14
      %v174 = vld [vmem:[%s166] sm:$0xff]
      %v175 = vld [vmem:[%s166 + $0x8] sm:$0xff]
      %v176 = vld [vmem:[%s166 + $0x10] sm:$0xff]
      %v177 = vld [vmem:[%s166 + $0x18] sm:$0xff]
      %v178 = vld [vmem:[%s166 + $0x20] sm:$0xff]
      %v179 = vld [vmem:[%s166 + $0x28] sm:$0xff]
      %v180 = vld [vmem:[%s166 + $0x30] sm:$0xff]
      %v181 = vld [vmem:[%s166 + $0x38] sm:$0xff]
      %v182 = vld [vmem:[%s166 + $0x40] sm:$0xff]
      %v183 = vld [vmem:[%s166 + $0x48] sm:$0xff]
      %v184 = vld [vmem:[%s166 + $0x50] sm:$0xff]
      %v185 = vld [vmem:[%s166 + $0x58] sm:$0xff]
      %v186 = vld [vmem:[%s166 + $0x60] sm:$0xff]
      %v187 = vld [vmem:[%s166 + $0x68] sm:$0xff]
      %v188 = vld [vmem:[%s166 + $0x70] sm:$0xff]
      %v189 = vld [vmem:[%s166 + $0x78] sm:$0xff]
      %v190 = vld [vmem:[%s166 + $0x80] sm:$0xff]
      %v191 = vld [vmem:[%s166 + $0x88] sm:$0xff]
      %v192 = vld [vmem:[%s166 + $0x90] sm:$0xff]
      %v193 = vld [vmem:[%s166 + $0x98] sm:$0xff]
      %v194 = vld [vmem:[%s166 + $0xa0] sm:$0xff]
      %v195 = vld [vmem:[%s166 + $0xa8] sm:$0xff]
      %v196 = vld [vmem:[%s166 + $0xb0] sm:$0xff]
      %v197 = vld [vmem:[%s166 + $0xb8] sm:$0xff]
      %v198 = vld [vmem:[%s166 + $0xc0] sm:$0xff]
      %v199 = vld [vmem:[%s166 + $0xc8] sm:$0xff]
      %v200 = vld [vmem:[%s166 + $0xd0] sm:$0xff]
      %v201 = vld [vmem:[%s166 + $0xd8] sm:$0xff]
      %v202 = vld [vmem:[%s166 + $0xe0] sm:$0xff]
      %v203 = vld [vmem:[%s166 + $0xe8] sm:$0xff]
      %v204 = vld [vmem:[%s166 + $0xf0] sm:$0xff]
      %v205 = vld [vmem:[%s166 + $0xf8] sm:$0xff]
      %v206 = vld [vmem:[%s1] sm:$0x1]
      %v208 = vlaneseq
      %v209 = vshrl.u32 %v208, 7
      %v210 = vsub.s32 0, %v209
      %v211 = vrot.slane %v206, %v210
      %v213 = vmul.f32 %v174, %v211
      %v214 = vmul.f32 %v175, %v211
      %v215 = vmul.f32 %v176, %v211
      %v216 = vmul.f32 %v177, %v211
      %v217 = vmul.f32 %v178, %v211
      %v218 = vmul.f32 %v179, %v211
      %v219 = vmul.f32 %v180, %v211
      %v220 = vmul.f32 %v181, %v211
      %v221 = vmul.f32 %v182, %v211
      %v222 = vmul.f32 %v183, %v211
      %v223 = vmul.f32 %v184, %v211
      %v224 = vmul.f32 %v185, %v211
      %v225 = vmul.f32 %v186, %v211
      %v226 = vmul.f32 %v187, %v211
      %v227 = vmul.f32 %v188, %v211
      %v228 = vmul.f32 %v189, %v211
      %v229 = vmul.f32 %v190, %v211
      %v230 = vmul.f32 %v191, %v211
      %v231 = vmul.f32 %v192, %v211
      %v232 = vmul.f32 %v193, %v211
      %v233 = vmul.f32 %v194, %v211
      %v234 = vmul.f32 %v195, %v211
      %v235 = vmul.f32 %v196, %v211
      %v236 = vmul.f32 %v197, %v211
      %v237 = vmul.f32 %v198, %v211
      %v238 = vmul.f32 %v199, %v211
      %v239 = vmul.f32 %v200, %v211
      %v240 = vmul.f32 %v201, %v211
      %v241 = vmul.f32 %v202, %v211
      %v242 = vmul.f32 %v203, %v211
      %v243 = vmul.f32 %v204, %v211
      %v244 = vmul.f32 %v205, %v211
      %v245 = vld [vmem:[%s2] sm:$0x1]
      %v247 = vlaneseq
      %v248 = vshrl.u32 %v247, 7
      %v249 = vsub.s32 0, %v248
      %v250 = vrot.slane %v245, %v249
      %v252 = vadd.f32 %v213, %v250
      %v253 = vadd.f32 %v214, %v250
      %v254 = vadd.f32 %v215, %v250
      %v255 = vadd.f32 %v216, %v250
      %v256 = vadd.f32 %v217, %v250
      %v257 = vadd.f32 %v218, %v250
      %v258 = vadd.f32 %v219, %v250
      %v259 = vadd.f32 %v220, %v250
      %v260 = vadd.f32 %v221, %v250
      %v261 = vadd.f32 %v222, %v250
      %v262 = vadd.f32 %v223, %v250
      %v263 = vadd.f32 %v224, %v250
      %v264 = vadd.f32 %v225, %v250
      %v265 = vadd.f32 %v226, %v250
      %v266 = vadd.f32 %v227, %v250
      %v267 = vadd.f32 %v228, %v250
      %v268 = vadd.f32 %v229, %v250
      %v269 = vadd.f32 %v230, %v250
      %v270 = vadd.f32 %v231, %v250
      %v271 = vadd.f32 %v232, %v250
      %v272 = vadd.f32 %v233, %v250
      %v273 = vadd.f32 %v234, %v250
      %v274 = vadd.f32 %v235, %v250
      %v275 = vadd.f32 %v236, %v250
      %v276 = vadd.f32 %v237, %v250
      %v277 = vadd.f32 %v238, %v250
      %v278 = vadd.f32 %v239, %v250
      %v279 = vadd.f32 %v240, %v250
      %v280 = vadd.f32 %v241, %v250
      %v281 = vadd.f32 %v242, %v250
      %v282 = vadd.f32 %v243, %v250
      %v283 = vadd.f32 %v244, %v250
      %v284 = vmul.f32 %v252, 0.5
      %v285 = vmul.f32 %v253, 0.5
      %v286 = vmul.f32 %v254, 0.5
      %v287 = vmul.f32 %v255, 0.5
      %v288 = vmul.f32 %v256, 0.5
      %v289 = vmul.f32 %v257, 0.5
      %v290 = vmul.f32 %v258, 0.5
      %v291 = vmul.f32 %v259, 0.5
      %v292 = vmul.f32 %v260, 0.5
      %v293 = vmul.f32 %v261, 0.5
      %v294 = vmul.f32 %v262, 0.5
      %v295 = vmul.f32 %v263, 0.5
      %v296 = vmul.f32 %v264, 0.5
      %v297 = vmul.f32 %v265, 0.5
      %v298 = vmul.f32 %v266, 0.5
      %v299 = vmul.f32 %v267, 0.5
      %v300 = vmul.f32 %v268, 0.5
      %v301 = vmul.f32 %v269, 0.5
      %v302 = vmul.f32 %v270, 0.5
      %v303 = vmul.f32 %v271, 0.5
      %v304 = vmul.f32 %v272, 0.5
      %v305 = vmul.f32 %v273, 0.5
      %v306 = vmul.f32 %v274, 0.5
      %v307 = vmul.f32 %v275, 0.5
      %v308 = vmul.f32 %v276, 0.5
      %v309 = vmul.f32 %v277, 0.5
      %v310 = vmul.f32 %v278, 0.5
      %v311 = vmul.f32 %v279, 0.5
      %v312 = vmul.f32 %v280, 0.5
      %v313 = vmul.f32 %v281, 0.5
      %v314 = vmul.f32 %v282, 0.5
      %v315 = vmul.f32 %v283, 0.5
      %v316 = vmul.f32 %v252, 0.70710677
      %v317 = vmul.f32 %v253, 0.70710677
      %v318 = vmul.f32 %v254, 0.70710677
      %v319 = vmul.f32 %v255, 0.70710677
      %v320 = vmul.f32 %v256, 0.70710677
      %v321 = vmul.f32 %v257, 0.70710677
      %v322 = vmul.f32 %v258, 0.70710677
      %v323 = vmul.f32 %v259, 0.70710677
      %v324 = vmul.f32 %v260, 0.70710677
      %v325 = vmul.f32 %v261, 0.70710677
      %v326 = vmul.f32 %v262, 0.70710677
      %v327 = vmul.f32 %v263, 0.70710677
      %v328 = vmul.f32 %v264, 0.70710677
      %v329 = vmul.f32 %v265, 0.70710677
      %v330 = vmul.f32 %v266, 0.70710677
      %v331 = vmul.f32 %v267, 0.70710677
      %v332 = vmul.f32 %v268, 0.70710677
      %v333 = vmul.f32 %v269, 0.70710677
      %v334 = vmul.f32 %v270, 0.70710677
      %v335 = vmul.f32 %v271, 0.70710677
      %v336 = vmul.f32 %v272, 0.70710677
      %v337 = vmul.f32 %v273, 0.70710677
      %v338 = vmul.f32 %v274, 0.70710677
      %v339 = vmul.f32 %v275, 0.70710677
      %v340 = vmul.f32 %v276, 0.70710677
      %v341 = vmul.f32 %v277, 0.70710677
      %v342 = vmul.f32 %v278, 0.70710677
      %v343 = vmul.f32 %v279, 0.70710677
      %v344 = vmul.f32 %v280, 0.70710677
      %v345 = vmul.f32 %v281, 0.70710677
      %v346 = vmul.f32 %v282, 0.70710677
      %v347 = vmul.f32 %v283, 0.70710677
      %v348 = verf.f32.pop %v316
      %v349 = verf.f32.pop %v317
      %v350 = verf.f32.pop %v318
      %v351 = verf.f32.pop %v319
      %v352 = verf.f32.pop %v320
      %v353 = verf.f32.pop %v321
      %v354 = verf.f32.pop %v322
      %v355 = verf.f32.pop %v323
      %v356 = verf.f32.pop %v324
      %v357 = verf.f32.pop %v325
      %v358 = verf.f32.pop %v326
      %v359 = verf.f32.pop %v327
      %v360 = verf.f32.pop %v328
      %v361 = verf.f32.pop %v329
      %v362 = verf.f32.pop %v330
      %v363 = verf.f32.pop %v331
      %v364 = verf.f32.pop %v332
      %v365 = verf.f32.pop %v333
      %v366 = verf.f32.pop %v334
      %v367 = verf.f32.pop %v335
      %v368 = verf.f32.pop %v336
      %v369 = verf.f32.pop %v337
      %v370 = verf.f32.pop %v338
      %v371 = verf.f32.pop %v339
      %v372 = verf.f32.pop %v340
      %v373 = verf.f32.pop %v341
      %v374 = verf.f32.pop %v342
      %v375 = verf.f32.pop %v343
      %v376 = verf.f32.pop %v344
      %v377 = verf.f32.pop %v345
      %v378 = verf.f32.pop %v346
      %v379 = verf.f32.pop %v347
      %v380 = vadd.f32 %v348, 1.0
      %v381 = vadd.f32 %v349, 1.0
      %v382 = vadd.f32 %v350, 1.0
      %v383 = vadd.f32 %v351, 1.0
      %v384 = vadd.f32 %v352, 1.0
      %v385 = vadd.f32 %v353, 1.0
      %v386 = vadd.f32 %v354, 1.0
      %v387 = vadd.f32 %v355, 1.0
      %v388 = vadd.f32 %v356, 1.0
      %v389 = vadd.f32 %v357, 1.0
      %v390 = vadd.f32 %v358, 1.0
      %v391 = vadd.f32 %v359, 1.0
      %v392 = vadd.f32 %v360, 1.0
      %v393 = vadd.f32 %v361, 1.0
      %v394 = vadd.f32 %v362, 1.0
      %v395 = vadd.f32 %v363, 1.0
      %v396 = vadd.f32 %v364, 1.0
      %v397 = vadd.f32 %v365, 1.0
      %v398 = vadd.f32 %v366, 1.0
      %v399 = vadd.f32 %v367, 1.0
      %v400 = vadd.f32 %v368, 1.0
      %v401 = vadd.f32 %v369, 1.0
      %v402 = vadd.f32 %v370, 1.0
      %v403 = vadd.f32 %v371, 1.0
      %v404 = vadd.f32 %v372, 1.0
      %v405 = vadd.f32 %v373, 1.0
      %v406 = vadd.f32 %v374, 1.0
      %v407 = vadd.f32 %v375, 1.0
      %v408 = vadd.f32 %v376, 1.0
      %v409 = vadd.f32 %v377, 1.0
      %v410 = vadd.f32 %v378, 1.0
      %v411 = vadd.f32 %v379, 1.0
      %v412 = vmul.f32 %v284, %v380
      %v413 = vmul.f32 %v285, %v381
      %v414 = vmul.f32 %v286, %v382
      %v415 = vmul.f32 %v287, %v383
      %v416 = vmul.f32 %v288, %v384
      %v417 = vmul.f32 %v289, %v385
      %v418 = vmul.f32 %v290, %v386
      %v419 = vmul.f32 %v291, %v387
      %v420 = vmul.f32 %v292, %v388
      %v421 = vmul.f32 %v293, %v389
      %v422 = vmul.f32 %v294, %v390
      %v423 = vmul.f32 %v295, %v391
      %v424 = vmul.f32 %v296, %v392
      %v425 = vmul.f32 %v297, %v393
      %v426 = vmul.f32 %v298, %v394
      %v427 = vmul.f32 %v299, %v395
      %v428 = vmul.f32 %v300, %v396
      %v429 = vmul.f32 %v301, %v397
      %v430 = vmul.f32 %v302, %v398
      %v431 = vmul.f32 %v303, %v399
      %v432 = vmul.f32 %v304, %v400
      %v433 = vmul.f32 %v305, %v401
      %v434 = vmul.f32 %v306, %v402
      %v435 = vmul.f32 %v307, %v403
      %v436 = vmul.f32 %v308, %v404
      %v437 = vmul.f32 %v309, %v405
      %v438 = vmul.f32 %v310, %v406
      %v439 = vmul.f32 %v311, %v407
      %v440 = vmul.f32 %v312, %v408
      %v441 = vmul.f32 %v313, %v409
      %v442 = vmul.f32 %v314, %v410
      %v443 = vmul.f32 %v315, %v411
      %vm444 = vcmask 64512
      %445 = vst.msk [vmem:[%s172] sm:$0xff] %vm444, %v412
      %446 = vst.msk [vmem:[%s172 + $0x8] sm:$0xff] %vm444, %v413
      %447 = vst.msk [vmem:[%s172 + $0x10] sm:$0xff] %vm444, %v414
      %448 = vst.msk [vmem:[%s172 + $0x18] sm:$0xff] %vm444, %v415
      %449 = vst.msk [vmem:[%s172 + $0x20] sm:$0xff] %vm444, %v416
      %450 = vst.msk [vmem:[%s172 + $0x28] sm:$0xff] %vm444, %v417
      %451 = vst.msk [vmem:[%s172 + $0x30] sm:$0xff] %vm444, %v418
      %452 = vst.msk [vmem:[%s172 + $0x38] sm:$0xff] %vm444, %v419
      %453 = vst.msk [vmem:[%s172 + $0x40] sm:$0xff] %vm444, %v420
      %454 = vst.msk [vmem:[%s172 + $0x48] sm:$0xff] %vm444, %v421
      %455 = vst.msk [vmem:[%s172 + $0x50] sm:$0xff] %vm444, %v422
      %456 = vst.msk [vmem:[%s172 + $0x58] sm:$0xff] %vm444, %v423
      %457 = vst.msk [vmem:[%s172 + $0x60] sm:$0xff] %vm444, %v424
      %458 = vst.msk [vmem:[%s172 + $0x68] sm:$0xff] %vm444, %v425
      %459 = vst.msk [vmem:[%s172 + $0x70] sm:$0xff] %vm444, %v426
      %460 = vst.msk [vmem:[%s172 + $0x78] sm:$0xff] %vm444, %v427
      %461 = vst.msk [vmem:[%s172 + $0x80] sm:$0xff] %vm444, %v428
      %462 = vst.msk [vmem:[%s172 + $0x88] sm:$0xff] %vm444, %v429
      %463 = vst.msk [vmem:[%s172 + $0x90] sm:$0xff] %vm444, %v430
      %464 = vst.msk [vmem:[%s172 + $0x98] sm:$0xff] %vm444, %v431
      %465 = vst.msk [vmem:[%s172 + $0xa0] sm:$0xff] %vm444, %v432
      %466 = vst.msk [vmem:[%s172 + $0xa8] sm:$0xff] %vm444, %v433
      %467 = vst.msk [vmem:[%s172 + $0xb0] sm:$0xff] %vm444, %v434
      %468 = vst.msk [vmem:[%s172 + $0xb8] sm:$0xff] %vm444, %v435
      %469 = vst.msk [vmem:[%s172 + $0xc0] sm:$0xff] %vm444, %v436
      %470 = vst.msk [vmem:[%s172 + $0xc8] sm:$0xff] %vm444, %v437
      %471 = vst.msk [vmem:[%s172 + $0xd0] sm:$0xff] %vm444, %v438
      %472 = vst.msk [vmem:[%s172 + $0xd8] sm:$0xff] %vm444, %v439
      %473 = vst.msk [vmem:[%s172 + $0xe0] sm:$0xff] %vm444, %v440
      %474 = vst.msk [vmem:[%s172 + $0xe8] sm:$0xff] %vm444, %v441
      %475 = vst.msk [vmem:[%s172 + $0xf0] sm:$0xff] %vm444, %v442
      %476 = vst.msk [vmem:[%s172 + $0xf8] sm:$0xff] %vm444, %v443
      %s477 = smul.u32 32, %s14
      %p478 = scmp.lt.s32.totalorder %s477, 255
      %s479 = scalar_select %p478, %s477, 255
      %s480 = smul.addr %s479, 8
      %s481 = scalar_lea.vmem %s3, %s480
      // Predicated region
      $region33: #{bottleneck_gelu.7} parent=31 // pred_check
        %p482 = pneg %p100
      $region34: #{bottleneck_gelu.7} parent=31 // pred_check_branch
        %484 = sbr.rel (%p482) target = $region36
      $region35: #{bottleneck_gelu.7} parent=31 // pred_region
        %s485 = smul.u32 32, %s14
      $region36: #{bottleneck_gelu.7} parent=31 // pred_fallthru
        _
    $region32: #{bottleneck_gelu.7} parent=5 // pred_fallthru
      _
    %p486 = scmp.le.s32.totalorder 2, %s9
    // Predicated region
    $region37: #{bottleneck_gelu.7} parent=5 // pred_check
      %p487 = pneg %p486
    $region38: #{bottleneck_gelu.7} parent=5 // pred_check_branch
      %489 = sbr.rel (%p487) target = $region40
    $region39: #{bottleneck_gelu.7} parent=5 // pred_region
      %s490 = ssub.s32 %s9, 2
      // Predicated region
      $region41: #{bottleneck_gelu.7} parent=39 // pred_check
        %p491 = pneg %p106
      $region42: #{bottleneck_gelu.7} parent=39 // pred_check_branch
        %493 = sbr.rel (%p491) target = $region44
      $region43: #{bottleneck_gelu.7} parent=39 // pred_region
        %s494 = smul.u32 32, %s15
        %p495 = scmp.lt.s32.totalorder %s494, 255
        %s496 = scalar_select %p495, %s494, 255
        %s497 = smul.addr %s496, 8
        %s498 = scalar_lea.vmem %s3, %s497
      $region44: #{bottleneck_gelu.7} parent=39 // pred_fallthru
        _
    $region40: #{bottleneck_gelu.7} parent=5 // pred_fallthru
      _
  $region6: #{bottleneck_gelu.7} parent=0 // loop_footer
    %s13 = sadd.s32 1, %s9
  $region7: #{bottleneck_gelu.7} parent=0 // loop_footer_branch
    %8 = sbr.rel target = $region3
  $region8: #{bottleneck_gelu.7} parent=0 // loop_exit
    _

// kernel: bottleneck_gelu.9
$region0: #{bottleneck_gelu.9}
  #allocation0 [shape = 'u32[]', space=smem, size = 0x4, offset = 0x4, fixed_abs, tag = 'smem constant byte address 0x4 - core index']
  #allocation1 [shape = 'u32[144,128]{1,0:T(1,128)}', space=vmem, size = 0x12000, scoped, tag = 'internal scratch']
  %s0 = inlined_call_operand.vmem [shape: f32[512,8], index: 0, kind: input, shape index: {}]
  %s1 = inlined_call_operand.vmem [shape: f32[1,8], index: 1, kind: input, shape index: {}]
  %s2 = inlined_call_operand.vmem [shape: f32[1,8], index: 2, kind: input, shape index: {}]
  %s3 = inlined_call_operand.vmem [shape: bf16[8,32], index: 3, kind: input, shape index: {}]
  %s4 = inlined_call_operand.vmem [shape: f32[512,32], index: 4, kind: output, shape index: {0}]
  %s5 = inlined_call_operand.vmem [shape: f32[2,1,32], index: 5, kind: output, shape index: {1}]
  %s6 = inlined_call_operand.vmem [shape: f32[2,1,32], index: 6, kind: output, shape index: {2}]
  %7 = xla_tuple %s4, %s5, %s6
  %s8 = sld [smem:[#allocation0]]
  $region65: #{bottleneck_gelu.9} parent=0
    _
  %s10 = ssub.s32 1, %s8
  %s11 = scalar_select 0, %s10, %s8
  loop: start=0, step=1, limit=4
  $region2: #{bottleneck_gelu.9} parent=0 // loop_pre_header
    _
  $region3: #{bottleneck_gelu.9} parent=0 // loop_header
    %s13 = sphi 0, %s17
    %p14 = scmp.ge.s32.totalorder %s13, 4
    %s23 = sphi 0, %s25
    %s26 = sphi 0, %s23
    %s27 = sphi 0, %s26
    %s43 = sphi 0, %s27
    %s47 = sphi 0, %s47
    %s49 = sphi 0, %s47
    %s50 = sphi 0, %s49
    %s64 = sphi 0, %s50
    %s68 = sphi 0, %s68
    %s70 = sphi 0, %s68
    %s71 = sphi 0, %s70
    %s85 = sphi 0, %s71
    %s89 = sphi 0, %s89
    %s91 = sphi 0, %s89
    %s92 = sphi 0, %s91
    %s106 = sphi 0, %s92
    %s112 = sphi 0, %s114
    %s115 = sphi 0, %s112
    %s116 = sphi 0, %s115
    %s132 = sphi 0, %s116
    %s138 = sphi 0, %s140
    %s141 = sphi 0, %s138
    %s142 = sphi 0, %s141
    %s158 = sphi 0, %s142
    %s164 = sphi 0, %s166
    %s167 = sphi 0, %s164
    %s168 = sphi 0, %s167
    %s184 = sphi 0, %s168
  $region4: #{bottleneck_gelu.9} parent=0 // loop_header_branch
    %16 = sbr.rel (%p14) target = $region8
  $region5: #{bottleneck_gelu.9} parent=0 // loop_body
    %s18 = ssub.s32 %s13, 1
    %s19 = ssub.s32 %s13, 2
    %s20 = sadd.s32 %s13, 1
    %s21 = ssub.s32 %s13, %s20
    %p22 = scmp.eq.s32.totalorder %s21, 0
    %s24 = sadd.s32 %s23, 1
    %s25 = scalar_select %p22, %s23, %s24
    %p28 = pneg %p22
    %p29 = scmp.eq.s32.totalorder %s13, 1
    %p30 = por %p28, %p29
    %p31 = scmp.ne.s32.totalorder %s23, %s26
    %p32 = scmp.eq.s32.totalorder %s13, 0
    %p33 = por %p31, %p32
    %p34 = scmp.ne.s32.totalorder %s23, %s26
    %p35 = scmp.eq.s32.totalorder %s18, 1
    %p36 = por %p34, %p35
    %p37 = scmp.ne.s32.totalorder %s26, %s27
    %p38 = scmp.eq.s32.totalorder %s18, 0
    %p39 = por %p37, %p38
    %p40 = scmp.ne.s32.totalorder %s26, %s27
    %p41 = scmp.eq.s32.totalorder %s19, 1
    %p42 = por %p40, %p41
    %p44 = scmp.ne.s32.totalorder %s27, %s43
    %p45 = scmp.eq.s32.totalorder %s19, 0
    %p46 = por %p44, %p45
    %s48 = sadd.s32 %s47, 1
    %p51 = scmp.eq.s32.totalorder %s13, 1
    %p52 = scmp.ne.s32.totalorder %s47, %s49
    %p53 = scmp.eq.s32.totalorder %s13, 0
    %p54 = por %p52, %p53
    %p55 = scmp.ne.s32.totalorder %s47, %s49
    %p56 = scmp.eq.s32.totalorder %s18, 1
    %p57 = por %p55, %p56
    %p58 = scmp.ne.s32.totalorder %s49, %s50
    %p59 = scmp.eq.s32.totalorder %s18, 0
    %p60 = por %p58, %p59
    %p61 = scmp.ne.s32.totalorder %s49, %s50
    %p62 = scmp.eq.s32.totalorder %s19, 1
    %p63 = por %p61, %p62
    %p65 = scmp.ne.s32.totalorder %s50, %s64
    %p66 = scmp.eq.s32.totalorder %s19, 0
    %p67 = por %p65, %p66
    %s69 = sadd.s32 %s68, 1
    %p72 = scmp.eq.s32.totalorder %s13, 1
    %p73 = scmp.ne.s32.totalorder %s68, %s70
    %p74 = scmp.eq.s32.totalorder %s13, 0
    %p75 = por %p73, %p74
    %p76 = scmp.ne.s32.totalorder %s68, %s70
    %p77 = scmp.eq.s32.totalorder %s18, 1
    %p78 = por %p76, %p77
    %p79 = scmp.ne.s32.totalorder %s70, %s71
    %p80 = scmp.eq.s32.totalorder %s18, 0
    %p81 = por %p79, %p80
    %p82 = scmp.ne.s32.totalorder %s70, %s71
    %p83 = scmp.eq.s32.totalorder %s19, 1
    %p84 = por %p82, %p83
    %p86 = scmp.ne.s32.totalorder %s71, %s85
    %p87 = scmp.eq.s32.totalorder %s19, 0
    %p88 = por %p86, %p87
    %s90 = sadd.s32 %s89, 1
    %p93 = scmp.eq.s32.totalorder %s13, 1
    %p94 = scmp.ne.s32.totalorder %s89, %s91
    %p95 = scmp.eq.s32.totalorder %s13, 0
    %p96 = por %p94, %p95
    %p97 = scmp.ne.s32.totalorder %s89, %s91
    %p98 = scmp.eq.s32.totalorder %s18, 1
    %p99 = por %p97, %p98
    %p100 = scmp.ne.s32.totalorder %s91, %s92
    %p101 = scmp.eq.s32.totalorder %s18, 0
    %p102 = por %p100, %p101
    %p103 = scmp.ne.s32.totalorder %s91, %s92
    %p104 = scmp.eq.s32.totalorder %s19, 1
    %p105 = por %p103, %p104
    %p107 = scmp.ne.s32.totalorder %s92, %s106
    %p108 = scmp.eq.s32.totalorder %s19, 0
    %p109 = por %p107, %p108
    %s110 = ssub.s32 %s13, %s20
    %p111 = scmp.eq.s32.totalorder %s110, 0
    %s113 = sadd.s32 %s112, 1
    %s114 = scalar_select %p111, %s112, %s113
    %p117 = pneg %p111
    %p118 = scmp.eq.s32.totalorder %s13, 1
    %p119 = por %p117, %p118
    %p120 = scmp.ne.s32.totalorder %s112, %s115
    %p121 = scmp.eq.s32.totalorder %s13, 0
    %p122 = por %p120, %p121
    %p123 = scmp.ne.s32.totalorder %s112, %s115
    %p124 = scmp.eq.s32.totalorder %s18, 1
    %p125 = por %p123, %p124
    %p126 = scmp.ne.s32.totalorder %s115, %s116
    %p127 = scmp.eq.s32.totalorder %s18, 0
    %p128 = por %p126, %p127
    %p129 = scmp.ne.s32.totalorder %s115, %s116
    %p130 = scmp.eq.s32.totalorder %s19, 1
    %p131 = por %p129, %p130
    %p133 = scmp.ne.s32.totalorder %s116, %s132
    %p134 = scmp.eq.s32.totalorder %s19, 0
    %p135 = por %p133, %p134
    %s136 = ssub.s32 %s13, %s20
    %p137 = scmp.eq.s32.totalorder %s136, 0
    %s139 = sadd.s32 %s138, 1
    %s140 = scalar_select %p137, %s138, %s139
    %p143 = pneg %p137
    %p144 = scmp.eq.s32.totalorder %s13, 1
    %p145 = por %p143, %p144
    %p146 = scmp.ne.s32.totalorder %s138, %s141
    %p147 = scmp.eq.s32.totalorder %s13, 0
    %p148 = por %p146, %p147
    %p149 = scmp.ne.s32.totalorder %s138, %s141
    %p150 = scmp.eq.s32.totalorder %s18, 1
    %p151 = por %p149, %p150
    %p152 = scmp.ne.s32.totalorder %s141, %s142
    %p153 = scmp.eq.s32.totalorder %s18, 0
    %p154 = por %p152, %p153
    %p155 = scmp.ne.s32.totalorder %s141, %s142
    %p156 = scmp.eq.s32.totalorder %s19, 1
    %p157 = por %p155, %p156
    %p159 = scmp.ne.s32.totalorder %s142, %s158
    %p160 = scmp.eq.s32.totalorder %s19, 0
    %p161 = por %p159, %p160
    %s162 = ssub.s32 %s13, %s20
    %p163 = scmp.eq.s32.totalorder %s162, 0
    %s165 = sadd.s32 %s164, 1
    %s166 = scalar_select %p163, %s164, %s165
    %p169 = pneg %p163
    %p170 = scmp.eq.s32.totalorder %s13, 1
    %p171 = por %p169, %p170
    %p172 = scmp.ne.s32.totalorder %s164, %s167
    %p173 = scmp.eq.s32.totalorder %s13, 0
    %p174 = por %p172, %p173
    %p175 = scmp.ne.s32.totalorder %s164, %s167
    %p176 = scmp.eq.s32.totalorder %s18, 1
    %p177 = por %p175, %p176
    %p178 = scmp.ne.s32.totalorder %s167, %s168
    %p179 = scmp.eq.s32.totalorder %s18, 0
    %p180 = por %p178, %p179
    %p181 = scmp.ne.s32.totalorder %s167, %s168
    %p182 = scmp.eq.s32.totalorder %s19, 1
    %p183 = por %p181, %p182
    %p185 = scmp.ne.s32.totalorder %s168, %s184
    %p186 = scmp.eq.s32.totalorder %s19, 0
    %p187 = por %p185, %p186
    %p188 = scmp.le.s32.totalorder 1, %s13
    %p189 = scmp.lt.s32.totalorder %s13, 3
    %p190 = pnand %p188, %p189
    %p191 = pneg %p190
    // Predicated region
    $region9: #{bottleneck_gelu.9} parent=5 // pred_check
      _
    $region10: #{bottleneck_gelu.9} parent=5 // pred_check_branch
      %193 = sbr.rel (%p190) target = $region12
    $region11: #{bottleneck_gelu.9} parent=5 // pred_region
      %s194 = ssub.s32 %s13, 1
      // Predicated region
      $region13: #{bottleneck_gelu.9} parent=11 // pred_check
        %p195 = pneg %p60
      $region14: #{bottleneck_gelu.9} parent=11 // pred_check_branch
        %197 = sbr.rel (%p195) target = $region16
      $region15: #{bottleneck_gelu.9} parent=11 // pred_region
        _
      $region16: #{bottleneck_gelu.9} parent=11 // pred_fallthru
        _
      // Predicated region
      $region17: #{bottleneck_gelu.9} parent=11 // pred_check
        %p198 = pneg %p81
      $region18: #{bottleneck_gelu.9} parent=11 // pred_check_branch
        %200 = sbr.rel (%p198) target = $region20
      $region19: #{bottleneck_gelu.9} parent=11 // pred_region
        _
      $region20: #{bottleneck_gelu.9} parent=11 // pred_fallthru
        _
      // Predicated region
      $region21: #{bottleneck_gelu.9} parent=11 // pred_check
        %p201 = pneg %p102
      $region22: #{bottleneck_gelu.9} parent=11 // pred_check_branch
        %203 = sbr.rel (%p201) target = $region24
      $region23: #{bottleneck_gelu.9} parent=11 // pred_region
        _
      $region24: #{bottleneck_gelu.9} parent=11 // pred_fallthru
        _
    $region12: #{bottleneck_gelu.9} parent=5 // pred_fallthru
      _
    %p204 = scmp.lt.s32.totalorder %s13, 2
    // Predicated region
    $region25: #{bottleneck_gelu.9} parent=5 // pred_check
      %p205 = pneg %p204
    $region26: #{bottleneck_gelu.9} parent=5 // pred_check_branch
      %207 = sbr.rel (%p205) target = $region28
    $region27: #{bottleneck_gelu.9} parent=5 // pred_region
      // Predicated region
      $region29: #{bottleneck_gelu.9} parent=27 // pred_check
        %p208 = pneg %p33
      $region30: #{bottleneck_gelu.9} parent=27 // pred_check_branch
        %210 = sbr.rel (%p208) target = $region32
      $region31: #{bottleneck_gelu.9} parent=27 // pred_region
        %s211 = smul.u32 32, %s13
        %p212 = scmp.lt.s32.totalorder %s211, 63
        %s213 = scalar_select %p212, %s211, 63
        %s214 = smul.addr %s213, 8
        %s215 = scalar_lea.vmem %s0, %s214
        %s216 = smul.u32 32, %s13
      $region32: #{bottleneck_gelu.9} parent=27 // pred_fallthru
        _
    $region28: #{bottleneck_gelu.9} parent=5 // pred_fallthru
      _
    %p217 = scmp.le.s32.totalorder 1, %s13
    %p218 = scmp.lt.s32.totalorder %s13, 3
    %p219 = pnand %p217, %p218
    %p220 = pneg %p219
    // Predicated region
    $region33: #{bottleneck_gelu.9} parent=5 // pred_check
      _
    $region34: #{bottleneck_gelu.9} parent=5 // pred_check_branch
      %222 = sbr.rel (%p219) target = $region36
    $region35: #{bottleneck_gelu.9} parent=5 // pred_region
      %s223 = ssub.s32 %s13, 1
      %s224 = smul.u32 32, %s18
      %p225 = scmp.lt.s32.totalorder %s224, 63
      %s226 = scalar_select %p225, %s224, 63
      %s227 = smul.addr %s226, 8
      %s228 = scalar_lea.vmem %s0, %s227
      %p229 = pneg %p39
      %p230 = pneg %p36
      %p231 = pneg %p60
      %p232 = pneg %p57
      %p233 = pneg %p81
      %p234 = pneg %p78
      %p235 = pneg %p102
      %p236 = pneg %p99
      %p237 = pneg %p128
      %p238 = pneg %p125
      %s239 = smul.u32 32, %s18
      %p240 = scmp.lt.s32.totalorder %s239, 63
      %s241 = scalar_select %p240, %s239, 63
      %s242 = smul.addr %s241, 8
      %s243 = scalar_lea.vmem %s4, %s242
      %p244 = pneg %p154
      %p245 = pneg %p151
      %p246 = scmp.lt.s32.totalorder %s18, 1
      %s247 = scalar_select %p246, %s18, 1
      %s248 = scalar_lea.vmem %s5, %s247
      %p249 = pneg %p180
      %p250 = pneg %p177
      %p251 = scmp.lt.s32.totalorder %s18, 1
      %s252 = scalar_select %p251, %s18, 1
      %s253 = scalar_lea.vmem %s6, %s252
      %s254 = smul.u32 32, %s18
      %p255 = scmp.lt.s32.totalorder %s254, 63
      %s256 = scalar_select %p255, %s254, 63
      %s257 = smul.addr %s256, 8
      %s258 = scalar_lea.vmem %s0, %s257
      %s259 = smul.u32 32, %s18
      %s260 = smul.u32 32, %s18
      %p261 = scmp.lt.s32.totalorder %s260, 63
      %s262 = scalar_select %p261, %s260, 63
      %s263 = smul.addr %s262, 8
      %s264 = scalar_lea.vmem %s4, %s263
      %s265 = smul.u32 32, %s18
      %p266 = scmp.lt.s32.totalorder %s18, 1
      %s267 = scalar_select %p266, %s18, 1
      %s268 = scalar_lea.vmem %s5, %s267
      %p269 = scmp.lt.s32.totalorder %s18, 1
      %s270 = scalar_select %p269, %s18, 1
      %s271 = scalar_lea.vmem %s6, %s270
      %v273 = vld [vmem:[%s258] sm:$0xff]
      %v274 = vld [vmem:[%s258 + $0x8] sm:$0xff]
      %v275 = vld [vmem:[%s258 + $0x10] sm:$0xff]
      %v276 = vld [vmem:[%s258 + $0x18] sm:$0xff]
      %v277 = vld [vmem:[%s258 + $0x20] sm:$0xff]
      %v278 = vld [vmem:[%s258 + $0x28] sm:$0xff]
      %v279 = vld [vmem:[%s258 + $0x30] sm:$0xff]
      %v280 = vld [vmem:[%s258 + $0x38] sm:$0xff]
      %v281 = vld [vmem:[%s258 + $0x40] sm:$0xff]
      %v282 = vld [vmem:[%s258 + $0x48] sm:$0xff]
      %v283 = vld [vmem:[%s258 + $0x50] sm:$0xff]
      %v284 = vld [vmem:[%s258 + $0x58] sm:$0xff]
      %v285 = vld [vmem:[%s258 + $0x60] sm:$0xff]
      %v286 = vld [vmem:[%s258 + $0x68] sm:$0xff]
      %v287 = vld [vmem:[%s258 + $0x70] sm:$0xff]
      %v288 = vld [vmem:[%s258 + $0x78] sm:$0xff]
      %v289 = vld [vmem:[%s258 + $0x80] sm:$0xff]
      %v290 = vld [vmem:[%s258 + $0x88] sm:$0xff]
      %v291 = vld [vmem:[%s258 + $0x90] sm:$0xff]
      %v292 = vld [vmem:[%s258 + $0x98] sm:$0xff]
      %v293 = vld [vmem:[%s258 + $0xa0] sm:$0xff]
      %v294 = vld [vmem:[%s258 + $0xa8] sm:$0xff]
      %v295 = vld [vmem:[%s258 + $0xb0] sm:$0xff]
      %v296 = vld [vmem:[%s258 + $0xb8] sm:$0xff]
      %v297 = vld [vmem:[%s258 + $0xc0] sm:$0xff]
      %v298 = vld [vmem:[%s258 + $0xc8] sm:$0xff]
      %v299 = vld [vmem:[%s258 + $0xd0] sm:$0xff]
      %v300 = vld [vmem:[%s258 + $0xd8] sm:$0xff]
      %v301 = vld [vmem:[%s258 + $0xe0] sm:$0xff]
      %v302 = vld [vmem:[%s258 + $0xe8] sm:$0xff]
      %v303 = vld [vmem:[%s258 + $0xf0] sm:$0xff]
      %v304 = vld [vmem:[%s258 + $0xf8] sm:$0xff]
      %v305 = vld [vmem:[%s1] sm:$0x1]
      %v307 = vlaneseq
      %v308 = vshrl.u32 %v307, 7
      %v309 = vsub.s32 0, %v308
      %v310 = vrot.slane %v305, %v309
      %v312 = vmul.f32 %v273, %v310
      %v313 = vmul.f32 %v274, %v310
      %v314 = vmul.f32 %v275, %v310
      %v315 = vmul.f32 %v276, %v310
      %v316 = vmul.f32 %v277, %v310
      %v317 = vmul.f32 %v278, %v310
      %v318 = vmul.f32 %v279, %v310
      %v319 = vmul.f32 %v280, %v310
      %v320 = vmul.f32 %v281, %v310
      %v321 = vmul.f32 %v282, %v310
      %v322 = vmul.f32 %v283, %v310
      %v323 = vmul.f32 %v284, %v310
      %v324 = vmul.f32 %v285, %v310
      %v325 = vmul.f32 %v286, %v310
      %v326 = vmul.f32 %v287, %v310
      %v327 = vmul.f32 %v288, %v310
      %v328 = vmul.f32 %v289, %v310
      %v329 = vmul.f32 %v290, %v310
      %v330 = vmul.f32 %v291, %v310
      %v331 = vmul.f32 %v292, %v310
      %v332 = vmul.f32 %v293, %v310
      %v333 = vmul.f32 %v294, %v310
      %v334 = vmul.f32 %v295, %v310
      %v335 = vmul.f32 %v296, %v310
      %v336 = vmul.f32 %v297, %v310
      %v337 = vmul.f32 %v298, %v310
      %v338 = vmul.f32 %v299, %v310
      %v339 = vmul.f32 %v300, %v310
      %v340 = vmul.f32 %v301, %v310
      %v341 = vmul.f32 %v302, %v310
      %v342 = vmul.f32 %v303, %v310
      %v343 = vmul.f32 %v304, %v310
      %v344 = vld [vmem:[%s2] sm:$0x1]
      %v346 = vlaneseq
      %v347 = vshrl.u32 %v346, 7
      %v348 = vsub.s32 0, %v347
      %v349 = vrot.slane %v344, %v348
      %v351 = vadd.f32 %v312, %v349
      %v352 = vadd.f32 %v313, %v349
      %v353 = vadd.f32 %v314, %v349
      %v354 = vadd.f32 %v315, %v349
      %v355 = vadd.f32 %v316, %v349
      %v356 = vadd.f32 %v317, %v349
      %v357 = vadd.f32 %v318, %v349
      %v358 = vadd.f32 %v319, %v349
      %v359 = vadd.f32 %v320, %v349
      %v360 = vadd.f32 %v321, %v349
      %v361 = vadd.f32 %v322, %v349
      %v362 = vadd.f32 %v323, %v349
      %v363 = vadd.f32 %v324, %v349
      %v364 = vadd.f32 %v325, %v349
      %v365 = vadd.f32 %v326, %v349
      %v366 = vadd.f32 %v327, %v349
      %v367 = vadd.f32 %v328, %v349
      %v368 = vadd.f32 %v329, %v349
      %v369 = vadd.f32 %v330, %v349
      %v370 = vadd.f32 %v331, %v349
      %v371 = vadd.f32 %v332, %v349
      %v372 = vadd.f32 %v333, %v349
      %v373 = vadd.f32 %v334, %v349
      %v374 = vadd.f32 %v335, %v349
      %v375 = vadd.f32 %v336, %v349
      %v376 = vadd.f32 %v337, %v349
      %v377 = vadd.f32 %v338, %v349
      %v378 = vadd.f32 %v339, %v349
      %v379 = vadd.f32 %v340, %v349
      %v380 = vadd.f32 %v341, %v349
      %v381 = vadd.f32 %v342, %v349
      %v382 = vadd.f32 %v343, %v349
      %v383 = vmul.f32 %v351, 0.5
      %v384 = vmul.f32 %v352, 0.5
      %v385 = vmul.f32 %v353, 0.5
      %v386 = vmul.f32 %v354, 0.5
      %v387 = vmul.f32 %v355, 0.5
      %v388 = vmul.f32 %v356, 0.5
      %v389 = vmul.f32 %v357, 0.5
      %v390 = vmul.f32 %v358, 0.5
      %v391 = vmul.f32 %v359, 0.5
      %v392 = vmul.f32 %v360, 0.5
      %v393 = vmul.f32 %v361, 0.5
      %v394 = vmul.f32 %v362, 0.5
      %v395 = vmul.f32 %v363, 0.5
      %v396 = vmul.f32 %v364, 0.5
      %v397 = vmul.f32 %v365, 0.5
      %v398 = vmul.f32 %v366, 0.5
      %v399 = vmul.f32 %v367, 0.5
      %v400 = vmul.f32 %v368, 0.5
      %v401 = vmul.f32 %v369, 0.5
      %v402 = vmul.f32 %v370, 0.5
      %v403 = vmul.f32 %v371, 0.5
      %v404 = vmul.f32 %v372, 0.5
      %v405 = vmul.f32 %v373, 0.5
      %v406 = vmul.f32 %v374, 0.5
      %v407 = vmul.f32 %v375, 0.5
      %v408 = vmul.f32 %v376, 0.5
      %v409 = vmul.f32 %v377, 0.5
      %v410 = vmul.f32 %v378, 0.5
      %v411 = vmul.f32 %v379, 0.5
      %v412 = vmul.f32 %v380, 0.5
      %v413 = vmul.f32 %v381, 0.5
      %v414 = vmul.f32 %v382, 0.5
      %v415 = vmul.f32 %v351, 0.70710677
      %v416 = vmul.f32 %v352, 0.70710677
      %v417 = vmul.f32 %v353, 0.70710677
      %v418 = vmul.f32 %v354, 0.70710677
      %v419 = vmul.f32 %v355, 0.70710677
      %v420 = vmul.f32 %v356, 0.70710677
      %v421 = vmul.f32 %v357, 0.70710677
      %v422 = vmul.f32 %v358, 0.70710677
      %v423 = vmul.f32 %v359, 0.70710677
      %v424 = vmul.f32 %v360, 0.70710677
      %v425 = vmul.f32 %v361, 0.70710677
      %v426 = vmul.f32 %v362, 0.70710677
      %v427 = vmul.f32 %v363, 0.70710677
      %v428 = vmul.f32 %v364, 0.70710677
      %v429 = vmul.f32 %v365, 0.70710677
      %v430 = vmul.f32 %v366, 0.70710677
      %v431 = vmul.f32 %v367, 0.70710677
      %v432 = vmul.f32 %v368, 0.70710677
      %v433 = vmul.f32 %v369, 0.70710677
      %v434 = vmul.f32 %v370, 0.70710677
      %v435 = vmul.f32 %v371, 0.70710677
      %v436 = vmul.f32 %v372, 0.70710677
      %v437 = vmul.f32 %v373, 0.70710677
      %v438 = vmul.f32 %v374, 0.70710677
      %v439 = vmul.f32 %v375, 0.70710677
      %v440 = vmul.f32 %v376, 0.70710677
      %v441 = vmul.f32 %v377, 0.70710677
      %v442 = vmul.f32 %v378, 0.70710677
      %v443 = vmul.f32 %v379, 0.70710677
      %v444 = vmul.f32 %v380, 0.70710677
      %v445 = vmul.f32 %v381, 0.70710677
      %v446 = vmul.f32 %v382, 0.70710677
      %v447 = verf.f32.pop %v415
      %v448 = verf.f32.pop %v416
      %v449 = verf.f32.pop %v417
      %v450 = verf.f32.pop %v418
      %v451 = verf.f32.pop %v419
      %v452 = verf.f32.pop %v420
      %v453 = verf.f32.pop %v421
      %v454 = verf.f32.pop %v422
      %v455 = verf.f32.pop %v423
      %v456 = verf.f32.pop %v424
      %v457 = verf.f32.pop %v425
      %v458 = verf.f32.pop %v426
      %v459 = verf.f32.pop %v427
      %v460 = verf.f32.pop %v428
      %v461 = verf.f32.pop %v429
      %v462 = verf.f32.pop %v430
      %v463 = verf.f32.pop %v431
      %v464 = verf.f32.pop %v432
      %v465 = verf.f32.pop %v433
      %v466 = verf.f32.pop %v434
      %v467 = verf.f32.pop %v435
      %v468 = verf.f32.pop %v436
      %v469 = verf.f32.pop %v437
      %v470 = verf.f32.pop %v438
      %v471 = verf.f32.pop %v439
      %v472 = verf.f32.pop %v440
      %v473 = verf.f32.pop %v441
      %v474 = verf.f32.pop %v442
      %v475 = verf.f32.pop %v443
      %v476 = verf.f32.pop %v444
      %v477 = verf.f32.pop %v445
      %v478 = verf.f32.pop %v446
      %v479 = vadd.f32 %v447, 1.0
      %v480 = vadd.f32 %v448, 1.0
      %v481 = vadd.f32 %v449, 1.0
      %v482 = vadd.f32 %v450, 1.0
      %v483 = vadd.f32 %v451, 1.0
      %v484 = vadd.f32 %v452, 1.0
      %v485 = vadd.f32 %v453, 1.0
      %v486 = vadd.f32 %v454, 1.0
      %v487 = vadd.f32 %v455, 1.0
      %v488 = vadd.f32 %v456, 1.0
      %v489 = vadd.f32 %v457, 1.0
      %v490 = vadd.f32 %v458, 1.0
      %v491 = vadd.f32 %v459, 1.0
      %v492 = vadd.f32 %v460, 1.0
      %v493 = vadd.f32 %v461, 1.0
      %v494 = vadd.f32 %v462, 1.0
      %v495 = vadd.f32 %v463, 1.0
      %v496 = vadd.f32 %v464, 1.0
      %v497 = vadd.f32 %v465, 1.0
      %v498 = vadd.f32 %v466, 1.0
      %v499 = vadd.f32 %v467, 1.0
      %v500 = vadd.f32 %v468, 1.0
      %v501 = vadd.f32 %v469, 1.0
      %v502 = vadd.f32 %v470, 1.0
      %v503 = vadd.f32 %v471, 1.0
      %v504 = vadd.f32 %v472, 1.0
      %v505 = vadd.f32 %v473, 1.0
      %v506 = vadd.f32 %v474, 1.0
      %v507 = vadd.f32 %v475, 1.0
      %v508 = vadd.f32 %v476, 1.0
      %v509 = vadd.f32 %v477, 1.0
      %v510 = vadd.f32 %v478, 1.0
      %v511 = vmul.f32 %v383, %v479
      %v512 = vmul.f32 %v384, %v480
      %v513 = vmul.f32 %v385, %v481
      %v514 = vmul.f32 %v386, %v482
      %v515 = vmul.f32 %v387, %v483
      %v516 = vmul.f32 %v388, %v484
      %v517 = vmul.f32 %v389, %v485
      %v518 = vmul.f32 %v390, %v486
      %v519 = vmul.f32 %v391, %v487
      %v520 = vmul.f32 %v392, %v488
      %v521 = vmul.f32 %v393, %v489
      %v522 = vmul.f32 %v394, %v490
      %v523 = vmul.f32 %v395, %v491
      %v524 = vmul.f32 %v396, %v492
      %v525 = vmul.f32 %v397, %v493
      %v526 = vmul.f32 %v398, %v494
      %v527 = vmul.f32 %v399, %v495
      %v528 = vmul.f32 %v400, %v496
      %v529 = vmul.f32 %v401, %v497
      %v530 = vmul.f32 %v402, %v498
      %v531 = vmul.f32 %v403, %v499
      %v532 = vmul.f32 %v404, %v500
      %v533 = vmul.f32 %v405, %v501
      %v534 = vmul.f32 %v406, %v502
      %v535 = vmul.f32 %v407, %v503
      %v536 = vmul.f32 %v408, %v504
      %v537 = vmul.f32 %v409, %v505
      %v538 = vmul.f32 %v410, %v506
      %v539 = vmul.f32 %v411, %v507
      %v540 = vmul.f32 %v412, %v508
      %v541 = vmul.f32 %v413, %v509
      %v542 = vmul.f32 %v414, %v510
      %v543 = vpack.c.bf16 %v512, %v511
      %v544 = vpack.c.bf16 %v514, %v513
      %v545 = vpack.c.bf16 %v516, %v515
      %v546 = vpack.c.bf16 %v518, %v517
      %v547 = vpack.c.bf16 %v520, %v519
      %v548 = vpack.c.bf16 %v522, %v521
      %v549 = vpack.c.bf16 %v524, %v523
      %v550 = vpack.c.bf16 %v526, %v525
      %v551 = vpack.c.bf16 %v528, %v527
      %v552 = vpack.c.bf16 %v530, %v529
      %v553 = vpack.c.bf16 %v532, %v531
      %v554 = vpack.c.bf16 %v534, %v533
      %v555 = vpack.c.bf16 %v536, %v535
      %v556 = vpack.c.bf16 %v538, %v537
      %v557 = vpack.c.bf16 %v540, %v539
      %v558 = vpack.c.bf16 %v542, %v541
      %v559 = vld [vmem:[%s3] sm:$0xf]
      %vm560 = vcmask 64512
      %v562 = vsel %vm560, %v543, 0
      %v565 = vsel %vm560, %v544, 0
      %v568 = vsel %vm560, %v545, 0
      %v571 = vsel %vm560, %v546, 0
      %v574 = vsel %vm560, %v547, 0
      %v577 = vsel %vm560, %v548, 0
      %v580 = vsel %vm560, %v549, 0
      %v583 = vsel %vm560, %v550, 0
      %v586 = vsel %vm560, %v551, 0
      %v589 = vsel %vm560, %v552, 0
      %v592 = vsel %vm560, %v553, 0
      %v595 = vsel %vm560, %v554, 0
      %v598 = vsel %vm560, %v555, 0
      %v601 = vsel %vm560, %v556, 0
      %v604 = vsel %vm560, %v557, 0
      %v607 = vsel %vm560, %v558, 0
      %vm609 = vcmask 1043456
      %v611 = vsel %vm609, %v559, 0
      %613 = vmatprep.subr.bf16.mxu0 0
      %614 = vmatpush1.bf16.msra.mxu0 %v611
      %615 = vmatprep.subr.bf16.mxu0 0
      %616 = vmatpush1.bf16.msra.mxu0 0
      %617 = vmatprep.subr.bf16.mxu0 0
      %618 = vmatpush1.bf16.msra.mxu0 0
      %619 = vmatprep.subr.bf16.mxu0 0
      %620 = vmatpush1.bf16.msra.mxu0 0
      %621 = vmatprep.subr.bf16.mxu0 0
      %622 = vmatpush1.bf16.msra.mxu0 0
      %623 = vmatprep.subr.bf16.mxu0 0
      %624 = vmatpush1.bf16.msra.mxu0 0
      %625 = vmatprep.subr.bf16.mxu0 0
      %626 = vmatpush1.bf16.msra.mxu0 0
      %627 = vmatprep.subr.bf16.mxu0 0
      %628 = vmatpush1.bf16.msra.mxu0 0
      %629 = vmatprep.subr.bf16.mxu0 0
      %630 = vmatpush1.bf16.msra.mxu0 0
      %631 = vmatprep.subr.bf16.mxu0 0
      %632 = vmatpush1.bf16.msra.mxu0 0
      %633 = vmatprep.subr.bf16.mxu0 0
      %634 = vmatpush1.bf16.msra.mxu0 0
      %635 = vmatprep.subr.bf16.mxu0 0
      %636 = vmatpush1.bf16.msra.mxu0 0
      %637 = vmatprep.subr.bf16.mxu0 0
      %638 = vmatpush1.bf16.msra.mxu0 0
      %639 = vmatprep.subr.bf16.mxu0 0
      %640 = vmatpush1.bf16.msra.mxu0 0
      %641 = vmatprep.subr.bf16.mxu0 0
      %642 = vmatpush1.bf16.msra.mxu0 0
      %643 = vmatprep.subr.bf16.mxu0 0
      %644 = vmatpush1.bf16.msra.mxu0 0
      %645 = vmatprep.mubr.bf16.mxu0 0
      %646 = vmatmul.mubr.bf16.gmra.mrb[0].mxu0 %v562
      %v647 = vpop.f32.mrb[0].mxu0
      %v648 = vadd.f32 0.0, %v647
      %v649 = vpop.f32.mrb[0].mxu0
      %v650 = vpop.f32.mrb[0].mxu0
      %v651 = vadd.f32 0.0, %v650
      %v652 = vpop.f32.mrb[0].mxu0
      %653 = vmatprep.mubr.bf16.mxu0 0
      %654 = vmatmul.mubr.bf16.gmra.mrb[0].mxu0 %v565
      %v655 = vpop.f32.mrb[0].mxu0
      %v656 = vadd.f32 0.0, %v655
      %v657 = vpop.f32.mrb[0].mxu0
      %v658 = vpop.f32.mrb[0].mxu0
      %v659 = vadd.f32 0.0, %v658
      %v660 = vpop.f32.mrb[0].mxu0
      %661 = vmatprep.mubr.bf16.mxu0 0
      %662 = vmatmul.mubr.bf16.gmra.mrb[0].mxu0 %v568
      %v663 = vpop.f32.mrb[0].mxu0
      %v664 = vadd.f32 0.0, %v663
      %v665 = vpop.f32.mrb[0].mxu0
      %v666 = vpop.f32.mrb[0].mxu0
      %v667 = vadd.f32 0.0, %v666
      %v668 = vpop.f32.mrb[0].mxu0
      %669 = vmatprep.mubr.bf16.mxu0 0
      %670 = vmatmul.mubr.bf16.gmra.mrb[0].mxu0 %v571
      %v671 = vpop.f32.mrb[0].mxu0
      %v672 = vadd.f32 0.0, %v671
      %v673 = vpop.f32.mrb[0].mxu0
      %v674 = vpop.f32.mrb[0].mxu0
      %v675 = vadd.f32 0.0, %v674
      %v676 = vpop.f32.mrb[0].mxu0
      %677 = vmatprep.mubr.bf16.mxu0 0
      %678 = vmatmul.mubr.bf16.gmra.mrb[0].mxu0 %v574
      %v679 = vpop.f32.mrb[0].mxu0
      %v680 = vadd.f32 0.0, %v679
      %v681 = vpop.f32.mrb[0].mxu0
      %v682 = vpop.f32.mrb[0].mxu0
      %v683 = vadd.f32 0.0, %v682
      %v684 = vpop.f32.mrb[0].mxu0
      %685 = vmatprep.mubr.bf16.mxu0 0
      %686 = vmatmul.mubr.bf16.gmra.mrb[0].mxu0 %v577
      %v687 = vpop.f32.mrb[0].mxu0
      %v688 = vadd.f32 0.0, %v687
      %v689 = vpop.f32.mrb[0].mxu0
      %v690 = vpop.f32.mrb[0].mxu0
      %v691 = vadd.f32 0.0, %v690
      %v692 = vpop.f32.mrb[0].mxu0
      %693 = vmatprep.mubr.bf16.mxu0 0
      %694 = vmatmul.mubr.bf16.gmra.mrb[0].mxu0 %v580
      %v695 = vpop.f32.mrb[0].mxu0
      %v696 = vadd.f32 0.0, %v695
      %v697 = vpop.f32.mrb[0].mxu0
      %v698 = vpop.f32.mrb[0].mxu0
      %v699 = vadd.f32 0.0, %v698
      %v700 = vpop.f32.mrb[0].mxu0
      %701 = vmatprep.mubr.bf16.mxu0 0
      %702 = vmatmul.mubr.bf16.gmra.mrb[0].mxu0 %v583
      %v703 = vpop.f32.mrb[0].mxu0
      %v704 = vadd.f32 0.0, %v703
      %v705 = vpop.f32.mrb[0].mxu0
      %v706 = vpop.f32.mrb[0].mxu0
      %v707 = vadd.f32 0.0, %v706
      %v708 = vpop.f32.mrb[0].mxu0
      %709 = vmatprep.mubr.bf16.mxu0 0
      %710 = vmatmul.mubr.bf16.gmra.mrb[0].mxu0 %v586
      %v711 = vpop.f32.mrb[0].mxu0
      %v712 = vadd.f32 0.0, %v711
      %v713 = vpop.f32.mrb[0].mxu0
      %v714 = vpop.f32.mrb[0].mxu0
      %v715 = vadd.f32 0.0, %v714
      %v716 = vpop.f32.mrb[0].mxu0
      %717 = vmatprep.mubr.bf16.mxu0 0
      %718 = vmatmul.mubr.bf16.gmra.mrb[0].mxu0 %v589
      %v719 = vpop.f32.mrb[0].mxu0
      %v720 = vadd.f32 0.0, %v719
      %v721 = vpop.f32.mrb[0].mxu0
      %v722 = vpop.f32.mrb[0].mxu0
      %v723 = vadd.f32 0.0, %v722
      %v724 = vpop.f32.mrb[0].mxu0
      %725 = vmatprep.mubr.bf16.mxu0 0
      %726 = vmatmul.mubr.bf16.gmra.mrb[0].mxu0 %v592
      %v727 = vpop.f32.mrb[0].mxu0
      %v728 = vadd.f32 0.0, %v727
      %v729 = vpop.f32.mrb[0].mxu0
      %v730 = vpop.f32.mrb[0].mxu0
      %v731 = vadd.f32 0.0, %v730
      %v732 = vpop.f32.mrb[0].mxu0
      %733 = vmatprep.mubr.bf16.mxu0 0
      %734 = vmatmul.mubr.bf16.gmra.mrb[0].mxu0 %v595
      %v735 = vpop.f32.mrb[0].mxu0
      %v736 = vadd.f32 0.0, %v735
      %v737 = vpop.f32.mrb[0].mxu0
      %v738 = vpop.f32.mrb[0].mxu0
      %v739 = vadd.f32 0.0, %v738
      %v740 = vpop.f32.mrb[0].mxu0
      %741 = vmatprep.mubr.bf16.mxu0 0
      %742 = vmatmul.mubr.bf16.gmra.mrb[0].mxu0 %v598
      %v743 = vpop.f32.mrb[0].mxu0
      %v744 = vadd.f32 0.0, %v743
      %v745 = vpop.f32.mrb[0].mxu0
      %v746 = vpop.f32.mrb[0].mxu0
      %v747 = vadd.f32 0.0, %v746
      %v748 = vpop.f32.mrb[0].mxu0
      %749 = vmatprep.mubr.bf16.mxu0 0
      %750 = vmatmul.mubr.bf16.gmra.mrb[0].mxu0 %v601
      %v751 = vpop.f32.mrb[0].mxu0
      %v752 = vadd.f32 0.0, %v751
      %v753 = vpop.f32.mrb[0].mxu0
      %v754 = vpop.f32.mrb[0].mxu0
      %v755 = vadd.f32 0.0, %v754
      %v756 = vpop.f32.mrb[0].mxu0
      %757 = vmatprep.mubr.bf16.mxu0 0
      %758 = vmatmul.mubr.bf16.gmra.mrb[0].mxu0 %v604
      %v759 = vpop.f32.mrb[0].mxu0
      %v760 = vadd.f32 0.0, %v759
      %v761 = vpop.f32.mrb[0].mxu0
      %v762 = vpop.f32.mrb[0].mxu0
      %v763 = vadd.f32 0.0, %v762
      %v764 = vpop.f32.mrb[0].mxu0
      %765 = vmatprep.mubr.bf16.mxu0 0
      %766 = vmatmul.mubr.bf16.gmra.mrb[0].mxu0 %v607
      %v767 = vpop.f32.mrb[0].mxu0
      %v768 = vadd.f32 0.0, %v767
      %v769 = vpop.f32.mrb[0].mxu0
      %v770 = vpop.f32.mrb[0].mxu0
      %v771 = vadd.f32 0.0, %v770
      %v772 = vpop.f32.mrb[0].mxu0
      %773 = vdwg.mxu0
      %vm774 = vcmask 261120
      %775 = vst.msk [vmem:[%s264] sm:$0xff] %vm774, %v648
      %776 = vst.msk [vmem:[%s264 + $0x8] sm:$0xff] %vm774, %v651
      %777 = vst.msk [vmem:[%s264 + $0x10] sm:$0xff] %vm774, %v656
      %778 = vst.msk [vmem:[%s264 + $0x18] sm:$0xff] %vm774, %v659
      %779 = vst.msk [vmem:[%s264 + $0x20] sm:$0xff] %vm774, %v664
      %780 = vst.msk [vmem:[%s264 + $0x28] sm:$0xff] %vm774, %v667
      %781 = vst.msk [vmem:[%s264 + $0x30] sm:$0xff] %vm774, %v672
      %782 = vst.msk [vmem:[%s264 + $0x38] sm:$0xff] %vm774, %v675
      %783 = vst.msk [vmem:[%s264 + $0x40] sm:$0xff] %vm774, %v680
      %784 = vst.msk [vmem:[%s264 + $0x48] sm:$0xff] %vm774, %v683
      %785 = vst.msk [vmem:[%s264 + $0x50] sm:$0xff] %vm774, %v688
      %786 = vst.msk [vmem:[%s264 + $0x58] sm:$0xff] %vm774, %v691
      %787 = vst.msk [vmem:[%s264 + $0x60] sm:$0xff] %vm774, %v696
      %788 = vst.msk [vmem:[%s264 + $0x68] sm:$0xff] %vm774, %v699
      %789 = vst.msk [vmem:[%s264 + $0x70] sm:$0xff] %vm774, %v704
      %790 = vst.msk [vmem:[%s264 + $0x78] sm:$0xff] %vm774, %v707
      %791 = vst.msk [vmem:[%s264 + $0x80] sm:$0xff] %vm774, %v712
      %792 = vst.msk [vmem:[%s264 + $0x88] sm:$0xff] %vm774, %v715
      %793 = vst.msk [vmem:[%s264 + $0x90] sm:$0xff] %vm774, %v720
      %794 = vst.msk [vmem:[%s264 + $0x98] sm:$0xff] %vm774, %v723
      %795 = vst.msk [vmem:[%s264 + $0xa0] sm:$0xff] %vm774, %v728
      %796 = vst.msk [vmem:[%s264 + $0xa8] sm:$0xff] %vm774, %v731
      %797 = vst.msk [vmem:[%s264 + $0xb0] sm:$0xff] %vm774, %v736
      %798 = vst.msk [vmem:[%s264 + $0xb8] sm:$0xff] %vm774, %v739
      %799 = vst.msk [vmem:[%s264 + $0xc0] sm:$0xff] %vm774, %v744
      %800 = vst.msk [vmem:[%s264 + $0xc8] sm:$0xff] %vm774, %v747
      %801 = vst.msk [vmem:[%s264 + $0xd0] sm:$0xff] %vm774, %v752
      %802 = vst.msk [vmem:[%s264 + $0xd8] sm:$0xff] %vm774, %v755
      %803 = vst.msk [vmem:[%s264 + $0xe0] sm:$0xff] %vm774, %v760
      %804 = vst.msk [vmem:[%s264 + $0xe8] sm:$0xff] %vm774, %v763
      %805 = vst.msk [vmem:[%s264 + $0xf0] sm:$0xff] %vm774, %v768
      %806 = vst.msk [vmem:[%s264 + $0xf8] sm:$0xff] %vm774, %v771
      %v807 = vsel %vm774, %v648, 0.0
      %v808 = vsel %vm774, %v651, 0.0
      %v809 = vadd.f32 %v807, %v808
      %v810 = vsel %vm774, %v656, 0.0
      %v811 = vadd.f32 %v809, %v810
      %v812 = vsel %vm774, %v659, 0.0
      %v813 = vadd.f32 %v811, %v812
      %v814 = vsel %vm774, %v664, 0.0
      %v815 = vadd.f32 %v813, %v814
      %v816 = vsel %vm774, %v667, 0.0
      %v817 = vadd.f32 %v815, %v816
      %v818 = vsel %vm774, %v672, 0.0
      %v819 = vadd.f32 %v817, %v818
      %v820 = vsel %vm774, %v675, 0.0
      %v821 = vadd.f32 %v819, %v820
      %v822 = vsel %vm774, %v680, 0.0
      %v823 = vadd.f32 %v821, %v822
      %v824 = vsel %vm774, %v683, 0.0
      %v825 = vadd.f32 %v823, %v824
      %v826 = vsel %vm774, %v688, 0.0
      %v827 = vadd.f32 %v825, %v826
      %v828 = vsel %vm774, %v691, 0.0
      %v829 = vadd.f32 %v827, %v828
      %v830 = vsel %vm774, %v696, 0.0
      %v831 = vadd.f32 %v829, %v830
      %v832 = vsel %vm774, %v699, 0.0
      %v833 = vadd.f32 %v831, %v832
      %v834 = vsel %vm774, %v704, 0.0
      %v835 = vadd.f32 %v833, %v834
      %v836 = vsel %vm774, %v707, 0.0
      %v837 = vadd.f32 %v835, %v836
      %v838 = vsel %vm774, %v712, 0.0
      %v839 = vadd.f32 %v837, %v838
      %v840 = vsel %vm774, %v715, 0.0
      %v841 = vadd.f32 %v839, %v840
      %v842 = vsel %vm774, %v720, 0.0
      %v843 = vadd.f32 %v841, %v842
      %v844 = vsel %vm774, %v723, 0.0
      %v845 = vadd.f32 %v843, %v844
      %v846 = vsel %vm774, %v728, 0.0
      %v847 = vadd.f32 %v845, %v846
      %v848 = vsel %vm774, %v731, 0.0
      %v849 = vadd.f32 %v847, %v848
      %v850 = vsel %vm774, %v736, 0.0
      %v851 = vadd.f32 %v849, %v850
      %v852 = vsel %vm774, %v739, 0.0
      %v853 = vadd.f32 %v851, %v852
      %v854 = vsel %vm774, %v744, 0.0
      %v855 = vadd.f32 %v853, %v854
      %v856 = vsel %vm774, %v747, 0.0
      %v857 = vadd.f32 %v855, %v856
      %v858 = vsel %vm774, %v752, 0.0
      %v859 = vadd.f32 %v857, %v858
      %v860 = vsel %vm774, %v755, 0.0
      %v861 = vadd.f32 %v859, %v860
      %v862 = vsel %vm774, %v760, 0.0
      %v863 = vadd.f32 %v861, %v862
      %v864 = vsel %vm774, %v763, 0.0
      %v865 = vadd.f32 %v863, %v864
      %v866 = vsel %vm774, %v768, 0.0
      %v867 = vadd.f32 %v865, %v866
      %v868 = vsel %vm774, %v771, 0.0
      %v869 = vadd.f32 %v867, %v868
      %v870 = vrot.slane %v869, 4
      %v871 = vadd.f32 %v869, %v870
      %v872 = vrot.slane %v871, 2
      %v873 = vadd.f32 %v871, %v872
      %v874 = vrot.slane %v873, 1
      %v875 = vadd.f32 %v873, %v874
      %vm876 = vcmask 253952
      %877 = vst.msk [vmem:[%s268] sm:$0x1] %vm876, %v875
      %v878 = vmul.f32 %v648, %v648
      %v879 = vmul.f32 %v651, %v651
      %v880 = vmul.f32 %v656, %v656
      %v881 = vmul.f32 %v659, %v659
      %v882 = vmul.f32 %v664, %v664
      %v883 = vmul.f32 %v667, %v667
      %v884 = vmul.f32 %v672, %v672
      %v885 = vmul.f32 %v675, %v675
      %v886 = vmul.f32 %v680, %v680
      %v887 = vmul.f32 %v683, %v683
      %v888 = vmul.f32 %v688, %v688
      %v889 = vmul.f32 %v691, %v691
      %v890 = vmul.f32 %v696, %v696
      %v891 = vmul.f32 %v699, %v699
      %v892 = vmul.f32 %v704, %v704
      %v893 = vmul.f32 %v707, %v707
      %v894 = vmul.f32 %v712, %v712
      %v895 = vmul.f32 %v715, %v715
      %v896 = vmul.f32 %v720, %v720
      %v897 = vmul.f32 %v723, %v723
      %v898 = vmul.f32 %v728, %v728
      %v899 = vmul.f32 %v731, %v731
      %v900 = vmul.f32 %v736, %v736
      %v901 = vmul.f32 %v739, %v739
      %v902 = vmul.f32 %v744, %v744
      %v903 = vmul.f32 %v747, %v747
      %v904 = vmul.f32 %v752, %v752
      %v905 = vmul.f32 %v755, %v755
      %v906 = vmul.f32 %v760, %v760
      %v907 = vmul.f32 %v763, %v763
      %v908 = vmul.f32 %v768, %v768
      %v909 = vmul.f32 %v771, %v771
      %v910 = vsel %vm774, %v878, 0.0
      %v911 = vsel %vm774, %v879, 0.0
      %v912 = vadd.f32 %v910, %v911
      %v913 = vsel %vm774, %v880, 0.0
      %v914 = vadd.f32 %v912, %v913
      %v915 = vsel %vm774, %v881, 0.0
      %v916 = vadd.f32 %v914, %v915
      %v917 = vsel %vm774, %v882, 0.0
      %v918 = vadd.f32 %v916, %v917
      %v919 = vsel %vm774, %v883, 0.0
      %v920 = vadd.f32 %v918, %v919
      %v921 = vsel %vm774, %v884, 0.0
      %v922 = vadd.f32 %v920, %v921
      %v923 = vsel %vm774, %v885, 0.0
      %v924 = vadd.f32 %v922, %v923
      %v925 = vsel %vm774, %v886, 0.0
      %v926 = vadd.f32 %v924, %v925
      %v927 = vsel %vm774, %v887, 0.0
      %v928 = vadd.f32 %v926, %v927
      %v929 = vsel %vm774, %v888, 0.0
      %v930 = vadd.f32 %v928, %v929
      %v931 = vsel %vm774, %v889, 0.0
      %v932 = vadd.f32 %v930, %v931
      %v933 = vsel %vm774, %v890, 0.0
      %v934 = vadd.f32 %v932, %v933
      %v935 = vsel %vm774, %v891, 0.0
      %v936 = vadd.f32 %v934, %v935
      %v937 = vsel %vm774, %v892, 0.0
      %v938 = vadd.f32 %v936, %v937
      %v939 = vsel %vm774, %v893, 0.0
      %v940 = vadd.f32 %v938, %v939
      %v941 = vsel %vm774, %v894, 0.0
      %v942 = vadd.f32 %v940, %v941
      %v943 = vsel %vm774, %v895, 0.0
      %v944 = vadd.f32 %v942, %v943
      %v945 = vsel %vm774, %v896, 0.0
      %v946 = vadd.f32 %v944, %v945
      %v947 = vsel %vm774, %v897, 0.0
      %v948 = vadd.f32 %v946, %v947
      %v949 = vsel %vm774, %v898, 0.0
      %v950 = vadd.f32 %v948, %v949
      %v951 = vsel %vm774, %v899, 0.0
      %v952 = vadd.f32 %v950, %v951
      %v953 = vsel %vm774, %v900, 0.0
      %v954 = vadd.f32 %v952, %v953
      %v955 = vsel %vm774, %v901, 0.0
      %v956 = vadd.f32 %v954, %v955
      %v957 = vsel %vm774, %v902, 0.0
      %v958 = vadd.f32 %v956, %v957
      %v959 = vsel %vm774, %v903, 0.0
      %v960 = vadd.f32 %v958, %v959
      %v961 = vsel %vm774, %v904, 0.0
      %v962 = vadd.f32 %v960, %v961
      %v963 = vsel %vm774, %v905, 0.0
      %v964 = vadd.f32 %v962, %v963
      %v965 = vsel %vm774, %v906, 0.0
      %v966 = vadd.f32 %v964, %v965
      %v967 = vsel %vm774, %v907, 0.0
      %v968 = vadd.f32 %v966, %v967
      %v969 = vsel %vm774, %v908, 0.0
      %v970 = vadd.f32 %v968, %v969
      %v971 = vsel %vm774, %v909, 0.0
      %v972 = vadd.f32 %v970, %v971
      %v973 = vrot.slane %v972, 4
      %v974 = vadd.f32 %v972, %v973
      %v975 = vrot.slane %v974, 2
      %v976 = vadd.f32 %v974, %v975
      %v977 = vrot.slane %v976, 1
      %v978 = vadd.f32 %v976, %v977
      %979 = vst.msk [vmem:[%s271] sm:$0x1] %vm876, %v978
      %s980 = smul.u32 32, %s18
      %p981 = scmp.lt.s32.totalorder %s980, 63
      %s982 = scalar_select %p981, %s980, 63
      %s983 = smul.addr %s982, 8
      %s984 = scalar_lea.vmem %s4, %s983
      %p985 = scmp.lt.s32.totalorder %s18, 1
      %s986 = scalar_select %p985, %s18, 1
      %s987 = scalar_lea.vmem %s5, %s986
      %p988 = scmp.lt.s32.totalorder %s18, 1
      %s989 = scalar_select %p988, %s18, 1
      %s990 = scalar_lea.vmem %s6, %s989
      // Predicated region
      $region37: #{bottleneck_gelu.9} parent=35 // pred_check
        %p991 = pneg %p125
      $region38: #{bottleneck_gelu.9} parent=35 // pred_check_branch
        %993 = sbr.rel (%p991) target = $region40
      $region39: #{bottleneck_gelu.9} parent=35 // pred_region
        %s994 = smul.u32 32, %s18
      $region40: #{bottleneck_gelu.9} parent=35 // pred_fallthru
        _
      // Predicated region
      $region41: #{bottleneck_gelu.9} parent=35 // pred_check
        %p995 = pneg %p151
      $region42: #{bottleneck_gelu.9} parent=35 // pred_check_branch
        %997 = sbr.rel (%p995) target = $region44
      $region43: #{bottleneck_gelu.9} parent=35 // pred_region
        _
      $region44: #{bottleneck_gelu.9} parent=35 // pred_fallthru
        _
      // Predicated region
      $region45: #{bottleneck_gelu.9} parent=35 // pred_check
        %p998 = pneg %p177
      $region46: #{bottleneck_gelu.9} parent=35 // pred_check_branch
        %1000 = sbr.rel (%p998) target = $region48
      $region47: #{bottleneck_gelu.9} parent=35 // pred_region
        _
      $region48: #{bottleneck_gelu.9} parent=35 // pred_fallthru
        _
    $region36: #{bottleneck_gelu.9} parent=5 // pred_fallthru
      _
    %p1001 = scmp.le.s32.totalorder 2, %s13
    // Predicated region
    $region49: #{bottleneck_gelu.9} parent=5 // pred_check
      %p1002 = pneg %p1001
    $region50: #{bottleneck_gelu.9} parent=5 // pred_check_branch
      %1004 = sbr.rel (%p1002) target = $region52
    $region51: #{bottleneck_gelu.9} parent=5 // pred_region
      %s1005 = ssub.s32 %s13, 2
      // Predicated region
      $region53: #{bottleneck_gelu.9} parent=51 // pred_check
        %p1006 = pneg %p131
      $region54: #{bottleneck_gelu.9} parent=51 // pred_check_branch
        %1008 = sbr.rel (%p1006) target = $region56
      $region55: #{bottleneck_gelu.9} parent=51 // pred_region
        %s1009 = smul.u32 32, %s19
        %p1010 = scmp.lt.s32.totalorder %s1009, 63
        %s1011 = scalar_select %p1010, %s1009, 63
        %s1012 = smul.addr %s1011, 8
        %s1013 = scalar_lea.vmem %s4, %s1012
      $region56: #{bottleneck_gelu.9} parent=51 // pred_fallthru
        _
      // Predicated region
      $region57: #{bottleneck_gelu.9} parent=51 // pred_check
        %p1014 = pneg %p157
      $region58: #{bottleneck_gelu.9} parent=51 // pred_check_branch
        %1016 = sbr.rel (%p1014) target = $region60
      $region59: #{bottleneck_gelu.9} parent=51 // pred_region
        %p1017 = scmp.lt.s32.totalorder %s19, 1
        %s1018 = scalar_select %p1017, %s19, 1
        %s1019 = scalar_lea.vmem %s5, %s1018
      $region60: #{bottleneck_gelu.9} parent=51 // pred_fallthru
        _
      // Predicated region
      $region61: #{bottleneck_gelu.9} parent=51 // pred_check
        %p1020 = pneg %p183
      $region62: #{bottleneck_gelu.9} parent=51 // pred_check_branch
        %1022 = sbr.rel (%p1020) target = $region64
      $region63: #{bottleneck_gelu.9} parent=51 // pred_region
        %p1023 = scmp.lt.s32.totalorder %s19, 1
        %s1024 = scalar_select %p1023, %s19, 1
        %s1025 = scalar_lea.vmem %s6, %s1024
      $region64: #{bottleneck_gelu.9} parent=51 // pred_fallthru
        _
    $region52: #{bottleneck_gelu.9} parent=5 // pred_fallthru
      _
  $region6: #{bottleneck_gelu.9} parent=0 // loop_footer
    %s17 = sadd.s32 1, %s13
  $region7: #{bottleneck_gelu.9} parent=0 // loop_footer_branch
    %12 = sbr.rel target = $region3
  $region8: #{bottleneck_gelu.9} parent=0 // loop_exit
    _

// kernel: bottleneck_gelu.8
$region0: #{bottleneck_gelu.8}
  #allocation0 [shape = 'u32[]', space=smem, size = 0x4, offset = 0x4, fixed_abs, tag = 'smem constant byte address 0x4 - core index']
  #allocation1 [shape = 'u32[144,128]{1,0:T(1,128)}', space=vmem, size = 0x12000, scoped, tag = 'internal scratch']
  %s0 = inlined_call_operand.vmem [shape: f32[2,17,17,8], index: 0, kind: input, shape index: {}]
  %s1 = inlined_call_operand.vmem [shape: f32[2,17,17,8], index: 1, kind: input, shape index: {}]
  %s2 = inlined_call_operand.vmem [shape: f32[2,17,17,8], index: 2, kind: input, shape index: {}]
  %s3 = inlined_call_operand.vmem [shape: f32[2,17,17,8], index: 3, kind: input, shape index: {}]
  %s4 = inlined_call_operand.vmem [shape: bf16[9,8,8], index: 4, kind: input, shape index: {}]
  %s5 = inlined_call_operand.vmem [shape: f32[512,8], index: 5, kind: output, shape index: {0}]
  %s6 = inlined_call_operand.vmem [shape: f32[2,1,8], index: 6, kind: output, shape index: {1}]
  %s7 = inlined_call_operand.vmem [shape: f32[2,1,8], index: 7, kind: output, shape index: {2}]
  %8 = xla_tuple %s5, %s6, %s7
  %s9 = sld [smem:[#allocation0]]
  $region69: #{bottleneck_gelu.8} parent=0
    _
  %s11 = ssub.s32 1, %s9
  %s12 = scalar_select 0, %s11, %s9
  loop: start=0, step=1, limit=4
  $region2: #{bottleneck_gelu.8} parent=0 // loop_pre_header
    _
  $region3: #{bottleneck_gelu.8} parent=0 // loop_header
    %s14 = sphi 0, %s18
    %p15 = scmp.ge.s32.totalorder %s14, 4
    %s24 = sphi 0, %s26
    %s27 = sphi 0, %s24
    %s28 = sphi 0, %s27
    %s44 = sphi 0, %s28
    %s50 = sphi 0, %s52
    %s53 = sphi 0, %s50
    %s54 = sphi 0, %s53
    %s70 = sphi 0, %s54
    %s76 = sphi 0, %s78
    %s79 = sphi 0, %s76
    %s80 = sphi 0, %s79
    %s96 = sphi 0, %s80
    %s102 = sphi 0, %s104
    %s105 = sphi 0, %s102
    %s106 = sphi 0, %s105
    %s122 = sphi 0, %s106
    %s126 = sphi 0, %s126
    %s128 = sphi 0, %s126
    %s129 = sphi 0, %s128
    %s143 = sphi 0, %s129
    %s149 = sphi 0, %s151
    %s152 = sphi 0, %s149
    %s153 = sphi 0, %s152
    %s169 = sphi 0, %s153
    %s175 = sphi 0, %s177
    %s178 = sphi 0, %s175
    %s179 = sphi 0, %s178
    %s195 = sphi 0, %s179
    %s201 = sphi 0, %s203
    %s204 = sphi 0, %s201
    %s205 = sphi 0, %s204
    %s221 = sphi 0, %s205
  $region4: #{bottleneck_gelu.8} parent=0 // loop_header_branch
    %17 = sbr.rel (%p15) target = $region8
  $region5: #{bottleneck_gelu.8} parent=0 // loop_body
    %s19 = ssub.s32 %s14, 1
    %s20 = ssub.s32 %s14, 2
    %s21 = sadd.s32 %s14, 1
    %s22 = ssub.s32 %s14, %s21
    %p23 = scmp.eq.s32.totalorder %s22, 0
    %s25 = sadd.s32 %s24, 1
    %s26 = scalar_select %p23, %s24, %s25
    %p29 = pneg %p23
    %p30 = scmp.eq.s32.totalorder %s14, 1
    %p31 = por %p29, %p30
    %p32 = scmp.ne.s32.totalorder %s24, %s27
    %p33 = scmp.eq.s32.totalorder %s14, 0
    %p34 = por %p32, %p33
    %p35 = scmp.ne.s32.totalorder %s24, %s27
    %p36 = scmp.eq.s32.totalorder %s19, 1
    %p37 = por %p35, %p36
    %p38 = scmp.ne.s32.totalorder %s27, %s28
    %p39 = scmp.eq.s32.totalorder %s19, 0
    %p40 = por %p38, %p39
    %p41 = scmp.ne.s32.totalorder %s27, %s28
    %p42 = scmp.eq.s32.totalorder %s20, 1
    %p43 = por %p41, %p42
    %p45 = scmp.ne.s32.totalorder %s28, %s44
    %p46 = scmp.eq.s32.totalorder %s20, 0
    %p47 = por %p45, %p46
    %s48 = ssub.s32 %s14, %s21
    %p49 = scmp.eq.s32.totalorder %s48, 0
    %s51 = sadd.s32 %s50, 1
    %s52 = scalar_select %p49, %s50, %s51
    %p55 = pneg %p49
    %p56 = scmp.eq.s32.totalorder %s14, 1
    %p57 = por %p55, %p56
    %p58 = scmp.ne.s32.totalorder %s50, %s53
    %p59 = scmp.eq.s32.totalorder %s14, 0
    %p60 = por %p58, %p59
    %p61 = scmp.ne.s32.totalorder %s50, %s53
    %p62 = scmp.eq.s32.totalorder %s19, 1
    %p63 = por %p61, %p62
    %p64 = scmp.ne.s32.totalorder %s53, %s54
    %p65 = scmp.eq.s32.totalorder %s19, 0
    %p66 = por %p64, %p65
    %p67 = scmp.ne.s32.totalorder %s53, %s54
    %p68 = scmp.eq.s32.totalorder %s20, 1
    %p69 = por %p67, %p68
    %p71 = scmp.ne.s32.totalorder %s54, %s70
    %p72 = scmp.eq.s32.totalorder %s20, 0
    %p73 = por %p71, %p72
    %s74 = ssub.s32 %s14, %s21
    %p75 = scmp.eq.s32.totalorder %s74, 0
    %s77 = sadd.s32 %s76, 1
    %s78 = scalar_select %p75, %s76, %s77
    %p81 = pneg %p75
    %p82 = scmp.eq.s32.totalorder %s14, 1
    %p83 = por %p81, %p82
    %p84 = scmp.ne.s32.totalorder %s76, %s79
    %p85 = scmp.eq.s32.totalorder %s14, 0
    %p86 = por %p84, %p85
    %p87 = scmp.ne.s32.totalorder %s76, %s79
    %p88 = scmp.eq.s32.totalorder %s19, 1
    %p89 = por %p87, %p88
    %p90 = scmp.ne.s32.totalorder %s79, %s80
    %p91 = scmp.eq.s32.totalorder %s19, 0
    %p92 = por %p90, %p91
    %p93 = scmp.ne.s32.totalorder %s79, %s80
    %p94 = scmp.eq.s32.totalorder %s20, 1
    %p95 = por %p93, %p94
    %p97 = scmp.ne.s32.totalorder %s80, %s96
    %p98 = scmp.eq.s32.totalorder %s20, 0
    %p99 = por %p97, %p98
    %s100 = ssub.s32 %s14, %s21
    %p101 = scmp.eq.s32.totalorder %s100, 0
    %s103 = sadd.s32 %s102, 1
    %s104 = scalar_select %p101, %s102, %s103
    %p107 = pneg %p101
    %p108 = scmp.eq.s32.totalorder %s14, 1
    %p109 = por %p107, %p108
    %p110 = scmp.ne.s32.totalorder %s102, %s105
    %p111 = scmp.eq.s32.totalorder %s14, 0
    %p112 = por %p110, %p111
    %p113 = scmp.ne.s32.totalorder %s102, %s105
    %p114 = scmp.eq.s32.totalorder %s19, 1
    %p115 = por %p113, %p114
    %p116 = scmp.ne.s32.totalorder %s105, %s106
    %p117 = scmp.eq.s32.totalorder %s19, 0
    %p118 = por %p116, %p117
    %p119 = scmp.ne.s32.totalorder %s105, %s106
    %p120 = scmp.eq.s32.totalorder %s20, 1
    %p121 = por %p119, %p120
    %p123 = scmp.ne.s32.totalorder %s106, %s122
    %p124 = scmp.eq.s32.totalorder %s20, 0
    %p125 = por %p123, %p124
    %s127 = sadd.s32 %s126, 1
    %p130 = scmp.eq.s32.totalorder %s14, 1
    %p131 = scmp.ne.s32.totalorder %s126, %s128
    %p132 = scmp.eq.s32.totalorder %s14, 0
    %p133 = por %p131, %p132
    %p134 = scmp.ne.s32.totalorder %s126, %s128
    %p135 = scmp.eq.s32.totalorder %s19, 1
    %p136 = por %p134, %p135
    %p137 = scmp.ne.s32.totalorder %s128, %s129
    %p138 = scmp.eq.s32.totalorder %s19, 0
    %p139 = por %p137, %p138
    %p140 = scmp.ne.s32.totalorder %s128, %s129
    %p141 = scmp.eq.s32.totalorder %s20, 1
    %p142 = por %p140, %p141
    %p144 = scmp.ne.s32.totalorder %s129, %s143
    %p145 = scmp.eq.s32.totalorder %s20, 0
    %p146 = por %p144, %p145
    %s147 = ssub.s32 %s14, %s21
    %p148 = scmp.eq.s32.totalorder %s147, 0
    %s150 = sadd.s32 %s149, 1
    %s151 = scalar_select %p148, %s149, %s150
    %p154 = pneg %p148
    %p155 = scmp.eq.s32.totalorder %s14, 1
    %p156 = por %p154, %p155
    %p157 = scmp.ne.s32.totalorder %s149, %s152
    %p158 = scmp.eq.s32.totalorder %s14, 0
    %p159 = por %p157, %p158
    %p160 = scmp.ne.s32.totalorder %s149, %s152
    %p161 = scmp.eq.s32.totalorder %s19, 1
    %p162 = por %p160, %p161
    %p163 = scmp.ne.s32.totalorder %s152, %s153
    %p164 = scmp.eq.s32.totalorder %s19, 0
    %p165 = por %p163, %p164
    %p166 = scmp.ne.s32.totalorder %s152, %s153
    %p167 = scmp.eq.s32.totalorder %s20, 1
    %p168 = por %p166, %p167
    %p170 = scmp.ne.s32.totalorder %s153, %s169
    %p171 = scmp.eq.s32.totalorder %s20, 0
    %p172 = por %p170, %p171
    %s173 = ssub.s32 %s14, %s21
    %p174 = scmp.eq.s32.totalorder %s173, 0
    %s176 = sadd.s32 %s175, 1
    %s177 = scalar_select %p174, %s175, %s176
    %p180 = pneg %p174
    %p181 = scmp.eq.s32.totalorder %s14, 1
    %p182 = por %p180, %p181
    %p183 = scmp.ne.s32.totalorder %s175, %s178
    %p184 = scmp.eq.s32.totalorder %s14, 0
    %p185 = por %p183, %p184
    %p186 = scmp.ne.s32.totalorder %s175, %s178
    %p187 = scmp.eq.s32.totalorder %s19, 1
    %p188 = por %p186, %p187
    %p189 = scmp.ne.s32.totalorder %s178, %s179
    %p190 = scmp.eq.s32.totalorder %s19, 0
    %p191 = por %p189, %p190
    %p192 = scmp.ne.s32.totalorder %s178, %s179
    %p193 = scmp.eq.s32.totalorder %s20, 1
    %p194 = por %p192, %p193
    %p196 = scmp.ne.s32.totalorder %s179, %s195
    %p197 = scmp.eq.s32.totalorder %s20, 0
    %p198 = por %p196, %p197
    %s199 = ssub.s32 %s14, %s21
    %p200 = scmp.eq.s32.totalorder %s199, 0
    %s202 = sadd.s32 %s201, 1
    %s203 = scalar_select %p200, %s201, %s202
    %p206 = pneg %p200
    %p207 = scmp.eq.s32.totalorder %s14, 1
    %p208 = por %p206, %p207
    %p209 = scmp.ne.s32.totalorder %s201, %s204
    %p210 = scmp.eq.s32.totalorder %s14, 0
    %p211 = por %p209, %p210
    %p212 = scmp.ne.s32.totalorder %s201, %s204
    %p213 = scmp.eq.s32.totalorder %s19, 1
    %p214 = por %p212, %p213
    %p215 = scmp.ne.s32.totalorder %s204, %s205
    %p216 = scmp.eq.s32.totalorder %s19, 0
    %p217 = por %p215, %p216
    %p218 = scmp.ne.s32.totalorder %s204, %s205
    %p219 = scmp.eq.s32.totalorder %s20, 1
    %p220 = por %p218, %p219
    %p222 = scmp.ne.s32.totalorder %s205, %s221
    %p223 = scmp.eq.s32.totalorder %s20, 0
    %p224 = por %p222, %p223
    %p225 = scmp.le.s32.totalorder 1, %s14
    %p226 = scmp.lt.s32.totalorder %s14, 3
    %p227 = pnand %p225, %p226
    %p228 = pneg %p227
    // Predicated region
    $region9: #{bottleneck_gelu.8} parent=5 // pred_check
      _
    $region10: #{bottleneck_gelu.8} parent=5 // pred_check_branch
      %230 = sbr.rel (%p227) target = $region12
    $region11: #{bottleneck_gelu.8} parent=5 // pred_region
      %s231 = ssub.s32 %s14, 1
      // Predicated region
      $region13: #{bottleneck_gelu.8} parent=11 // pred_check
        %p232 = pneg %p139
      $region14: #{bottleneck_gelu.8} parent=11 // pred_check_branch
        %234 = sbr.rel (%p232) target = $region16
      $region15: #{bottleneck_gelu.8} parent=11 // pred_region
        _
      $region16: #{bottleneck_gelu.8} parent=11 // pred_fallthru
        _
    $region12: #{bottleneck_gelu.8} parent=5 // pred_fallthru
      _
    %p235 = scmp.lt.s32.totalorder %s14, 2
    // Predicated region
    $region17: #{bottleneck_gelu.8} parent=5 // pred_check
      %p236 = pneg %p235
    $region18: #{bottleneck_gelu.8} parent=5 // pred_check_branch
      %238 = sbr.rel (%p236) target = $region20
    $region19: #{bottleneck_gelu.8} parent=5 // pred_region
      // Predicated region
      $region21: #{bottleneck_gelu.8} parent=19 // pred_check
        %p239 = pneg %p34
      $region22: #{bottleneck_gelu.8} parent=19 // pred_check_branch
        %241 = sbr.rel (%p239) target = $region24
      $region23: #{bottleneck_gelu.8} parent=19 // pred_region
        %p242 = scmp.lt.s32.totalorder %s14, 1
        %s243 = scalar_select %p242, %s14, 1
        %s244 = smul.addr %s243, 51
        %s245 = smul.addr %s244, 8
        %s246 = scalar_lea.vmem %s0, %s245
      $region24: #{bottleneck_gelu.8} parent=19 // pred_fallthru
        _
      // Predicated region
      $region25: #{bottleneck_gelu.8} parent=19 // pred_check
        %p247 = pneg %p60
      $region26: #{bottleneck_gelu.8} parent=19 // pred_check_branch
        %249 = sbr.rel (%p247) target = $region28
      $region27: #{bottleneck_gelu.8} parent=19 // pred_region
        %p250 = scmp.lt.s32.totalorder %s14, 1
        %s251 = scalar_select %p250, %s14, 1
        %s252 = smul.addr %s251, 51
        %s253 = smul.addr %s252, 8
        %s254 = scalar_lea.vmem %s1, %s253
      $region28: #{bottleneck_gelu.8} parent=19 // pred_fallthru
        _
      // Predicated region
      $region29: #{bottleneck_gelu.8} parent=19 // pred_check
        %p255 = pneg %p86
      $region30: #{bottleneck_gelu.8} parent=19 // pred_check_branch
        %257 = sbr.rel (%p255) target = $region32
      $region31: #{bottleneck_gelu.8} parent=19 // pred_region
        %p258 = scmp.lt.s32.totalorder %s14, 1
        %s259 = scalar_select %p258, %s14, 1
        %s260 = smul.addr %s259, 51
        %s261 = smul.addr %s260, 8
        %s262 = scalar_lea.vmem %s2, %s261
      $region32: #{bottleneck_gelu.8} parent=19 // pred_fallthru
        _
      // Predicated region
      $region33: #{bottleneck_gelu.8} parent=19 // pred_check
        %p263 = pneg %p112
      $region34: #{bottleneck_gelu.8} parent=19 // pred_check_branch
        %265 = sbr.rel (%p263) target = $region36
      $region35: #{bottleneck_gelu.8} parent=19 // pred_region
        %p266 = scmp.lt.s32.totalorder %s14, 1
        %s267 = scalar_select %p266, %s14, 1
        %s268 = smul.addr %s267, 51
        %s269 = smul.addr %s268, 8
        %s270 = scalar_lea.vmem %s3, %s269
      $region36: #{bottleneck_gelu.8} parent=19 // pred_fallthru
        _
    $region20: #{bottleneck_gelu.8} parent=5 // pred_fallthru
      _
    %p271 = scmp.le.s32.totalorder 1, %s14
    %p272 = scmp.lt.s32.totalorder %s14, 3
    %p273 = pnand %p271, %p272
    %p274 = pneg %p273
    // Predicated region
    $region37: #{bottleneck_gelu.8} parent=5 // pred_check
      _
    $region38: #{bottleneck_gelu.8} parent=5 // pred_check_branch
      %276 = sbr.rel (%p273) target = $region40
    $region39: #{bottleneck_gelu.8} parent=5 // pred_region
      %s277 = ssub.s32 %s14, 1
      %p278 = scmp.lt.s32.totalorder %s19, 1
      %s279 = scalar_select %p278, %s19, 1
      %s280 = smul.addr %s279, 51
      %s281 = smul.addr %s280, 8
      %s282 = scalar_lea.vmem %s0, %s281
      %p283 = pneg %p40
      %p284 = pneg %p37
      %p285 = scmp.lt.s32.totalorder %s19, 1
      %s286 = scalar_select %p285, %s19, 1
      %s287 = smul.addr %s286, 51
      %s288 = smul.addr %s287, 8
      %s289 = scalar_lea.vmem %s1, %s288
      %p290 = pneg %p66
      %p291 = pneg %p63
      %p292 = scmp.lt.s32.totalorder %s19, 1
      %s293 = scalar_select %p292, %s19, 1
      %s294 = smul.addr %s293, 51
      %s295 = smul.addr %s294, 8
      %s296 = scalar_lea.vmem %s2, %s295
      %p297 = pneg %p92
      %p298 = pneg %p89
      %p299 = scmp.lt.s32.totalorder %s19, 1
      %s300 = scalar_select %p299, %s19, 1
      %s301 = smul.addr %s300, 51
      %s302 = smul.addr %s301, 8
      %s303 = scalar_lea.vmem %s3, %s302
      %p304 = pneg %p118
      %p305 = pneg %p115
      %p306 = pneg %p139
      %p307 = pneg %p136
      %p308 = pneg %p165
      %p309 = pneg %p162
      %s310 = smul.u32 32, %s19
      %p311 = scmp.lt.s32.totalorder %s310, 63
      %s312 = scalar_select %p311, %s310, 63
      %s313 = smul.addr %s312, 8
      %s314 = scalar_lea.vmem %s5, %s313
      %p315 = pneg %p191
      %p316 = pneg %p188
      %p317 = scmp.lt.s32.totalorder %s19, 1
      %s318 = scalar_select %p317, %s19, 1
      %s319 = scalar_lea.vmem %s6, %s318
      %p320 = pneg %p217
      %p321 = pneg %p214
      %p322 = scmp.lt.s32.totalorder %s19, 1
      %s323 = scalar_select %p322, %s19, 1
      %s324 = scalar_lea.vmem %s7, %s323
      %p325 = scmp.lt.s32.totalorder %s19, 1
      %s326 = scalar_select %p325, %s19, 1
      %s327 = smul.addr %s326, 51
      %s328 = smul.addr %s327, 8
      %s329 = scalar_lea.vmem %s0, %s328
      %p330 = scmp.lt.s32.totalorder %s19, 1
      %s331 = scalar_select %p330, %s19, 1
      %s332 = smul.addr %s331, 51
      %s333 = smul.addr %s332, 8
      %s334 = scalar_lea.vmem %s1, %s333
      %p335 = scmp.lt.s32.totalorder %s19, 1
      %s336 = scalar_select %p335, %s19, 1
      %s337 = smul.addr %s336, 51
      %s338 = smul.addr %s337, 8
      %s339 = scalar_lea.vmem %s2, %s338
      %p340 = scmp.lt.s32.totalorder %s19, 1
      %s341 = scalar_select %p340, %s19, 1
      %s342 = smul.addr %s341, 51
      %s343 = smul.addr %s342, 8
      %s344 = scalar_lea.vmem %s3, %s343
      %s345 = smul.u32 32, %s19
      %p346 = scmp.lt.s32.totalorder %s345, 63
      %s347 = scalar_select %p346, %s345, 63
      %s348 = smul.addr %s347, 8
      %s349 = scalar_lea.vmem %s5, %s348
      %s350 = smul.u32 32, %s19
      %p351 = scmp.lt.s32.totalorder %s19, 1
      %s352 = scalar_select %p351, %s19, 1
      %s353 = scalar_lea.vmem %s6, %s352
      %p354 = scmp.lt.s32.totalorder %s19, 1
      %s355 = scalar_select %p354, %s19, 1
      %s356 = scalar_lea.vmem %s7, %s355
      %v358 = vld [vmem:[%s329] sm:$0xff]
      %v359 = vld [vmem:[%s329 + $0x8] sm:$0xff]
      %v360 = vld [vmem:[%s329 + $0x10] sm:$0x1]
      %v361 = vld [vmem:[%s329 + $0x18] sm:$0xff]
      %v362 = vld [vmem:[%s329 + $0x20] sm:$0xff]
      %v363 = vld [vmem:[%s329 + $0x28] sm:$0x1]
      %v364 = vld [vmem:[%s329 + $0x30] sm:$0xff]
      %v365 = vld [vmem:[%s329 + $0x38] sm:$0xff]
      %v366 = vld [vmem:[%s329 + $0x40] sm:$0x1]
      %v367 = vld [vmem:[%s329 + $0x48] sm:$0xff]
      %v368 = vld [vmem:[%s329 + $0x50] sm:$0xff]
      %v369 = vld [vmem:[%s329 + $0x58] sm:$0x1]
      %v370 = vld [vmem:[%s329 + $0x60] sm:$0xff]
      %v371 = vld [vmem:[%s329 + $0x68] sm:$0xff]
      %v372 = vld [vmem:[%s329 + $0x70] sm:$0x1]
      %v373 = vld [vmem:[%s329 + $0x78] sm:$0xff]
      %v374 = vld [vmem:[%s329 + $0x80] sm:$0xff]
      %v375 = vld [vmem:[%s329 + $0x88] sm:$0x1]
      %v376 = vld [vmem:[%s329 + $0x90] sm:$0xff]
      %v377 = vld [vmem:[%s329 + $0x98] sm:$0xff]
      %v378 = vld [vmem:[%s329 + $0xa0] sm:$0x1]
      %v379 = vld [vmem:[%s329 + $0xa8] sm:$0xff]
      %v380 = vld [vmem:[%s329 + $0xb0] sm:$0xff]
      %v381 = vld [vmem:[%s329 + $0xb8] sm:$0x1]
      %v382 = vld [vmem:[%s329 + $0xc0] sm:$0xff]
      %v383 = vld [vmem:[%s329 + $0xc8] sm:$0xff]
      %v384 = vld [vmem:[%s329 + $0xd0] sm:$0x1]
      %v385 = vld [vmem:[%s329 + $0xd8] sm:$0xff]
      %v386 = vld [vmem:[%s329 + $0xe0] sm:$0xff]
      %v387 = vld [vmem:[%s329 + $0xe8] sm:$0x1]
      %v388 = vld [vmem:[%s329 + $0xf0] sm:$0xff]
      %v389 = vld [vmem:[%s329 + $0xf8] sm:$0xff]
      %v390 = vld [vmem:[%s329 + $0x100] sm:$0x1]
      %v391 = vld [vmem:[%s329 + $0x108] sm:$0xff]
      %v392 = vld [vmem:[%s329 + $0x110] sm:$0xff]
      %v393 = vld [vmem:[%s329 + $0x118] sm:$0x1]
      %v394 = vld [vmem:[%s329 + $0x120] sm:$0xff]
      %v395 = vld [vmem:[%s329 + $0x128] sm:$0xff]
      %v396 = vld [vmem:[%s329 + $0x130] sm:$0x1]
      %v397 = vld [vmem:[%s329 + $0x138] sm:$0xff]
      %v398 = vld [vmem:[%s329 + $0x140] sm:$0xff]
      %v399 = vld [vmem:[%s329 + $0x148] sm:$0x1]
      %v400 = vld [vmem:[%s329 + $0x150] sm:$0xff]
      %v401 = vld [vmem:[%s329 + $0x158] sm:$0xff]
      %v402 = vld [vmem:[%s329 + $0x160] sm:$0x1]
      %v403 = vld [vmem:[%s329 + $0x168] sm:$0xff]
      %v404 = vld [vmem:[%s329 + $0x170] sm:$0xff]
      %v405 = vld [vmem:[%s329 + $0x178] sm:$0x1]
      %v406 = vld [vmem:[%s329 + $0x180] sm:$0xff]
      %v407 = vld [vmem:[%s329 + $0x188] sm:$0xff]
      %v408 = vld [vmem:[%s329 + $0x190] sm:$0x1]
      %v409 = vld [vmem:[%s334] sm:$0xff]
      %v410 = vld [vmem:[%s334 + $0x8] sm:$0xff]
      %v411 = vld [vmem:[%s334 + $0x18] sm:$0xff]
      %v412 = vld [vmem:[%s334 + $0x20] sm:$0xff]
      %v413 = vld [vmem:[%s334 + $0x30] sm:$0xff]
      %v414 = vld [vmem:[%s334 + $0x38] sm:$0xff]
      %v415 = vld [vmem:[%s334 + $0x48] sm:$0xff]
      %v416 = vld [vmem:[%s334 + $0x50] sm:$0xff]
      %v417 = vld [vmem:[%s334 + $0x60] sm:$0xff]
      %v418 = vld [vmem:[%s334 + $0x68] sm:$0xff]
      %v419 = vld [vmem:[%s334 + $0x78] sm:$0xff]
      %v420 = vld [vmem:[%s334 + $0x80] sm:$0xff]
      %v421 = vld [vmem:[%s334 + $0x90] sm:$0xff]
      %v422 = vld [vmem:[%s334 + $0x98] sm:$0xff]
      %v423 = vld [vmem:[%s334 + $0xa8] sm:$0xff]
      %v424 = vld [vmem:[%s334 + $0xb0] sm:$0xff]
      %v425 = vld [vmem:[%s334 + $0xc0] sm:$0xff]
      %v426 = vld [vmem:[%s334 + $0xc8] sm:$0xff]
      %v427 = vld [vmem:[%s334 + $0xd8] sm:$0xff]
      %v428 = vld [vmem:[%s334 + $0xe0] sm:$0xff]
      %v429 = vld [vmem:[%s334 + $0xf0] sm:$0xff]
      %v430 = vld [vmem:[%s334 + $0xf8] sm:$0xff]
      %v431 = vld [vmem:[%s334 + $0x108] sm:$0xff]
      %v432 = vld [vmem:[%s334 + $0x110] sm:$0xff]
      %v433 = vld [vmem:[%s334 + $0x120] sm:$0xff]
      %v434 = vld [vmem:[%s334 + $0x128] sm:$0xff]
      %v435 = vld [vmem:[%s334 + $0x138] sm:$0xff]
      %v436 = vld [vmem:[%s334 + $0x140] sm:$0xff]
      %v437 = vld [vmem:[%s334 + $0x150] sm:$0xff]
      %v438 = vld [vmem:[%s334 + $0x158] sm:$0xff]
      %v439 = vld [vmem:[%s334 + $0x168] sm:$0xff]
      %v440 = vld [vmem:[%s334 + $0x170] sm:$0xff]
      %v441 = vld [vmem:[%s334 + $0x180] sm:$0xff]
      %v442 = vld [vmem:[%s334 + $0x188] sm:$0xff]
      %v443 = vld [vmem:[%s339] sm:$0xff]
      %v444 = vld [vmem:[%s339 + $0x8] sm:$0xff]
      %v445 = vld [vmem:[%s339 + $0x10] sm:$0x1]
      %v446 = vld [vmem:[%s339 + $0x18] sm:$0xff]
      %v447 = vld [vmem:[%s339 + $0x20] sm:$0xff]
      %v448 = vld [vmem:[%s339 + $0x28] sm:$0x1]
      %v449 = vld [vmem:[%s339 + $0x30] sm:$0xff]
      %v450 = vld [vmem:[%s339 + $0x38] sm:$0xff]
      %v451 = vld [vmem:[%s339 + $0x40] sm:$0x1]
      %v452 = vld [vmem:[%s339 + $0x48] sm:$0xff]
      %v453 = vld [vmem:[%s339 + $0x50] sm:$0xff]
      %v454 = vld [vmem:[%s339 + $0x58] sm:$0x1]
      %v455 = vld [vmem:[%s339 + $0x60] sm:$0xff]
      %v456 = vld [vmem:[%s339 + $0x68] sm:$0xff]
      %v457 = vld [vmem:[%s339 + $0x70] sm:$0x1]
      %v458 = vld [vmem:[%s339 + $0x78] sm:$0xff]
      %v459 = vld [vmem:[%s339 + $0x80] sm:$0xff]
      %v460 = vld [vmem:[%s339 + $0x88] sm:$0x1]
      %v461 = vld [vmem:[%s339 + $0x90] sm:$0xff]
      %v462 = vld [vmem:[%s339 + $0x98] sm:$0xff]
      %v463 = vld [vmem:[%s339 + $0xa0] sm:$0x1]
      %v464 = vld [vmem:[%s339 + $0xa8] sm:$0xff]
      %v465 = vld [vmem:[%s339 + $0xb0] sm:$0xff]
      %v466 = vld [vmem:[%s339 + $0xb8] sm:$0x1]
      %v467 = vld [vmem:[%s339 + $0xc0] sm:$0xff]
      %v468 = vld [vmem:[%s339 + $0xc8] sm:$0xff]
      %v469 = vld [vmem:[%s339 + $0xd0] sm:$0x1]
      %v470 = vld [vmem:[%s339 + $0xd8] sm:$0xff]
      %v471 = vld [vmem:[%s339 + $0xe0] sm:$0xff]
      %v472 = vld [vmem:[%s339 + $0xe8] sm:$0x1]
      %v473 = vld [vmem:[%s339 + $0xf0] sm:$0xff]
      %v474 = vld [vmem:[%s339 + $0xf8] sm:$0xff]
      %v475 = vld [vmem:[%s339 + $0x100] sm:$0x1]
      %v476 = vld [vmem:[%s339 + $0x108] sm:$0xff]
      %v477 = vld [vmem:[%s339 + $0x110] sm:$0xff]
      %v478 = vld [vmem:[%s339 + $0x118] sm:$0x1]
      %v479 = vld [vmem:[%s339 + $0x120] sm:$0xff]
      %v480 = vld [vmem:[%s339 + $0x128] sm:$0xff]
      %v481 = vld [vmem:[%s339 + $0x130] sm:$0x1]
      %v482 = vld [vmem:[%s339 + $0x138] sm:$0xff]
      %v483 = vld [vmem:[%s339 + $0x140] sm:$0xff]
      %v484 = vld [vmem:[%s339 + $0x148] sm:$0x1]
      %v485 = vld [vmem:[%s339 + $0x150] sm:$0xff]
      %v486 = vld [vmem:[%s339 + $0x158] sm:$0xff]
      %v487 = vld [vmem:[%s339 + $0x160] sm:$0x1]
      %v488 = vld [vmem:[%s339 + $0x168] sm:$0xff]
      %v489 = vld [vmem:[%s339 + $0x170] sm:$0xff]
      %v490 = vld [vmem:[%s339 + $0x178] sm:$0x1]
      %v491 = vld [vmem:[%s344] sm:$0xff]
      %v492 = vld [vmem:[%s344 + $0x8] sm:$0xff]
      %v493 = vld [vmem:[%s344 + $0x18] sm:$0xff]
      %v494 = vld [vmem:[%s344 + $0x20] sm:$0xff]
      %v495 = vld [vmem:[%s344 + $0x30] sm:$0xff]
      %v496 = vld [vmem:[%s344 + $0x38] sm:$0xff]
      %v497 = vld [vmem:[%s344 + $0x48] sm:$0xff]
      %v498 = vld [vmem:[%s344 + $0x50] sm:$0xff]
      %v499 = vld [vmem:[%s344 + $0x60] sm:$0xff]
      %v500 = vld [vmem:[%s344 + $0x68] sm:$0xff]
      %v501 = vld [vmem:[%s344 + $0x78] sm:$0xff]
      %v502 = vld [vmem:[%s344 + $0x80] sm:$0xff]
      %v503 = vld [vmem:[%s344 + $0x90] sm:$0xff]
      %v504 = vld [vmem:[%s344 + $0x98] sm:$0xff]
      %v505 = vld [vmem:[%s344 + $0xa8] sm:$0xff]
      %v506 = vld [vmem:[%s344 + $0xb0] sm:$0xff]
      %v507 = vld [vmem:[%s344 + $0xc0] sm:$0xff]
      %v508 = vld [vmem:[%s344 + $0xc8] sm:$0xff]
      %v509 = vld [vmem:[%s344 + $0xd8] sm:$0xff]
      %v510 = vld [vmem:[%s344 + $0xe0] sm:$0xff]
      %v511 = vld [vmem:[%s344 + $0xf0] sm:$0xff]
      %v512 = vld [vmem:[%s344 + $0xf8] sm:$0xff]
      %v513 = vld [vmem:[%s344 + $0x108] sm:$0xff]
      %v514 = vld [vmem:[%s344 + $0x110] sm:$0xff]
      %v515 = vld [vmem:[%s344 + $0x120] sm:$0xff]
      %v516 = vld [vmem:[%s344 + $0x128] sm:$0xff]
      %v517 = vld [vmem:[%s344 + $0x138] sm:$0xff]
      %v518 = vld [vmem:[%s344 + $0x140] sm:$0xff]
      %v519 = vld [vmem:[%s344 + $0x150] sm:$0xff]
      %v520 = vld [vmem:[%s344 + $0x158] sm:$0xff]
      %v521 = vld [vmem:[%s344 + $0x168] sm:$0xff]
      %v522 = vld [vmem:[%s344 + $0x170] sm:$0xff]
      %v523 = vpack.c.bf16 %v359, %v358
      %v524 = vpack.c.bf16 %v362, %v361
      %v525 = vpack.c.bf16 %v365, %v364
      %v526 = vpack.c.bf16 %v368, %v367
      %v527 = vpack.c.bf16 %v371, %v370
      %v528 = vpack.c.bf16 %v374, %v373
      %v529 = vpack.c.bf16 %v377, %v376
      %v530 = vpack.c.bf16 %v380, %v379
      %v531 = vpack.c.bf16 %v383, %v382
      %v532 = vpack.c.bf16 %v386, %v385
      %v533 = vpack.c.bf16 %v389, %v388
      %v534 = vpack.c.bf16 %v392, %v391
      %v535 = vpack.c.bf16 %v395, %v394
      %v536 = vpack.c.bf16 %v398, %v397
      %v537 = vpack.c.bf16 %v401, %v400
      %v538 = vpack.c.bf16 %v404, %v403
      %v539 = vld [vmem:[%s4] sm:$0xf]
      %v540 = vpack.c.bf16 %v410, %v409
      %v541 = vpack.c.bf16 %v412, %v411
      %v542 = vpack.c.bf16 %v414, %v413
      %v543 = vpack.c.bf16 %v416, %v415
      %v544 = vpack.c.bf16 %v418, %v417
      %v545 = vpack.c.bf16 %v420, %v419
      %v546 = vpack.c.bf16 %v422, %v421
      %v547 = vpack.c.bf16 %v424, %v423
      %v548 = vpack.c.bf16 %v426, %v425
      %v549 = vpack.c.bf16 %v428, %v427
      %v550 = vpack.c.bf16 %v430, %v429
      %v551 = vpack.c.bf16 %v432, %v431
      %v552 = vpack.c.bf16 %v434, %v433
      %v553 = vpack.c.bf16 %v436, %v435
      %v554 = vpack.c.bf16 %v438, %v437
      %v555 = vpack.c.bf16 %v440, %v439
      %s556 = scalar_lea.vmem %s4, 4
      %v557 = vld [vmem:[%s556] sm:$0xf]
      %vm558 = vcmask 64512
      %v560 = vsel %vm558, %v540, 0
      %v563 = vsel %vm558, %v541, 0
      %v566 = vsel %vm558, %v542, 0
      %v569 = vsel %vm558, %v543, 0
      %v572 = vsel %vm558, %v544, 0
      %v575 = vsel %vm558, %v545, 0
      %v578 = vsel %vm558, %v546, 0
      %v581 = vsel %vm558, %v547, 0
      %v584 = vsel %vm558, %v548, 0
      %v587 = vsel %vm558, %v549, 0
      %v590 = vsel %vm558, %v550, 0
      %v593 = vsel %vm558, %v551, 0
      %v596 = vsel %vm558, %v552, 0
      %v599 = vsel %vm558, %v553, 0
      %v602 = vsel %vm558, %v554, 0
      %v605 = vsel %vm558, %v555, 0
      %vm607 = vcmask 1043456
      %v609 = vsel %vm607, %v557, 0
      %611 = vmatprep.subr.bf16.mxu0 0
      %612 = vmatpush1.bf16.msra.mxu0 %v609
      %613 = vmatprep.subr.bf16.mxu0 0
      %614 = vmatpush1.bf16.msra.mxu0 0
      %615 = vmatprep.subr.bf16.mxu0 0
      %616 = vmatpush1.bf16.msra.mxu0 0
      %617 = vmatprep.subr.bf16.mxu0 0
      %618 = vmatpush1.bf16.msra.mxu0 0
      %619 = vmatprep.subr.bf16.mxu0 0
      %620 = vmatpush1.bf16.msra.mxu0 0
      %621 = vmatprep.subr.bf16.mxu0 0
      %622 = vmatpush1.bf16.msra.mxu0 0
      %623 = vmatprep.subr.bf16.mxu0 0
      %624 = vmatpush1.bf16.msra.mxu0 0
      %625 = vmatprep.subr.bf16.mxu0 0
      %626 = vmatpush1.bf16.msra.mxu0 0
      %627 = vmatprep.subr.bf16.mxu0 0
      %628 = vmatpush1.bf16.msra.mxu0 0
      %629 = vmatprep.subr.bf16.mxu0 0
      %630 = vmatpush1.bf16.msra.mxu0 0
      %631 = vmatprep.subr.bf16.mxu0 0
      %632 = vmatpush1.bf16.msra.mxu0 0
      %633 = vmatprep.subr.bf16.mxu0 0
      %634 = vmatpush1.bf16.msra.mxu0 0
      %635 = vmatprep.subr.bf16.mxu0 0
      %636 = vmatpush1.bf16.msra.mxu0 0
      %637 = vmatprep.subr.bf16.mxu0 0
      %638 = vmatpush1.bf16.msra.mxu0 0
      %639 = vmatprep.subr.bf16.mxu0 0
      %640 = vmatpush1.bf16.msra.mxu0 0
      %641 = vmatprep.subr.bf16.mxu0 0
      %642 = vmatpush1.bf16.msra.mxu0 0
      %643 = vmatprep.mubr.bf16.mxu0 0
      %644 = vmatmul.mubr.bf16.gmra.mrb[0].mxu0 %v560
      %v645 = vpop.f32.mrb[0].mxu0
      %v646 = vadd.f32 0.0, %v645
      %v647 = vpop.f32.mrb[0].mxu0
      %v648 = vpop.f32.mrb[0].mxu0
      %v649 = vadd.f32 0.0, %v648
      %v650 = vpop.f32.mrb[0].mxu0
      %651 = vmatprep.mubr.bf16.mxu0 0
      %652 = vmatmul.mubr.bf16.gmra.mrb[0].mxu0 %v563
      %v653 = vpop.f32.mrb[0].mxu0
      %v654 = vadd.f32 0.0, %v653
      %v655 = vpop.f32.mrb[0].mxu0
      %v656 = vpop.f32.mrb[0].mxu0
      %v657 = vadd.f32 0.0, %v656
      %v658 = vpop.f32.mrb[0].mxu0
      %659 = vmatprep.mubr.bf16.mxu0 0
      %660 = vmatmul.mubr.bf16.gmra.mrb[0].mxu0 %v566
      %v661 = vpop.f32.mrb[0].mxu0
      %v662 = vadd.f32 0.0, %v661
      %v663 = vpop.f32.mrb[0].mxu0
      %v664 = vpop.f32.mrb[0].mxu0
      %v665 = vadd.f32 0.0, %v664
      %v666 = vpop.f32.mrb[0].mxu0
      %667 = vmatprep.mubr.bf16.mxu0 0
      %668 = vmatmul.mubr.bf16.gmra.mrb[0].mxu0 %v569
      %v669 = vpop.f32.mrb[0].mxu0
      %v670 = vadd.f32 0.0, %v669
      %v671 = vpop.f32.mrb[0].mxu0
      %v672 = vpop.f32.mrb[0].mxu0
      %v673 = vadd.f32 0.0, %v672
      %v674 = vpop.f32.mrb[0].mxu0
      %675 = vmatprep.mubr.bf16.mxu0 0
      %676 = vmatmul.mubr.bf16.gmra.mrb[0].mxu0 %v572
      %v677 = vpop.f32.mrb[0].mxu0
      %v678 = vadd.f32 0.0, %v677
      %v679 = vpop.f32.mrb[0].mxu0
      %v680 = vpop.f32.mrb[0].mxu0
      %v681 = vadd.f32 0.0, %v680
      %v682 = vpop.f32.mrb[0].mxu0
      %683 = vmatprep.mubr.bf16.mxu0 0
      %684 = vmatmul.mubr.bf16.gmra.mrb[0].mxu0 %v575
      %v685 = vpop.f32.mrb[0].mxu0
      %v686 = vadd.f32 0.0, %v685
      %v687 = vpop.f32.mrb[0].mxu0
      %v688 = vpop.f32.mrb[0].mxu0
      %v689 = vadd.f32 0.0, %v688
      %v690 = vpop.f32.mrb[0].mxu0
      %691 = vmatprep.mubr.bf16.mxu0 0
      %692 = vmatmul.mubr.bf16.gmra.mrb[0].mxu0 %v578
      %v693 = vpop.f32.mrb[0].mxu0
      %v694 = vadd.f32 0.0, %v693
      %v695 = vpop.f32.mrb[0].mxu0
      %v696 = vpop.f32.mrb[0].mxu0
      %v697 = vadd.f32 0.0, %v696
      %v698 = vpop.f32.mrb[0].mxu0
      %699 = vmatprep.mubr.bf16.mxu0 0
      %700 = vmatmul.mubr.bf16.gmra.mrb[0].mxu0 %v581
      %v701 = vpop.f32.mrb[0].mxu0
      %v702 = vadd.f32 0.0, %v701
      %v703 = vpop.f32.mrb[0].mxu0
      %v704 = vpop.f32.mrb[0].mxu0
      %v705 = vadd.f32 0.0, %v704
      %v706 = vpop.f32.mrb[0].mxu0
      %707 = vmatprep.mubr.bf16.mxu0 0
      %708 = vmatmul.mubr.bf16.gmra.mrb[0].mxu0 %v584
      %v709 = vpop.f32.mrb[0].mxu0
      %v710 = vadd.f32 0.0, %v709
      %v711 = vpop.f32.mrb[0].mxu0
      %v712 = vpop.f32.mrb[0].mxu0
      %v713 = vadd.f32 0.0, %v712
      %v714 = vpop.f32.mrb[0].mxu0
      %715 = vmatprep.mubr.bf16.mxu0 0
      %716 = vmatmul.mubr.bf16.gmra.mrb[0].mxu0 %v587
      %v717 = vpop.f32.mrb[0].mxu0
      %v718 = vadd.f32 0.0, %v717
      %v719 = vpop.f32.mrb[0].mxu0
      %v720 = vpop.f32.mrb[0].mxu0
      %v721 = vadd.f32 0.0, %v720
      %v722 = vpop.f32.mrb[0].mxu0
      %723 = vmatprep.mubr.bf16.mxu0 0
      %724 = vmatmul.mubr.bf16.gmra.mrb[0].mxu0 %v590
      %v725 = vpop.f32.mrb[0].mxu0
      %v726 = vadd.f32 0.0, %v725
      %v727 = vpop.f32.mrb[0].mxu0
      %v728 = vpop.f32.mrb[0].mxu0
      %v729 = vadd.f32 0.0, %v728
      %v730 = vpop.f32.mrb[0].mxu0
      %731 = vmatprep.mubr.bf16.mxu0 0
      %732 = vmatmul.mubr.bf16.gmra.mrb[0].mxu0 %v593
      %v733 = vpop.f32.mrb[0].mxu0
      %v734 = vadd.f32 0.0, %v733
      %v735 = vpop.f32.mrb[0].mxu0
      %v736 = vpop.f32.mrb[0].mxu0
      %v737 = vadd.f32 0.0, %v736
      %v738 = vpop.f32.mrb[0].mxu0
      %739 = vmatprep.mubr.bf16.mxu0 0
      %740 = vmatmul.mubr.bf16.gmra.mrb[0].mxu0 %v596
      %v741 = vpop.f32.mrb[0].mxu0
      %v742 = vadd.f32 0.0, %v741
      %v743 = vpop.f32.mrb[0].mxu0
      %v744 = vpop.f32.mrb[0].mxu0
      %v745 = vadd.f32 0.0, %v744
      %v746 = vpop.f32.mrb[0].mxu0
      %747 = vmatprep.mubr.bf16.mxu0 0
      %748 = vmatmul.mubr.bf16.gmra.mrb[0].mxu0 %v599
      %v749 = vpop.f32.mrb[0].mxu0
      %v750 = vadd.f32 0.0, %v749
      %v751 = vpop.f32.mrb[0].mxu0
      %v752 = vpop.f32.mrb[0].mxu0
      %v753 = vadd.f32 0.0, %v752
      %v754 = vpop.f32.mrb[0].mxu0
      %755 = vmatprep.mubr.bf16.mxu0 0
      %756 = vmatmul.mubr.bf16.gmra.mrb[0].mxu0 %v602
      %v757 = vpop.f32.mrb[0].mxu0
      %v758 = vadd.f32 0.0, %v757
      %v759 = vpop.f32.mrb[0].mxu0
      %v760 = vpop.f32.mrb[0].mxu0
      %v761 = vadd.f32 0.0, %v760
      %v762 = vpop.f32.mrb[0].mxu0
      %763 = vmatprep.mubr.bf16.mxu0 0
      %764 = vmatmul.mubr.bf16.gmra.mrb[0].mxu0 %v605
      %v765 = vpop.f32.mrb[0].mxu0
      %v766 = vadd.f32 0.0, %v765
      %v767 = vpop.f32.mrb[0].mxu0
      %v768 = vpop.f32.mrb[0].mxu0
      %v769 = vadd.f32 0.0, %v768
      %v770 = vpop.f32.mrb[0].mxu0
      %771 = vdwg.mxu0
      %v773 = vsel %vm558, %v523, 0
      %v776 = vsel %vm558, %v524, 0
      %v779 = vsel %vm558, %v525, 0
      %v782 = vsel %vm558, %v526, 0
      %v785 = vsel %vm558, %v527, 0
      %v788 = vsel %vm558, %v528, 0
      %v791 = vsel %vm558, %v529, 0
      %v794 = vsel %vm558, %v530, 0
      %v797 = vsel %vm558, %v531, 0
      %v800 = vsel %vm558, %v532, 0
      %v803 = vsel %vm558, %v533, 0
      %v806 = vsel %vm558, %v534, 0
      %v809 = vsel %vm558, %v535, 0
      %v812 = vsel %vm558, %v536, 0
      %v815 = vsel %vm558, %v537, 0
      %v818 = vsel %vm558, %v538, 0
      %v821 = vsel %vm607, %v539, 0
      %823 = vmatprep.subr.bf16.mxu0 0
      %824 = vmatpush1.bf16.msra.mxu0 %v821
      %825 = vmatprep.subr.bf16.mxu0 0
      %826 = vmatpush1.bf16.msra.mxu0 0
      %827 = vmatprep.subr.bf16.mxu0 0
      %828 = vmatpush1.bf16.msra.mxu0 0
      %829 = vmatprep.subr.bf16.mxu0 0
      %830 = vmatpush1.bf16.msra.mxu0 0
      %831 = vmatprep.subr.bf16.mxu0 0
      %832 = vmatpush1.bf16.msra.mxu0 0
      %833 = vmatprep.subr.bf16.mxu0 0
      %834 = vmatpush1.bf16.msra.mxu0 0
      %835 = vmatprep.subr.bf16.mxu0 0
      %836 = vmatpush1.bf16.msra.mxu0 0
      %837 = vmatprep.subr.bf16.mxu0 0
      %838 = vmatpush1.bf16.msra.mxu0 0
      %839 = vmatprep.subr.bf16.mxu0 0
      %840 = vmatpush1.bf16.msra.mxu0 0
      %841 = vmatprep.subr.bf16.mxu0 0
      %842 = vmatpush1.bf16.msra.mxu0 0
      %843 = vmatprep.subr.bf16.mxu0 0
      %844 = vmatpush1.bf16.msra.mxu0 0
      %845 = vmatprep.subr.bf16.mxu0 0
      %846 = vmatpush1.bf16.msra.mxu0 0
      %847 = vmatprep.subr.bf16.mxu0 0
      %848 = vmatpush1.bf16.msra.mxu0 0
      %849 = vmatprep.subr.bf16.mxu0 0
      %850 = vmatpush1.bf16.msra.mxu0 0
      %851 = vmatprep.subr.bf16.mxu0 0
      %852 = vmatpush1.bf16.msra.mxu0 0
      %853 = vmatprep.subr.bf16.mxu0 0
      %854 = vmatpush1.bf16.msra.mxu0 0
      %855 = vmatprep.mubr.bf16.mxu0 0
      %856 = vmatmul.mubr.bf16.gmra.mrb[0].mxu0 %v773
      %v857 = vpop.f32.mrb[0].mxu0
      %v858 = vadd.f32 %v646, %v857
      %v859 = vpop.f32.mrb[0].mxu0
      %v860 = vpop.f32.mrb[0].mxu0
      %v861 = vadd.f32 %v649, %v860
      %v862 = vpop.f32.mrb[0].mxu0
      %863 = vmatprep.mubr.bf16.mxu0 0
      %864 = vmatmul.mubr.bf16.gmra.mrb[0].mxu0 %v776
      %v865 = vpop.f32.mrb[0].mxu0
      %v866 = vadd.f32 %v654, %v865
      %v867 = vpop.f32.mrb[0].mxu0
      %v868 = vpop.f32.mrb[0].mxu0
      %v869 = vadd.f32 %v657, %v868
      %v870 = vpop.f32.mrb[0].mxu0
      %871 = vmatprep.mubr.bf16.mxu0 0
      %872 = vmatmul.mubr.bf16.gmra.mrb[0].mxu0 %v779
      %v873 = vpop.f32.mrb[0].mxu0
      %v874 = vadd.f32 %v662, %v873
      %v875 = vpop.f32.mrb[0].mxu0
      %v876 = vpop.f32.mrb[0].mxu0
      %v877 = vadd.f32 %v665, %v876
      %v878 = vpop.f32.mrb[0].mxu0
      %879 = vmatprep.mubr.bf16.mxu0 0
      %880 = vmatmul.mubr.bf16.gmra.mrb[0].mxu0 %v782
      %v881 = vpop.f32.mrb[0].mxu0
      %v882 = vadd.f32 %v670, %v881
      %v883 = vpop.f32.mrb[0].mxu0
      %v884 = vpop.f32.mrb[0].mxu0
      %v885 = vadd.f32 %v673, %v884
      %v886 = vpop.f32.mrb[0].mxu0
      %887 = vmatprep.mubr.bf16.mxu0 0
      %888 = vmatmul.mubr.bf16.gmra.mrb[0].mxu0 %v785
      %v889 = vpop.f32.mrb[0].mxu0
      %v890 = vadd.f32 %v678, %v889
      %v891 = vpop.f32.mrb[0].mxu0
      %v892 = vpop.f32.mrb[0].mxu0
      %v893 = vadd.f32 %v681, %v892
      %v894 = vpop.f32.mrb[0].mxu0
      %895 = vmatprep.mubr.bf16.mxu0 0
      %896 = vmatmul.mubr.bf16.gmra.mrb[0].mxu0 %v788
      %v897 = vpop.f32.mrb[0].mxu0
      %v898 = vadd.f32 %v686, %v897
      %v899 = vpop.f32.mrb[0].mxu0
      %v900 = vpop.f32.mrb[0].mxu0
      %v901 = vadd.f32 %v689, %v900
      %v902 = vpop.f32.mrb[0].mxu0
      %903 = vmatprep.mubr.bf16.mxu0 0
      %904 = vmatmul.mubr.bf16.gmra.mrb[0].mxu0 %v791
      %v905 = vpop.f32.mrb[0].mxu0
      %v906 = vadd.f32 %v694, %v905
      %v907 = vpop.f32.mrb[0].mxu0
      %v908 = vpop.f32.mrb[0].mxu0
      %v909 = vadd.f32 %v697, %v908
      %v910 = vpop.f32.mrb[0].mxu0
      %911 = vmatprep.mubr.bf16.mxu0 0
      %912 = vmatmul.mubr.bf16.gmra.mrb[0].mxu0 %v794
      %v913 = vpop.f32.mrb[0].mxu0
      %v914 = vadd.f32 %v702, %v913
      %v915 = vpop.f32.mrb[0].mxu0
      %v916 = vpop.f32.mrb[0].mxu0
      %v917 = vadd.f32 %v705, %v916
      %v918 = vpop.f32.mrb[0].mxu0
      %919 = vmatprep.mubr.bf16.mxu0 0
      %920 = vmatmul.mubr.bf16.gmra.mrb[0].mxu0 %v797
      %v921 = vpop.f32.mrb[0].mxu0
      %v922 = vadd.f32 %v710, %v921
      %v923 = vpop.f32.mrb[0].mxu0
      %v924 = vpop.f32.mrb[0].mxu0
      %v925 = vadd.f32 %v713, %v924
      %v926 = vpop.f32.mrb[0].mxu0
      %927 = vmatprep.mubr.bf16.mxu0 0
      %928 = vmatmul.mubr.bf16.gmra.mrb[0].mxu0 %v800
      %v929 = vpop.f32.mrb[0].mxu0
      %v930 = vadd.f32 %v718, %v929
      %v931 = vpop.f32.mrb[0].mxu0
      %v932 = vpop.f32.mrb[0].mxu0
      %v933 = vadd.f32 %v721, %v932
      %v934 = vpop.f32.mrb[0].mxu0
      %935 = vmatprep.mubr.bf16.mxu0 0
      %936 = vmatmul.mubr.bf16.gmra.mrb[0].mxu0 %v803
      %v937 = vpop.f32.mrb[0].mxu0
      %v938 = vadd.f32 %v726, %v937
      %v939 = vpop.f32.mrb[0].mxu0
      %v940 = vpop.f32.mrb[0].mxu0
      %v941 = vadd.f32 %v729, %v940
      %v942 = vpop.f32.mrb[0].mxu0
      %943 = vmatprep.mubr.bf16.mxu0 0
      %944 = vmatmul.mubr.bf16.gmra.mrb[0].mxu0 %v806
      %v945 = vpop.f32.mrb[0].mxu0
      %v946 = vadd.f32 %v734, %v945
      %v947 = vpop.f32.mrb[0].mxu0
      %v948 = vpop.f32.mrb[0].mxu0
      %v949 = vadd.f32 %v737, %v948
      %v950 = vpop.f32.mrb[0].mxu0
      %951 = vmatprep.mubr.bf16.mxu0 0
      %952 = vmatmul.mubr.bf16.gmra.mrb[0].mxu0 %v809
      %v953 = vpop.f32.mrb[0].mxu0
      %v954 = vadd.f32 %v742, %v953
      %v955 = vpop.f32.mrb[0].mxu0
      %v956 = vpop.f32.mrb[0].mxu0
      %v957 = vadd.f32 %v745, %v956
      %v958 = vpop.f32.mrb[0].mxu0
      %959 = vmatprep.mubr.bf16.mxu0 0
      %960 = vmatmul.mubr.bf16.gmra.mrb[0].mxu0 %v812
      %v961 = vpop.f32.mrb[0].mxu0
      %v962 = vadd.f32 %v750, %v961
      %v963 = vpop.f32.mrb[0].mxu0
      %v964 = vpop.f32.mrb[0].mxu0
      %v965 = vadd.f32 %v753, %v964
      %v966 = vpop.f32.mrb[0].mxu0
      %967 = vmatprep.mubr.bf16.mxu0 0
      %968 = vmatmul.mubr.bf16.gmra.mrb[0].mxu0 %v815
      %v969 = vpop.f32.mrb[0].mxu0
      %v970 = vadd.f32 %v758, %v969
      %v971 = vpop.f32.mrb[0].mxu0
      %v972 = vpop.f32.mrb[0].mxu0
      %v973 = vadd.f32 %v761, %v972
      %v974 = vpop.f32.mrb[0].mxu0
      %975 = vmatprep.mubr.bf16.mxu0 0
      %976 = vmatmul.mubr.bf16.gmra.mrb[0].mxu0 %v818
      %v977 = vpop.f32.mrb[0].mxu0
      %v978 = vadd.f32 %v766, %v977
      %v979 = vpop.f32.mrb[0].mxu0
      %v980 = vpop.f32.mrb[0].mxu0
      %v981 = vadd.f32 %v769, %v980
      %v982 = vpop.f32.mrb[0].mxu0
      %983 = vdwg.mxu0
      %vm1032 = vcmask 1046528
      %v1033 = vrot.slane %v358, 1
      %v1034 = vrot.slane %v359, 1
      %v1035 = vsel %vm1032, %v1033, %v1034
      %v1036 = vrot.slane %v360, 1
      %v1037 = vsel %vm1032, %v1034, %v1036
      %v1038 = vrot.slane %v361, 1
      %v1039 = vrot.slane %v362, 1
      %v1040 = vsel %vm1032, %v1038, %v1039
      %v1041 = vrot.slane %v363, 1
      %v1042 = vsel %vm1032, %v1039, %v1041
      %v1043 = vrot.slane %v364, 1
      %v1044 = vrot.slane %v365, 1
      %v1045 = vsel %vm1032, %v1043, %v1044
      %v1046 = vrot.slane %v366, 1
      %v1047 = vsel %vm1032, %v1044, %v1046
      %v1048 = vrot.slane %v367, 1
      %v1049 = vrot.slane %v368, 1
      %v1050 = vsel %vm1032, %v1048, %v1049
      %v1051 = vrot.slane %v369, 1
      %v1052 = vsel %vm1032, %v1049, %v1051
      %v1053 = vrot.slane %v370, 1
      %v1054 = vrot.slane %v371, 1
      %v1055 = vsel %vm1032, %v1053, %v1054
      %v1056 = vrot.slane %v372, 1
      %v1057 = vsel %vm1032, %v1054, %v1056
      %v1058 = vrot.slane %v373, 1
      %v1059 = vrot.slane %v374, 1
      %v1060 = vsel %vm1032, %v1058, %v1059
      %v1061 = vrot.slane %v375, 1
      %v1062 = vsel %vm1032, %v1059, %v1061
      %v1063 = vrot.slane %v376, 1
      %v1064 = vrot.slane %v377, 1
      %v1065 = vsel %vm1032, %v1063, %v1064
      %v1066 = vrot.slane %v378, 1
      %v1067 = vsel %vm1032, %v1064, %v1066
      %v1068 = vrot.slane %v379, 1
      %v1069 = vrot.slane %v380, 1
      %v1070 = vsel %vm1032, %v1068, %v1069
      %v1071 = vrot.slane %v381, 1
      %v1072 = vsel %vm1032, %v1069, %v1071
      %v1073 = vrot.slane %v382, 1
      %v1074 = vrot.slane %v383, 1
      %v1075 = vsel %vm1032, %v1073, %v1074
      %v1076 = vrot.slane %v384, 1
      %v1077 = vsel %vm1032, %v1074, %v1076
      %v1078 = vrot.slane %v385, 1
      %v1079 = vrot.slane %v386, 1
      %v1080 = vsel %vm1032, %v1078, %v1079
      %v1081 = vrot.slane %v387, 1
      %v1082 = vsel %vm1032, %v1079, %v1081
      %v1083 = vrot.slane %v388, 1
      %v1084 = vrot.slane %v389, 1
      %v1085 = vsel %vm1032, %v1083, %v1084
      %v1086 = vrot.slane %v390, 1
      %v1087 = vsel %vm1032, %v1084, %v1086
      %v1088 = vrot.slane %v391, 1
      %v1089 = vrot.slane %v392, 1
      %v1090 = vsel %vm1032, %v1088, %v1089
      %v1091 = vrot.slane %v393, 1
      %v1092 = vsel %vm1032, %v1089, %v1091
      %v1093 = vrot.slane %v394, 1
      %v1094 = vrot.slane %v395, 1
      %v1095 = vsel %vm1032, %v1093, %v1094
      %v1096 = vrot.slane %v396, 1
      %v1097 = vsel %vm1032, %v1094, %v1096
      %v1098 = vrot.slane %v397, 1
      %v1099 = vrot.slane %v398, 1
      %v1100 = vsel %vm1032, %v1098, %v1099
      %v1101 = vrot.slane %v399, 1
      %v1102 = vsel %vm1032, %v1099, %v1101
      %v1103 = vrot.slane %v400, 1
      %v1104 = vrot.slane %v401, 1
      %v1105 = vsel %vm1032, %v1103, %v1104
      %v1106 = vrot.slane %v402, 1
      %v1107 = vsel %vm1032, %v1104, %v1106
      %v1108 = vrot.slane %v403, 1
      %v1109 = vrot.slane %v404, 1
      %v1110 = vsel %vm1032, %v1108, %v1109
      %v1111 = vrot.slane %v405, 1
      %v1112 = vsel %vm1032, %v1109, %v1111
      %v1145 = vpack.c.bf16 %v1037, %v1035
      %v1146 = vpack.c.bf16 %v1042, %v1040
      %v1147 = vpack.c.bf16 %v1047, %v1045
      %v1148 = vpack.c.bf16 %v1052, %v1050
      %v1149 = vpack.c.bf16 %v1057, %v1055
      %v1150 = vpack.c.bf16 %v1062, %v1060
      %v1151 = vpack.c.bf16 %v1067, %v1065
      %v1152 = vpack.c.bf16 %v1072, %v1070
      %v1153 = vpack.c.bf16 %v1077, %v1075
      %v1154 = vpack.c.bf16 %v1082, %v1080
      %v1155 = vpack.c.bf16 %v1087, %v1085
      %v1156 = vpack.c.bf16 %v1092, %v1090
      %v1157 = vpack.c.bf16 %v1097, %v1095
      %v1158 = vpack.c.bf16 %v1102, %v1100
      %v1159 = vpack.c.bf16 %v1107, %v1105
      %v1160 = vpack.c.bf16 %v1112, %v1110
      %s1161 = scalar_lea.vmem %s4, 8
      %v1162 = vld [vmem:[%s1161] sm:$0xf]
      %v1164 = vsel %vm558, %v1145, 0
      %v1167 = vsel %vm558, %v1146, 0
      %v1170 = vsel %vm558, %v1147, 0
      %v1173 = vsel %vm558, %v1148, 0
      %v1176 = vsel %vm558, %v1149, 0
      %v1179 = vsel %vm558, %v1150, 0
      %v1182 = vsel %vm558, %v1151, 0
      %v1185 = vsel %vm558, %v1152, 0
      %v1188 = vsel %vm558, %v1153, 0
      %v1191 = vsel %vm558, %v1154, 0
      %v1194 = vsel %vm558, %v1155, 0
      %v1197 = vsel %vm558, %v1156, 0
      %v1200 = vsel %vm558, %v1157, 0
      %v1203 = vsel %vm558, %v1158, 0
      %v1206 = vsel %vm558, %v1159, 0
      %v1209 = vsel %vm558, %v1160, 0
      %v1212 = vsel %vm607, %v1162, 0
      %1214 = vmatprep.subr.bf16.mxu0 0
      %1215 = vmatpush1.bf16.msra.mxu0 %v1212
      %1216 = vmatprep.subr.bf16.mxu0 0
      %1217 = vmatpush1.bf16.msra.mxu0 0
      %1218 = vmatprep.subr.bf16.mxu0 0
      %1219 = vmatpush1.bf16.msra.mxu0 0
      %1220 = vmatprep.subr.bf16.mxu0 0
      %1221 = vmatpush1.bf16.msra.mxu0 0
      %1222 = vmatprep.subr.bf16.mxu0 0
      %1223 = vmatpush1.bf16.msra.mxu0 0
      %1224 = vmatprep.subr.bf16.mxu0 0
      %1225 = vmatpush1.bf16.msra.mxu0 0
      %1226 = vmatprep.subr.bf16.mxu0 0
      %1227 = vmatpush1.bf16.msra.mxu0 0
      %1228 = vmatprep.subr.bf16.mxu0 0
      %1229 = vmatpush1.bf16.msra.mxu0 0
      %1230 = vmatprep.subr.bf16.mxu0 0
      %1231 = vmatpush1.bf16.msra.mxu0 0
      %1232 = vmatprep.subr.bf16.mxu0 0
      %1233 = vmatpush1.bf16.msra.mxu0 0
      %1234 = vmatprep.subr.bf16.mxu0 0
      %1235 = vmatpush1.bf16.msra.mxu0 0
      %1236 = vmatprep.subr.bf16.mxu0 0
      %1237 = vmatpush1.bf16.msra.mxu0 0
      %1238 = vmatprep.subr.bf16.mxu0 0
      %1239 = vmatpush1.bf16.msra.mxu0 0
      %1240 = vmatprep.subr.bf16.mxu0 0
      %1241 = vmatpush1.bf16.msra.mxu0 0
      %1242 = vmatprep.subr.bf16.mxu0 0
      %1243 = vmatpush1.bf16.msra.mxu0 0
      %1244 = vmatprep.subr.bf16.mxu0 0
      %1245 = vmatpush1.bf16.msra.mxu0 0
      %1246 = vmatprep.mubr.bf16.mxu0 0
      %1247 = vmatmul.mubr.bf16.gmra.mrb[0].mxu0 %v1164
      %v1248 = vpop.f32.mrb[0].mxu0
      %v1249 = vadd.f32 0.0, %v1248
      %v1250 = vpop.f32.mrb[0].mxu0
      %v1251 = vpop.f32.mrb[0].mxu0
      %v1252 = vadd.f32 0.0, %v1251
      %v1253 = vpop.f32.mrb[0].mxu0
      %1254 = vmatprep.mubr.bf16.mxu0 0
      %1255 = vmatmul.mubr.bf16.gmra.mrb[0].mxu0 %v1167
      %v1256 = vpop.f32.mrb[0].mxu0
      %v1257 = vadd.f32 0.0, %v1256
      %v1258 = vpop.f32.mrb[0].mxu0
      %v1259 = vpop.f32.mrb[0].mxu0
      %v1260 = vadd.f32 0.0, %v1259
      %v1261 = vpop.f32.mrb[0].mxu0
      %1262 = vmatprep.mubr.bf16.mxu0 0
      %1263 = vmatmul.mubr.bf16.gmra.mrb[0].mxu0 %v1170
      %v1264 = vpop.f32.mrb[0].mxu0
      %v1265 = vadd.f32 0.0, %v1264
      %v1266 = vpop.f32.mrb[0].mxu0
      %v1267 = vpop.f32.mrb[0].mxu0
      %v1268 = vadd.f32 0.0, %v1267
      %v1269 = vpop.f32.mrb[0].mxu0
      %1270 = vmatprep.mubr.bf16.mxu0 0
      %1271 = vmatmul.mubr.bf16.gmra.mrb[0].mxu0 %v1173
      %v1272 = vpop.f32.mrb[0].mxu0
      %v1273 = vadd.f32 0.0, %v1272
      %v1274 = vpop.f32.mrb[0].mxu0
      %v1275 = vpop.f32.mrb[0].mxu0
      %v1276 = vadd.f32 0.0, %v1275
      %v1277 = vpop.f32.mrb[0].mxu0
      %1278 = vmatprep.mubr.bf16.mxu0 0
      %1279 = vmatmul.mubr.bf16.gmra.mrb[0].mxu0 %v1176
      %v1280 = vpop.f32.mrb[0].mxu0
      %v1281 = vadd.f32 0.0, %v1280
      %v1282 = vpop.f32.mrb[0].mxu0
      %v1283 = vpop.f32.mrb[0].mxu0
      %v1284 = vadd.f32 0.0, %v1283
      %v1285 = vpop.f32.mrb[0].mxu0
      %1286 = vmatprep.mubr.bf16.mxu0 0
      %1287 = vmatmul.mubr.bf16.gmra.mrb[0].mxu0 %v1179
      %v1288 = vpop.f32.mrb[0].mxu0
      %v1289 = vadd.f32 0.0, %v1288
      %v1290 = vpop.f32.mrb[0].mxu0
      %v1291 = vpop.f32.mrb[0].mxu0
      %v1292 = vadd.f32 0.0, %v1291
      %v1293 = vpop.f32.mrb[0].mxu0
      %1294 = vmatprep.mubr.bf16.mxu0 0
      %1295 = vmatmul.mubr.bf16.gmra.mrb[0].mxu0 %v1182
      %v1296 = vpop.f32.mrb[0].mxu0
      %v1297 = vadd.f32 0.0, %v1296
      %v1298 = vpop.f32.mrb[0].mxu0
      %v1299 = vpop.f32.mrb[0].mxu0
      %v1300 = vadd.f32 0.0, %v1299
      %v1301 = vpop.f32.mrb[0].mxu0
      %1302 = vmatprep.mubr.bf16.mxu0 0
      %1303 = vmatmul.mubr.bf16.gmra.mrb[0].mxu0 %v1185
      %v1304 = vpop.f32.mrb[0].mxu0
      %v1305 = vadd.f32 0.0, %v1304
      %v1306 = vpop.f32.mrb[0].mxu0
      %v1307 = vpop.f32.mrb[0].mxu0
      %v1308 = vadd.f32 0.0, %v1307
      %v1309 = vpop.f32.mrb[0].mxu0
      %1310 = vmatprep.mubr.bf16.mxu0 0
      %1311 = vmatmul.mubr.bf16.gmra.mrb[0].mxu0 %v1188
      %v1312 = vpop.f32.mrb[0].mxu0
      %v1313 = vadd.f32 0.0, %v1312
      %v1314 = vpop.f32.mrb[0].mxu0
      %v1315 = vpop.f32.mrb[0].mxu0
      %v1316 = vadd.f32 0.0, %v1315
      %v1317 = vpop.f32.mrb[0].mxu0
      %1318 = vmatprep.mubr.bf16.mxu0 0
      %1319 = vmatmul.mubr.bf16.gmra.mrb[0].mxu0 %v1191
      %v1320 = vpop.f32.mrb[0].mxu0
      %v1321 = vadd.f32 0.0, %v1320
      %v1322 = vpop.f32.mrb[0].mxu0
      %v1323 = vpop.f32.mrb[0].mxu0
      %v1324 = vadd.f32 0.0, %v1323
      %v1325 = vpop.f32.mrb[0].mxu0
      %1326 = vmatprep.mubr.bf16.mxu0 0
      %1327 = vmatmul.mubr.bf16.gmra.mrb[0].mxu0 %v1194
      %v1328 = vpop.f32.mrb[0].mxu0
      %v1329 = vadd.f32 0.0, %v1328
      %v1330 = vpop.f32.mrb[0].mxu0
      %v1331 = vpop.f32.mrb[0].mxu0
      %v1332 = vadd.f32 0.0, %v1331
      %v1333 = vpop.f32.mrb[0].mxu0
      %1334 = vmatprep.mubr.bf16.mxu0 0
      %1335 = vmatmul.mubr.bf16.gmra.mrb[0].mxu0 %v1197
      %v1336 = vpop.f32.mrb[0].mxu0
      %v1337 = vadd.f32 0.0, %v1336
      %v1338 = vpop.f32.mrb[0].mxu0
      %v1339 = vpop.f32.mrb[0].mxu0
      %v1340 = vadd.f32 0.0, %v1339
      %v1341 = vpop.f32.mrb[0].mxu0
      %1342 = vmatprep.mubr.bf16.mxu0 0
      %1343 = vmatmul.mubr.bf16.gmra.mrb[0].mxu0 %v1200
      %v1344 = vpop.f32.mrb[0].mxu0
      %v1345 = vadd.f32 0.0, %v1344
      %v1346 = vpop.f32.mrb[0].mxu0
      %v1347 = vpop.f32.mrb[0].mxu0
      %v1348 = vadd.f32 0.0, %v1347
      %v1349 = vpop.f32.mrb[0].mxu0
      %1350 = vmatprep.mubr.bf16.mxu0 0
      %1351 = vmatmul.mubr.bf16.gmra.mrb[0].mxu0 %v1203
      %v1352 = vpop.f32.mrb[0].mxu0
      %v1353 = vadd.f32 0.0, %v1352
      %v1354 = vpop.f32.mrb[0].mxu0
      %v1355 = vpop.f32.mrb[0].mxu0
      %v1356 = vadd.f32 0.0, %v1355
      %v1357 = vpop.f32.mrb[0].mxu0
      %1358 = vmatprep.mubr.bf16.mxu0 0
      %1359 = vmatmul.mubr.bf16.gmra.mrb[0].mxu0 %v1206
      %v1360 = vpop.f32.mrb[0].mxu0
      %v1361 = vadd.f32 0.0, %v1360
      %v1362 = vpop.f32.mrb[0].mxu0
      %v1363 = vpop.f32.mrb[0].mxu0
      %v1364 = vadd.f32 0.0, %v1363
      %v1365 = vpop.f32.mrb[0].mxu0
      %1366 = vmatprep.mubr.bf16.mxu0 0
      %1367 = vmatmul.mubr.bf16.gmra.mrb[0].mxu0 %v1209
      %v1368 = vpop.f32.mrb[0].mxu0
      %v1369 = vadd.f32 0.0, %v1368
      %v1370 = vpop.f32.mrb[0].mxu0
      %v1371 = vpop.f32.mrb[0].mxu0
      %v1372 = vadd.f32 0.0, %v1371
      %v1373 = vpop.f32.mrb[0].mxu0
      %1374 = vdwg.mxu0
      %v1375 = vadd.f32 %v858, %v1249
      %v1376 = vadd.f32 %v861, %v1252
      %v1377 = vadd.f32 %v866, %v1257
      %v1378 = vadd.f32 %v869, %v1260
      %v1379 = vadd.f32 %v874, %v1265
      %v1380 = vadd.f32 %v877, %v1268
      %v1381 = vadd.f32 %v882, %v1273
      %v1382 = vadd.f32 %v885, %v1276
      %v1383 = vadd.f32 %v890, %v1281
      %v1384 = vadd.f32 %v893, %v1284
      %v1385 = vadd.f32 %v898, %v1289
      %v1386 = vadd.f32 %v901, %v1292
      %v1387 = vadd.f32 %v906, %v1297
      %v1388 = vadd.f32 %v909, %v1300
      %v1389 = vadd.f32 %v914, %v1305
      %v1390 = vadd.f32 %v917, %v1308
      %v1391 = vadd.f32 %v922, %v1313
      %v1392 = vadd.f32 %v925, %v1316
      %v1393 = vadd.f32 %v930, %v1321
      %v1394 = vadd.f32 %v933, %v1324
      %v1395 = vadd.f32 %v938, %v1329
      %v1396 = vadd.f32 %v941, %v1332
      %v1397 = vadd.f32 %v946, %v1337
      %v1398 = vadd.f32 %v949, %v1340
      %v1399 = vadd.f32 %v954, %v1345
      %v1400 = vadd.f32 %v957, %v1348
      %v1401 = vadd.f32 %v962, %v1353
      %v1402 = vadd.f32 %v965, %v1356
      %v1403 = vadd.f32 %v970, %v1361
      %v1404 = vadd.f32 %v973, %v1364
      %v1405 = vadd.f32 %v978, %v1369
      %v1406 = vadd.f32 %v981, %v1372
      %v1407 = vpack.c.bf16 %v444, %v443
      %v1408 = vpack.c.bf16 %v447, %v446
      %v1409 = vpack.c.bf16 %v450, %v449
      %v1410 = vpack.c.bf16 %v453, %v452
      %v1411 = vpack.c.bf16 %v456, %v455
      %v1412 = vpack.c.bf16 %v459, %v458
      %v1413 = vpack.c.bf16 %v462, %v461
      %v1414 = vpack.c.bf16 %v465, %v464
      %v1415 = vpack.c.bf16 %v468, %v467
      %v1416 = vpack.c.bf16 %v471, %v470
      %v1417 = vpack.c.bf16 %v474, %v473
      %v1418 = vpack.c.bf16 %v477, %v476
      %v1419 = vpack.c.bf16 %v480, %v479
      %v1420 = vpack.c.bf16 %v483, %v482
      %v1421 = vpack.c.bf16 %v486, %v485
      %v1422 = vpack.c.bf16 %v489, %v488
      %s1423 = scalar_lea.vmem %s4, 12
      %v1424 = vld [vmem:[%s1423] sm:$0xf]
      %v1426 = vsel %vm558, %v1407, 0
      %v1429 = vsel %vm558, %v1408, 0
      %v1432 = vsel %vm558, %v1409, 0
      %v1435 = vsel %vm558, %v1410, 0
      %v1438 = vsel %vm558, %v1411, 0
      %v1441 = vsel %vm558, %v1412, 0
      %v1444 = vsel %vm558, %v1413, 0
      %v1447 = vsel %vm558, %v1414, 0
      %v1450 = vsel %vm558, %v1415, 0
      %v1453 = vsel %vm558, %v1416, 0
      %v1456 = vsel %vm558, %v1417, 0
      %v1459 = vsel %vm558, %v1418, 0
      %v1462 = vsel %vm558, %v1419, 0
      %v1465 = vsel %vm558, %v1420, 0
      %v1468 = vsel %vm558, %v1421, 0
      %v1471 = vsel %vm558, %v1422, 0
      %v1474 = vsel %vm607, %v1424, 0
      %1476 = vmatprep.subr.bf16.mxu0 0
      %1477 = vmatpush1.bf16.msra.mxu0 %v1474
      %1478 = vmatprep.subr.bf16.mxu0 0
      %1479 = vmatpush1.bf16.msra.mxu0 0
      %1480 = vmatprep.subr.bf16.mxu0 0
      %1481 = vmatpush1.bf16.msra.mxu0 0
      %1482 = vmatprep.subr.bf16.mxu0 0
      %1483 = vmatpush1.bf16.msra.mxu0 0
      %1484 = vmatprep.subr.bf16.mxu0 0
      %1485 = vmatpush1.bf16.msra.mxu0 0
      %1486 = vmatprep.subr.bf16.mxu0 0
      %1487 = vmatpush1.bf16.msra.mxu0 0
      %1488 = vmatprep.subr.bf16.mxu0 0
      %1489 = vmatpush1.bf16.msra.mxu0 0
      %1490 = vmatprep.subr.bf16.mxu0 0
      %1491 = vmatpush1.bf16.msra.mxu0 0
      %1492 = vmatprep.subr.bf16.mxu0 0
      %1493 = vmatpush1.bf16.msra.mxu0 0
      %1494 = vmatprep.subr.bf16.mxu0 0
      %1495 = vmatpush1.bf16.msra.mxu0 0
      %1496 = vmatprep.subr.bf16.mxu0 0
      %1497 = vmatpush1.bf16.msra.mxu0 0
      %1498 = vmatprep.subr.bf16.mxu0 0
      %1499 = vmatpush1.bf16.msra.mxu0 0
      %1500 = vmatprep.subr.bf16.mxu0 0
      %1501 = vmatpush1.bf16.msra.mxu0 0
      %1502 = vmatprep.subr.bf16.mxu0 0
      %1503 = vmatpush1.bf16.msra.mxu0 0
      %1504 = vmatprep.subr.bf16.mxu0 0
      %1505 = vmatpush1.bf16.msra.mxu0 0
      %1506 = vmatprep.subr.bf16.mxu0 0
      %1507 = vmatpush1.bf16.msra.mxu0 0
      %1508 = vmatprep.mubr.bf16.mxu0 0
      %1509 = vmatmul.mubr.bf16.gmra.mrb[0].mxu0 %v1426
      %v1510 = vpop.f32.mrb[0].mxu0
      %v1511 = vadd.f32 0.0, %v1510
      %v1512 = vpop.f32.mrb[0].mxu0
      %v1513 = vpop.f32.mrb[0].mxu0
      %v1514 = vadd.f32 0.0, %v1513
      %v1515 = vpop.f32.mrb[0].mxu0
      %1516 = vmatprep.mubr.bf16.mxu0 0
      %1517 = vmatmul.mubr.bf16.gmra.mrb[0].mxu0 %v1429
      %v1518 = vpop.f32.mrb[0].mxu0
      %v1519 = vadd.f32 0.0, %v1518
      %v1520 = vpop.f32.mrb[0].mxu0
      %v1521 = vpop.f32.mrb[0].mxu0
      %v1522 = vadd.f32 0.0, %v1521
      %v1523 = vpop.f32.mrb[0].mxu0
      %1524 = vmatprep.mubr.bf16.mxu0 0
      %1525 = vmatmul.mubr.bf16.gmra.mrb[0].mxu0 %v1432
      %v1526 = vpop.f32.mrb[0].mxu0
      %v1527 = vadd.f32 0.0, %v1526
      %v1528 = vpop.f32.mrb[0].mxu0
      %v1529 = vpop.f32.mrb[0].mxu0
      %v1530 = vadd.f32 0.0, %v1529
      %v1531 = vpop.f32.mrb[0].mxu0
      %1532 = vmatprep.mubr.bf16.mxu0 0
      %1533 = vmatmul.mubr.bf16.gmra.mrb[0].mxu0 %v1435
      %v1534 = vpop.f32.mrb[0].mxu0
      %v1535 = vadd.f32 0.0, %v1534
      %v1536 = vpop.f32.mrb[0].mxu0
      %v1537 = vpop.f32.mrb[0].mxu0
      %v1538 = vadd.f32 0.0, %v1537
      %v1539 = vpop.f32.mrb[0].mxu0
      %1540 = vmatprep.mubr.bf16.mxu0 0
      %1541 = vmatmul.mubr.bf16.gmra.mrb[0].mxu0 %v1438
      %v1542 = vpop.f32.mrb[0].mxu0
      %v1543 = vadd.f32 0.0, %v1542
      %v1544 = vpop.f32.mrb[0].mxu0
      %v1545 = vpop.f32.mrb[0].mxu0
      %v1546 = vadd.f32 0.0, %v1545
      %v1547 = vpop.f32.mrb[0].mxu0
      %1548 = vmatprep.mubr.bf16.mxu0 0
      %1549 = vmatmul.mubr.bf16.gmra.mrb[0].mxu0 %v1441
      %v1550 = vpop.f32.mrb[0].mxu0
      %v1551 = vadd.f32 0.0, %v1550
      %v1552 = vpop.f32.mrb[0].mxu0
      %v1553 = vpop.f32.mrb[0].mxu0
      %v1554 = vadd.f32 0.0, %v1553
      %v1555 = vpop.f32.mrb[0].mxu0
      %1556 = vmatprep.mubr.bf16.mxu0 0
      %1557 = vmatmul.mubr.bf16.gmra.mrb[0].mxu0 %v1444
      %v1558 = vpop.f32.mrb[0].mxu0
      %v1559 = vadd.f32 0.0, %v1558
      %v1560 = vpop.f32.mrb[0].mxu0
      %v1561 = vpop.f32.mrb[0].mxu0
      %v1562 = vadd.f32 0.0, %v1561
      %v1563 = vpop.f32.mrb[0].mxu0
      %1564 = vmatprep.mubr.bf16.mxu0 0
      %1565 = vmatmul.mubr.bf16.gmra.mrb[0].mxu0 %v1447
      %v1566 = vpop.f32.mrb[0].mxu0
      %v1567 = vadd.f32 0.0, %v1566
      %v1568 = vpop.f32.mrb[0].mxu0
      %v1569 = vpop.f32.mrb[0].mxu0
      %v1570 = vadd.f32 0.0, %v1569
      %v1571 = vpop.f32.mrb[0].mxu0
      %1572 = vmatprep.mubr.bf16.mxu0 0
      %1573 = vmatmul.mubr.bf16.gmra.mrb[0].mxu0 %v1450
      %v1574 = vpop.f32.mrb[0].mxu0
      %v1575 = vadd.f32 0.0, %v1574
      %v1576 = vpop.f32.mrb[0].mxu0
      %v1577 = vpop.f32.mrb[0].mxu0
      %v1578 = vadd.f32 0.0, %v1577
      %v1579 = vpop.f32.mrb[0].mxu0
      %1580 = vmatprep.mubr.bf16.mxu0 0
      %1581 = vmatmul.mubr.bf16.gmra.mrb[0].mxu0 %v1453
      %v1582 = vpop.f32.mrb[0].mxu0
      %v1583 = vadd.f32 0.0, %v1582
      %v1584 = vpop.f32.mrb[0].mxu0
      %v1585 = vpop.f32.mrb[0].mxu0
      %v1586 = vadd.f32 0.0, %v1585
      %v1587 = vpop.f32.mrb[0].mxu0
      %1588 = vmatprep.mubr.bf16.mxu0 0
      %1589 = vmatmul.mubr.bf16.gmra.mrb[0].mxu0 %v1456
      %v1590 = vpop.f32.mrb[0].mxu0
      %v1591 = vadd.f32 0.0, %v1590
      %v1592 = vpop.f32.mrb[0].mxu0
      %v1593 = vpop.f32.mrb[0].mxu0
      %v1594 = vadd.f32 0.0, %v1593
      %v1595 = vpop.f32.mrb[0].mxu0
      %1596 = vmatprep.mubr.bf16.mxu0 0
      %1597 = vmatmul.mubr.bf16.gmra.mrb[0].mxu0 %v1459
      %v1598 = vpop.f32.mrb[0].mxu0
      %v1599 = vadd.f32 0.0, %v1598
      %v1600 = vpop.f32.mrb[0].mxu0
      %v1601 = vpop.f32.mrb[0].mxu0
      %v1602 = vadd.f32 0.0, %v1601
      %v1603 = vpop.f32.mrb[0].mxu0
      %1604 = vmatprep.mubr.bf16.mxu0 0
      %1605 = vmatmul.mubr.bf16.gmra.mrb[0].mxu0 %v1462
      %v1606 = vpop.f32.mrb[0].mxu0
      %v1607 = vadd.f32 0.0, %v1606
      %v1608 = vpop.f32.mrb[0].mxu0
      %v1609 = vpop.f32.mrb[0].mxu0
      %v1610 = vadd.f32 0.0, %v1609
      %v1611 = vpop.f32.mrb[0].mxu0
      %1612 = vmatprep.mubr.bf16.mxu0 0
      %1613 = vmatmul.mubr.bf16.gmra.mrb[0].mxu0 %v1465
      %v1614 = vpop.f32.mrb[0].mxu0
      %v1615 = vadd.f32 0.0, %v1614
      %v1616 = vpop.f32.mrb[0].mxu0
      %v1617 = vpop.f32.mrb[0].mxu0
      %v1618 = vadd.f32 0.0, %v1617
      %v1619 = vpop.f32.mrb[0].mxu0
      %1620 = vmatprep.mubr.bf16.mxu0 0
      %1621 = vmatmul.mubr.bf16.gmra.mrb[0].mxu0 %v1468
      %v1622 = vpop.f32.mrb[0].mxu0
      %v1623 = vadd.f32 0.0, %v1622
      %v1624 = vpop.f32.mrb[0].mxu0
      %v1625 = vpop.f32.mrb[0].mxu0
      %v1626 = vadd.f32 0.0, %v1625
      %v1627 = vpop.f32.mrb[0].mxu0
      %1628 = vmatprep.mubr.bf16.mxu0 0
      %1629 = vmatmul.mubr.bf16.gmra.mrb[0].mxu0 %v1471
      %v1630 = vpop.f32.mrb[0].mxu0
      %v1631 = vadd.f32 0.0, %v1630
      %v1632 = vpop.f32.mrb[0].mxu0
      %v1633 = vpop.f32.mrb[0].mxu0
      %v1634 = vadd.f32 0.0, %v1633
      %v1635 = vpop.f32.mrb[0].mxu0
      %1636 = vdwg.mxu0
      %v1637 = vadd.f32 %v1375, %v1511
      %v1638 = vadd.f32 %v1376, %v1514
      %v1639 = vadd.f32 %v1377, %v1519
      %v1640 = vadd.f32 %v1378, %v1522
      %v1641 = vadd.f32 %v1379, %v1527
      %v1642 = vadd.f32 %v1380, %v1530
      %v1643 = vadd.f32 %v1381, %v1535
      %v1644 = vadd.f32 %v1382, %v1538
      %v1645 = vadd.f32 %v1383, %v1543
      %v1646 = vadd.f32 %v1384, %v1546
      %v1647 = vadd.f32 %v1385, %v1551
      %v1648 = vadd.f32 %v1386, %v1554
      %v1649 = vadd.f32 %v1387, %v1559
      %v1650 = vadd.f32 %v1388, %v1562
      %v1651 = vadd.f32 %v1389, %v1567
      %v1652 = vadd.f32 %v1390, %v1570
      %v1653 = vadd.f32 %v1391, %v1575
      %v1654 = vadd.f32 %v1392, %v1578
      %v1655 = vadd.f32 %v1393, %v1583
      %v1656 = vadd.f32 %v1394, %v1586
      %v1657 = vadd.f32 %v1395, %v1591
      %v1658 = vadd.f32 %v1396, %v1594
      %v1659 = vadd.f32 %v1397, %v1599
      %v1660 = vadd.f32 %v1398, %v1602
      %v1661 = vadd.f32 %v1399, %v1607
      %v1662 = vadd.f32 %v1400, %v1610
      %v1663 = vadd.f32 %v1401, %v1615
      %v1664 = vadd.f32 %v1402, %v1618
      %v1665 = vadd.f32 %v1403, %v1623
      %v1666 = vadd.f32 %v1404, %v1626
      %v1667 = vadd.f32 %v1405, %v1631
      %v1668 = vadd.f32 %v1406, %v1634
      %v1669 = vpack.c.bf16 %v492, %v491
      %v1670 = vpack.c.bf16 %v494, %v493
      %v1671 = vpack.c.bf16 %v496, %v495
      %v1672 = vpack.c.bf16 %v498, %v497
      %v1673 = vpack.c.bf16 %v500, %v499
      %v1674 = vpack.c.bf16 %v502, %v501
      %v1675 = vpack.c.bf16 %v504, %v503
      %v1676 = vpack.c.bf16 %v506, %v505
      %v1677 = vpack.c.bf16 %v508, %v507
      %v1678 = vpack.c.bf16 %v510, %v509
      %v1679 = vpack.c.bf16 %v512, %v511
      %v1680 = vpack.c.bf16 %v514, %v513
      %v1681 = vpack.c.bf16 %v516, %v515
      %v1682 = vpack.c.bf16 %v518, %v517
      %v1683 = vpack.c.bf16 %v520, %v519
      %v1684 = vpack.c.bf16 %v522, %v521
      %s1685 = scalar_lea.vmem %s4, 16
      %v1686 = vld [vmem:[%s1685] sm:$0xf]
      %v1688 = vsel %vm558, %v1669, 0
      %v1691 = vsel %vm558, %v1670, 0
      %v1694 = vsel %vm558, %v1671, 0
      %v1697 = vsel %vm558, %v1672, 0
      %v1700 = vsel %vm558, %v1673, 0
      %v1703 = vsel %vm558, %v1674, 0
      %v1706 = vsel %vm558, %v1675, 0
      %v1709 = vsel %vm558, %v1676, 0
      %v1712 = vsel %vm558, %v1677, 0
      %v1715 = vsel %vm558, %v1678, 0
      %v1718 = vsel %vm558, %v1679, 0
      %v1721 = vsel %vm558, %v1680, 0
      %v1724 = vsel %vm558, %v1681, 0
      %v1727 = vsel %vm558, %v1682, 0
      %v1730 = vsel %vm558, %v1683, 0
      %v1733 = vsel %vm558, %v1684, 0
      %v1736 = vsel %vm607, %v1686, 0
      %1738 = vmatprep.subr.bf16.mxu0 0
      %1739 = vmatpush1.bf16.msra.mxu0 %v1736
      %1740 = vmatprep.subr.bf16.mxu0 0
      %1741 = vmatpush1.bf16.msra.mxu0 0
      %1742 = vmatprep.subr.bf16.mxu0 0
      %1743 = vmatpush1.bf16.msra.mxu0 0
      %1744 = vmatprep.subr.bf16.mxu0 0
      %1745 = vmatpush1.bf16.msra.mxu0 0
      %1746 = vmatprep.subr.bf16.mxu0 0
      %1747 = vmatpush1.bf16.msra.mxu0 0
      %1748 = vmatprep.subr.bf16.mxu0 0
      %1749 = vmatpush1.bf16.msra.mxu0 0
      %1750 = vmatprep.subr.bf16.mxu0 0
      %1751 = vmatpush1.bf16.msra.mxu0 0
      %1752 = vmatprep.subr.bf16.mxu0 0
      %1753 = vmatpush1.bf16.msra.mxu0 0
      %1754 = vmatprep.subr.bf16.mxu0 0
      %1755 = vmatpush1.bf16.msra.mxu0 0
      %1756 = vmatprep.subr.bf16.mxu0 0
      %1757 = vmatpush1.bf16.msra.mxu0 0
      %1758 = vmatprep.subr.bf16.mxu0 0
      %1759 = vmatpush1.bf16.msra.mxu0 0
      %1760 = vmatprep.subr.bf16.mxu0 0
      %1761 = vmatpush1.bf16.msra.mxu0 0
      %1762 = vmatprep.subr.bf16.mxu0 0
      %1763 = vmatpush1.bf16.msra.mxu0 0
      %1764 = vmatprep.subr.bf16.mxu0 0
      %1765 = vmatpush1.bf16.msra.mxu0 0
      %1766 = vmatprep.subr.bf16.mxu0 0
      %1767 = vmatpush1.bf16.msra.mxu0 0
      %1768 = vmatprep.subr.bf16.mxu0 0
      %1769 = vmatpush1.bf16.msra.mxu0 0
      %1770 = vmatprep.mubr.bf16.mxu0 0
      %1771 = vmatmul.mubr.bf16.gmra.mrb[0].mxu0 %v1688
      %v1772 = vpop.f32.mrb[0].mxu0
      %v1773 = vadd.f32 0.0, %v1772
      %v1774 = vpop.f32.mrb[0].mxu0
      %v1775 = vpop.f32.mrb[0].mxu0
      %v1776 = vadd.f32 0.0, %v1775
      %v1777 = vpop.f32.mrb[0].mxu0
      %1778 = vmatprep.mubr.bf16.mxu0 0
      %1779 = vmatmul.mubr.bf16.gmra.mrb[0].mxu0 %v1691
      %v1780 = vpop.f32.mrb[0].mxu0
      %v1781 = vadd.f32 0.0, %v1780
      %v1782 = vpop.f32.mrb[0].mxu0
      %v1783 = vpop.f32.mrb[0].mxu0
      %v1784 = vadd.f32 0.0, %v1783
      %v1785 = vpop.f32.mrb[0].mxu0
      %1786 = vmatprep.mubr.bf16.mxu0 0
      %1787 = vmatmul.mubr.bf16.gmra.mrb[0].mxu0 %v1694
      %v1788 = vpop.f32.mrb[0].mxu0
      %v1789 = vadd.f32 0.0, %v1788
      %v1790 = vpop.f32.mrb[0].mxu0
      %v1791 = vpop.f32.mrb[0].mxu0
      %v1792 = vadd.f32 0.0, %v1791
      %v1793 = vpop.f32.mrb[0].mxu0
      %1794 = vmatprep.mubr.bf16.mxu0 0
      %1795 = vmatmul.mubr.bf16.gmra.mrb[0].mxu0 %v1697
      %v1796 = vpop.f32.mrb[0].mxu0
      %v1797 = vadd.f32 0.0, %v1796
      %v1798 = vpop.f32.mrb[0].mxu0
      %v1799 = vpop.f32.mrb[0].mxu0
      %v1800 = vadd.f32 0.0, %v1799
      %v1801 = vpop.f32.mrb[0].mxu0
      %1802 = vmatprep.mubr.bf16.mxu0 0
      %1803 = vmatmul.mubr.bf16.gmra.mrb[0].mxu0 %v1700
      %v1804 = vpop.f32.mrb[0].mxu0
      %v1805 = vadd.f32 0.0, %v1804
      %v1806 = vpop.f32.mrb[0].mxu0
      %v1807 = vpop.f32.mrb[0].mxu0
      %v1808 = vadd.f32 0.0, %v1807
      %v1809 = vpop.f32.mrb[0].mxu0
      %1810 = vmatprep.mubr.bf16.mxu0 0
      %1811 = vmatmul.mubr.bf16.gmra.mrb[0].mxu0 %v1703
      %v1812 = vpop.f32.mrb[0].mxu0
      %v1813 = vadd.f32 0.0, %v1812
      %v1814 = vpop.f32.mrb[0].mxu0
      %v1815 = vpop.f32.mrb[0].mxu0
      %v1816 = vadd.f32 0.0, %v1815
      %v1817 = vpop.f32.mrb[0].mxu0
      %1818 = vmatprep.mubr.bf16.mxu0 0
      %1819 = vmatmul.mubr.bf16.gmra.mrb[0].mxu0 %v1706
      %v1820 = vpop.f32.mrb[0].mxu0
      %v1821 = vadd.f32 0.0, %v1820
      %v1822 = vpop.f32.mrb[0].mxu0
      %v1823 = vpop.f32.mrb[0].mxu0
      %v1824 = vadd.f32 0.0, %v1823
      %v1825 = vpop.f32.mrb[0].mxu0
      %1826 = vmatprep.mubr.bf16.mxu0 0
      %1827 = vmatmul.mubr.bf16.gmra.mrb[0].mxu0 %v1709
      %v1828 = vpop.f32.mrb[0].mxu0
      %v1829 = vadd.f32 0.0, %v1828
      %v1830 = vpop.f32.mrb[0].mxu0
      %v1831 = vpop.f32.mrb[0].mxu0
      %v1832 = vadd.f32 0.0, %v1831
      %v1833 = vpop.f32.mrb[0].mxu0
      %1834 = vmatprep.mubr.bf16.mxu0 0
      %1835 = vmatmul.mubr.bf16.gmra.mrb[0].mxu0 %v1712
      %v1836 = vpop.f32.mrb[0].mxu0
      %v1837 = vadd.f32 0.0, %v1836
      %v1838 = vpop.f32.mrb[0].mxu0
      %v1839 = vpop.f32.mrb[0].mxu0
      %v1840 = vadd.f32 0.0, %v1839
      %v1841 = vpop.f32.mrb[0].mxu0
      %1842 = vmatprep.mubr.bf16.mxu0 0
      %1843 = vmatmul.mubr.bf16.gmra.mrb[0].mxu0 %v1715
      %v1844 = vpop.f32.mrb[0].mxu0
      %v1845 = vadd.f32 0.0, %v1844
      %v1846 = vpop.f32.mrb[0].mxu0
      %v1847 = vpop.f32.mrb[0].mxu0
      %v1848 = vadd.f32 0.0, %v1847
      %v1849 = vpop.f32.mrb[0].mxu0
      %1850 = vmatprep.mubr.bf16.mxu0 0
      %1851 = vmatmul.mubr.bf16.gmra.mrb[0].mxu0 %v1718
      %v1852 = vpop.f32.mrb[0].mxu0
      %v1853 = vadd.f32 0.0, %v1852
      %v1854 = vpop.f32.mrb[0].mxu0
      %v1855 = vpop.f32.mrb[0].mxu0
      %v1856 = vadd.f32 0.0, %v1855
      %v1857 = vpop.f32.mrb[0].mxu0
      %1858 = vmatprep.mubr.bf16.mxu0 0
      %1859 = vmatmul.mubr.bf16.gmra.mrb[0].mxu0 %v1721
      %v1860 = vpop.f32.mrb[0].mxu0
      %v1861 = vadd.f32 0.0, %v1860
      %v1862 = vpop.f32.mrb[0].mxu0
      %v1863 = vpop.f32.mrb[0].mxu0
      %v1864 = vadd.f32 0.0, %v1863
      %v1865 = vpop.f32.mrb[0].mxu0
      %1866 = vmatprep.mubr.bf16.mxu0 0
      %1867 = vmatmul.mubr.bf16.gmra.mrb[0].mxu0 %v1724
      %v1868 = vpop.f32.mrb[0].mxu0
      %v1869 = vadd.f32 0.0, %v1868
      %v1870 = vpop.f32.mrb[0].mxu0
      %v1871 = vpop.f32.mrb[0].mxu0
      %v1872 = vadd.f32 0.0, %v1871
      %v1873 = vpop.f32.mrb[0].mxu0
      %1874 = vmatprep.mubr.bf16.mxu0 0
      %1875 = vmatmul.mubr.bf16.gmra.mrb[0].mxu0 %v1727
      %v1876 = vpop.f32.mrb[0].mxu0
      %v1877 = vadd.f32 0.0, %v1876
      %v1878 = vpop.f32.mrb[0].mxu0
      %v1879 = vpop.f32.mrb[0].mxu0
      %v1880 = vadd.f32 0.0, %v1879
      %v1881 = vpop.f32.mrb[0].mxu0
      %1882 = vmatprep.mubr.bf16.mxu0 0
      %1883 = vmatmul.mubr.bf16.gmra.mrb[0].mxu0 %v1730
      %v1884 = vpop.f32.mrb[0].mxu0
      %v1885 = vadd.f32 0.0, %v1884
      %v1886 = vpop.f32.mrb[0].mxu0
      %v1887 = vpop.f32.mrb[0].mxu0
      %v1888 = vadd.f32 0.0, %v1887
      %v1889 = vpop.f32.mrb[0].mxu0
      %1890 = vmatprep.mubr.bf16.mxu0 0
      %1891 = vmatmul.mubr.bf16.gmra.mrb[0].mxu0 %v1733
      %v1892 = vpop.f32.mrb[0].mxu0
      %v1893 = vadd.f32 0.0, %v1892
      %v1894 = vpop.f32.mrb[0].mxu0
      %v1895 = vpop.f32.mrb[0].mxu0
      %v1896 = vadd.f32 0.0, %v1895
      %v1897 = vpop.f32.mrb[0].mxu0
      %1898 = vdwg.mxu0
      %v1899 = vadd.f32 %v1637, %v1773
      %v1900 = vadd.f32 %v1638, %v1776
      %v1901 = vadd.f32 %v1639, %v1781
      %v1902 = vadd.f32 %v1640, %v1784
      %v1903 = vadd.f32 %v1641, %v1789
      %v1904 = vadd.f32 %v1642, %v1792
      %v1905 = vadd.f32 %v1643, %v1797
      %v1906 = vadd.f32 %v1644, %v1800
      %v1907 = vadd.f32 %v1645, %v1805
      %v1908 = vadd.f32 %v1646, %v1808
      %v1909 = vadd.f32 %v1647, %v1813
      %v1910 = vadd.f32 %v1648, %v1816
      %v1911 = vadd.f32 %v1649, %v1821
      %v1912 = vadd.f32 %v1650, %v1824
      %v1913 = vadd.f32 %v1651, %v1829
      %v1914 = vadd.f32 %v1652, %v1832
      %v1915 = vadd.f32 %v1653, %v1837
      %v1916 = vadd.f32 %v1654, %v1840
      %v1917 = vadd.f32 %v1655, %v1845
      %v1918 = vadd.f32 %v1656, %v1848
      %v1919 = vadd.f32 %v1657, %v1853
      %v1920 = vadd.f32 %v1658, %v1856
      %v1921 = vadd.f32 %v1659, %v1861
      %v1922 = vadd.f32 %v1660, %v1864
      %v1923 = vadd.f32 %v1661, %v1869
      %v1924 = vadd.f32 %v1662, %v1872
      %v1925 = vadd.f32 %v1663, %v1877
      %v1926 = vadd.f32 %v1664, %v1880
      %v1927 = vadd.f32 %v1665, %v1885
      %v1928 = vadd.f32 %v1666, %v1888
      %v1929 = vadd.f32 %v1667, %v1893
      %v1930 = vadd.f32 %v1668, %v1896
      %v1979 = vrot.slane %v443, 1
      %v1980 = vrot.slane %v444, 1
      %v1981 = vsel %vm1032, %v1979, %v1980
      %v1982 = vrot.slane %v445, 1
      %v1983 = vsel %vm1032, %v1980, %v1982
      %v1984 = vrot.slane %v446, 1
      %v1985 = vrot.slane %v447, 1
      %v1986 = vsel %vm1032, %v1984, %v1985
      %v1987 = vrot.slane %v448, 1
      %v1988 = vsel %vm1032, %v1985, %v1987
      %v1989 = vrot.slane %v449, 1
      %v1990 = vrot.slane %v450, 1
      %v1991 = vsel %vm1032, %v1989, %v1990
      %v1992 = vrot.slane %v451, 1
      %v1993 = vsel %vm1032, %v1990, %v1992
      %v1994 = vrot.slane %v452, 1
      %v1995 = vrot.slane %v453, 1
      %v1996 = vsel %vm1032, %v1994, %v1995
      %v1997 = vrot.slane %v454, 1
      %v1998 = vsel %vm1032, %v1995, %v1997
      %v1999 = vrot.slane %v455, 1
      %v2000 = vrot.slane %v456, 1
      %v2001 = vsel %vm1032, %v1999, %v2000
      %v2002 = vrot.slane %v457, 1
      %v2003 = vsel %vm1032, %v2000, %v2002
      %v2004 = vrot.slane %v458, 1
      %v2005 = vrot.slane %v459, 1
      %v2006 = vsel %vm1032, %v2004, %v2005
      %v2007 = vrot.slane %v460, 1
      %v2008 = vsel %vm1032, %v2005, %v2007
      %v2009 = vrot.slane %v461, 1
      %v2010 = vrot.slane %v462, 1
      %v2011 = vsel %vm1032, %v2009, %v2010
      %v2012 = vrot.slane %v463, 1
      %v2013 = vsel %vm1032, %v2010, %v2012
      %v2014 = vrot.slane %v464, 1
      %v2015 = vrot.slane %v465, 1
      %v2016 = vsel %vm1032, %v2014, %v2015
      %v2017 = vrot.slane %v466, 1
      %v2018 = vsel %vm1032, %v2015, %v2017
      %v2019 = vrot.slane %v467, 1
      %v2020 = vrot.slane %v468, 1
      %v2021 = vsel %vm1032, %v2019, %v2020
      %v2022 = vrot.slane %v469, 1
      %v2023 = vsel %vm1032, %v2020, %v2022
      %v2024 = vrot.slane %v470, 1
      %v2025 = vrot.slane %v471, 1
      %v2026 = vsel %vm1032, %v2024, %v2025
      %v2027 = vrot.slane %v472, 1
      %v2028 = vsel %vm1032, %v2025, %v2027
      %v2029 = vrot.slane %v473, 1
      %v2030 = vrot.slane %v474, 1
      %v2031 = vsel %vm1032, %v2029, %v2030
      %v2032 = vrot.slane %v475, 1
      %v2033 = vsel %vm1032, %v2030, %v2032
      %v2034 = vrot.slane %v476, 1
      %v2035 = vrot.slane %v477, 1
      %v2036 = vsel %vm1032, %v2034, %v2035
      %v2037 = vrot.slane %v478, 1
      %v2038 = vsel %vm1032, %v2035, %v2037
      %v2039 = vrot.slane %v479, 1
      %v2040 = vrot.slane %v480, 1
      %v2041 = vsel %vm1032, %v2039, %v2040
      %v2042 = vrot.slane %v481, 1
      %v2043 = vsel %vm1032, %v2040, %v2042
      %v2044 = vrot.slane %v482, 1
      %v2045 = vrot.slane %v483, 1
      %v2046 = vsel %vm1032, %v2044, %v2045
      %v2047 = vrot.slane %v484, 1
      %v2048 = vsel %vm1032, %v2045, %v2047
      %v2049 = vrot.slane %v485, 1
      %v2050 = vrot.slane %v486, 1
      %v2051 = vsel %vm1032, %v2049, %v2050
      %v2052 = vrot.slane %v487, 1
      %v2053 = vsel %vm1032, %v2050, %v2052
      %v2054 = vrot.slane %v488, 1
      %v2055 = vrot.slane %v489, 1
      %v2056 = vsel %vm1032, %v2054, %v2055
      %v2057 = vrot.slane %v490, 1
      %v2058 = vsel %vm1032, %v2055, %v2057
      %v2091 = vpack.c.bf16 %v1983, %v1981
      %v2092 = vpack.c.bf16 %v1988, %v1986
      %v2093 = vpack.c.bf16 %v1993, %v1991
      %v2094 = vpack.c.bf16 %v1998, %v1996
      %v2095 = vpack.c.bf16 %v2003, %v2001
      %v2096 = vpack.c.bf16 %v2008, %v2006
      %v2097 = vpack.c.bf16 %v2013, %v2011
      %v2098 = vpack.c.bf16 %v2018, %v2016
      %v2099 = vpack.c.bf16 %v2023, %v2021
      %v2100 = vpack.c.bf16 %v2028, %v2026
      %v2101 = vpack.c.bf16 %v2033, %v2031
      %v2102 = vpack.c.bf16 %v2038, %v2036
      %v2103 = vpack.c.bf16 %v2043, %v2041
      %v2104 = vpack.c.bf16 %v2048, %v2046
      %v2105 = vpack.c.bf16 %v2053, %v2051
      %v2106 = vpack.c.bf16 %v2058, %v2056
      %s2107 = scalar_lea.vmem %s4, 20
      %v2108 = vld [vmem:[%s2107] sm:$0xf]
      %v2110 = vsel %vm558, %v2091, 0
      %v2113 = vsel %vm558, %v2092, 0
      %v2116 = vsel %vm558, %v2093, 0
      %v2119 = vsel %vm558, %v2094, 0
      %v2122 = vsel %vm558, %v2095, 0
      %v2125 = vsel %vm558, %v2096, 0
      %v2128 = vsel %vm558, %v2097, 0
      %v2131 = vsel %vm558, %v2098, 0
      %v2134 = vsel %vm558, %v2099, 0
      %v2137 = vsel %vm558, %v2100, 0
      %v2140 = vsel %vm558, %v2101, 0
      %v2143 = vsel %vm558, %v2102, 0
      %v2146 = vsel %vm558, %v2103, 0
      %v2149 = vsel %vm558, %v2104, 0
      %v2152 = vsel %vm558, %v2105, 0
      %v2155 = vsel %vm558, %v2106, 0
      %v2158 = vsel %vm607, %v2108, 0
      %2160 = vmatprep.subr.bf16.mxu0 0
      %2161 = vmatpush1.bf16.msra.mxu0 %v2158
      %2162 = vmatprep.subr.bf16.mxu0 0
      %2163 = vmatpush1.bf16.msra.mxu0 0
      %2164 = vmatprep.subr.bf16.mxu0 0
      %2165 = vmatpush1.bf16.msra.mxu0 0
      %2166 = vmatprep.subr.bf16.mxu0 0
      %2167 = vmatpush1.bf16.msra.mxu0 0
      %2168 = vmatprep.subr.bf16.mxu0 0
      %2169 = vmatpush1.bf16.msra.mxu0 0
      %2170 = vmatprep.subr.bf16.mxu0 0
      %2171 = vmatpush1.bf16.msra.mxu0 0
      %2172 = vmatprep.subr.bf16.mxu0 0
      %2173 = vmatpush1.bf16.msra.mxu0 0
      %2174 = vmatprep.subr.bf16.mxu0 0
      %2175 = vmatpush1.bf16.msra.mxu0 0
      %2176 = vmatprep.subr.bf16.mxu0 0
      %2177 = vmatpush1.bf16.msra.mxu0 0
      %2178 = vmatprep.subr.bf16.mxu0 0
      %2179 = vmatpush1.bf16.msra.mxu0 0
      %2180 = vmatprep.subr.bf16.mxu0 0
      %2181 = vmatpush1.bf16.msra.mxu0 0
      %2182 = vmatprep.subr.bf16.mxu0 0
      %2183 = vmatpush1.bf16.msra.mxu0 0
      %2184 = vmatprep.subr.bf16.mxu0 0
      %2185 = vmatpush1.bf16.msra.mxu0 0
      %2186 = vmatprep.subr.bf16.mxu0 0
      %2187 = vmatpush1.bf16.msra.mxu0 0
      %2188 = vmatprep.subr.bf16.mxu0 0
      %2189 = vmatpush1.bf16.msra.mxu0 0
      %2190 = vmatprep.subr.bf16.mxu0 0
      %2191 = vmatpush1.bf16.msra.mxu0 0
      %2192 = vmatprep.mubr.bf16.mxu0 0
      %2193 = vmatmul.mubr.bf16.gmra.mrb[0].mxu0 %v2110
      %v2194 = vpop.f32.mrb[0].mxu0
      %v2195 = vadd.f32 0.0, %v2194
      %v2196 = vpop.f32.mrb[0].mxu0
      %v2197 = vpop.f32.mrb[0].mxu0
      %v2198 = vadd.f32 0.0, %v2197
      %v2199 = vpop.f32.mrb[0].mxu0
      %2200 = vmatprep.mubr.bf16.mxu0 0
      %2201 = vmatmul.mubr.bf16.gmra.mrb[0].mxu0 %v2113
      %v2202 = vpop.f32.mrb[0].mxu0
      %v2203 = vadd.f32 0.0, %v2202
      %v2204 = vpop.f32.mrb[0].mxu0
      %v2205 = vpop.f32.mrb[0].mxu0
      %v2206 = vadd.f32 0.0, %v2205
      %v2207 = vpop.f32.mrb[0].mxu0
      %2208 = vmatprep.mubr.bf16.mxu0 0
      %2209 = vmatmul.mubr.bf16.gmra.mrb[0].mxu0 %v2116
      %v2210 = vpop.f32.mrb[0].mxu0
      %v2211 = vadd.f32 0.0, %v2210
      %v2212 = vpop.f32.mrb[0].mxu0
      %v2213 = vpop.f32.mrb[0].mxu0
      %v2214 = vadd.f32 0.0, %v2213
      %v2215 = vpop.f32.mrb[0].mxu0
      %2216 = vmatprep.mubr.bf16.mxu0 0
      %2217 = vmatmul.mubr.bf16.gmra.mrb[0].mxu0 %v2119
      %v2218 = vpop.f32.mrb[0].mxu0
      %v2219 = vadd.f32 0.0, %v2218
      %v2220 = vpop.f32.mrb[0].mxu0
      %v2221 = vpop.f32.mrb[0].mxu0
      %v2222 = vadd.f32 0.0, %v2221
      %v2223 = vpop.f32.mrb[0].mxu0
      %2224 = vmatprep.mubr.bf16.mxu0 0
      %2225 = vmatmul.mubr.bf16.gmra.mrb[0].mxu0 %v2122
      %v2226 = vpop.f32.mrb[0].mxu0
      %v2227 = vadd.f32 0.0, %v2226
      %v2228 = vpop.f32.mrb[0].mxu0
      %v2229 = vpop.f32.mrb[0].mxu0
      %v2230 = vadd.f32 0.0, %v2229
      %v2231 = vpop.f32.mrb[0].mxu0
      %2232 = vmatprep.mubr.bf16.mxu0 0
      %2233 = vmatmul.mubr.bf16.gmra.mrb[0].mxu0 %v2125
      %v2234 = vpop.f32.mrb[0].mxu0
      %v2235 = vadd.f32 0.0, %v2234
      %v2236 = vpop.f32.mrb[0].mxu0
      %v2237 = vpop.f32.mrb[0].mxu0
      %v2238 = vadd.f32 0.0, %v2237
      %v2239 = vpop.f32.mrb[0].mxu0
      %2240 = vmatprep.mubr.bf16.mxu0 0
      %2241 = vmatmul.mubr.bf16.gmra.mrb[0].mxu0 %v2128
      %v2242 = vpop.f32.mrb[0].mxu0
      %v2243 = vadd.f32 0.0, %v2242
      %v2244 = vpop.f32.mrb[0].mxu0
      %v2245 = vpop.f32.mrb[0].mxu0
      %v2246 = vadd.f32 0.0, %v2245
      %v2247 = vpop.f32.mrb[0].mxu0
      %2248 = vmatprep.mubr.bf16.mxu0 0
      %2249 = vmatmul.mubr.bf16.gmra.mrb[0].mxu0 %v2131
      %v2250 = vpop.f32.mrb[0].mxu0
      %v2251 = vadd.f32 0.0, %v2250
      %v2252 = vpop.f32.mrb[0].mxu0
      %v2253 = vpop.f32.mrb[0].mxu0
      %v2254 = vadd.f32 0.0, %v2253
      %v2255 = vpop.f32.mrb[0].mxu0
      %2256 = vmatprep.mubr.bf16.mxu0 0
      %2257 = vmatmul.mubr.bf16.gmra.mrb[0].mxu0 %v2134
      %v2258 = vpop.f32.mrb[0].mxu0
      %v2259 = vadd.f32 0.0, %v2258
      %v2260 = vpop.f32.mrb[0].mxu0
      %v2261 = vpop.f32.mrb[0].mxu0
      %v2262 = vadd.f32 0.0, %v2261
      %v2263 = vpop.f32.mrb[0].mxu0
      %2264 = vmatprep.mubr.bf16.mxu0 0
      %2265 = vmatmul.mubr.bf16.gmra.mrb[0].mxu0 %v2137
      %v2266 = vpop.f32.mrb[0].mxu0
      %v2267 = vadd.f32 0.0, %v2266
      %v2268 = vpop.f32.mrb[0].mxu0
      %v2269 = vpop.f32.mrb[0].mxu0
      %v2270 = vadd.f32 0.0, %v2269
      %v2271 = vpop.f32.mrb[0].mxu0
      %2272 = vmatprep.mubr.bf16.mxu0 0
      %2273 = vmatmul.mubr.bf16.gmra.mrb[0].mxu0 %v2140
      %v2274 = vpop.f32.mrb[0].mxu0
      %v2275 = vadd.f32 0.0, %v2274
      %v2276 = vpop.f32.mrb[0].mxu0
      %v2277 = vpop.f32.mrb[0].mxu0
      %v2278 = vadd.f32 0.0, %v2277
      %v2279 = vpop.f32.mrb[0].mxu0
      %2280 = vmatprep.mubr.bf16.mxu0 0
      %2281 = vmatmul.mubr.bf16.gmra.mrb[0].mxu0 %v2143
      %v2282 = vpop.f32.mrb[0].mxu0
      %v2283 = vadd.f32 0.0, %v2282
      %v2284 = vpop.f32.mrb[0].mxu0
      %v2285 = vpop.f32.mrb[0].mxu0
      %v2286 = vadd.f32 0.0, %v2285
      %v2287 = vpop.f32.mrb[0].mxu0
      %2288 = vmatprep.mubr.bf16.mxu0 0
      %2289 = vmatmul.mubr.bf16.gmra.mrb[0].mxu0 %v2146
      %v2290 = vpop.f32.mrb[0].mxu0
      %v2291 = vadd.f32 0.0, %v2290
      %v2292 = vpop.f32.mrb[0].mxu0
      %v2293 = vpop.f32.mrb[0].mxu0
      %v2294 = vadd.f32 0.0, %v2293
      %v2295 = vpop.f32.mrb[0].mxu0
      %2296 = vmatprep.mubr.bf16.mxu0 0
      %2297 = vmatmul.mubr.bf16.gmra.mrb[0].mxu0 %v2149
      %v2298 = vpop.f32.mrb[0].mxu0
      %v2299 = vadd.f32 0.0, %v2298
      %v2300 = vpop.f32.mrb[0].mxu0
      %v2301 = vpop.f32.mrb[0].mxu0
      %v2302 = vadd.f32 0.0, %v2301
      %v2303 = vpop.f32.mrb[0].mxu0
      %2304 = vmatprep.mubr.bf16.mxu0 0
      %2305 = vmatmul.mubr.bf16.gmra.mrb[0].mxu0 %v2152
      %v2306 = vpop.f32.mrb[0].mxu0
      %v2307 = vadd.f32 0.0, %v2306
      %v2308 = vpop.f32.mrb[0].mxu0
      %v2309 = vpop.f32.mrb[0].mxu0
      %v2310 = vadd.f32 0.0, %v2309
      %v2311 = vpop.f32.mrb[0].mxu0
      %2312 = vmatprep.mubr.bf16.mxu0 0
      %2313 = vmatmul.mubr.bf16.gmra.mrb[0].mxu0 %v2155
      %v2314 = vpop.f32.mrb[0].mxu0
      %v2315 = vadd.f32 0.0, %v2314
      %v2316 = vpop.f32.mrb[0].mxu0
      %v2317 = vpop.f32.mrb[0].mxu0
      %v2318 = vadd.f32 0.0, %v2317
      %v2319 = vpop.f32.mrb[0].mxu0
      %2320 = vdwg.mxu0
      %v2321 = vadd.f32 %v1899, %v2195
      %v2322 = vadd.f32 %v1900, %v2198
      %v2323 = vadd.f32 %v1901, %v2203
      %v2324 = vadd.f32 %v1902, %v2206
      %v2325 = vadd.f32 %v1903, %v2211
      %v2326 = vadd.f32 %v1904, %v2214
      %v2327 = vadd.f32 %v1905, %v2219
      %v2328 = vadd.f32 %v1906, %v2222
      %v2329 = vadd.f32 %v1907, %v2227
      %v2330 = vadd.f32 %v1908, %v2230
      %v2331 = vadd.f32 %v1909, %v2235
      %v2332 = vadd.f32 %v1910, %v2238
      %v2333 = vadd.f32 %v1911, %v2243
      %v2334 = vadd.f32 %v1912, %v2246
      %v2335 = vadd.f32 %v1913, %v2251
      %v2336 = vadd.f32 %v1914, %v2254
      %v2337 = vadd.f32 %v1915, %v2259
      %v2338 = vadd.f32 %v1916, %v2262
      %v2339 = vadd.f32 %v1917, %v2267
      %v2340 = vadd.f32 %v1918, %v2270
      %v2341 = vadd.f32 %v1919, %v2275
      %v2342 = vadd.f32 %v1920, %v2278
      %v2343 = vadd.f32 %v1921, %v2283
      %v2344 = vadd.f32 %v1922, %v2286
      %v2345 = vadd.f32 %v1923, %v2291
      %v2346 = vadd.f32 %v1924, %v2294
      %v2347 = vadd.f32 %v1925, %v2299
      %v2348 = vadd.f32 %v1926, %v2302
      %v2349 = vadd.f32 %v1927, %v2307
      %v2350 = vadd.f32 %v1928, %v2310
      %v2351 = vadd.f32 %v1929, %v2315
      %v2352 = vadd.f32 %v1930, %v2318
      %v2353 = vpack.c.bf16 %v407, %v406
      %s2354 = scalar_lea.vmem %s4, 24
      %v2355 = vld [vmem:[%s2354] sm:$0xf]
      %v2357 = vsel %vm558, %v2353, 0
      %v2360 = vsel %vm607, %v2355, 0
      %2362 = vmatprep.subr.bf16.mxu0 0
      %2363 = vmatpush1.bf16.msra.mxu0 %v2360
      %2364 = vmatprep.subr.bf16.mxu0 0
      %2365 = vmatpush1.bf16.msra.mxu0 0
      %2366 = vmatprep.subr.bf16.mxu0 0
      %2367 = vmatpush1.bf16.msra.mxu0 0
      %2368 = vmatprep.subr.bf16.mxu0 0
      %2369 = vmatpush1.bf16.msra.mxu0 0
      %2370 = vmatprep.subr.bf16.mxu0 0
      %2371 = vmatpush1.bf16.msra.mxu0 0
      %2372 = vmatprep.subr.bf16.mxu0 0
      %2373 = vmatpush1.bf16.msra.mxu0 0
      %2374 = vmatprep.subr.bf16.mxu0 0
      %2375 = vmatpush1.bf16.msra.mxu0 0
      %2376 = vmatprep.subr.bf16.mxu0 0
      %2377 = vmatpush1.bf16.msra.mxu0 0
      %2378 = vmatprep.subr.bf16.mxu0 0
      %2379 = vmatpush1.bf16.msra.mxu0 0
      %2380 = vmatprep.subr.bf16.mxu0 0
      %2381 = vmatpush1.bf16.msra.mxu0 0
      %2382 = vmatprep.subr.bf16.mxu0 0
      %2383 = vmatpush1.bf16.msra.mxu0 0
      %2384 = vmatprep.subr.bf16.mxu0 0
      %2385 = vmatpush1.bf16.msra.mxu0 0
      %2386 = vmatprep.subr.bf16.mxu0 0
      %2387 = vmatpush1.bf16.msra.mxu0 0
      %2388 = vmatprep.subr.bf16.mxu0 0
      %2389 = vmatpush1.bf16.msra.mxu0 0
      %2390 = vmatprep.subr.bf16.mxu0 0
      %2391 = vmatpush1.bf16.msra.mxu0 0
      %2392 = vmatprep.subr.bf16.mxu0 0
      %2393 = vmatpush1.bf16.msra.mxu0 0
      %2394 = vmatprep.mubr.bf16.mxu0 0
      %2395 = vmatmul.mubr.bf16.gmra.mrb[0].mxu0 %v776
      %v2396 = vpop.f32.mrb[0].mxu0
      %v2397 = vadd.f32 0.0, %v2396
      %v2398 = vpop.f32.mrb[0].mxu0
      %v2399 = vpop.f32.mrb[0].mxu0
      %v2400 = vadd.f32 0.0, %v2399
      %v2401 = vpop.f32.mrb[0].mxu0
      %2402 = vmatprep.mubr.bf16.mxu0 0
      %2403 = vmatmul.mubr.bf16.gmra.mrb[0].mxu0 %v779
      %v2404 = vpop.f32.mrb[0].mxu0
      %v2405 = vadd.f32 0.0, %v2404
      %v2406 = vpop.f32.mrb[0].mxu0
      %v2407 = vpop.f32.mrb[0].mxu0
      %v2408 = vadd.f32 0.0, %v2407
      %v2409 = vpop.f32.mrb[0].mxu0
      %2410 = vmatprep.mubr.bf16.mxu0 0
      %2411 = vmatmul.mubr.bf16.gmra.mrb[0].mxu0 %v782
      %v2412 = vpop.f32.mrb[0].mxu0
      %v2413 = vadd.f32 0.0, %v2412
      %v2414 = vpop.f32.mrb[0].mxu0
      %v2415 = vpop.f32.mrb[0].mxu0
      %v2416 = vadd.f32 0.0, %v2415
      %v2417 = vpop.f32.mrb[0].mxu0
      %2418 = vmatprep.mubr.bf16.mxu0 0
      %2419 = vmatmul.mubr.bf16.gmra.mrb[0].mxu0 %v785
      %v2420 = vpop.f32.mrb[0].mxu0
      %v2421 = vadd.f32 0.0, %v2420
      %v2422 = vpop.f32.mrb[0].mxu0
      %v2423 = vpop.f32.mrb[0].mxu0
      %v2424 = vadd.f32 0.0, %v2423
      %v2425 = vpop.f32.mrb[0].mxu0
      %2426 = vmatprep.mubr.bf16.mxu0 0
      %2427 = vmatmul.mubr.bf16.gmra.mrb[0].mxu0 %v788
      %v2428 = vpop.f32.mrb[0].mxu0
      %v2429 = vadd.f32 0.0, %v2428
      %v2430 = vpop.f32.mrb[0].mxu0
      %v2431 = vpop.f32.mrb[0].mxu0
      %v2432 = vadd.f32 0.0, %v2431
      %v2433 = vpop.f32.mrb[0].mxu0
      %2434 = vmatprep.mubr.bf16.mxu0 0
      %2435 = vmatmul.mubr.bf16.gmra.mrb[0].mxu0 %v791
      %v2436 = vpop.f32.mrb[0].mxu0
      %v2437 = vadd.f32 0.0, %v2436
      %v2438 = vpop.f32.mrb[0].mxu0
      %v2439 = vpop.f32.mrb[0].mxu0
      %v2440 = vadd.f32 0.0, %v2439
      %v2441 = vpop.f32.mrb[0].mxu0
      %2442 = vmatprep.mubr.bf16.mxu0 0
      %2443 = vmatmul.mubr.bf16.gmra.mrb[0].mxu0 %v794
      %v2444 = vpop.f32.mrb[0].mxu0
      %v2445 = vadd.f32 0.0, %v2444
      %v2446 = vpop.f32.mrb[0].mxu0
      %v2447 = vpop.f32.mrb[0].mxu0
      %v2448 = vadd.f32 0.0, %v2447
      %v2449 = vpop.f32.mrb[0].mxu0
      %2450 = vmatprep.mubr.bf16.mxu0 0
      %2451 = vmatmul.mubr.bf16.gmra.mrb[0].mxu0 %v797
      %v2452 = vpop.f32.mrb[0].mxu0
      %v2453 = vadd.f32 0.0, %v2452
      %v2454 = vpop.f32.mrb[0].mxu0
      %v2455 = vpop.f32.mrb[0].mxu0
      %v2456 = vadd.f32 0.0, %v2455
      %v2457 = vpop.f32.mrb[0].mxu0
      %2458 = vmatprep.mubr.bf16.mxu0 0
      %2459 = vmatmul.mubr.bf16.gmra.mrb[0].mxu0 %v800
      %v2460 = vpop.f32.mrb[0].mxu0
      %v2461 = vadd.f32 0.0, %v2460
      %v2462 = vpop.f32.mrb[0].mxu0
      %v2463 = vpop.f32.mrb[0].mxu0
      %v2464 = vadd.f32 0.0, %v2463
      %v2465 = vpop.f32.mrb[0].mxu0
      %2466 = vmatprep.mubr.bf16.mxu0 0
      %2467 = vmatmul.mubr.bf16.gmra.mrb[0].mxu0 %v803
      %v2468 = vpop.f32.mrb[0].mxu0
      %v2469 = vadd.f32 0.0, %v2468
      %v2470 = vpop.f32.mrb[0].mxu0
      %v2471 = vpop.f32.mrb[0].mxu0
      %v2472 = vadd.f32 0.0, %v2471
      %v2473 = vpop.f32.mrb[0].mxu0
      %2474 = vmatprep.mubr.bf16.mxu0 0
      %2475 = vmatmul.mubr.bf16.gmra.mrb[0].mxu0 %v806
      %v2476 = vpop.f32.mrb[0].mxu0
      %v2477 = vadd.f32 0.0, %v2476
      %v2478 = vpop.f32.mrb[0].mxu0
      %v2479 = vpop.f32.mrb[0].mxu0
      %v2480 = vadd.f32 0.0, %v2479
      %v2481 = vpop.f32.mrb[0].mxu0
      %2482 = vmatprep.mubr.bf16.mxu0 0
      %2483 = vmatmul.mubr.bf16.gmra.mrb[0].mxu0 %v809
      %v2484 = vpop.f32.mrb[0].mxu0
      %v2485 = vadd.f32 0.0, %v2484
      %v2486 = vpop.f32.mrb[0].mxu0
      %v2487 = vpop.f32.mrb[0].mxu0
      %v2488 = vadd.f32 0.0, %v2487
      %v2489 = vpop.f32.mrb[0].mxu0
      %2490 = vmatprep.mubr.bf16.mxu0 0
      %2491 = vmatmul.mubr.bf16.gmra.mrb[0].mxu0 %v812
      %v2492 = vpop.f32.mrb[0].mxu0
      %v2493 = vadd.f32 0.0, %v2492
      %v2494 = vpop.f32.mrb[0].mxu0
      %v2495 = vpop.f32.mrb[0].mxu0
      %v2496 = vadd.f32 0.0, %v2495
      %v2497 = vpop.f32.mrb[0].mxu0
      %2498 = vmatprep.mubr.bf16.mxu0 0
      %2499 = vmatmul.mubr.bf16.gmra.mrb[0].mxu0 %v815
      %v2500 = vpop.f32.mrb[0].mxu0
      %v2501 = vadd.f32 0.0, %v2500
      %v2502 = vpop.f32.mrb[0].mxu0
      %v2503 = vpop.f32.mrb[0].mxu0
      %v2504 = vadd.f32 0.0, %v2503
      %v2505 = vpop.f32.mrb[0].mxu0
      %2506 = vmatprep.mubr.bf16.mxu0 0
      %2507 = vmatmul.mubr.bf16.gmra.mrb[0].mxu0 %v818
      %v2508 = vpop.f32.mrb[0].mxu0
      %v2509 = vadd.f32 0.0, %v2508
      %v2510 = vpop.f32.mrb[0].mxu0
      %v2511 = vpop.f32.mrb[0].mxu0
      %v2512 = vadd.f32 0.0, %v2511
      %v2513 = vpop.f32.mrb[0].mxu0
      %2514 = vmatprep.mubr.bf16.mxu0 0
      %2515 = vmatmul.mubr.bf16.gmra.mrb[0].mxu0 %v2357
      %v2516 = vpop.f32.mrb[0].mxu0
      %v2517 = vadd.f32 0.0, %v2516
      %v2518 = vpop.f32.mrb[0].mxu0
      %v2519 = vpop.f32.mrb[0].mxu0
      %v2520 = vadd.f32 0.0, %v2519
      %v2521 = vpop.f32.mrb[0].mxu0
      %2522 = vdwg.mxu0
      %v2523 = vadd.f32 %v2321, %v2397
      %v2524 = vadd.f32 %v2322, %v2400
      %v2525 = vadd.f32 %v2323, %v2405
      %v2526 = vadd.f32 %v2324, %v2408
      %v2527 = vadd.f32 %v2325, %v2413
      %v2528 = vadd.f32 %v2326, %v2416
      %v2529 = vadd.f32 %v2327, %v2421
      %v2530 = vadd.f32 %v2328, %v2424
      %v2531 = vadd.f32 %v2329, %v2429
      %v2532 = vadd.f32 %v2330, %v2432
      %v2533 = vadd.f32 %v2331, %v2437
      %v2534 = vadd.f32 %v2332, %v2440
      %v2535 = vadd.f32 %v2333, %v2445
      %v2536 = vadd.f32 %v2334, %v2448
      %v2537 = vadd.f32 %v2335, %v2453
      %v2538 = vadd.f32 %v2336, %v2456
      %v2539 = vadd.f32 %v2337, %v2461
      %v2540 = vadd.f32 %v2338, %v2464
      %v2541 = vadd.f32 %v2339, %v2469
      %v2542 = vadd.f32 %v2340, %v2472
      %v2543 = vadd.f32 %v2341, %v2477
      %v2544 = vadd.f32 %v2342, %v2480
      %v2545 = vadd.f32 %v2343, %v2485
      %v2546 = vadd.f32 %v2344, %v2488
      %v2547 = vadd.f32 %v2345, %v2493
      %v2548 = vadd.f32 %v2346, %v2496
      %v2549 = vadd.f32 %v2347, %v2501
      %v2550 = vadd.f32 %v2348, %v2504
      %v2551 = vadd.f32 %v2349, %v2509
      %v2552 = vadd.f32 %v2350, %v2512
      %v2553 = vadd.f32 %v2351, %v2517
      %v2554 = vadd.f32 %v2352, %v2520
      %v2555 = vpack.c.bf16 %v442, %v441
      %s2556 = scalar_lea.vmem %s4, 28
      %v2557 = vld [vmem:[%s2556] sm:$0xf]
      %v2559 = vsel %vm558, %v2555, 0
      %v2562 = vsel %vm607, %v2557, 0
      %2564 = vmatprep.subr.bf16.mxu0 0
      %2565 = vmatpush1.bf16.msra.mxu0 %v2562
      %2566 = vmatprep.subr.bf16.mxu0 0
      %2567 = vmatpush1.bf16.msra.mxu0 0
      %2568 = vmatprep.subr.bf16.mxu0 0
      %2569 = vmatpush1.bf16.msra.mxu0 0
      %2570 = vmatprep.subr.bf16.mxu0 0
      %2571 = vmatpush1.bf16.msra.mxu0 0
      %2572 = vmatprep.subr.bf16.mxu0 0
      %2573 = vmatpush1.bf16.msra.mxu0 0
      %2574 = vmatprep.subr.bf16.mxu0 0
      %2575 = vmatpush1.bf16.msra.mxu0 0
      %2576 = vmatprep.subr.bf16.mxu0 0
      %2577 = vmatpush1.bf16.msra.mxu0 0
      %2578 = vmatprep.subr.bf16.mxu0 0
      %2579 = vmatpush1.bf16.msra.mxu0 0
      %2580 = vmatprep.subr.bf16.mxu0 0
      %2581 = vmatpush1.bf16.msra.mxu0 0
      %2582 = vmatprep.subr.bf16.mxu0 0
      %2583 = vmatpush1.bf16.msra.mxu0 0
      %2584 = vmatprep.subr.bf16.mxu0 0
      %2585 = vmatpush1.bf16.msra.mxu0 0
      %2586 = vmatprep.subr.bf16.mxu0 0
      %2587 = vmatpush1.bf16.msra.mxu0 0
      %2588 = vmatprep.subr.bf16.mxu0 0
      %2589 = vmatpush1.bf16.msra.mxu0 0
      %2590 = vmatprep.subr.bf16.mxu0 0
      %2591 = vmatpush1.bf16.msra.mxu0 0
      %2592 = vmatprep.subr.bf16.mxu0 0
      %2593 = vmatpush1.bf16.msra.mxu0 0
      %2594 = vmatprep.subr.bf16.mxu0 0
      %2595 = vmatpush1.bf16.msra.mxu0 0
      %2596 = vmatprep.mubr.bf16.mxu0 0
      %2597 = vmatmul.mubr.bf16.gmra.mrb[0].mxu0 %v563
      %v2598 = vpop.f32.mrb[0].mxu0
      %v2599 = vadd.f32 0.0, %v2598
      %v2600 = vpop.f32.mrb[0].mxu0
      %v2601 = vpop.f32.mrb[0].mxu0
      %v2602 = vadd.f32 0.0, %v2601
      %v2603 = vpop.f32.mrb[0].mxu0
      %2604 = vmatprep.mubr.bf16.mxu0 0
      %2605 = vmatmul.mubr.bf16.gmra.mrb[0].mxu0 %v566
      %v2606 = vpop.f32.mrb[0].mxu0
      %v2607 = vadd.f32 0.0, %v2606
      %v2608 = vpop.f32.mrb[0].mxu0
      %v2609 = vpop.f32.mrb[0].mxu0
      %v2610 = vadd.f32 0.0, %v2609
      %v2611 = vpop.f32.mrb[0].mxu0
      %2612 = vmatprep.mubr.bf16.mxu0 0
      %2613 = vmatmul.mubr.bf16.gmra.mrb[0].mxu0 %v569
      %v2614 = vpop.f32.mrb[0].mxu0
      %v2615 = vadd.f32 0.0, %v2614
      %v2616 = vpop.f32.mrb[0].mxu0
      %v2617 = vpop.f32.mrb[0].mxu0
      %v2618 = vadd.f32 0.0, %v2617
      %v2619 = vpop.f32.mrb[0].mxu0
      %2620 = vmatprep.mubr.bf16.mxu0 0
      %2621 = vmatmul.mubr.bf16.gmra.mrb[0].mxu0 %v572
      %v2622 = vpop.f32.mrb[0].mxu0
      %v2623 = vadd.f32 0.0, %v2622
      %v2624 = vpop.f32.mrb[0].mxu0
      %v2625 = vpop.f32.mrb[0].mxu0
      %v2626 = vadd.f32 0.0, %v2625
      %v2627 = vpop.f32.mrb[0].mxu0
      %2628 = vmatprep.mubr.bf16.mxu0 0
      %2629 = vmatmul.mubr.bf16.gmra.mrb[0].mxu0 %v575
      %v2630 = vpop.f32.mrb[0].mxu0
      %v2631 = vadd.f32 0.0, %v2630
      %v2632 = vpop.f32.mrb[0].mxu0
      %v2633 = vpop.f32.mrb[0].mxu0
      %v2634 = vadd.f32 0.0, %v2633
      %v2635 = vpop.f32.mrb[0].mxu0
      %2636 = vmatprep.mubr.bf16.mxu0 0
      %2637 = vmatmul.mubr.bf16.gmra.mrb[0].mxu0 %v578
      %v2638 = vpop.f32.mrb[0].mxu0
      %v2639 = vadd.f32 0.0, %v2638
      %v2640 = vpop.f32.mrb[0].mxu0
      %v2641 = vpop.f32.mrb[0].mxu0
      %v2642 = vadd.f32 0.0, %v2641
      %v2643 = vpop.f32.mrb[0].mxu0
      %2644 = vmatprep.mubr.bf16.mxu0 0
      %2645 = vmatmul.mubr.bf16.gmra.mrb[0].mxu0 %v581
      %v2646 = vpop.f32.mrb[0].mxu0
      %v2647 = vadd.f32 0.0, %v2646
      %v2648 = vpop.f32.mrb[0].mxu0
      %v2649 = vpop.f32.mrb[0].mxu0
      %v2650 = vadd.f32 0.0, %v2649
      %v2651 = vpop.f32.mrb[0].mxu0
      %2652 = vmatprep.mubr.bf16.mxu0 0
      %2653 = vmatmul.mubr.bf16.gmra.mrb[0].mxu0 %v584
      %v2654 = vpop.f32.mrb[0].mxu0
      %v2655 = vadd.f32 0.0, %v2654
      %v2656 = vpop.f32.mrb[0].mxu0
      %v2657 = vpop.f32.mrb[0].mxu0
      %v2658 = vadd.f32 0.0, %v2657
      %v2659 = vpop.f32.mrb[0].mxu0
      %2660 = vmatprep.mubr.bf16.mxu0 0
      %2661 = vmatmul.mubr.bf16.gmra.mrb[0].mxu0 %v587
      %v2662 = vpop.f32.mrb[0].mxu0
      %v2663 = vadd.f32 0.0, %v2662
      %v2664 = vpop.f32.mrb[0].mxu0
      %v2665 = vpop.f32.mrb[0].mxu0
      %v2666 = vadd.f32 0.0, %v2665
      %v2667 = vpop.f32.mrb[0].mxu0
      %2668 = vmatprep.mubr.bf16.mxu0 0
      %2669 = vmatmul.mubr.bf16.gmra.mrb[0].mxu0 %v590
      %v2670 = vpop.f32.mrb[0].mxu0
      %v2671 = vadd.f32 0.0, %v2670
      %v2672 = vpop.f32.mrb[0].mxu0
      %v2673 = vpop.f32.mrb[0].mxu0
      %v2674 = vadd.f32 0.0, %v2673
      %v2675 = vpop.f32.mrb[0].mxu0
      %2676 = vmatprep.mubr.bf16.mxu0 0
      %2677 = vmatmul.mubr.bf16.gmra.mrb[0].mxu0 %v593
      %v2678 = vpop.f32.mrb[0].mxu0
      %v2679 = vadd.f32 0.0, %v2678
      %v2680 = vpop.f32.mrb[0].mxu0
      %v2681 = vpop.f32.mrb[0].mxu0
      %v2682 = vadd.f32 0.0, %v2681
      %v2683 = vpop.f32.mrb[0].mxu0
      %2684 = vmatprep.mubr.bf16.mxu0 0
      %2685 = vmatmul.mubr.bf16.gmra.mrb[0].mxu0 %v596
      %v2686 = vpop.f32.mrb[0].mxu0
      %v2687 = vadd.f32 0.0, %v2686
      %v2688 = vpop.f32.mrb[0].mxu0
      %v2689 = vpop.f32.mrb[0].mxu0
      %v2690 = vadd.f32 0.0, %v2689
      %v2691 = vpop.f32.mrb[0].mxu0
      %2692 = vmatprep.mubr.bf16.mxu0 0
      %2693 = vmatmul.mubr.bf16.gmra.mrb[0].mxu0 %v599
      %v2694 = vpop.f32.mrb[0].mxu0
      %v2695 = vadd.f32 0.0, %v2694
      %v2696 = vpop.f32.mrb[0].mxu0
      %v2697 = vpop.f32.mrb[0].mxu0
      %v2698 = vadd.f32 0.0, %v2697
      %v2699 = vpop.f32.mrb[0].mxu0
      %2700 = vmatprep.mubr.bf16.mxu0 0
      %2701 = vmatmul.mubr.bf16.gmra.mrb[0].mxu0 %v602
      %v2702 = vpop.f32.mrb[0].mxu0
      %v2703 = vadd.f32 0.0, %v2702
      %v2704 = vpop.f32.mrb[0].mxu0
      %v2705 = vpop.f32.mrb[0].mxu0
      %v2706 = vadd.f32 0.0, %v2705
      %v2707 = vpop.f32.mrb[0].mxu0
      %2708 = vmatprep.mubr.bf16.mxu0 0
      %2709 = vmatmul.mubr.bf16.gmra.mrb[0].mxu0 %v605
      %v2710 = vpop.f32.mrb[0].mxu0
      %v2711 = vadd.f32 0.0, %v2710
      %v2712 = vpop.f32.mrb[0].mxu0
      %v2713 = vpop.f32.mrb[0].mxu0
      %v2714 = vadd.f32 0.0, %v2713
      %v2715 = vpop.f32.mrb[0].mxu0
      %2716 = vmatprep.mubr.bf16.mxu0 0
      %2717 = vmatmul.mubr.bf16.gmra.mrb[0].mxu0 %v2559
      %v2718 = vpop.f32.mrb[0].mxu0
      %v2719 = vadd.f32 0.0, %v2718
      %v2720 = vpop.f32.mrb[0].mxu0
      %v2721 = vpop.f32.mrb[0].mxu0
      %v2722 = vadd.f32 0.0, %v2721
      %v2723 = vpop.f32.mrb[0].mxu0
      %2724 = vdwg.mxu0
      %v2725 = vadd.f32 %v2523, %v2599
      %v2726 = vadd.f32 %v2524, %v2602
      %v2727 = vadd.f32 %v2525, %v2607
      %v2728 = vadd.f32 %v2526, %v2610
      %v2729 = vadd.f32 %v2527, %v2615
      %v2730 = vadd.f32 %v2528, %v2618
      %v2731 = vadd.f32 %v2529, %v2623
      %v2732 = vadd.f32 %v2530, %v2626
      %v2733 = vadd.f32 %v2531, %v2631
      %v2734 = vadd.f32 %v2532, %v2634
      %v2735 = vadd.f32 %v2533, %v2639
      %v2736 = vadd.f32 %v2534, %v2642
      %v2737 = vadd.f32 %v2535, %v2647
      %v2738 = vadd.f32 %v2536, %v2650
      %v2739 = vadd.f32 %v2537, %v2655
      %v2740 = vadd.f32 %v2538, %v2658
      %v2741 = vadd.f32 %v2539, %v2663
      %v2742 = vadd.f32 %v2540, %v2666
      %v2743 = vadd.f32 %v2541, %v2671
      %v2744 = vadd.f32 %v2542, %v2674
      %v2745 = vadd.f32 %v2543, %v2679
      %v2746 = vadd.f32 %v2544, %v2682
      %v2747 = vadd.f32 %v2545, %v2687
      %v2748 = vadd.f32 %v2546, %v2690
      %v2749 = vadd.f32 %v2547, %v2695
      %v2750 = vadd.f32 %v2548, %v2698
      %v2751 = vadd.f32 %v2549, %v2703
      %v2752 = vadd.f32 %v2550, %v2706
      %v2753 = vadd.f32 %v2551, %v2711
      %v2754 = vadd.f32 %v2552, %v2714
      %v2755 = vadd.f32 %v2553, %v2719
      %v2756 = vadd.f32 %v2554, %v2722
      %v2760 = vrot.slane %v406, 1
      %v2761 = vrot.slane %v407, 1
      %v2762 = vsel %vm1032, %v2760, %v2761
      %v2763 = vrot.slane %v408, 1
      %v2764 = vsel %vm1032, %v2761, %v2763
      %v2767 = vpack.c.bf16 %v2764, %v2762
      %s2768 = scalar_lea.vmem %s4, 32
      %v2769 = vld [vmem:[%s2768] sm:$0xf]
      %v2771 = vsel %vm558, %v2767, 0
      %v2774 = vsel %vm607, %v2769, 0
      %2776 = vmatprep.subr.bf16.mxu0 0
      %2777 = vmatpush1.bf16.msra.mxu0 %v2774
      %2778 = vmatprep.subr.bf16.mxu0 0
      %2779 = vmatpush1.bf16.msra.mxu0 0
      %2780 = vmatprep.subr.bf16.mxu0 0
      %2781 = vmatpush1.bf16.msra.mxu0 0
      %2782 = vmatprep.subr.bf16.mxu0 0
      %2783 = vmatpush1.bf16.msra.mxu0 0
      %2784 = vmatprep.subr.bf16.mxu0 0
      %2785 = vmatpush1.bf16.msra.mxu0 0
      %2786 = vmatprep.subr.bf16.mxu0 0
      %2787 = vmatpush1.bf16.msra.mxu0 0
      %2788 = vmatprep.subr.bf16.mxu0 0
      %2789 = vmatpush1.bf16.msra.mxu0 0
      %2790 = vmatprep.subr.bf16.mxu0 0
      %2791 = vmatpush1.bf16.msra.mxu0 0
      %2792 = vmatprep.subr.bf16.mxu0 0
      %2793 = vmatpush1.bf16.msra.mxu0 0
      %2794 = vmatprep.subr.bf16.mxu0 0
      %2795 = vmatpush1.bf16.msra.mxu0 0
      %2796 = vmatprep.subr.bf16.mxu0 0
      %2797 = vmatpush1.bf16.msra.mxu0 0
      %2798 = vmatprep.subr.bf16.mxu0 0
      %2799 = vmatpush1.bf16.msra.mxu0 0
      %2800 = vmatprep.subr.bf16.mxu0 0
      %2801 = vmatpush1.bf16.msra.mxu0 0
      %2802 = vmatprep.subr.bf16.mxu0 0
      %2803 = vmatpush1.bf16.msra.mxu0 0
      %2804 = vmatprep.subr.bf16.mxu0 0
      %2805 = vmatpush1.bf16.msra.mxu0 0
      %2806 = vmatprep.subr.bf16.mxu0 0
      %2807 = vmatpush1.bf16.msra.mxu0 0
      %2808 = vmatprep.mubr.bf16.mxu0 0
      %2809 = vmatmul.mubr.bf16.gmra.mrb[0].mxu0 %v1167
      %v2810 = vpop.f32.mrb[0].mxu0
      %v2811 = vadd.f32 0.0, %v2810
      %v2812 = vpop.f32.mrb[0].mxu0
      %v2813 = vpop.f32.mrb[0].mxu0
      %v2814 = vadd.f32 0.0, %v2813
      %v2815 = vpop.f32.mrb[0].mxu0
      %2816 = vmatprep.mubr.bf16.mxu0 0
      %2817 = vmatmul.mubr.bf16.gmra.mrb[0].mxu0 %v1170
      %v2818 = vpop.f32.mrb[0].mxu0
      %v2819 = vadd.f32 0.0, %v2818
      %v2820 = vpop.f32.mrb[0].mxu0
      %v2821 = vpop.f32.mrb[0].mxu0
      %v2822 = vadd.f32 0.0, %v2821
      %v2823 = vpop.f32.mrb[0].mxu0
      %2824 = vmatprep.mubr.bf16.mxu0 0
      %2825 = vmatmul.mubr.bf16.gmra.mrb[0].mxu0 %v1173
      %v2826 = vpop.f32.mrb[0].mxu0
      %v2827 = vadd.f32 0.0, %v2826
      %v2828 = vpop.f32.mrb[0].mxu0
      %v2829 = vpop.f32.mrb[0].mxu0
      %v2830 = vadd.f32 0.0, %v2829
      %v2831 = vpop.f32.mrb[0].mxu0
      %2832 = vmatprep.mubr.bf16.mxu0 0
      %2833 = vmatmul.mubr.bf16.gmra.mrb[0].mxu0 %v1176
      %v2834 = vpop.f32.mrb[0].mxu0
      %v2835 = vadd.f32 0.0, %v2834
      %v2836 = vpop.f32.mrb[0].mxu0
      %v2837 = vpop.f32.mrb[0].mxu0
      %v2838 = vadd.f32 0.0, %v2837
      %v2839 = vpop.f32.mrb[0].mxu0
      %2840 = vmatprep.mubr.bf16.mxu0 0
      %2841 = vmatmul.mubr.bf16.gmra.mrb[0].mxu0 %v1179
      %v2842 = vpop.f32.mrb[0].mxu0
      %v2843 = vadd.f32 0.0, %v2842
      %v2844 = vpop.f32.mrb[0].mxu0
      %v2845 = vpop.f32.mrb[0].mxu0
      %v2846 = vadd.f32 0.0, %v2845
      %v2847 = vpop.f32.mrb[0].mxu0
      %2848 = vmatprep.mubr.bf16.mxu0 0
      %2849 = vmatmul.mubr.bf16.gmra.mrb[0].mxu0 %v1182
      %v2850 = vpop.f32.mrb[0].mxu0
      %v2851 = vadd.f32 0.0, %v2850
      %v2852 = vpop.f32.mrb[0].mxu0
      %v2853 = vpop.f32.mrb[0].mxu0
      %v2854 = vadd.f32 0.0, %v2853
      %v2855 = vpop.f32.mrb[0].mxu0
      %2856 = vmatprep.mubr.bf16.mxu0 0
      %2857 = vmatmul.mubr.bf16.gmra.mrb[0].mxu0 %v1185
      %v2858 = vpop.f32.mrb[0].mxu0
      %v2859 = vadd.f32 0.0, %v2858
      %v2860 = vpop.f32.mrb[0].mxu0
      %v2861 = vpop.f32.mrb[0].mxu0
      %v2862 = vadd.f32 0.0, %v2861
      %v2863 = vpop.f32.mrb[0].mxu0
      %2864 = vmatprep.mubr.bf16.mxu0 0
      %2865 = vmatmul.mubr.bf16.gmra.mrb[0].mxu0 %v1188
      %v2866 = vpop.f32.mrb[0].mxu0
      %v2867 = vadd.f32 0.0, %v2866
      %v2868 = vpop.f32.mrb[0].mxu0
      %v2869 = vpop.f32.mrb[0].mxu0
      %v2870 = vadd.f32 0.0, %v2869
      %v2871 = vpop.f32.mrb[0].mxu0
      %2872 = vmatprep.mubr.bf16.mxu0 0
      %2873 = vmatmul.mubr.bf16.gmra.mrb[0].mxu0 %v1191
      %v2874 = vpop.f32.mrb[0].mxu0
      %v2875 = vadd.f32 0.0, %v2874
      %v2876 = vpop.f32.mrb[0].mxu0
      %v2877 = vpop.f32.mrb[0].mxu0
      %v2878 = vadd.f32 0.0, %v2877
      %v2879 = vpop.f32.mrb[0].mxu0
      %2880 = vmatprep.mubr.bf16.mxu0 0
      %2881 = vmatmul.mubr.bf16.gmra.mrb[0].mxu0 %v1194
      %v2882 = vpop.f32.mrb[0].mxu0
      %v2883 = vadd.f32 0.0, %v2882
      %v2884 = vpop.f32.mrb[0].mxu0
      %v2885 = vpop.f32.mrb[0].mxu0
      %v2886 = vadd.f32 0.0, %v2885
      %v2887 = vpop.f32.mrb[0].mxu0
      %2888 = vmatprep.mubr.bf16.mxu0 0
      %2889 = vmatmul.mubr.bf16.gmra.mrb[0].mxu0 %v1197
      %v2890 = vpop.f32.mrb[0].mxu0
      %v2891 = vadd.f32 0.0, %v2890
      %v2892 = vpop.f32.mrb[0].mxu0
      %v2893 = vpop.f32.mrb[0].mxu0
      %v2894 = vadd.f32 0.0, %v2893
      %v2895 = vpop.f32.mrb[0].mxu0
      %2896 = vmatprep.mubr.bf16.mxu0 0
      %2897 = vmatmul.mubr.bf16.gmra.mrb[0].mxu0 %v1200
      %v2898 = vpop.f32.mrb[0].mxu0
      %v2899 = vadd.f32 0.0, %v2898
      %v2900 = vpop.f32.mrb[0].mxu0
      %v2901 = vpop.f32.mrb[0].mxu0
      %v2902 = vadd.f32 0.0, %v2901
      %v2903 = vpop.f32.mrb[0].mxu0
      %2904 = vmatprep.mubr.bf16.mxu0 0
      %2905 = vmatmul.mubr.bf16.gmra.mrb[0].mxu0 %v1203
      %v2906 = vpop.f32.mrb[0].mxu0
      %v2907 = vadd.f32 0.0, %v2906
      %v2908 = vpop.f32.mrb[0].mxu0
      %v2909 = vpop.f32.mrb[0].mxu0
      %v2910 = vadd.f32 0.0, %v2909
      %v2911 = vpop.f32.mrb[0].mxu0
      %2912 = vmatprep.mubr.bf16.mxu0 0
      %2913 = vmatmul.mubr.bf16.gmra.mrb[0].mxu0 %v1206
      %v2914 = vpop.f32.mrb[0].mxu0
      %v2915 = vadd.f32 0.0, %v2914
      %v2916 = vpop.f32.mrb[0].mxu0
      %v2917 = vpop.f32.mrb[0].mxu0
      %v2918 = vadd.f32 0.0, %v2917
      %v2919 = vpop.f32.mrb[0].mxu0
      %2920 = vmatprep.mubr.bf16.mxu0 0
      %2921 = vmatmul.mubr.bf16.gmra.mrb[0].mxu0 %v1209
      %v2922 = vpop.f32.mrb[0].mxu0
      %v2923 = vadd.f32 0.0, %v2922
      %v2924 = vpop.f32.mrb[0].mxu0
      %v2925 = vpop.f32.mrb[0].mxu0
      %v2926 = vadd.f32 0.0, %v2925
      %v2927 = vpop.f32.mrb[0].mxu0
      %2928 = vmatprep.mubr.bf16.mxu0 0
      %2929 = vmatmul.mubr.bf16.gmra.mrb[0].mxu0 %v2771
      %v2930 = vpop.f32.mrb[0].mxu0
      %v2931 = vadd.f32 0.0, %v2930
      %v2932 = vpop.f32.mrb[0].mxu0
      %v2933 = vpop.f32.mrb[0].mxu0
      %v2934 = vadd.f32 0.0, %v2933
      %v2935 = vpop.f32.mrb[0].mxu0
      %2936 = vdwg.mxu0
      %v2937 = vadd.f32 %v2725, %v2811
      %v2938 = vadd.f32 %v2726, %v2814
      %v2939 = vadd.f32 %v2727, %v2819
      %v2940 = vadd.f32 %v2728, %v2822
      %v2941 = vadd.f32 %v2729, %v2827
      %v2942 = vadd.f32 %v2730, %v2830
      %v2943 = vadd.f32 %v2731, %v2835
      %v2944 = vadd.f32 %v2732, %v2838
      %v2945 = vadd.f32 %v2733, %v2843
      %v2946 = vadd.f32 %v2734, %v2846
      %v2947 = vadd.f32 %v2735, %v2851
      %v2948 = vadd.f32 %v2736, %v2854
      %v2949 = vadd.f32 %v2737, %v2859
      %v2950 = vadd.f32 %v2738, %v2862
      %v2951 = vadd.f32 %v2739, %v2867
      %v2952 = vadd.f32 %v2740, %v2870
      %v2953 = vadd.f32 %v2741, %v2875
      %v2954 = vadd.f32 %v2742, %v2878
      %v2955 = vadd.f32 %v2743, %v2883
      %v2956 = vadd.f32 %v2744, %v2886
      %v2957 = vadd.f32 %v2745, %v2891
      %v2958 = vadd.f32 %v2746, %v2894
      %v2959 = vadd.f32 %v2747, %v2899
      %v2960 = vadd.f32 %v2748, %v2902
      %v2961 = vadd.f32 %v2749, %v2907
      %v2962 = vadd.f32 %v2750, %v2910
      %v2963 = vadd.f32 %v2751, %v2915
      %v2964 = vadd.f32 %v2752, %v2918
      %v2965 = vadd.f32 %v2753, %v2923
      %v2966 = vadd.f32 %v2754, %v2926
      %v2967 = vadd.f32 %v2755, %v2931
      %v2968 = vadd.f32 %v2756, %v2934
      %2969 = vst.msk [vmem:[%s349] sm:$0xff] %vm558, %v2937
      %2970 = vst.msk [vmem:[%s349 + $0x8] sm:$0xff] %vm558, %v2938
      %2971 = vst.msk [vmem:[%s349 + $0x10] sm:$0xff] %vm558, %v2939
      %2972 = vst.msk [vmem:[%s349 + $0x18] sm:$0xff] %vm558, %v2940
      %2973 = vst.msk [vmem:[%s349 + $0x20] sm:$0xff] %vm558, %v2941
      %2974 = vst.msk [vmem:[%s349 + $0x28] sm:$0xff] %vm558, %v2942
      %2975 = vst.msk [vmem:[%s349 + $0x30] sm:$0xff] %vm558, %v2943
      %2976 = vst.msk [vmem:[%s349 + $0x38] sm:$0xff] %vm558, %v2944
      %2977 = vst.msk [vmem:[%s349 + $0x40] sm:$0xff] %vm558, %v2945
      %2978 = vst.msk [vmem:[%s349 + $0x48] sm:$0xff] %vm558, %v2946
      %2979 = vst.msk [vmem:[%s349 + $0x50] sm:$0xff] %vm558, %v2947
      %2980 = vst.msk [vmem:[%s349 + $0x58] sm:$0xff] %vm558, %v2948
      %2981 = vst.msk [vmem:[%s349 + $0x60] sm:$0xff] %vm558, %v2949
      %2982 = vst.msk [vmem:[%s349 + $0x68] sm:$0xff] %vm558, %v2950
      %2983 = vst.msk [vmem:[%s349 + $0x70] sm:$0xff] %vm558, %v2951
      %2984 = vst.msk [vmem:[%s349 + $0x78] sm:$0xff] %vm558, %v2952
      %2985 = vst.msk [vmem:[%s349 + $0x80] sm:$0xff] %vm558, %v2953
      %2986 = vst.msk [vmem:[%s349 + $0x88] sm:$0xff] %vm558, %v2954
      %2987 = vst.msk [vmem:[%s349 + $0x90] sm:$0xff] %vm558, %v2955
      %2988 = vst.msk [vmem:[%s349 + $0x98] sm:$0xff] %vm558, %v2956
      %2989 = vst.msk [vmem:[%s349 + $0xa0] sm:$0xff] %vm558, %v2957
      %2990 = vst.msk [vmem:[%s349 + $0xa8] sm:$0xff] %vm558, %v2958
      %2991 = vst.msk [vmem:[%s349 + $0xb0] sm:$0xff] %vm558, %v2959
      %2992 = vst.msk [vmem:[%s349 + $0xb8] sm:$0xff] %vm558, %v2960
      %2993 = vst.msk [vmem:[%s349 + $0xc0] sm:$0xff] %vm558, %v2961
      %2994 = vst.msk [vmem:[%s349 + $0xc8] sm:$0xff] %vm558, %v2962
      %2995 = vst.msk [vmem:[%s349 + $0xd0] sm:$0xff] %vm558, %v2963
      %2996 = vst.msk [vmem:[%s349 + $0xd8] sm:$0xff] %vm558, %v2964
      %2997 = vst.msk [vmem:[%s349 + $0xe0] sm:$0xff] %vm558, %v2965
      %2998 = vst.msk [vmem:[%s349 + $0xe8] sm:$0xff] %vm558, %v2966
      %2999 = vst.msk [vmem:[%s349 + $0xf0] sm:$0xff] %vm558, %v2967
      %3000 = vst.msk [vmem:[%s349 + $0xf8] sm:$0xff] %vm558, %v2968
      %v3001 = vsel %vm558, %v2937, 0.0
      %v3002 = vsel %vm558, %v2938, 0.0
      %v3003 = vadd.f32 %v3001, %v3002
      %v3004 = vsel %vm558, %v2939, 0.0
      %v3005 = vadd.f32 %v3003, %v3004
      %v3006 = vsel %vm558, %v2940, 0.0
      %v3007 = vadd.f32 %v3005, %v3006
      %v3008 = vsel %vm558, %v2941, 0.0
      %v3009 = vadd.f32 %v3007, %v3008
      %v3010 = vsel %vm558, %v2942, 0.0
      %v3011 = vadd.f32 %v3009, %v3010
      %v3012 = vsel %vm558, %v2943, 0.0
      %v3013 = vadd.f32 %v3011, %v3012
      %v3014 = vsel %vm558, %v2944, 0.0
      %v3015 = vadd.f32 %v3013, %v3014
      %v3016 = vsel %vm558, %v2945, 0.0
      %v3017 = vadd.f32 %v3015, %v3016
      %v3018 = vsel %vm558, %v2946, 0.0
      %v3019 = vadd.f32 %v3017, %v3018
      %v3020 = vsel %vm558, %v2947, 0.0
      %v3021 = vadd.f32 %v3019, %v3020
      %v3022 = vsel %vm558, %v2948, 0.0
      %v3023 = vadd.f32 %v3021, %v3022
      %v3024 = vsel %vm558, %v2949, 0.0
      %v3025 = vadd.f32 %v3023, %v3024
      %v3026 = vsel %vm558, %v2950, 0.0
      %v3027 = vadd.f32 %v3025, %v3026
      %v3028 = vsel %vm558, %v2951, 0.0
      %v3029 = vadd.f32 %v3027, %v3028
      %v3030 = vsel %vm558, %v2952, 0.0
      %v3031 = vadd.f32 %v3029, %v3030
      %v3032 = vsel %vm558, %v2953, 0.0
      %v3033 = vadd.f32 %v3031, %v3032
      %v3034 = vsel %vm558, %v2954, 0.0
      %v3035 = vadd.f32 %v3033, %v3034
      %v3036 = vsel %vm558, %v2955, 0.0
      %v3037 = vadd.f32 %v3035, %v3036
      %v3038 = vsel %vm558, %v2956, 0.0
      %v3039 = vadd.f32 %v3037, %v3038
      %v3040 = vsel %vm558, %v2957, 0.0
      %v3041 = vadd.f32 %v3039, %v3040
      %v3042 = vsel %vm558, %v2958, 0.0
      %v3043 = vadd.f32 %v3041, %v3042
      %v3044 = vsel %vm558, %v2959, 0.0
      %v3045 = vadd.f32 %v3043, %v3044
      %v3046 = vsel %vm558, %v2960, 0.0
      %v3047 = vadd.f32 %v3045, %v3046
      %v3048 = vsel %vm558, %v2961, 0.0
      %v3049 = vadd.f32 %v3047, %v3048
      %v3050 = vsel %vm558, %v2962, 0.0
      %v3051 = vadd.f32 %v3049, %v3050
      %v3052 = vsel %vm558, %v2963, 0.0
      %v3053 = vadd.f32 %v3051, %v3052
      %v3054 = vsel %vm558, %v2964, 0.0
      %v3055 = vadd.f32 %v3053, %v3054
      %v3056 = vsel %vm558, %v2965, 0.0
      %v3057 = vadd.f32 %v3055, %v3056
      %v3058 = vsel %vm558, %v2966, 0.0
      %v3059 = vadd.f32 %v3057, %v3058
      %v3060 = vsel %vm558, %v2967, 0.0
      %v3061 = vadd.f32 %v3059, %v3060
      %v3062 = vsel %vm558, %v2968, 0.0
      %v3063 = vadd.f32 %v3061, %v3062
      %v3064 = vrot.slane %v3063, 4
      %v3065 = vadd.f32 %v3063, %v3064
      %v3066 = vrot.slane %v3065, 2
      %v3067 = vadd.f32 %v3065, %v3066
      %v3068 = vrot.slane %v3067, 1
      %v3069 = vadd.f32 %v3067, %v3068
      %vm3070 = vcmask 57344
      %3071 = vst.msk [vmem:[%s353] sm:$0x1] %vm3070, %v3069
      %v3072 = vmul.f32 %v2937, %v2937
      %v3073 = vmul.f32 %v2938, %v2938
      %v3074 = vmul.f32 %v2939, %v2939
      %v3075 = vmul.f32 %v2940, %v2940
      %v3076 = vmul.f32 %v2941, %v2941
      %v3077 = vmul.f32 %v2942, %v2942
      %v3078 = vmul.f32 %v2943, %v2943
      %v3079 = vmul.f32 %v2944, %v2944
      %v3080 = vmul.f32 %v2945, %v2945
      %v3081 = vmul.f32 %v2946, %v2946
      %v3082 = vmul.f32 %v2947, %v2947
      %v3083 = vmul.f32 %v2948, %v2948
      %v3084 = vmul.f32 %v2949, %v2949
      %v3085 = vmul.f32 %v2950, %v2950
      %v3086 = vmul.f32 %v2951, %v2951
      %v3087 = vmul.f32 %v2952, %v2952
      %v3088 = vmul.f32 %v2953, %v2953
      %v3089 = vmul.f32 %v2954, %v2954
      %v3090 = vmul.f32 %v2955, %v2955
      %v3091 = vmul.f32 %v2956, %v2956
      %v3092 = vmul.f32 %v2957, %v2957
      %v3093 = vmul.f32 %v2958, %v2958
      %v3094 = vmul.f32 %v2959, %v2959
      %v3095 = vmul.f32 %v2960, %v2960
      %v3096 = vmul.f32 %v2961, %v2961
      %v3097 = vmul.f32 %v2962, %v2962
      %v3098 = vmul.f32 %v2963, %v2963
      %v3099 = vmul.f32 %v2964, %v2964
      %v3100 = vmul.f32 %v2965, %v2965
      %v3101 = vmul.f32 %v2966, %v2966
      %v3102 = vmul.f32 %v2967, %v2967
      %v3103 = vmul.f32 %v2968, %v2968
      %v3104 = vsel %vm558, %v3072, 0.0
      %v3105 = vsel %vm558, %v3073, 0.0
      %v3106 = vadd.f32 %v3104, %v3105
      %v3107 = vsel %vm558, %v3074, 0.0
      %v3108 = vadd.f32 %v3106, %v3107
      %v3109 = vsel %vm558, %v3075, 0.0
      %v3110 = vadd.f32 %v3108, %v3109
      %v3111 = vsel %vm558, %v3076, 0.0
      %v3112 = vadd.f32 %v3110, %v3111
      %v3113 = vsel %vm558, %v3077, 0.0
      %v3114 = vadd.f32 %v3112, %v3113
      %v3115 = vsel %vm558, %v3078, 0.0
      %v3116 = vadd.f32 %v3114, %v3115
      %v3117 = vsel %vm558, %v3079, 0.0
      %v3118 = vadd.f32 %v3116, %v3117
      %v3119 = vsel %vm558, %v3080, 0.0
      %v3120 = vadd.f32 %v3118, %v3119
      %v3121 = vsel %vm558, %v3081, 0.0
      %v3122 = vadd.f32 %v3120, %v3121
      %v3123 = vsel %vm558, %v3082, 0.0
      %v3124 = vadd.f32 %v3122, %v3123
      %v3125 = vsel %vm558, %v3083, 0.0
      %v3126 = vadd.f32 %v3124, %v3125
      %v3127 = vsel %vm558, %v3084, 0.0
      %v3128 = vadd.f32 %v3126, %v3127
      %v3129 = vsel %vm558, %v3085, 0.0
      %v3130 = vadd.f32 %v3128, %v3129
      %v3131 = vsel %vm558, %v3086, 0.0
      %v3132 = vadd.f32 %v3130, %v3131
      %v3133 = vsel %vm558, %v3087, 0.0
      %v3134 = vadd.f32 %v3132, %v3133
      %v3135 = vsel %vm558, %v3088, 0.0
      %v3136 = vadd.f32 %v3134, %v3135
      %v3137 = vsel %vm558, %v3089, 0.0
      %v3138 = vadd.f32 %v3136, %v3137
      %v3139 = vsel %vm558, %v3090, 0.0
      %v3140 = vadd.f32 %v3138, %v3139
      %v3141 = vsel %vm558, %v3091, 0.0
      %v3142 = vadd.f32 %v3140, %v3141
      %v3143 = vsel %vm558, %v3092, 0.0
      %v3144 = vadd.f32 %v3142, %v3143
      %v3145 = vsel %vm558, %v3093, 0.0
      %v3146 = vadd.f32 %v3144, %v3145
      %v3147 = vsel %vm558, %v3094, 0.0
      %v3148 = vadd.f32 %v3146, %v3147
      %v3149 = vsel %vm558, %v3095, 0.0
      %v3150 = vadd.f32 %v3148, %v3149
      %v3151 = vsel %vm558, %v3096, 0.0
      %v3152 = vadd.f32 %v3150, %v3151
      %v3153 = vsel %vm558, %v3097, 0.0
      %v3154 = vadd.f32 %v3152, %v3153
      %v3155 = vsel %vm558, %v3098, 0.0
      %v3156 = vadd.f32 %v3154, %v3155
      %v3157 = vsel %vm558, %v3099, 0.0
      %v3158 = vadd.f32 %v3156, %v3157
      %v3159 = vsel %vm558, %v3100, 0.0
      %v3160 = vadd.f32 %v3158, %v3159
      %v3161 = vsel %vm558, %v3101, 0.0
      %v3162 = vadd.f32 %v3160, %v3161
      %v3163 = vsel %vm558, %v3102, 0.0
      %v3164 = vadd.f32 %v3162, %v3163
      %v3165 = vsel %vm558, %v3103, 0.0
      %v3166 = vadd.f32 %v3164, %v3165
      %v3167 = vrot.slane %v3166, 4
      %v3168 = vadd.f32 %v3166, %v3167
      %v3169 = vrot.slane %v3168, 2
      %v3170 = vadd.f32 %v3168, %v3169
      %v3171 = vrot.slane %v3170, 1
      %v3172 = vadd.f32 %v3170, %v3171
      %3173 = vst.msk [vmem:[%s356] sm:$0x1] %vm3070, %v3172
      %s3174 = smul.u32 32, %s19
      %p3175 = scmp.lt.s32.totalorder %s3174, 63
      %s3176 = scalar_select %p3175, %s3174, 63
      %s3177 = smul.addr %s3176, 8
      %s3178 = scalar_lea.vmem %s5, %s3177
      %p3179 = scmp.lt.s32.totalorder %s19, 1
      %s3180 = scalar_select %p3179, %s19, 1
      %s3181 = scalar_lea.vmem %s6, %s3180
      %p3182 = scmp.lt.s32.totalorder %s19, 1
      %s3183 = scalar_select %p3182, %s19, 1
      %s3184 = scalar_lea.vmem %s7, %s3183
      // Predicated region
      $region41: #{bottleneck_gelu.8} parent=39 // pred_check
        %p3185 = pneg %p162
      $region42: #{bottleneck_gelu.8} parent=39 // pred_check_branch
        %3187 = sbr.rel (%p3185) target = $region44
      $region43: #{bottleneck_gelu.8} parent=39 // pred_region
        %s3188 = smul.u32 32, %s19
      $region44: #{bottleneck_gelu.8} parent=39 // pred_fallthru
        _
      // Predicated region
      $region45: #{bottleneck_gelu.8} parent=39 // pred_check
        %p3189 = pneg %p188
      $region46: #{bottleneck_gelu.8} parent=39 // pred_check_branch
        %3191 = sbr.rel (%p3189) target = $region48
      $region47: #{bottleneck_gelu.8} parent=39 // pred_region
        _
      $region48: #{bottleneck_gelu.8} parent=39 // pred_fallthru
        _
      // Predicated region
      $region49: #{bottleneck_gelu.8} parent=39 // pred_check
        %p3192 = pneg %p214
      $region50: #{bottleneck_gelu.8} parent=39 // pred_check_branch
        %3194 = sbr.rel (%p3192) target = $region52
      $region51: #{bottleneck_gelu.8} parent=39 // pred_region
        _
      $region52: #{bottleneck_gelu.8} parent=39 // pred_fallthru
        _
    $region40: #{bottleneck_gelu.8} parent=5 // pred_fallthru
      _
    %p3195 = scmp.le.s32.totalorder 2, %s14
    // Predicated region
    $region53: #{bottleneck_gelu.8} parent=5 // pred_check
      %p3196 = pneg %p3195
    $region54: #{bottleneck_gelu.8} parent=5 // pred_check_branch
      %3198 = sbr.rel (%p3196) target = $region56
    $region55: #{bottleneck_gelu.8} parent=5 // pred_region
      %s3199 = ssub.s32 %s14, 2
      // Predicated region
      $region57: #{bottleneck_gelu.8} parent=55 // pred_check
        %p3200 = pneg %p168
      $region58: #{bottleneck_gelu.8} parent=55 // pred_check_branch
        %3202 = sbr.rel (%p3200) target = $region60
      $region59: #{bottleneck_gelu.8} parent=55 // pred_region
        %s3203 = smul.u32 32, %s20
        %p3204 = scmp.lt.s32.totalorder %s3203, 63
        %s3205 = scalar_select %p3204, %s3203, 63
        %s3206 = smul.addr %s3205, 8
        %s3207 = scalar_lea.vmem %s5, %s3206
      $region60: #{bottleneck_gelu.8} parent=55 // pred_fallthru
        _
      // Predicated region
      $region61: #{bottleneck_gelu.8} parent=55 // pred_check
        %p3208 = pneg %p194
      $region62: #{bottleneck_gelu.8} parent=55 // pred_check_branch
        %3210 = sbr.rel (%p3208) target = $region64
      $region63: #{bottleneck_gelu.8} parent=55 // pred_region
        %p3211 = scmp.lt.s32.totalorder %s20, 1
        %s3212 = scalar_select %p3211, %s20, 1
        %s3213 = scalar_lea.vmem %s6, %s3212
      $region64: #{bottleneck_gelu.8} parent=55 // pred_fallthru
        _
      // Predicated region
      $region65: #{bottleneck_gelu.8} parent=55 // pred_check
        %p3214 = pneg %p220
      $region66: #{bottleneck_gelu.8} parent=55 // pred_check_branch
        %3216 = sbr.rel (%p3214) target = $region68
      $region67: #{bottleneck_gelu.8} parent=55 // pred_region
        %p3217 = scmp.lt.s32.totalorder %s20, 1
        %s3218 = scalar_select %p3217, %s20, 1
        %s3219 = scalar_lea.vmem %s7, %s3218
      $region68: #{bottleneck_gelu.8} parent=55 // pred_fallthru
        _
    $region56: #{bottleneck_gelu.8} parent=5 // pred_fallthru
      _
  $region6: #{bottleneck_gelu.8} parent=0 // loop_footer
    %s18 = sadd.s32 1, %s14
  $region7: #{bottleneck_gelu.8} parent=0 // loop_footer_branch
    %13 = sbr.rel target = $region3
  $region8: #{bottleneck_gelu.8} parent=0 // loop_exit
    _

// kernel: bottleneck_gelu.10
$region0: #{bottleneck_gelu.10}
  #allocation0 [shape = 'u32[]', space=smem, size = 0x4, offset = 0x4, fixed_abs, tag = 'smem constant byte address 0x4 - core index']
  #allocation1 [shape = 'u32[144,128]{1,0:T(1,128)}', space=vmem, size = 0x12000, scoped, tag = 'internal scratch']
  %s0 = inlined_call_operand.vmem [shape: f32[512,4], index: 0, kind: input, shape index: {}]
  %s1 = inlined_call_operand.vmem [shape: bf16[4,32], index: 1, kind: input, shape index: {}]
  %s2 = inlined_call_operand.vmem [shape: f32[512,32], index: 2, kind: output, shape index: {0}]
  %s3 = inlined_call_operand.vmem [shape: f32[2,1,32], index: 3, kind: output, shape index: {1}]
  %s4 = inlined_call_operand.vmem [shape: f32[2,1,32], index: 4, kind: output, shape index: {2}]
  %5 = xla_tuple %s2, %s3, %s4
  %s6 = sld [smem:[#allocation0]]
  $region57: #{bottleneck_gelu.10} parent=0
    _
  %s8 = ssub.s32 1, %s6
  %s9 = scalar_select 0, %s8, %s6
  loop: start=0, step=1, limit=4
  $region2: #{bottleneck_gelu.10} parent=0 // loop_pre_header
    _
  $region3: #{bottleneck_gelu.10} parent=0 // loop_header
    %s11 = sphi 0, %s15
    %p12 = scmp.ge.s32.totalorder %s11, 4
    %s21 = sphi 0, %s23
    %s24 = sphi 0, %s21
    %s25 = sphi 0, %s24
    %s41 = sphi 0, %s25
    %s45 = sphi 0, %s45
    %s47 = sphi 0, %s45
    %s48 = sphi 0, %s47
    %s62 = sphi 0, %s48
    %s68 = sphi 0, %s70
    %s71 = sphi 0, %s68
    %s72 = sphi 0, %s71
    %s88 = sphi 0, %s72
    %s94 = sphi 0, %s96
    %s97 = sphi 0, %s94
    %s98 = sphi 0, %s97
    %s114 = sphi 0, %s98
    %s120 = sphi 0, %s122
    %s123 = sphi 0, %s120
    %s124 = sphi 0, %s123
    %s140 = sphi 0, %s124
  $region4: #{bottleneck_gelu.10} parent=0 // loop_header_branch
    %14 = sbr.rel (%p12) target = $region8
  $region5: #{bottleneck_gelu.10} parent=0 // loop_body
    %s16 = ssub.s32 %s11, 1
    %s17 = ssub.s32 %s11, 2
    %s18 = sadd.s32 %s11, 1
    %s19 = ssub.s32 %s11, %s18
    %p20 = scmp.eq.s32.totalorder %s19, 0
    %s22 = sadd.s32 %s21, 1
    %s23 = scalar_select %p20, %s21, %s22
    %p26 = pneg %p20
    %p27 = scmp.eq.s32.totalorder %s11, 1
    %p28 = por %p26, %p27
    %p29 = scmp.ne.s32.totalorder %s21, %s24
    %p30 = scmp.eq.s32.totalorder %s11, 0
    %p31 = por %p29, %p30
    %p32 = scmp.ne.s32.totalorder %s21, %s24
    %p33 = scmp.eq.s32.totalorder %s16, 1
    %p34 = por %p32, %p33
    %p35 = scmp.ne.s32.totalorder %s24, %s25
    %p36 = scmp.eq.s32.totalorder %s16, 0
    %p37 = por %p35, %p36
    %p38 = scmp.ne.s32.totalorder %s24, %s25
    %p39 = scmp.eq.s32.totalorder %s17, 1
    %p40 = por %p38, %p39
    %p42 = scmp.ne.s32.totalorder %s25, %s41
    %p43 = scmp.eq.s32.totalorder %s17, 0
    %p44 = por %p42, %p43
    %s46 = sadd.s32 %s45, 1
    %p49 = scmp.eq.s32.totalorder %s11, 1
    %p50 = scmp.ne.s32.totalorder %s45, %s47
    %p51 = scmp.eq.s32.totalorder %s11, 0
    %p52 = por %p50, %p51
    %p53 = scmp.ne.s32.totalorder %s45, %s47
    %p54 = scmp.eq.s32.totalorder %s16, 1
    %p55 = por %p53, %p54
    %p56 = scmp.ne.s32.totalorder %s47, %s48
    %p57 = scmp.eq.s32.totalorder %s16, 0
    %p58 = por %p56, %p57
    %p59 = scmp.ne.s32.totalorder %s47, %s48
    %p60 = scmp.eq.s32.totalorder %s17, 1
    %p61 = por %p59, %p60
    %p63 = scmp.ne.s32.totalorder %s48, %s62
    %p64 = scmp.eq.s32.totalorder %s17, 0
    %p65 = por %p63, %p64
    %s66 = ssub.s32 %s11, %s18
    %p67 = scmp.eq.s32.totalorder %s66, 0
    %s69 = sadd.s32 %s68, 1
    %s70 = scalar_select %p67, %s68, %s69
    %p73 = pneg %p67
    %p74 = scmp.eq.s32.totalorder %s11, 1
    %p75 = por %p73, %p74
    %p76 = scmp.ne.s32.totalorder %s68, %s71
    %p77 = scmp.eq.s32.totalorder %s11, 0
    %p78 = por %p76, %p77
    %p79 = scmp.ne.s32.totalorder %s68, %s71
    %p80 = scmp.eq.s32.totalorder %s16, 1
    %p81 = por %p79, %p80
    %p82 = scmp.ne.s32.totalorder %s71, %s72
    %p83 = scmp.eq.s32.totalorder %s16, 0
    %p84 = por %p82, %p83
    %p85 = scmp.ne.s32.totalorder %s71, %s72
    %p86 = scmp.eq.s32.totalorder %s17, 1
    %p87 = por %p85, %p86
    %p89 = scmp.ne.s32.totalorder %s72, %s88
    %p90 = scmp.eq.s32.totalorder %s17, 0
    %p91 = por %p89, %p90
    %s92 = ssub.s32 %s11, %s18
    %p93 = scmp.eq.s32.totalorder %s92, 0
    %s95 = sadd.s32 %s94, 1
    %s96 = scalar_select %p93, %s94, %s95
    %p99 = pneg %p93
    %p100 = scmp.eq.s32.totalorder %s11, 1
    %p101 = por %p99, %p100
    %p102 = scmp.ne.s32.totalorder %s94, %s97
    %p103 = scmp.eq.s32.totalorder %s11, 0
    %p104 = por %p102, %p103
    %p105 = scmp.ne.s32.totalorder %s94, %s97
    %p106 = scmp.eq.s32.totalorder %s16, 1
    %p107 = por %p105, %p106
    %p108 = scmp.ne.s32.totalorder %s97, %s98
    %p109 = scmp.eq.s32.totalorder %s16, 0
    %p110 = por %p108, %p109
    %p111 = scmp.ne.s32.totalorder %s97, %s98
    %p112 = scmp.eq.s32.totalorder %s17, 1
    %p113 = por %p111, %p112
    %p115 = scmp.ne.s32.totalorder %s98, %s114
    %p116 = scmp.eq.s32.totalorder %s17, 0
    %p117 = por %p115, %p116
    %s118 = ssub.s32 %s11, %s18
    %p119 = scmp.eq.s32.totalorder %s118, 0
    %s121 = sadd.s32 %s120, 1
    %s122 = scalar_select %p119, %s120, %s121
    %p125 = pneg %p119
    %p126 = scmp.eq.s32.totalorder %s11, 1
    %p127 = por %p125, %p126
    %p128 = scmp.ne.s32.totalorder %s120, %s123
    %p129 = scmp.eq.s32.totalorder %s11, 0
    %p130 = por %p128, %p129
    %p131 = scmp.ne.s32.totalorder %s120, %s123
    %p132 = scmp.eq.s32.totalorder %s16, 1
    %p133 = por %p131, %p132
    %p134 = scmp.ne.s32.totalorder %s123, %s124
    %p135 = scmp.eq.s32.totalorder %s16, 0
    %p136 = por %p134, %p135
    %p137 = scmp.ne.s32.totalorder %s123, %s124
    %p138 = scmp.eq.s32.totalorder %s17, 1
    %p139 = por %p137, %p138
    %p141 = scmp.ne.s32.totalorder %s124, %s140
    %p142 = scmp.eq.s32.totalorder %s17, 0
    %p143 = por %p141, %p142
    %p144 = scmp.le.s32.totalorder 1, %s11
    %p145 = scmp.lt.s32.totalorder %s11, 3
    %p146 = pnand %p144, %p145
    %p147 = pneg %p146
    // Predicated region
    $region9: #{bottleneck_gelu.10} parent=5 // pred_check
      _
    $region10: #{bottleneck_gelu.10} parent=5 // pred_check_branch
      %149 = sbr.rel (%p146) target = $region12
    $region11: #{bottleneck_gelu.10} parent=5 // pred_region
      %s150 = ssub.s32 %s11, 1
      // Predicated region
      $region13: #{bottleneck_gelu.10} parent=11 // pred_check
        %p151 = pneg %p58
      $region14: #{bottleneck_gelu.10} parent=11 // pred_check_branch
        %153 = sbr.rel (%p151) target = $region16
      $region15: #{bottleneck_gelu.10} parent=11 // pred_region
        _
      $region16: #{bottleneck_gelu.10} parent=11 // pred_fallthru
        _
    $region12: #{bottleneck_gelu.10} parent=5 // pred_fallthru
      _
    %p154 = scmp.lt.s32.totalorder %s11, 2
    // Predicated region
    $region17: #{bottleneck_gelu.10} parent=5 // pred_check
      %p155 = pneg %p154
    $region18: #{bottleneck_gelu.10} parent=5 // pred_check_branch
      %157 = sbr.rel (%p155) target = $region20
    $region19: #{bottleneck_gelu.10} parent=5 // pred_region
      // Predicated region
      $region21: #{bottleneck_gelu.10} parent=19 // pred_check
        %p158 = pneg %p31
      $region22: #{bottleneck_gelu.10} parent=19 // pred_check_branch
        %160 = sbr.rel (%p158) target = $region24
      $region23: #{bottleneck_gelu.10} parent=19 // pred_region
        %s161 = smul.u32 32, %s11
        %p162 = scmp.lt.s32.totalorder %s161, 63
        %s163 = scalar_select %p162, %s161, 63
        %s164 = smul.addr %s163, 8
        %s165 = scalar_lea.vmem %s0, %s164
        %s166 = smul.u32 32, %s11
      $region24: #{bottleneck_gelu.10} parent=19 // pred_fallthru
        _
    $region20: #{bottleneck_gelu.10} parent=5 // pred_fallthru
      _
    %p167 = scmp.le.s32.totalorder 1, %s11
    %p168 = scmp.lt.s32.totalorder %s11, 3
    %p169 = pnand %p167, %p168
    %p170 = pneg %p169
    // Predicated region
    $region25: #{bottleneck_gelu.10} parent=5 // pred_check
      _
    $region26: #{bottleneck_gelu.10} parent=5 // pred_check_branch
      %172 = sbr.rel (%p169) target = $region28
    $region27: #{bottleneck_gelu.10} parent=5 // pred_region
      %s173 = ssub.s32 %s11, 1
      %s174 = smul.u32 32, %s16
      %p175 = scmp.lt.s32.totalorder %s174, 63
      %s176 = scalar_select %p175, %s174, 63
      %s177 = smul.addr %s176, 8
      %s178 = scalar_lea.vmem %s0, %s177
      %p179 = pneg %p37
      %p180 = pneg %p34
      %p181 = pneg %p58
      %p182 = pneg %p55
      %p183 = pneg %p84
      %p184 = pneg %p81
      %s185 = smul.u32 32, %s16
      %p186 = scmp.lt.s32.totalorder %s185, 63
      %s187 = scalar_select %p186, %s185, 63
      %s188 = smul.addr %s187, 8
      %s189 = scalar_lea.vmem %s2, %s188
      %p190 = pneg %p110
      %p191 = pneg %p107
      %p192 = scmp.lt.s32.totalorder %s16, 1
      %s193 = scalar_select %p192, %s16, 1
      %s194 = scalar_lea.vmem %s3, %s193
      %p195 = pneg %p136
      %p196 = pneg %p133
      %p197 = scmp.lt.s32.totalorder %s16, 1
      %s198 = scalar_select %p197, %s16, 1
      %s199 = scalar_lea.vmem %s4, %s198
      %s200 = smul.u32 32, %s16
      %p201 = scmp.lt.s32.totalorder %s200, 63
      %s202 = scalar_select %p201, %s200, 63
      %s203 = smul.addr %s202, 8
      %s204 = scalar_lea.vmem %s0, %s203
      %s205 = smul.u32 32, %s16
      %s206 = smul.u32 32, %s16
      %p207 = scmp.lt.s32.totalorder %s206, 63
      %s208 = scalar_select %p207, %s206, 63
      %s209 = smul.addr %s208, 8
      %s210 = scalar_lea.vmem %s2, %s209
      %s211 = smul.u32 32, %s16
      %p212 = scmp.lt.s32.totalorder %s16, 1
      %s213 = scalar_select %p212, %s16, 1
      %s214 = scalar_lea.vmem %s3, %s213
      %p215 = scmp.lt.s32.totalorder %s16, 1
      %s216 = scalar_select %p215, %s16, 1
      %s217 = scalar_lea.vmem %s4, %s216
      %v219 = vld [vmem:[%s204] sm:$0xff]
      %v220 = vld [vmem:[%s204 + $0x8] sm:$0xff]
      %v221 = vld [vmem:[%s204 + $0x10] sm:$0xff]
      %v222 = vld [vmem:[%s204 + $0x18] sm:$0xff]
      %v223 = vld [vmem:[%s204 + $0x20] sm:$0xff]
      %v224 = vld [vmem:[%s204 + $0x28] sm:$0xff]
      %v225 = vld [vmem:[%s204 + $0x30] sm:$0xff]
      %v226 = vld [vmem:[%s204 + $0x38] sm:$0xff]
      %v227 = vld [vmem:[%s204 + $0x40] sm:$0xff]
      %v228 = vld [vmem:[%s204 + $0x48] sm:$0xff]
      %v229 = vld [vmem:[%s204 + $0x50] sm:$0xff]
      %v230 = vld [vmem:[%s204 + $0x58] sm:$0xff]
      %v231 = vld [vmem:[%s204 + $0x60] sm:$0xff]
      %v232 = vld [vmem:[%s204 + $0x68] sm:$0xff]
      %v233 = vld [vmem:[%s204 + $0x70] sm:$0xff]
      %v234 = vld [vmem:[%s204 + $0x78] sm:$0xff]
      %v235 = vld [vmem:[%s204 + $0x80] sm:$0xff]
      %v236 = vld [vmem:[%s204 + $0x88] sm:$0xff]
      %v237 = vld [vmem:[%s204 + $0x90] sm:$0xff]
      %v238 = vld [vmem:[%s204 + $0x98] sm:$0xff]
      %v239 = vld [vmem:[%s204 + $0xa0] sm:$0xff]
      %v240 = vld [vmem:[%s204 + $0xa8] sm:$0xff]
      %v241 = vld [vmem:[%s204 + $0xb0] sm:$0xff]
      %v242 = vld [vmem:[%s204 + $0xb8] sm:$0xff]
      %v243 = vld [vmem:[%s204 + $0xc0] sm:$0xff]
      %v244 = vld [vmem:[%s204 + $0xc8] sm:$0xff]
      %v245 = vld [vmem:[%s204 + $0xd0] sm:$0xff]
      %v246 = vld [vmem:[%s204 + $0xd8] sm:$0xff]
      %v247 = vld [vmem:[%s204 + $0xe0] sm:$0xff]
      %v248 = vld [vmem:[%s204 + $0xe8] sm:$0xff]
      %v249 = vld [vmem:[%s204 + $0xf0] sm:$0xff]
      %v250 = vld [vmem:[%s204 + $0xf8] sm:$0xff]
      %v251 = vpack.c.bf16 %v220, %v219
      %v252 = vpack.c.bf16 %v222, %v221
      %v253 = vpack.c.bf16 %v224, %v223
      %v254 = vpack.c.bf16 %v226, %v225
      %v255 = vpack.c.bf16 %v228, %v227
      %v256 = vpack.c.bf16 %v230, %v229
      %v257 = vpack.c.bf16 %v232, %v231
      %v258 = vpack.c.bf16 %v234, %v233
      %v259 = vpack.c.bf16 %v236, %v235
      %v260 = vpack.c.bf16 %v238, %v237
      %v261 = vpack.c.bf16 %v240, %v239
      %v262 = vpack.c.bf16 %v242, %v241
      %v263 = vpack.c.bf16 %v244, %v243
      %v264 = vpack.c.bf16 %v246, %v245
      %v265 = vpack.c.bf16 %v248, %v247
      %v266 = vpack.c.bf16 %v250, %v249
      %v267 = vld [vmem:[%s1] sm:$0x3]
      %vm268 = vcmask 31744
      %v270 = vsel %vm268, %v251, 0
      %v273 = vsel %vm268, %v252, 0
      %v276 = vsel %vm268, %v253, 0
      %v279 = vsel %vm268, %v254, 0
      %v282 = vsel %vm268, %v255, 0
      %v285 = vsel %vm268, %v256, 0
      %v288 = vsel %vm268, %v257, 0
      %v291 = vsel %vm268, %v258, 0
      %v294 = vsel %vm268, %v259, 0
      %v297 = vsel %vm268, %v260, 0
      %v300 = vsel %vm268, %v261, 0
      %v303 = vsel %vm268, %v262, 0
      %v306 = vsel %vm268, %v263, 0
      %v309 = vsel %vm268, %v264, 0
      %v312 = vsel %vm268, %v265, 0
      %v315 = vsel %vm268, %v266, 0
      %vm317 = vcmask 1041408
      %v319 = vsel %vm317, %v267, 0
      %321 = vmatprep.subr.bf16.mxu0 0
      %322 = vmatpush1.bf16.msra.mxu0 %v319
      %323 = vmatprep.subr.bf16.mxu0 0
      %324 = vmatpush1.bf16.msra.mxu0 0
      %325 = vmatprep.subr.bf16.mxu0 0
      %326 = vmatpush1.bf16.msra.mxu0 0
      %327 = vmatprep.subr.bf16.mxu0 0
      %328 = vmatpush1.bf16.msra.mxu0 0
      %329 = vmatprep.subr.bf16.mxu0 0
      %330 = vmatpush1.bf16.msra.mxu0 0
      %331 = vmatprep.subr.bf16.mxu0 0
      %332 = vmatpush1.bf16.msra.mxu0 0
      %333 = vmatprep.subr.bf16.mxu0 0
      %334 = vmatpush1.bf16.msra.mxu0 0
      %335 = vmatprep.subr.bf16.mxu0 0
      %336 = vmatpush1.bf16.msra.mxu0 0
      %337 = vmatprep.subr.bf16.mxu0 0
      %338 = vmatpush1.bf16.msra.mxu0 0
      %339 = vmatprep.subr.bf16.mxu0 0
      %340 = vmatpush1.bf16.msra.mxu0 0
      %341 = vmatprep.subr.bf16.mxu0 0
      %342 = vmatpush1.bf16.msra.mxu0 0
      %343 = vmatprep.subr.bf16.mxu0 0
      %344 = vmatpush1.bf16.msra.mxu0 0
      %345 = vmatprep.subr.bf16.mxu0 0
      %346 = vmatpush1.bf16.msra.mxu0 0
      %347 = vmatprep.subr.bf16.mxu0 0
      %348 = vmatpush1.bf16.msra.mxu0 0
      %349 = vmatprep.subr.bf16.mxu0 0
      %350 = vmatpush1.bf16.msra.mxu0 0
      %351 = vmatprep.subr.bf16.mxu0 0
      %352 = vmatpush1.bf16.msra.mxu0 0
      %353 = vmatprep.mubr.bf16.mxu0 0
      %354 = vmatmul.mubr.bf16.gmra.mrb[0].mxu0 %v270
      %v355 = vpop.f32.mrb[0].mxu0
      %v356 = vadd.f32 0.0, %v355
      %v357 = vpop.f32.mrb[0].mxu0
      %v358 = vpop.f32.mrb[0].mxu0
      %v359 = vadd.f32 0.0, %v358
      %v360 = vpop.f32.mrb[0].mxu0
      %361 = vmatprep.mubr.bf16.mxu0 0
      %362 = vmatmul.mubr.bf16.gmra.mrb[0].mxu0 %v273
      %v363 = vpop.f32.mrb[0].mxu0
      %v364 = vadd.f32 0.0, %v363
      %v365 = vpop.f32.mrb[0].mxu0
      %v366 = vpop.f32.mrb[0].mxu0
      %v367 = vadd.f32 0.0, %v366
      %v368 = vpop.f32.mrb[0].mxu0
      %369 = vmatprep.mubr.bf16.mxu0 0
      %370 = vmatmul.mubr.bf16.gmra.mrb[0].mxu0 %v276
      %v371 = vpop.f32.mrb[0].mxu0
      %v372 = vadd.f32 0.0, %v371
      %v373 = vpop.f32.mrb[0].mxu0
      %v374 = vpop.f32.mrb[0].mxu0
      %v375 = vadd.f32 0.0, %v374
      %v376 = vpop.f32.mrb[0].mxu0
      %377 = vmatprep.mubr.bf16.mxu0 0
      %378 = vmatmul.mubr.bf16.gmra.mrb[0].mxu0 %v279
      %v379 = vpop.f32.mrb[0].mxu0
      %v380 = vadd.f32 0.0, %v379
      %v381 = vpop.f32.mrb[0].mxu0
      %v382 = vpop.f32.mrb[0].mxu0
      %v383 = vadd.f32 0.0, %v382
      %v384 = vpop.f32.mrb[0].mxu0
      %385 = vmatprep.mubr.bf16.mxu0 0
      %386 = vmatmul.mubr.bf16.gmra.mrb[0].mxu0 %v282
      %v387 = vpop.f32.mrb[0].mxu0
      %v388 = vadd.f32 0.0, %v387
      %v389 = vpop.f32.mrb[0].mxu0
      %v390 = vpop.f32.mrb[0].mxu0
      %v391 = vadd.f32 0.0, %v390
      %v392 = vpop.f32.mrb[0].mxu0
      %393 = vmatprep.mubr.bf16.mxu0 0
      %394 = vmatmul.mubr.bf16.gmra.mrb[0].mxu0 %v285
      %v395 = vpop.f32.mrb[0].mxu0
      %v396 = vadd.f32 0.0, %v395
      %v397 = vpop.f32.mrb[0].mxu0
      %v398 = vpop.f32.mrb[0].mxu0
      %v399 = vadd.f32 0.0, %v398
      %v400 = vpop.f32.mrb[0].mxu0
      %401 = vmatprep.mubr.bf16.mxu0 0
      %402 = vmatmul.mubr.bf16.gmra.mrb[0].mxu0 %v288
      %v403 = vpop.f32.mrb[0].mxu0
      %v404 = vadd.f32 0.0, %v403
      %v405 = vpop.f32.mrb[0].mxu0
      %v406 = vpop.f32.mrb[0].mxu0
      %v407 = vadd.f32 0.0, %v406
      %v408 = vpop.f32.mrb[0].mxu0
      %409 = vmatprep.mubr.bf16.mxu0 0
      %410 = vmatmul.mubr.bf16.gmra.mrb[0].mxu0 %v291
      %v411 = vpop.f32.mrb[0].mxu0
      %v412 = vadd.f32 0.0, %v411
      %v413 = vpop.f32.mrb[0].mxu0
      %v414 = vpop.f32.mrb[0].mxu0
      %v415 = vadd.f32 0.0, %v414
      %v416 = vpop.f32.mrb[0].mxu0
      %417 = vmatprep.mubr.bf16.mxu0 0
      %418 = vmatmul.mubr.bf16.gmra.mrb[0].mxu0 %v294
      %v419 = vpop.f32.mrb[0].mxu0
      %v420 = vadd.f32 0.0, %v419
      %v421 = vpop.f32.mrb[0].mxu0
      %v422 = vpop.f32.mrb[0].mxu0
      %v423 = vadd.f32 0.0, %v422
      %v424 = vpop.f32.mrb[0].mxu0
      %425 = vmatprep.mubr.bf16.mxu0 0
      %426 = vmatmul.mubr.bf16.gmra.mrb[0].mxu0 %v297
      %v427 = vpop.f32.mrb[0].mxu0
      %v428 = vadd.f32 0.0, %v427
      %v429 = vpop.f32.mrb[0].mxu0
      %v430 = vpop.f32.mrb[0].mxu0
      %v431 = vadd.f32 0.0, %v430
      %v432 = vpop.f32.mrb[0].mxu0
      %433 = vmatprep.mubr.bf16.mxu0 0
      %434 = vmatmul.mubr.bf16.gmra.mrb[0].mxu0 %v300
      %v435 = vpop.f32.mrb[0].mxu0
      %v436 = vadd.f32 0.0, %v435
      %v437 = vpop.f32.mrb[0].mxu0
      %v438 = vpop.f32.mrb[0].mxu0
      %v439 = vadd.f32 0.0, %v438
      %v440 = vpop.f32.mrb[0].mxu0
      %441 = vmatprep.mubr.bf16.mxu0 0
      %442 = vmatmul.mubr.bf16.gmra.mrb[0].mxu0 %v303
      %v443 = vpop.f32.mrb[0].mxu0
      %v444 = vadd.f32 0.0, %v443
      %v445 = vpop.f32.mrb[0].mxu0
      %v446 = vpop.f32.mrb[0].mxu0
      %v447 = vadd.f32 0.0, %v446
      %v448 = vpop.f32.mrb[0].mxu0
      %449 = vmatprep.mubr.bf16.mxu0 0
      %450 = vmatmul.mubr.bf16.gmra.mrb[0].mxu0 %v306
      %v451 = vpop.f32.mrb[0].mxu0
      %v452 = vadd.f32 0.0, %v451
      %v453 = vpop.f32.mrb[0].mxu0
      %v454 = vpop.f32.mrb[0].mxu0
      %v455 = vadd.f32 0.0, %v454
      %v456 = vpop.f32.mrb[0].mxu0
      %457 = vmatprep.mubr.bf16.mxu0 0
      %458 = vmatmul.mubr.bf16.gmra.mrb[0].mxu0 %v309
      %v459 = vpop.f32.mrb[0].mxu0
      %v460 = vadd.f32 0.0, %v459
      %v461 = vpop.f32.mrb[0].mxu0
      %v462 = vpop.f32.mrb[0].mxu0
      %v463 = vadd.f32 0.0, %v462
      %v464 = vpop.f32.mrb[0].mxu0
      %465 = vmatprep.mubr.bf16.mxu0 0
      %466 = vmatmul.mubr.bf16.gmra.mrb[0].mxu0 %v312
      %v467 = vpop.f32.mrb[0].mxu0
      %v468 = vadd.f32 0.0, %v467
      %v469 = vpop.f32.mrb[0].mxu0
      %v470 = vpop.f32.mrb[0].mxu0
      %v471 = vadd.f32 0.0, %v470
      %v472 = vpop.f32.mrb[0].mxu0
      %473 = vmatprep.mubr.bf16.mxu0 0
      %474 = vmatmul.mubr.bf16.gmra.mrb[0].mxu0 %v315
      %v475 = vpop.f32.mrb[0].mxu0
      %v476 = vadd.f32 0.0, %v475
      %v477 = vpop.f32.mrb[0].mxu0
      %v478 = vpop.f32.mrb[0].mxu0
      %v479 = vadd.f32 0.0, %v478
      %v480 = vpop.f32.mrb[0].mxu0
      %481 = vdwg.mxu0
      %vm482 = vcmask 261120
      %483 = vst.msk [vmem:[%s210] sm:$0xff] %vm482, %v356
      %484 = vst.msk [vmem:[%s210 + $0x8] sm:$0xff] %vm482, %v359
      %485 = vst.msk [vmem:[%s210 + $0x10] sm:$0xff] %vm482, %v364
      %486 = vst.msk [vmem:[%s210 + $0x18] sm:$0xff] %vm482, %v367
      %487 = vst.msk [vmem:[%s210 + $0x20] sm:$0xff] %vm482, %v372
      %488 = vst.msk [vmem:[%s210 + $0x28] sm:$0xff] %vm482, %v375
      %489 = vst.msk [vmem:[%s210 + $0x30] sm:$0xff] %vm482, %v380
      %490 = vst.msk [vmem:[%s210 + $0x38] sm:$0xff] %vm482, %v383
      %491 = vst.msk [vmem:[%s210 + $0x40] sm:$0xff] %vm482, %v388
      %492 = vst.msk [vmem:[%s210 + $0x48] sm:$0xff] %vm482, %v391
      %493 = vst.msk [vmem:[%s210 + $0x50] sm:$0xff] %vm482, %v396
      %494 = vst.msk [vmem:[%s210 + $0x58] sm:$0xff] %vm482, %v399
      %495 = vst.msk [vmem:[%s210 + $0x60] sm:$0xff] %vm482, %v404
      %496 = vst.msk [vmem:[%s210 + $0x68] sm:$0xff] %vm482, %v407
      %497 = vst.msk [vmem:[%s210 + $0x70] sm:$0xff] %vm482, %v412
      %498 = vst.msk [vmem:[%s210 + $0x78] sm:$0xff] %vm482, %v415
      %499 = vst.msk [vmem:[%s210 + $0x80] sm:$0xff] %vm482, %v420
      %500 = vst.msk [vmem:[%s210 + $0x88] sm:$0xff] %vm482, %v423
      %501 = vst.msk [vmem:[%s210 + $0x90] sm:$0xff] %vm482, %v428
      %502 = vst.msk [vmem:[%s210 + $0x98] sm:$0xff] %vm482, %v431
      %503 = vst.msk [vmem:[%s210 + $0xa0] sm:$0xff] %vm482, %v436
      %504 = vst.msk [vmem:[%s210 + $0xa8] sm:$0xff] %vm482, %v439
      %505 = vst.msk [vmem:[%s210 + $0xb0] sm:$0xff] %vm482, %v444
      %506 = vst.msk [vmem:[%s210 + $0xb8] sm:$0xff] %vm482, %v447
      %507 = vst.msk [vmem:[%s210 + $0xc0] sm:$0xff] %vm482, %v452
      %508 = vst.msk [vmem:[%s210 + $0xc8] sm:$0xff] %vm482, %v455
      %509 = vst.msk [vmem:[%s210 + $0xd0] sm:$0xff] %vm482, %v460
      %510 = vst.msk [vmem:[%s210 + $0xd8] sm:$0xff] %vm482, %v463
      %511 = vst.msk [vmem:[%s210 + $0xe0] sm:$0xff] %vm482, %v468
      %512 = vst.msk [vmem:[%s210 + $0xe8] sm:$0xff] %vm482, %v471
      %513 = vst.msk [vmem:[%s210 + $0xf0] sm:$0xff] %vm482, %v476
      %514 = vst.msk [vmem:[%s210 + $0xf8] sm:$0xff] %vm482, %v479
      %v515 = vsel %vm482, %v356, 0.0
      %v516 = vsel %vm482, %v359, 0.0
      %v517 = vadd.f32 %v515, %v516
      %v518 = vsel %vm482, %v364, 0.0
      %v519 = vadd.f32 %v517, %v518
      %v520 = vsel %vm482, %v367, 0.0
      %v521 = vadd.f32 %v519, %v520
      %v522 = vsel %vm482, %v372, 0.0
      %v523 = vadd.f32 %v521, %v522
      %v524 = vsel %vm482, %v375, 0.0
      %v525 = vadd.f32 %v523, %v524
      %v526 = vsel %vm482, %v380, 0.0
      %v527 = vadd.f32 %v525, %v526
      %v528 = vsel %vm482, %v383, 0.0
      %v529 = vadd.f32 %v527, %v528
      %v530 = vsel %vm482, %v388, 0.0
      %v531 = vadd.f32 %v529, %v530
      %v532 = vsel %vm482, %v391, 0.0
      %v533 = vadd.f32 %v531, %v532
      %v534 = vsel %vm482, %v396, 0.0
      %v535 = vadd.f32 %v533, %v534
      %v536 = vsel %vm482, %v399, 0.0
      %v537 = vadd.f32 %v535, %v536
      %v538 = vsel %vm482, %v404, 0.0
      %v539 = vadd.f32 %v537, %v538
      %v540 = vsel %vm482, %v407, 0.0
      %v541 = vadd.f32 %v539, %v540
      %v542 = vsel %vm482, %v412, 0.0
      %v543 = vadd.f32 %v541, %v542
      %v544 = vsel %vm482, %v415, 0.0
      %v545 = vadd.f32 %v543, %v544
      %v546 = vsel %vm482, %v420, 0.0
      %v547 = vadd.f32 %v545, %v546
      %v548 = vsel %vm482, %v423, 0.0
      %v549 = vadd.f32 %v547, %v548
      %v550 = vsel %vm482, %v428, 0.0
      %v551 = vadd.f32 %v549, %v550
      %v552 = vsel %vm482, %v431, 0.0
      %v553 = vadd.f32 %v551, %v552
      %v554 = vsel %vm482, %v436, 0.0
      %v555 = vadd.f32 %v553, %v554
      %v556 = vsel %vm482, %v439, 0.0
      %v557 = vadd.f32 %v555, %v556
      %v558 = vsel %vm482, %v444, 0.0
      %v559 = vadd.f32 %v557, %v558
      %v560 = vsel %vm482, %v447, 0.0
      %v561 = vadd.f32 %v559, %v560
      %v562 = vsel %vm482, %v452, 0.0
      %v563 = vadd.f32 %v561, %v562
      %v564 = vsel %vm482, %v455, 0.0
      %v565 = vadd.f32 %v563, %v564
      %v566 = vsel %vm482, %v460, 0.0
      %v567 = vadd.f32 %v565, %v566
      %v568 = vsel %vm482, %v463, 0.0
      %v569 = vadd.f32 %v567, %v568
      %v570 = vsel %vm482, %v468, 0.0
      %v571 = vadd.f32 %v569, %v570
      %v572 = vsel %vm482, %v471, 0.0
      %v573 = vadd.f32 %v571, %v572
      %v574 = vsel %vm482, %v476, 0.0
      %v575 = vadd.f32 %v573, %v574
      %v576 = vsel %vm482, %v479, 0.0
      %v577 = vadd.f32 %v575, %v576
      %v578 = vrot.slane %v577, 4
      %v579 = vadd.f32 %v577, %v578
      %v580 = vrot.slane %v579, 2
      %v581 = vadd.f32 %v579, %v580
      %v582 = vrot.slane %v581, 1
      %v583 = vadd.f32 %v581, %v582
      %vm584 = vcmask 253952
      %585 = vst.msk [vmem:[%s214] sm:$0x1] %vm584, %v583
      %v586 = vmul.f32 %v356, %v356
      %v587 = vmul.f32 %v359, %v359
      %v588 = vmul.f32 %v364, %v364
      %v589 = vmul.f32 %v367, %v367
      %v590 = vmul.f32 %v372, %v372
      %v591 = vmul.f32 %v375, %v375
      %v592 = vmul.f32 %v380, %v380
      %v593 = vmul.f32 %v383, %v383
      %v594 = vmul.f32 %v388, %v388
      %v595 = vmul.f32 %v391, %v391
      %v596 = vmul.f32 %v396, %v396
      %v597 = vmul.f32 %v399, %v399
      %v598 = vmul.f32 %v404, %v404
      %v599 = vmul.f32 %v407, %v407
      %v600 = vmul.f32 %v412, %v412
      %v601 = vmul.f32 %v415, %v415
      %v602 = vmul.f32 %v420, %v420
      %v603 = vmul.f32 %v423, %v423
      %v604 = vmul.f32 %v428, %v428
      %v605 = vmul.f32 %v431, %v431
      %v606 = vmul.f32 %v436, %v436
      %v607 = vmul.f32 %v439, %v439
      %v608 = vmul.f32 %v444, %v444
      %v609 = vmul.f32 %v447, %v447
      %v610 = vmul.f32 %v452, %v452
      %v611 = vmul.f32 %v455, %v455
      %v612 = vmul.f32 %v460, %v460
      %v613 = vmul.f32 %v463, %v463
      %v614 = vmul.f32 %v468, %v468
      %v615 = vmul.f32 %v471, %v471
      %v616 = vmul.f32 %v476, %v476
      %v617 = vmul.f32 %v479, %v479
      %v618 = vsel %vm482, %v586, 0.0
      %v619 = vsel %vm482, %v587, 0.0
      %v620 = vadd.f32 %v618, %v619
      %v621 = vsel %vm482, %v588, 0.0
      %v622 = vadd.f32 %v620, %v621
      %v623 = vsel %vm482, %v589, 0.0
      %v624 = vadd.f32 %v622, %v623
      %v625 = vsel %vm482, %v590, 0.0
      %v626 = vadd.f32 %v624, %v625
      %v627 = vsel %vm482, %v591, 0.0
      %v628 = vadd.f32 %v626, %v627
      %v629 = vsel %vm482, %v592, 0.0
      %v630 = vadd.f32 %v628, %v629
      %v631 = vsel %vm482, %v593, 0.0
      %v632 = vadd.f32 %v630, %v631
      %v633 = vsel %vm482, %v594, 0.0
      %v634 = vadd.f32 %v632, %v633
      %v635 = vsel %vm482, %v595, 0.0
      %v636 = vadd.f32 %v634, %v635
      %v637 = vsel %vm482, %v596, 0.0
      %v638 = vadd.f32 %v636, %v637
      %v639 = vsel %vm482, %v597, 0.0
      %v640 = vadd.f32 %v638, %v639
      %v641 = vsel %vm482, %v598, 0.0
      %v642 = vadd.f32 %v640, %v641
      %v643 = vsel %vm482, %v599, 0.0
      %v644 = vadd.f32 %v642, %v643
      %v645 = vsel %vm482, %v600, 0.0
      %v646 = vadd.f32 %v644, %v645
      %v647 = vsel %vm482, %v601, 0.0
      %v648 = vadd.f32 %v646, %v647
      %v649 = vsel %vm482, %v602, 0.0
      %v650 = vadd.f32 %v648, %v649
      %v651 = vsel %vm482, %v603, 0.0
      %v652 = vadd.f32 %v650, %v651
      %v653 = vsel %vm482, %v604, 0.0
      %v654 = vadd.f32 %v652, %v653
      %v655 = vsel %vm482, %v605, 0.0
      %v656 = vadd.f32 %v654, %v655
      %v657 = vsel %vm482, %v606, 0.0
      %v658 = vadd.f32 %v656, %v657
      %v659 = vsel %vm482, %v607, 0.0
      %v660 = vadd.f32 %v658, %v659
      %v661 = vsel %vm482, %v608, 0.0
      %v662 = vadd.f32 %v660, %v661
      %v663 = vsel %vm482, %v609, 0.0
      %v664 = vadd.f32 %v662, %v663
      %v665 = vsel %vm482, %v610, 0.0
      %v666 = vadd.f32 %v664, %v665
      %v667 = vsel %vm482, %v611, 0.0
      %v668 = vadd.f32 %v666, %v667
      %v669 = vsel %vm482, %v612, 0.0
      %v670 = vadd.f32 %v668, %v669
      %v671 = vsel %vm482, %v613, 0.0
      %v672 = vadd.f32 %v670, %v671
      %v673 = vsel %vm482, %v614, 0.0
      %v674 = vadd.f32 %v672, %v673
      %v675 = vsel %vm482, %v615, 0.0
      %v676 = vadd.f32 %v674, %v675
      %v677 = vsel %vm482, %v616, 0.0
      %v678 = vadd.f32 %v676, %v677
      %v679 = vsel %vm482, %v617, 0.0
      %v680 = vadd.f32 %v678, %v679
      %v681 = vrot.slane %v680, 4
      %v682 = vadd.f32 %v680, %v681
      %v683 = vrot.slane %v682, 2
      %v684 = vadd.f32 %v682, %v683
      %v685 = vrot.slane %v684, 1
      %v686 = vadd.f32 %v684, %v685
      %687 = vst.msk [vmem:[%s217] sm:$0x1] %vm584, %v686
      %s688 = smul.u32 32, %s16
      %p689 = scmp.lt.s32.totalorder %s688, 63
      %s690 = scalar_select %p689, %s688, 63
      %s691 = smul.addr %s690, 8
      %s692 = scalar_lea.vmem %s2, %s691
      %p693 = scmp.lt.s32.totalorder %s16, 1
      %s694 = scalar_select %p693, %s16, 1
      %s695 = scalar_lea.vmem %s3, %s694
      %p696 = scmp.lt.s32.totalorder %s16, 1
      %s697 = scalar_select %p696, %s16, 1
      %s698 = scalar_lea.vmem %s4, %s697
      // Predicated region
      $region29: #{bottleneck_gelu.10} parent=27 // pred_check
        %p699 = pneg %p81
      $region30: #{bottleneck_gelu.10} parent=27 // pred_check_branch
        %701 = sbr.rel (%p699) target = $region32
      $region31: #{bottleneck_gelu.10} parent=27 // pred_region
        %s702 = smul.u32 32, %s16
      $region32: #{bottleneck_gelu.10} parent=27 // pred_fallthru
        _
      // Predicated region
      $region33: #{bottleneck_gelu.10} parent=27 // pred_check
        %p703 = pneg %p107
      $region34: #{bottleneck_gelu.10} parent=27 // pred_check_branch
        %705 = sbr.rel (%p703) target = $region36
      $region35: #{bottleneck_gelu.10} parent=27 // pred_region
        _
      $region36: #{bottleneck_gelu.10} parent=27 // pred_fallthru
        _
      // Predicated region
      $region37: #{bottleneck_gelu.10} parent=27 // pred_check
        %p706 = pneg %p133
      $region38: #{bottleneck_gelu.10} parent=27 // pred_check_branch
        %708 = sbr.rel (%p706) target = $region40
      $region39: #{bottleneck_gelu.10} parent=27 // pred_region
        _
      $region40: #{bottleneck_gelu.10} parent=27 // pred_fallthru
        _
    $region28: #{bottleneck_gelu.10} parent=5 // pred_fallthru
      _
    %p709 = scmp.le.s32.totalorder 2, %s11
    // Predicated region
    $region41: #{bottleneck_gelu.10} parent=5 // pred_check
      %p710 = pneg %p709
    $region42: #{bottleneck_gelu.10} parent=5 // pred_check_branch
      %712 = sbr.rel (%p710) target = $region44
    $region43: #{bottleneck_gelu.10} parent=5 // pred_region
      %s713 = ssub.s32 %s11, 2
      // Predicated region
      $region45: #{bottleneck_gelu.10} parent=43 // pred_check
        %p714 = pneg %p87
      $region46: #{bottleneck_gelu.10} parent=43 // pred_check_branch
        %716 = sbr.rel (%p714) target = $region48
      $region47: #{bottleneck_gelu.10} parent=43 // pred_region
        %s717 = smul.u32 32, %s17
        %p718 = scmp.lt.s32.totalorder %s717, 63
        %s719 = scalar_select %p718, %s717, 63
        %s720 = smul.addr %s719, 8
        %s721 = scalar_lea.vmem %s2, %s720
      $region48: #{bottleneck_gelu.10} parent=43 // pred_fallthru
        _
      // Predicated region
      $region49: #{bottleneck_gelu.10} parent=43 // pred_check
        %p722 = pneg %p113
      $region50: #{bottleneck_gelu.10} parent=43 // pred_check_branch
        %724 = sbr.rel (%p722) target = $region52
      $region51: #{bottleneck_gelu.10} parent=43 // pred_region
        %p725 = scmp.lt.s32.totalorder %s17, 1
        %s726 = scalar_select %p725, %s17, 1
        %s727 = scalar_lea.vmem %s3, %s726
      $region52: #{bottleneck_gelu.10} parent=43 // pred_fallthru
        _
      // Predicated region
      $region53: #{bottleneck_gelu.10} parent=43 // pred_check
        %p728 = pneg %p139
      $region54: #{bottleneck_gelu.10} parent=43 // pred_check_branch
        %730 = sbr.rel (%p728) target = $region56
      $region55: #{bottleneck_gelu.10} parent=43 // pred_region
        %p731 = scmp.lt.s32.totalorder %s17, 1
        %s732 = scalar_select %p731, %s17, 1
        %s733 = scalar_lea.vmem %s4, %s732
      $region56: #{bottleneck_gelu.10} parent=43 // pred_fallthru
        _
    $region44: #{bottleneck_gelu.10} parent=5 // pred_fallthru
      _
  $region6: #{bottleneck_gelu.10} parent=0 // loop_footer
    %s15 = sadd.s32 1, %s11
  $region7: #{bottleneck_gelu.10} parent=0 // loop_footer_branch
    %10 = sbr.rel target = $region3
  $region8: #{bottleneck_gelu.10} parent=0 // loop_exit
    _

// kernel: bottleneck_gelu.11
$region0: #{bottleneck_gelu.11}
  #allocation0 [shape = 'u32[]', space=smem, size = 0x4, offset = 0x4, fixed_abs, tag = 'smem constant byte address 0x4 - core index']
  #allocation1 [shape = 'u32[144,128]{1,0:T(1,128)}', space=vmem, size = 0x12000, scoped, tag = 'internal scratch']
  %s0 = inlined_call_operand.vmem [shape: f32[512,32], index: 0, kind: input, shape index: {}]
  %s1 = inlined_call_operand.vmem [shape: f32[1,32], index: 1, kind: input, shape index: {}]
  %s2 = inlined_call_operand.vmem [shape: f32[1,32], index: 2, kind: input, shape index: {}]
  %s3 = inlined_call_operand.vmem [shape: f32[512,32], index: 3, kind: input, shape index: {}]
  %s4 = inlined_call_operand.vmem [shape: f32[1,32], index: 4, kind: input, shape index: {}]
  %s5 = inlined_call_operand.vmem [shape: f32[1,32], index: 5, kind: input, shape index: {}]
  %s6 = inlined_call_operand.hbm [shape: f32[512,32], index: 6, kind: output, shape index: {}]
  %s7 = sld [smem:[#allocation0]]
  $region57: #{bottleneck_gelu.11} parent=0
    _
  %s9 = ssub.s32 1, %s7
  %s10 = scalar_select 0, %s9, %s7
  $region1: #{bottleneck_gelu.11} parent=0
    #allocation2 [shape = 'u8[262144]{0}', space=vmem, size = 0x40000, scoped, tag = 'output window, operand 0']
    #allocation3 [shape = 's32[2]{0}', space=sflag, size = 0x8, scoped, tag = 'scoped memory for bottleneck_gelu.11']
    %11 = vsyncpa [#allocation3], 0
    %s12 = scalar_lea.sflag [#allocation3], 1
    %13 = vsyncpa %s12, 0
    loop: start=0, step=1, limit=4
    $region2: #{bottleneck_gelu.11} parent=1 // loop_pre_header
      _
    $region3: #{bottleneck_gelu.11} parent=1 // loop_header
      %s15 = sphi 0, %s19
      %p16 = scmp.ge.s32.totalorder %s15, 4
      %s25 = sphi 0, %s27
      %s28 = sphi 0, %s25
      %s29 = sphi 0, %s28
      %s45 = sphi 0, %s29
      %s49 = sphi 0, %s49
      %s51 = sphi 0, %s49
      %s52 = sphi 0, %s51
      %s66 = sphi 0, %s52
      %s70 = sphi 0, %s70
      %s72 = sphi 0, %s70
      %s73 = sphi 0, %s72
      %s87 = sphi 0, %s73
      %s93 = sphi 0, %s95
      %s96 = sphi 0, %s93
      %s97 = sphi 0, %s96
      %s113 = sphi 0, %s97
      %s117 = sphi 0, %s117
      %s119 = sphi 0, %s117
      %s120 = sphi 0, %s119
      %s134 = sphi 0, %s120
      %s138 = sphi 0, %s138
      %s140 = sphi 0, %s138
      %s141 = sphi 0, %s140
      %s155 = sphi 0, %s141
      %s161 = sphi 0, %s163
      %s164 = sphi 0, %s161
      %s165 = sphi 0, %s164
      %s181 = sphi 0, %s165
    $region4: #{bottleneck_gelu.11} parent=1 // loop_header_branch
      %18 = sbr.rel (%p16) target = $region8
    $region5: #{bottleneck_gelu.11} parent=1 // loop_body
      %s20 = ssub.s32 %s15, 1
      %s21 = ssub.s32 %s15, 2
      %s22 = sadd.s32 %s15, 1
      %s23 = ssub.s32 %s15, %s22
      %p24 = scmp.eq.s32.totalorder %s23, 0
      %s26 = sadd.s32 %s25, 1
      %s27 = scalar_select %p24, %s25, %s26
      %p30 = pneg %p24
      %p31 = scmp.eq.s32.totalorder %s15, 1
      %p32 = por %p30, %p31
      %p33 = scmp.ne.s32.totalorder %s25, %s28
      %p34 = scmp.eq.s32.totalorder %s15, 0
      %p35 = por %p33, %p34
      %p36 = scmp.ne.s32.totalorder %s25, %s28
      %p37 = scmp.eq.s32.totalorder %s20, 1
      %p38 = por %p36, %p37
      %p39 = scmp.ne.s32.totalorder %s28, %s29
      %p40 = scmp.eq.s32.totalorder %s20, 0
      %p41 = por %p39, %p40
      %p42 = scmp.ne.s32.totalorder %s28, %s29
      %p43 = scmp.eq.s32.totalorder %s21, 1
      %p44 = por %p42, %p43
      %p46 = scmp.ne.s32.totalorder %s29, %s45
      %p47 = scmp.eq.s32.totalorder %s21, 0
      %p48 = por %p46, %p47
      %s50 = sadd.s32 %s49, 1
      %p53 = scmp.eq.s32.totalorder %s15, 1
      %p54 = scmp.ne.s32.totalorder %s49, %s51
      %p55 = scmp.eq.s32.totalorder %s15, 0
      %p56 = por %p54, %p55
      %p57 = scmp.ne.s32.totalorder %s49, %s51
      %p58 = scmp.eq.s32.totalorder %s20, 1
      %p59 = por %p57, %p58
      %p60 = scmp.ne.s32.totalorder %s51, %s52
      %p61 = scmp.eq.s32.totalorder %s20, 0
      %p62 = por %p60, %p61
      %p63 = scmp.ne.s32.totalorder %s51, %s52
      %p64 = scmp.eq.s32.totalorder %s21, 1
      %p65 = por %p63, %p64
      %p67 = scmp.ne.s32.totalorder %s52, %s66
      %p68 = scmp.eq.s32.totalorder %s21, 0
      %p69 = por %p67, %p68
      %s71 = sadd.s32 %s70, 1
      %p74 = scmp.eq.s32.totalorder %s15, 1
      %p75 = scmp.ne.s32.totalorder %s70, %s72
      %p76 = scmp.eq.s32.totalorder %s15, 0
      %p77 = por %p75, %p76
      %p78 = scmp.ne.s32.totalorder %s70, %s72
      %p79 = scmp.eq.s32.totalorder %s20, 1
      %p80 = por %p78, %p79
      %p81 = scmp.ne.s32.totalorder %s72, %s73
      %p82 = scmp.eq.s32.totalorder %s20, 0
      %p83 = por %p81, %p82
      %p84 = scmp.ne.s32.totalorder %s72, %s73
      %p85 = scmp.eq.s32.totalorder %s21, 1
      %p86 = por %p84, %p85
      %p88 = scmp.ne.s32.totalorder %s73, %s87
      %p89 = scmp.eq.s32.totalorder %s21, 0
      %p90 = por %p88, %p89
      %s91 = ssub.s32 %s15, %s22
      %p92 = scmp.eq.s32.totalorder %s91, 0
      %s94 = sadd.s32 %s93, 1
      %s95 = scalar_select %p92, %s93, %s94
      %p98 = pneg %p92
      %p99 = scmp.eq.s32.totalorder %s15, 1
      %p100 = por %p98, %p99
      %p101 = scmp.ne.s32.totalorder %s93, %s96
      %p102 = scmp.eq.s32.totalorder %s15, 0
      %p103 = por %p101, %p102
      %p104 = scmp.ne.s32.totalorder %s93, %s96
      %p105 = scmp.eq.s32.totalorder %s20, 1
      %p106 = por %p104, %p105
      %p107 = scmp.ne.s32.totalorder %s96, %s97
      %p108 = scmp.eq.s32.totalorder %s20, 0
      %p109 = por %p107, %p108
      %p110 = scmp.ne.s32.totalorder %s96, %s97
      %p111 = scmp.eq.s32.totalorder %s21, 1
      %p112 = por %p110, %p111
      %p114 = scmp.ne.s32.totalorder %s97, %s113
      %p115 = scmp.eq.s32.totalorder %s21, 0
      %p116 = por %p114, %p115
      %s118 = sadd.s32 %s117, 1
      %p121 = scmp.eq.s32.totalorder %s15, 1
      %p122 = scmp.ne.s32.totalorder %s117, %s119
      %p123 = scmp.eq.s32.totalorder %s15, 0
      %p124 = por %p122, %p123
      %p125 = scmp.ne.s32.totalorder %s117, %s119
      %p126 = scmp.eq.s32.totalorder %s20, 1
      %p127 = por %p125, %p126
      %p128 = scmp.ne.s32.totalorder %s119, %s120
      %p129 = scmp.eq.s32.totalorder %s20, 0
      %p130 = por %p128, %p129
      %p131 = scmp.ne.s32.totalorder %s119, %s120
      %p132 = scmp.eq.s32.totalorder %s21, 1
      %p133 = por %p131, %p132
      %p135 = scmp.ne.s32.totalorder %s120, %s134
      %p136 = scmp.eq.s32.totalorder %s21, 0
      %p137 = por %p135, %p136
      %s139 = sadd.s32 %s138, 1
      %p142 = scmp.eq.s32.totalorder %s15, 1
      %p143 = scmp.ne.s32.totalorder %s138, %s140
      %p144 = scmp.eq.s32.totalorder %s15, 0
      %p145 = por %p143, %p144
      %p146 = scmp.ne.s32.totalorder %s138, %s140
      %p147 = scmp.eq.s32.totalorder %s20, 1
      %p148 = por %p146, %p147
      %p149 = scmp.ne.s32.totalorder %s140, %s141
      %p150 = scmp.eq.s32.totalorder %s20, 0
      %p151 = por %p149, %p150
      %p152 = scmp.ne.s32.totalorder %s140, %s141
      %p153 = scmp.eq.s32.totalorder %s21, 1
      %p154 = por %p152, %p153
      %p156 = scmp.ne.s32.totalorder %s141, %s155
      %p157 = scmp.eq.s32.totalorder %s21, 0
      %p158 = por %p156, %p157
      %s159 = ssub.s32 %s15, %s22
      %p160 = scmp.eq.s32.totalorder %s159, 0
      %s162 = sadd.s32 %s161, 1
      %s163 = scalar_select %p160, %s161, %s162
      %p166 = pneg %p160
      %p167 = scmp.eq.s32.totalorder %s15, 1
      %p168 = por %p166, %p167
      %p169 = scmp.ne.s32.totalorder %s161, %s164
      %p170 = scmp.eq.s32.totalorder %s15, 0
      %p171 = por %p169, %p170
      %p172 = scmp.ne.s32.totalorder %s161, %s164
      %p173 = scmp.eq.s32.totalorder %s20, 1
      %p174 = por %p172, %p173
      %p175 = scmp.ne.s32.totalorder %s164, %s165
      %p176 = scmp.eq.s32.totalorder %s20, 0
      %p177 = por %p175, %p176
      %p178 = scmp.ne.s32.totalorder %s164, %s165
      %p179 = scmp.eq.s32.totalorder %s21, 1
      %p180 = por %p178, %p179
      %p182 = scmp.ne.s32.totalorder %s165, %s181
      %p183 = scmp.eq.s32.totalorder %s21, 0
      %p184 = por %p182, %p183
      %p185 = scmp.le.s32.totalorder 1, %s15
      %p186 = scmp.lt.s32.totalorder %s15, 3
      %p187 = pnand %p185, %p186
      %p188 = pneg %p187
      // Predicated region
      $region9: #{bottleneck_gelu.11} parent=5 // pred_check
        _
      $region10: #{bottleneck_gelu.11} parent=5 // pred_check_branch
        %190 = sbr.rel (%p187) target = $region12
      $region11: #{bottleneck_gelu.11} parent=5 // pred_region
        %s191 = ssub.s32 %s15, 1
        // Predicated region
        $region13: #{bottleneck_gelu.11} parent=11 // pred_check
          %p192 = pneg %p62
        $region14: #{bottleneck_gelu.11} parent=11 // pred_check_branch
          %194 = sbr.rel (%p192) target = $region16
        $region15: #{bottleneck_gelu.11} parent=11 // pred_region
          _
        $region16: #{bottleneck_gelu.11} parent=11 // pred_fallthru
          _
        // Predicated region
        $region17: #{bottleneck_gelu.11} parent=11 // pred_check
          %p195 = pneg %p83
        $region18: #{bottleneck_gelu.11} parent=11 // pred_check_branch
          %197 = sbr.rel (%p195) target = $region20
        $region19: #{bottleneck_gelu.11} parent=11 // pred_region
          _
        $region20: #{bottleneck_gelu.11} parent=11 // pred_fallthru
          _
        // Predicated region
        $region21: #{bottleneck_gelu.11} parent=11 // pred_check
          %p198 = pneg %p130
        $region22: #{bottleneck_gelu.11} parent=11 // pred_check_branch
          %200 = sbr.rel (%p198) target = $region24
        $region23: #{bottleneck_gelu.11} parent=11 // pred_region
          _
        $region24: #{bottleneck_gelu.11} parent=11 // pred_fallthru
          _
        // Predicated region
        $region25: #{bottleneck_gelu.11} parent=11 // pred_check
          %p201 = pneg %p151
        $region26: #{bottleneck_gelu.11} parent=11 // pred_check_branch
          %203 = sbr.rel (%p201) target = $region28
        $region27: #{bottleneck_gelu.11} parent=11 // pred_region
          _
        $region28: #{bottleneck_gelu.11} parent=11 // pred_fallthru
          _
      $region12: #{bottleneck_gelu.11} parent=5 // pred_fallthru
        _
      %p204 = scmp.lt.s32.totalorder %s15, 2
      // Predicated region
      $region29: #{bottleneck_gelu.11} parent=5 // pred_check
        %p205 = pneg %p204
      $region30: #{bottleneck_gelu.11} parent=5 // pred_check_branch
        %207 = sbr.rel (%p205) target = $region32
      $region31: #{bottleneck_gelu.11} parent=5 // pred_region
        // Predicated region
        $region33: #{bottleneck_gelu.11} parent=31 // pred_check
          %p208 = pneg %p35
        $region34: #{bottleneck_gelu.11} parent=31 // pred_check_branch
          %210 = sbr.rel (%p208) target = $region36
        $region35: #{bottleneck_gelu.11} parent=31 // pred_region
          %s211 = smul.u32 32, %s15
          %p212 = scmp.lt.s32.totalorder %s211, 63
          %s213 = scalar_select %p212, %s211, 63
          %s214 = smul.addr %s213, 8
          %s215 = scalar_lea.vmem %s0, %s214
          %s216 = smul.u32 32, %s15
        $region36: #{bottleneck_gelu.11} parent=31 // pred_fallthru
          _
        // Predicated region
        $region37: #{bottleneck_gelu.11} parent=31 // pred_check
          %p217 = pneg %p103
        $region38: #{bottleneck_gelu.11} parent=31 // pred_check_branch
          %219 = sbr.rel (%p217) target = $region40
        $region39: #{bottleneck_gelu.11} parent=31 // pred_region
          %s220 = smul.u32 32, %s15
          %p221 = scmp.lt.s32.totalorder %s220, 63
          %s222 = scalar_select %p221, %s220, 63
          %s223 = smul.addr %s222, 8
          %s224 = scalar_lea.vmem %s3, %s223
          %s225 = smul.u32 32, %s15
        $region40: #{bottleneck_gelu.11} parent=31 // pred_fallthru
          _
      $region32: #{bottleneck_gelu.11} parent=5 // pred_fallthru
        _
      %p226 = scmp.le.s32.totalorder 1, %s15
      %p227 = scmp.lt.s32.totalorder %s15, 3
      %p228 = pnand %p226, %p227
      %p229 = pneg %p228
      // Predicated region
      $region41: #{bottleneck_gelu.11} parent=5 // pred_check
        _
      $region42: #{bottleneck_gelu.11} parent=5 // pred_check_branch
        %231 = sbr.rel (%p228) target = $region44
      $region43: #{bottleneck_gelu.11} parent=5 // pred_region
        %s232 = ssub.s32 %s15, 1
        %s233 = smul.u32 32, %s20
        %p234 = scmp.lt.s32.totalorder %s233, 63
        %s235 = scalar_select %p234, %s233, 63
        %s236 = smul.addr %s235, 8
        %s237 = scalar_lea.vmem %s0, %s236
        %p238 = pneg %p41
        %p239 = pneg %p38
        %p240 = pneg %p62
        %p241 = pneg %p59
        %p242 = pneg %p83
        %p243 = pneg %p80
        %s244 = smul.u32 32, %s20
        %p245 = scmp.lt.s32.totalorder %s244, 63
        %s246 = scalar_select %p245, %s244, 63
        %s247 = smul.addr %s246, 8
        %s248 = scalar_lea.vmem %s3, %s247
        %p249 = pneg %p109
        %p250 = pneg %p106
        %p251 = pneg %p130
        %p252 = pneg %p127
        %p253 = pneg %p151
        %p254 = pneg %p148
        %p255 = pneg %p177
        %p256 = pneg %p174
        %s257 = sand.u32 %s164, 1
        %s258 = scalar_lea.sflag [#allocation3], %s257
        %s259 = sand.u32 %s164, 1
        %s260 = smul.addr %s259, 256
        %s261 = scalar_lea.vmem [#allocation2], %s260
        %s262 = smul.u32 32, %s20
        %p263 = scmp.lt.s32.totalorder %s262, 63
        %s264 = scalar_select %p263, %s262, 63
        %s265 = smul.addr %s264, 8
        %s266 = scalar_lea.vmem %s0, %s265
        %s267 = smul.u32 32, %s20
        %s268 = smul.u32 32, %s20
        %p269 = scmp.lt.s32.totalorder %s268, 63
        %s270 = scalar_select %p269, %s268, 63
        %s271 = smul.addr %s270, 8
        %s272 = scalar_lea.vmem %s3, %s271
        %s273 = smul.u32 32, %s20
        %s274 = smul.u32 32, %s20
        %v275 = vld [vmem:[%s266] sm:$0xff]
        %v276 = vld [vmem:[%s266 + $0x8] sm:$0xff]
        %v277 = vld [vmem:[%s266 + $0x10] sm:$0xff]
        %v278 = vld [vmem:[%s266 + $0x18] sm:$0xff]
        %v279 = vld [vmem:[%s266 + $0x20] sm:$0xff]
        %v280 = vld [vmem:[%s266 + $0x28] sm:$0xff]
        %v281 = vld [vmem:[%s266 + $0x30] sm:$0xff]
        %v282 = vld [vmem:[%s266 + $0x38] sm:$0xff]
        %v283 = vld [vmem:[%s266 + $0x40] sm:$0xff]
        %v284 = vld [vmem:[%s266 + $0x48] sm:$0xff]
        %v285 = vld [vmem:[%s266 + $0x50] sm:$0xff]
        %v286 = vld [vmem:[%s266 + $0x58] sm:$0xff]
        %v287 = vld [vmem:[%s266 + $0x60] sm:$0xff]
        %v288 = vld [vmem:[%s266 + $0x68] sm:$0xff]
        %v289 = vld [vmem:[%s266 + $0x70] sm:$0xff]
        %v290 = vld [vmem:[%s266 + $0x78] sm:$0xff]
        %v291 = vld [vmem:[%s266 + $0x80] sm:$0xff]
        %v292 = vld [vmem:[%s266 + $0x88] sm:$0xff]
        %v293 = vld [vmem:[%s266 + $0x90] sm:$0xff]
        %v294 = vld [vmem:[%s266 + $0x98] sm:$0xff]
        %v295 = vld [vmem:[%s266 + $0xa0] sm:$0xff]
        %v296 = vld [vmem:[%s266 + $0xa8] sm:$0xff]
        %v297 = vld [vmem:[%s266 + $0xb0] sm:$0xff]
        %v298 = vld [vmem:[%s266 + $0xb8] sm:$0xff]
        %v299 = vld [vmem:[%s266 + $0xc0] sm:$0xff]
        %v300 = vld [vmem:[%s266 + $0xc8] sm:$0xff]
        %v301 = vld [vmem:[%s266 + $0xd0] sm:$0xff]
        %v302 = vld [vmem:[%s266 + $0xd8] sm:$0xff]
        %v303 = vld [vmem:[%s266 + $0xe0] sm:$0xff]
        %v304 = vld [vmem:[%s266 + $0xe8] sm:$0xff]
        %v305 = vld [vmem:[%s266 + $0xf0] sm:$0xff]
        %v306 = vld [vmem:[%s266 + $0xf8] sm:$0xff]
        %v307 = vld [vmem:[%s1] sm:$0x1]
        %v309 = vlaneseq
        %v310 = vshrl.u32 %v309, 7
        %v311 = vsub.s32 0, %v310
        %v312 = vrot.slane %v307, %v311
        %v314 = vmul.f32 %v275, %v312
        %v315 = vmul.f32 %v276, %v312
        %v316 = vmul.f32 %v277, %v312
        %v317 = vmul.f32 %v278, %v312
        %v318 = vmul.f32 %v279, %v312
        %v319 = vmul.f32 %v280, %v312
        %v320 = vmul.f32 %v281, %v312
        %v321 = vmul.f32 %v282, %v312
        %v322 = vmul.f32 %v283, %v312
        %v323 = vmul.f32 %v284, %v312
        %v324 = vmul.f32 %v285, %v312
        %v325 = vmul.f32 %v286, %v312
        %v326 = vmul.f32 %v287, %v312
        %v327 = vmul.f32 %v288, %v312
        %v328 = vmul.f32 %v289, %v312
        %v329 = vmul.f32 %v290, %v312
        %v330 = vmul.f32 %v291, %v312
        %v331 = vmul.f32 %v292, %v312
        %v332 = vmul.f32 %v293, %v312
        %v333 = vmul.f32 %v294, %v312
        %v334 = vmul.f32 %v295, %v312
        %v335 = vmul.f32 %v296, %v312
        %v336 = vmul.f32 %v297, %v312
        %v337 = vmul.f32 %v298, %v312
        %v338 = vmul.f32 %v299, %v312
        %v339 = vmul.f32 %v300, %v312
        %v340 = vmul.f32 %v301, %v312
        %v341 = vmul.f32 %v302, %v312
        %v342 = vmul.f32 %v303, %v312
        %v343 = vmul.f32 %v304, %v312
        %v344 = vmul.f32 %v305, %v312
        %v345 = vmul.f32 %v306, %v312
        %v346 = vld [vmem:[%s2] sm:$0x1]
        %v348 = vlaneseq
        %v349 = vshrl.u32 %v348, 7
        %v350 = vsub.s32 0, %v349
        %v351 = vrot.slane %v346, %v350
        %v353 = vadd.f32 %v314, %v351
        %v354 = vadd.f32 %v315, %v351
        %v355 = vadd.f32 %v316, %v351
        %v356 = vadd.f32 %v317, %v351
        %v357 = vadd.f32 %v318, %v351
        %v358 = vadd.f32 %v319, %v351
        %v359 = vadd.f32 %v320, %v351
        %v360 = vadd.f32 %v321, %v351
        %v361 = vadd.f32 %v322, %v351
        %v362 = vadd.f32 %v323, %v351
        %v363 = vadd.f32 %v324, %v351
        %v364 = vadd.f32 %v325, %v351
        %v365 = vadd.f32 %v326, %v351
        %v366 = vadd.f32 %v327, %v351
        %v367 = vadd.f32 %v328, %v351
        %v368 = vadd.f32 %v329, %v351
        %v369 = vadd.f32 %v330, %v351
        %v370 = vadd.f32 %v331, %v351
        %v371 = vadd.f32 %v332, %v351
        %v372 = vadd.f32 %v333, %v351
        %v373 = vadd.f32 %v334, %v351
        %v374 = vadd.f32 %v335, %v351
        %v375 = vadd.f32 %v336, %v351
        %v376 = vadd.f32 %v337, %v351
        %v377 = vadd.f32 %v338, %v351
        %v378 = vadd.f32 %v339, %v351
        %v379 = vadd.f32 %v340, %v351
        %v380 = vadd.f32 %v341, %v351
        %v381 = vadd.f32 %v342, %v351
        %v382 = vadd.f32 %v343, %v351
        %v383 = vadd.f32 %v344, %v351
        %v384 = vadd.f32 %v345, %v351
        %v385 = vld [vmem:[%s272] sm:$0xff]
        %v386 = vld [vmem:[%s272 + $0x8] sm:$0xff]
        %v387 = vld [vmem:[%s272 + $0x10] sm:$0xff]
        %v388 = vld [vmem:[%s272 + $0x18] sm:$0xff]
        %v389 = vld [vmem:[%s272 + $0x20] sm:$0xff]
        %v390 = vld [vmem:[%s272 + $0x28] sm:$0xff]
        %v391 = vld [vmem:[%s272 + $0x30] sm:$0xff]
        %v392 = vld [vmem:[%s272 + $0x38] sm:$0xff]
        %v393 = vld [vmem:[%s272 + $0x40] sm:$0xff]
        %v394 = vld [vmem:[%s272 + $0x48] sm:$0xff]
        %v395 = vld [vmem:[%s272 + $0x50] sm:$0xff]
        %v396 = vld [vmem:[%s272 + $0x58] sm:$0xff]
        %v397 = vld [vmem:[%s272 + $0x60] sm:$0xff]
        %v398 = vld [vmem:[%s272 + $0x68] sm:$0xff]
        %v399 = vld [vmem:[%s272 + $0x70] sm:$0xff]
        %v400 = vld [vmem:[%s272 + $0x78] sm:$0xff]
        %v401 = vld [vmem:[%s272 + $0x80] sm:$0xff]
        %v402 = vld [vmem:[%s272 + $0x88] sm:$0xff]
        %v403 = vld [vmem:[%s272 + $0x90] sm:$0xff]
        %v404 = vld [vmem:[%s272 + $0x98] sm:$0xff]
        %v405 = vld [vmem:[%s272 + $0xa0] sm:$0xff]
        %v406 = vld [vmem:[%s272 + $0xa8] sm:$0xff]
        %v407 = vld [vmem:[%s272 + $0xb0] sm:$0xff]
        %v408 = vld [vmem:[%s272 + $0xb8] sm:$0xff]
        %v409 = vld [vmem:[%s272 + $0xc0] sm:$0xff]
        %v410 = vld [vmem:[%s272 + $0xc8] sm:$0xff]
        %v411 = vld [vmem:[%s272 + $0xd0] sm:$0xff]
        %v412 = vld [vmem:[%s272 + $0xd8] sm:$0xff]
        %v413 = vld [vmem:[%s272 + $0xe0] sm:$0xff]
        %v414 = vld [vmem:[%s272 + $0xe8] sm:$0xff]
        %v415 = vld [vmem:[%s272 + $0xf0] sm:$0xff]
        %v416 = vld [vmem:[%s272 + $0xf8] sm:$0xff]
        %v417 = vld [vmem:[%s4] sm:$0x1]
        %v419 = vlaneseq
        %v420 = vshrl.u32 %v419, 7
        %v421 = vsub.s32 0, %v420
        %v422 = vrot.slane %v417, %v421
        %v424 = vmul.f32 %v385, %v422
        %v425 = vmul.f32 %v386, %v422
        %v426 = vmul.f32 %v387, %v422
        %v427 = vmul.f32 %v388, %v422
        %v428 = vmul.f32 %v389, %v422
        %v429 = vmul.f32 %v390, %v422
        %v430 = vmul.f32 %v391, %v422
        %v431 = vmul.f32 %v392, %v422
        %v432 = vmul.f32 %v393, %v422
        %v433 = vmul.f32 %v394, %v422
        %v434 = vmul.f32 %v395, %v422
        %v435 = vmul.f32 %v396, %v422
        %v436 = vmul.f32 %v397, %v422
        %v437 = vmul.f32 %v398, %v422
        %v438 = vmul.f32 %v399, %v422
        %v439 = vmul.f32 %v400, %v422
        %v440 = vmul.f32 %v401, %v422
        %v441 = vmul.f32 %v402, %v422
        %v442 = vmul.f32 %v403, %v422
        %v443 = vmul.f32 %v404, %v422
        %v444 = vmul.f32 %v405, %v422
        %v445 = vmul.f32 %v406, %v422
        %v446 = vmul.f32 %v407, %v422
        %v447 = vmul.f32 %v408, %v422
        %v448 = vmul.f32 %v409, %v422
        %v449 = vmul.f32 %v410, %v422
        %v450 = vmul.f32 %v411, %v422
        %v451 = vmul.f32 %v412, %v422
        %v452 = vmul.f32 %v413, %v422
        %v453 = vmul.f32 %v414, %v422
        %v454 = vmul.f32 %v415, %v422
        %v455 = vmul.f32 %v416, %v422
        %v456 = vld [vmem:[%s5] sm:$0x1]
        %v458 = vlaneseq
        %v459 = vshrl.u32 %v458, 7
        %v460 = vsub.s32 0, %v459
        %v461 = vrot.slane %v456, %v460
        %v463 = vadd.f32 %v424, %v461
        %v464 = vadd.f32 %v425, %v461
        %v465 = vadd.f32 %v426, %v461
        %v466 = vadd.f32 %v427, %v461
        %v467 = vadd.f32 %v428, %v461
        %v468 = vadd.f32 %v429, %v461
        %v469 = vadd.f32 %v430, %v461
        %v470 = vadd.f32 %v431, %v461
        %v471 = vadd.f32 %v432, %v461
        %v472 = vadd.f32 %v433, %v461
        %v473 = vadd.f32 %v434, %v461
        %v474 = vadd.f32 %v435, %v461
        %v475 = vadd.f32 %v436, %v461
        %v476 = vadd.f32 %v437, %v461
        %v477 = vadd.f32 %v438, %v461
        %v478 = vadd.f32 %v439, %v461
        %v479 = vadd.f32 %v440, %v461
        %v480 = vadd.f32 %v441, %v461
        %v481 = vadd.f32 %v442, %v461
        %v482 = vadd.f32 %v443, %v461
        %v483 = vadd.f32 %v444, %v461
        %v484 = vadd.f32 %v445, %v461
        %v485 = vadd.f32 %v446, %v461
        %v486 = vadd.f32 %v447, %v461
        %v487 = vadd.f32 %v448, %v461
        %v488 = vadd.f32 %v449, %v461
        %v489 = vadd.f32 %v450, %v461
        %v490 = vadd.f32 %v451, %v461
        %v491 = vadd.f32 %v452, %v461
        %v492 = vadd.f32 %v453, %v461
        %v493 = vadd.f32 %v454, %v461
        %v494 = vadd.f32 %v455, %v461
        %v495 = vadd.f32 %v353, %v463
        %v496 = vadd.f32 %v354, %v464
        %v497 = vadd.f32 %v355, %v465
        %v498 = vadd.f32 %v356, %v466
        %v499 = vadd.f32 %v357, %v467
        %v500 = vadd.f32 %v358, %v468
        %v501 = vadd.f32 %v359, %v469
        %v502 = vadd.f32 %v360, %v470
        %v503 = vadd.f32 %v361, %v471
        %v504 = vadd.f32 %v362, %v472
        %v505 = vadd.f32 %v363, %v473
        %v506 = vadd.f32 %v364, %v474
        %v507 = vadd.f32 %v365, %v475
        %v508 = vadd.f32 %v366, %v476
        %v509 = vadd.f32 %v367, %v477
        %v510 = vadd.f32 %v368, %v478
        %v511 = vadd.f32 %v369, %v479
        %v512 = vadd.f32 %v370, %v480
        %v513 = vadd.f32 %v371, %v481
        %v514 = vadd.f32 %v372, %v482
        %v515 = vadd.f32 %v373, %v483
        %v516 = vadd.f32 %v374, %v484
        %v517 = vadd.f32 %v375, %v485
        %v518 = vadd.f32 %v376, %v486
        %v519 = vadd.f32 %v377, %v487
        %v520 = vadd.f32 %v378, %v488
        %v521 = vadd.f32 %v379, %v489
        %v522 = vadd.f32 %v380, %v490
        %v523 = vadd.f32 %v381, %v491
        %v524 = vadd.f32 %v382, %v492
        %v525 = vadd.f32 %v383, %v493
        %v526 = vadd.f32 %v384, %v494
        %v527 = vmul.f32 %v495, 0.5
        %v528 = vmul.f32 %v496, 0.5
        %v529 = vmul.f32 %v497, 0.5
        %v530 = vmul.f32 %v498, 0.5
        %v531 = vmul.f32 %v499, 0.5
        %v532 = vmul.f32 %v500, 0.5
        %v533 = vmul.f32 %v501, 0.5
        %v534 = vmul.f32 %v502, 0.5
        %v535 = vmul.f32 %v503, 0.5
        %v536 = vmul.f32 %v504, 0.5
        %v537 = vmul.f32 %v505, 0.5
        %v538 = vmul.f32 %v506, 0.5
        %v539 = vmul.f32 %v507, 0.5
        %v540 = vmul.f32 %v508, 0.5
        %v541 = vmul.f32 %v509, 0.5
        %v542 = vmul.f32 %v510, 0.5
        %v543 = vmul.f32 %v511, 0.5
        %v544 = vmul.f32 %v512, 0.5
        %v545 = vmul.f32 %v513, 0.5
        %v546 = vmul.f32 %v514, 0.5
        %v547 = vmul.f32 %v515, 0.5
        %v548 = vmul.f32 %v516, 0.5
        %v549 = vmul.f32 %v517, 0.5
        %v550 = vmul.f32 %v518, 0.5
        %v551 = vmul.f32 %v519, 0.5
        %v552 = vmul.f32 %v520, 0.5
        %v553 = vmul.f32 %v521, 0.5
        %v554 = vmul.f32 %v522, 0.5
        %v555 = vmul.f32 %v523, 0.5
        %v556 = vmul.f32 %v524, 0.5
        %v557 = vmul.f32 %v525, 0.5
        %v558 = vmul.f32 %v526, 0.5
        %v559 = vmul.f32 %v495, 0.70710677
        %v560 = vmul.f32 %v496, 0.70710677
        %v561 = vmul.f32 %v497, 0.70710677
        %v562 = vmul.f32 %v498, 0.70710677
        %v563 = vmul.f32 %v499, 0.70710677
        %v564 = vmul.f32 %v500, 0.70710677
        %v565 = vmul.f32 %v501, 0.70710677
        %v566 = vmul.f32 %v502, 0.70710677
        %v567 = vmul.f32 %v503, 0.70710677
        %v568 = vmul.f32 %v504, 0.70710677
        %v569 = vmul.f32 %v505, 0.70710677
        %v570 = vmul.f32 %v506, 0.70710677
        %v571 = vmul.f32 %v507, 0.70710677
        %v572 = vmul.f32 %v508, 0.70710677
        %v573 = vmul.f32 %v509, 0.70710677
        %v574 = vmul.f32 %v510, 0.70710677
        %v575 = vmul.f32 %v511, 0.70710677
        %v576 = vmul.f32 %v512, 0.70710677
        %v577 = vmul.f32 %v513, 0.70710677
        %v578 = vmul.f32 %v514, 0.70710677
        %v579 = vmul.f32 %v515, 0.70710677
        %v580 = vmul.f32 %v516, 0.70710677
        %v581 = vmul.f32 %v517, 0.70710677
        %v582 = vmul.f32 %v518, 0.70710677
        %v583 = vmul.f32 %v519, 0.70710677
        %v584 = vmul.f32 %v520, 0.70710677
        %v585 = vmul.f32 %v521, 0.70710677
        %v586 = vmul.f32 %v522, 0.70710677
        %v587 = vmul.f32 %v523, 0.70710677
        %v588 = vmul.f32 %v524, 0.70710677
        %v589 = vmul.f32 %v525, 0.70710677
        %v590 = vmul.f32 %v526, 0.70710677
        %v591 = verf.f32.pop %v559
        %v592 = verf.f32.pop %v560
        %v593 = verf.f32.pop %v561
        %v594 = verf.f32.pop %v562
        %v595 = verf.f32.pop %v563
        %v596 = verf.f32.pop %v564
        %v597 = verf.f32.pop %v565
        %v598 = verf.f32.pop %v566
        %v599 = verf.f32.pop %v567
        %v600 = verf.f32.pop %v568
        %v601 = verf.f32.pop %v569
        %v602 = verf.f32.pop %v570
        %v603 = verf.f32.pop %v571
        %v604 = verf.f32.pop %v572
        %v605 = verf.f32.pop %v573
        %v606 = verf.f32.pop %v574
        %v607 = verf.f32.pop %v575
        %v608 = verf.f32.pop %v576
        %v609 = verf.f32.pop %v577
        %v610 = verf.f32.pop %v578
        %v611 = verf.f32.pop %v579
        %v612 = verf.f32.pop %v580
        %v613 = verf.f32.pop %v581
        %v614 = verf.f32.pop %v582
        %v615 = verf.f32.pop %v583
        %v616 = verf.f32.pop %v584
        %v617 = verf.f32.pop %v585
        %v618 = verf.f32.pop %v586
        %v619 = verf.f32.pop %v587
        %v620 = verf.f32.pop %v588
        %v621 = verf.f32.pop %v589
        %v622 = verf.f32.pop %v590
        %v623 = vadd.f32 %v591, 1.0
        %v624 = vadd.f32 %v592, 1.0
        %v625 = vadd.f32 %v593, 1.0
        %v626 = vadd.f32 %v594, 1.0
        %v627 = vadd.f32 %v595, 1.0
        %v628 = vadd.f32 %v596, 1.0
        %v629 = vadd.f32 %v597, 1.0
        %v630 = vadd.f32 %v598, 1.0
        %v631 = vadd.f32 %v599, 1.0
        %v632 = vadd.f32 %v600, 1.0
        %v633 = vadd.f32 %v601, 1.0
        %v634 = vadd.f32 %v602, 1.0
        %v635 = vadd.f32 %v603, 1.0
        %v636 = vadd.f32 %v604, 1.0
        %v637 = vadd.f32 %v605, 1.0
        %v638 = vadd.f32 %v606, 1.0
        %v639 = vadd.f32 %v607, 1.0
        %v640 = vadd.f32 %v608, 1.0
        %v641 = vadd.f32 %v609, 1.0
        %v642 = vadd.f32 %v610, 1.0
        %v643 = vadd.f32 %v611, 1.0
        %v644 = vadd.f32 %v612, 1.0
        %v645 = vadd.f32 %v613, 1.0
        %v646 = vadd.f32 %v614, 1.0
        %v647 = vadd.f32 %v615, 1.0
        %v648 = vadd.f32 %v616, 1.0
        %v649 = vadd.f32 %v617, 1.0
        %v650 = vadd.f32 %v618, 1.0
        %v651 = vadd.f32 %v619, 1.0
        %v652 = vadd.f32 %v620, 1.0
        %v653 = vadd.f32 %v621, 1.0
        %v654 = vadd.f32 %v622, 1.0
        %v655 = vmul.f32 %v527, %v623
        %v656 = vmul.f32 %v528, %v624
        %v657 = vmul.f32 %v529, %v625
        %v658 = vmul.f32 %v530, %v626
        %v659 = vmul.f32 %v531, %v627
        %v660 = vmul.f32 %v532, %v628
        %v661 = vmul.f32 %v533, %v629
        %v662 = vmul.f32 %v534, %v630
        %v663 = vmul.f32 %v535, %v631
        %v664 = vmul.f32 %v536, %v632
        %v665 = vmul.f32 %v537, %v633
        %v666 = vmul.f32 %v538, %v634
        %v667 = vmul.f32 %v539, %v635
        %v668 = vmul.f32 %v540, %v636
        %v669 = vmul.f32 %v541, %v637
        %v670 = vmul.f32 %v542, %v638
        %v671 = vmul.f32 %v543, %v639
        %v672 = vmul.f32 %v544, %v640
        %v673 = vmul.f32 %v545, %v641
        %v674 = vmul.f32 %v546, %v642
        %v675 = vmul.f32 %v547, %v643
        %v676 = vmul.f32 %v548, %v644
        %v677 = vmul.f32 %v549, %v645
        %v678 = vmul.f32 %v550, %v646
        %v679 = vmul.f32 %v551, %v647
        %v680 = vmul.f32 %v552, %v648
        %v681 = vmul.f32 %v553, %v649
        %v682 = vmul.f32 %v554, %v650
        %v683 = vmul.f32 %v555, %v651
        %v684 = vmul.f32 %v556, %v652
        %v685 = vmul.f32 %v557, %v653
        %v686 = vmul.f32 %v558, %v654
        %vm687 = vcmask 261120
        %688 = vst.msk [vmem:[%s261] sm:$0xff] %vm687, %v655
        %689 = vst.msk [vmem:[%s261 + $0x8] sm:$0xff] %vm687, %v656
        %690 = vst.msk [vmem:[%s261 + $0x10] sm:$0xff] %vm687, %v657
        %691 = vst.msk [vmem:[%s261 + $0x18] sm:$0xff] %vm687, %v658
        %692 = vst.msk [vmem:[%s261 + $0x20] sm:$0xff] %vm687, %v659
        %693 = vst.msk [vmem:[%s261 + $0x28] sm:$0xff] %vm687, %v660
        %694 = vst.msk [vmem:[%s261 + $0x30] sm:$0xff] %vm687, %v661
        %695 = vst.msk [vmem:[%s261 + $0x38] sm:$0xff] %vm687, %v662
        %696 = vst.msk [vmem:[%s261 + $0x40] sm:$0xff] %vm687, %v663
        %697 = vst.msk [vmem:[%s261 + $0x48] sm:$0xff] %vm687, %v664
        %698 = vst.msk [vmem:[%s261 + $0x50] sm:$0xff] %vm687, %v665
        %699 = vst.msk [vmem:[%s261 + $0x58] sm:$0xff] %vm687, %v666
        %700 = vst.msk [vmem:[%s261 + $0x60] sm:$0xff] %vm687, %v667
        %701 = vst.msk [vmem:[%s261 + $0x68] sm:$0xff] %vm687, %v668
        %702 = vst.msk [vmem:[%s261 + $0x70] sm:$0xff] %vm687, %v669
        %703 = vst.msk [vmem:[%s261 + $0x78] sm:$0xff] %vm687, %v670
        %704 = vst.msk [vmem:[%s261 + $0x80] sm:$0xff] %vm687, %v671
        %705 = vst.msk [vmem:[%s261 + $0x88] sm:$0xff] %vm687, %v672
        %706 = vst.msk [vmem:[%s261 + $0x90] sm:$0xff] %vm687, %v673
        %707 = vst.msk [vmem:[%s261 + $0x98] sm:$0xff] %vm687, %v674
        %708 = vst.msk [vmem:[%s261 + $0xa0] sm:$0xff] %vm687, %v675
        %709 = vst.msk [vmem:[%s261 + $0xa8] sm:$0xff] %vm687, %v676
        %710 = vst.msk [vmem:[%s261 + $0xb0] sm:$0xff] %vm687, %v677
        %711 = vst.msk [vmem:[%s261 + $0xb8] sm:$0xff] %vm687, %v678
        %712 = vst.msk [vmem:[%s261 + $0xc0] sm:$0xff] %vm687, %v679
        %713 = vst.msk [vmem:[%s261 + $0xc8] sm:$0xff] %vm687, %v680
        %714 = vst.msk [vmem:[%s261 + $0xd0] sm:$0xff] %vm687, %v681
        %715 = vst.msk [vmem:[%s261 + $0xd8] sm:$0xff] %vm687, %v682
        %716 = vst.msk [vmem:[%s261 + $0xe0] sm:$0xff] %vm687, %v683
        %717 = vst.msk [vmem:[%s261 + $0xe8] sm:$0xff] %vm687, %v684
        %718 = vst.msk [vmem:[%s261 + $0xf0] sm:$0xff] %vm687, %v685
        %719 = vst.msk [vmem:[%s261 + $0xf8] sm:$0xff] %vm687, %v686
        %s720 = sand.u32 %s164, 1
        %s721 = scalar_lea.sflag [#allocation3], %s720
        %s722 = sand.u32 %s164, 1
        %s723 = smul.addr %s722, 256
        %s724 = scalar_lea.vmem [#allocation2], %s723
        // Predicated region
        $region45: #{bottleneck_gelu.11} parent=43 // pred_check
          %p725 = pneg %p174
        $region46: #{bottleneck_gelu.11} parent=43 // pred_check_branch
          %727 = sbr.rel (%p725) target = $region48
        $region47: #{bottleneck_gelu.11} parent=43 // pred_region
          %s728 = smul.u32 32, %s20
          %s730 = ssub.s32 4096, 4096
          %731 = vsyncadd %s721, %s730
          %s732 = smul.addr %s728, 128
          %s733 = scalar_lea.hbm %s6, %s732
          %s734 = sshll.u32 %s724, 4
          %s735 = int_to_ptr.vmem [resolvable:$true] %s734
          %740 = dma.vmem_to_hbm [thread:$0]  %s735, 4096, %s733, %s721, 128, 128, 8
        $region48: #{bottleneck_gelu.11} parent=43 // pred_fallthru
          _
      $region44: #{bottleneck_gelu.11} parent=5 // pred_fallthru
        _
      %p741 = scmp.le.s32.totalorder 2, %s15
      // Predicated region
      $region49: #{bottleneck_gelu.11} parent=5 // pred_check
        %p742 = pneg %p741
      $region50: #{bottleneck_gelu.11} parent=5 // pred_check_branch
        %744 = sbr.rel (%p742) target = $region52
      $region51: #{bottleneck_gelu.11} parent=5 // pred_region
        %s745 = ssub.s32 %s15, 2
        // Predicated region
        $region53: #{bottleneck_gelu.11} parent=51 // pred_check
          %p746 = pneg %p180
        $region54: #{bottleneck_gelu.11} parent=51 // pred_check_branch
          %748 = sbr.rel (%p746) target = $region56
        $region55: #{bottleneck_gelu.11} parent=51 // pred_region
          %s749 = sand.u32 %s165, 1
          %s750 = scalar_lea.sflag [#allocation3], %s749
          %s751 = sand.u32 %s165, 1
          %s752 = smul.addr %s751, 256
          %s753 = scalar_lea.vmem [#allocation2], %s752
          %754 = dma.done %s750, 4096
        $region56: #{bottleneck_gelu.11} parent=51 // pred_fallthru
          _
      $region52: #{bottleneck_gelu.11} parent=5 // pred_fallthru
        _
    $region6: #{bottleneck_gelu.11} parent=1 // loop_footer
      %s19 = sadd.s32 1, %s15
    $region7: #{bottleneck_gelu.11} parent=1 // loop_footer_branch
      %14 = sbr.rel target = $region3
    $region8: #{bottleneck_gelu.11} parent=1 // loop_exit
      _
    %755 = vsyncpa [#allocation3], 1
    %s756 = scalar_lea.sflag [#allocation3], 1
    %757 = vsyncpa %s756, 1

</llo_original>
